<compile_context>
chip_gen: v6e
topology: v6e:2x2x1
jax: 0.10.0
libtpu: 0.0.40
codegen_flags: <defaults>
</compile_context>

<pallas_src>
import math
import functools
import numpy as np
import jax
import jax.numpy as jnp
from jax.experimental import pallas as pl
from jax.experimental.pallas import tpu as pltpu

# -------------------------------------------------------------------------
# Module constants (mirroring CNN.__init__)
# -------------------------------------------------------------------------
N_SAMPLES = 10000                       # self.N
K_CH = 2                                # self.K (K==2 branch of forward)
SOURCE_EXP, AMBIENT_EXP = 9, 6
P_SOURCE = 10.0 ** SOURCE_EXP
P_AMBIENT = 10.0 ** AMBIENT_EXP
T_INT = 0.1
READ_NOISE = 20.0
D_MAX = 10000.0
SPEED_OF_LIGHT = 299792458.0 * 1000.0
F_MAX = SPEED_OF_LIGHT / (2.0 * D_MAX)
TAU_MIN = 1.0 / F_MAX
DT = TAU_MIN / float(N_SAMPLES)
TAU = 1.0 / F_MAX
MEAN_BETA = 1e-4
GAMMA = 1.0 / (MEAN_BETA * T_INT * (P_AMBIENT + P_SOURCE))
BN_EPS = 1e-5


# -------------------------------------------------------------------------
# Generation-aware VMEM budget (v7x: 64 MiB, v5e/v6e: 128 MiB)
# -------------------------------------------------------------------------
def _query_vmem_capacity():
    try:
        info = pltpu.get_tpu_info()
        cap = getattr(info, "vmem_capacity_bytes", None)
        if cap:
            return int(cap)
    except Exception:
        pass
    return 64 * 1024 * 1024             # conservative default (v7x per-core)


_VMEM_CAP = _query_vmem_capacity()
_FUSE_MAX_BYTES = max(_VMEM_CAP // 4, 8 * 1024 * 1024)
_VMEM_LIMIT = int(min(_VMEM_CAP * 3 // 4, 96 * 1024 * 1024))


def _cparams(*sems):
    return pltpu.CompilerParams(dimension_semantics=tuple(sems),
                                vmem_limit_bytes=_VMEM_LIMIT)


def _full_specs(*shapes):
    """BlockSpecs that map the whole array into VMEM (single-block kernels)."""
    specs = []
    for s in shapes:
        n = len(s)
        specs.append(pl.BlockSpec(tuple(s), lambda i, _n=n: (0,) * _n))
    return specs


def _pick_tile_m(M):
    """Largest M tile that evenly divides M, else the full M (fallback path)."""
    for t in (512, 256, 128, 64):
        if M % t == 0 and M > t:
            return t
    return M


def _fused_bytes_mm(M, K, N):
    # bf16 A + bf16 W (x2 for pipeline buffers) + bf16 out + f32 working acc.
    return 2 * (M * K * 2 + K * N * 2 + M * N * 2) + M * N * 4


# -------------------------------------------------------------------------
# Pallas kernels
# -------------------------------------------------------------------------
def _bn_cols(acc, inv_rows):
    """Per-column batch-norm (gamma=1, beta=0, biased variance) of an f32 slab."""
    mu = jnp.sum(acc, axis=0, keepdims=True) * inv_rows
    d = acc - mu
    var = jnp.sum(d * d, axis=0, keepdims=True) * inv_rows
    return d * jax.lax.rsqrt(var + BN_EPS)


def _conv_bn_relu_kernel(a_ref, w_ref, b_ref, o_ref, *, inv_rows):
    # Conv (matmul+bias) + BatchNorm (batch stats) + ReLU, one pass, bf16 out.
    acc = jnp.dot(a_ref[...], w_ref[...], preferred_element_type=jnp.float32)
    acc = acc + b_ref[...]
    y = jnp.maximum(_bn_cols(acc, inv_rows), 0.0)
    o_ref[...] = y.astype(o_ref.dtype)


def _bn_convT_relu_kernel(a_ref, m_ref, w_ref, b_ref, o_ref, *, inv_m0):
    # BatchNorm2d (on the *input* of the transposed conv) + sub-pixel
    # ConvTranspose2d matmul + bias + ReLU, one pass.
    # Each patch column of A holds every value of its input channel exactly
    # once (2x2 / stride-1 / pad-1 taps), so per-column sums over A recover
    # the per-channel batch statistics; the mask keeps padded taps at zero.
    a = a_ref[...].astype(jnp.float32)
    mask = m_ref[...]
    mu = jnp.sum(a, axis=0, keepdims=True) * inv_m0
    d = a - mask * mu                      # padded entries stay exactly 0
    var = jnp.sum(d * d, axis=0, keepdims=True) * inv_m0
    a_n = d * jax.lax.rsqrt(var + BN_EPS)
    acc = jnp.dot(a_n.astype(jnp.bfloat16), w_ref[...],
                  preferred_element_type=jnp.float32)
    acc = acc + b_ref[...]
    o_ref[...] = jnp.maximum(acc, 0.0).astype(o_ref.dtype)


def _tail_kernel(bv_ref, xd_ref, w1_ref, b1_ref, w2_ref, b2_ref,
                 wcd_ref, wcs_ref, bc_ref, o_ref, *, inv_rows):
    # skip1 conv + BN + ReLU -> skip2 conv + BN + ReLU -> combine(concat) conv,
    # all resident in VMEM.  The concat is folded into a split comb weight.
    h = jnp.dot(bv_ref[...], w1_ref[...], preferred_element_type=jnp.float32)
    h = jnp.maximum(_bn_cols(h + b1_ref[...], inv_rows), 0.0)
    h = jnp.dot(h.astype(jnp.bfloat16), w2_ref[...],
                preferred_element_type=jnp.float32)
    h = jnp.maximum(_bn_cols(h + b2_ref[...], inv_rows), 0.0)
    out = (jnp.dot(xd_ref[...], wcd_ref[...], preferred_element_type=jnp.float32)
           + jnp.dot(h.astype(jnp.bfloat16), wcs_ref[...],
                     preferred_element_type=jnp.float32)
           + bc_ref[...])
    o_ref[...] = out


def _mm_bias_kernel(a_ref, w_ref, b_ref, o_ref, *, relu):
    acc = jnp.dot(a_ref[...], w_ref[...], preferred_element_type=jnp.float32)
    acc = acc + b_ref[...]
    if relu:
        acc = jnp.maximum(acc, 0.0)
    o_ref[...] = acc.astype(o_ref.dtype)


def _mm_bias_stats_kernel(a_ref, w_ref, b_ref, y_ref, s_ref, ss_ref):
    # Tiled fallback, pass 1: matmul + bias, emit bf16 tile plus per-tile
    # sum / sum-of-squares (so BN needs no extra f32 HBM round trip).
    acc = jnp.dot(a_ref[...], w_ref[...], preferred_element_type=jnp.float32)
    acc = acc + b_ref[...]
    y_ref[...] = acc.astype(y_ref.dtype)
    s_ref[...] = jnp.sum(acc, axis=0, keepdims=True)
    ss_ref[...] = jnp.sum(acc * acc, axis=0, keepdims=True)


def _bn_apply_kernel(y_ref, s_ref, ss_ref, o_ref, *, relu, inv_rows):
    # Tiled fallback, pass 2: reduce the per-tile stats and normalize the tile.
    mu = jnp.sum(s_ref[...], axis=0, keepdims=True) * inv_rows
    ms = jnp.sum(ss_ref[...], axis=0, keepdims=True) * inv_rows
    var = ms - mu * mu
    y = (y_ref[...].astype(jnp.float32) - mu) * jax.lax.rsqrt(var + BN_EPS)
    if relu:
        y = jnp.maximum(y, 0.0)
    o_ref[...] = y.astype(o_ref.dtype)


# -------------------------------------------------------------------------
# Pallas wrappers
# -------------------------------------------------------------------------
def pallas_matmul_bias(a, w, bias2, relu, out_dtype):
    """(M,K)@(K,N) + bias (optional ReLU), M tiled with a parallel grid."""
    M, K = a.shape
    N = w.shape[1]
    tm = _pick_tile_m(M)
    return pl.pallas_call(
        functools.partial(_mm_bias_kernel, relu=relu),
        out_shape=jax.ShapeDtypeStruct((M, N), out_dtype),
        grid=(M // tm,),
        in_specs=[pl.BlockSpec((tm, K), lambda i: (i, 0)),
                  pl.BlockSpec((K, N), lambda i: (0, 0)),
                  pl.BlockSpec((1, N), lambda i: (0, 0))],
        out_specs=pl.BlockSpec((tm, N), lambda i: (i, 0)),
        compiler_params=_cparams("parallel"),
    )(a.astype(jnp.bfloat16), w.astype(jnp.bfloat16), bias2)


def _mm_bn_relu_tiled(A, w, bias2, out_dtype):
    """Two-pass fallback for slabs that do not fit the single-block budget."""
    M, K = A.shape
    N = w.shape[1]
    tm = _pick_tile_m(M)
    T = M // tm
    y, s, ss = pl.pallas_call(
        _mm_bias_stats_kernel,
        out_shape=(jax.ShapeDtypeStruct((M, N), jnp.bfloat16),
                   jax.ShapeDtypeStruct((T, N), jnp.float32),
                   jax.ShapeDtypeStruct((T, N), jnp.float32)),
        grid=(T,),
        in_specs=[pl.BlockSpec((tm, K), lambda i: (i, 0)),
                  pl.BlockSpec((K, N), lambda i: (0, 0)),
                  pl.BlockSpec((1, N), lambda i: (0, 0))],
        out_specs=(pl.BlockSpec((tm, N), lambda i: (i, 0)),
                   pl.BlockSpec((1, N), lambda i: (i, 0)),
                   pl.BlockSpec((1, N), lambda i: (i, 0))),
        compiler_params=_cparams("parallel"),
    )(A, w, bias2)
    return pl.pallas_call(
        functools.partial(_bn_apply_kernel, relu=True, inv_rows=1.0 / M),
        out_shape=jax.ShapeDtypeStruct((M, N), out_dtype),
        grid=(T,),
        in_specs=[pl.BlockSpec((tm, N), lambda i: (i, 0)),
                  pl.BlockSpec((T, N), lambda i: (0, 0)),
                  pl.BlockSpec((T, N), lambda i: (0, 0))],
        out_specs=pl.BlockSpec((tm, N), lambda i: (i, 0)),
        compiler_params=_cparams("parallel"),
    )(y, s, ss)


def _mm_bn_relu(A, w, bias2, out_dtype=jnp.bfloat16):
    """Conv (matmul+bias) + BatchNorm(batch stats) + ReLU on a (M,K) slab."""
    M, K = A.shape
    N = w.shape[1]
    A = A.astype(jnp.bfloat16)
    w = w.astype(jnp.bfloat16)
    if _fused_bytes_mm(M, K, N) <= _FUSE_MAX_BYTES:
        args = (A, w, bias2)
        return pl.pallas_call(
            functools.partial(_conv_bn_relu_kernel, inv_rows=1.0 / M),
            out_shape=jax.ShapeDtypeStruct((M, N), out_dtype),
            grid=(1,),
            in_specs=_full_specs(*(a.shape for a in args)),
            out_specs=_full_specs((M, N))[0],
            compiler_params=_cparams("arbitrary"),
        )(*args)
    return _mm_bn_relu_tiled(A, w, bias2, out_dtype)


# -------------------------------------------------------------------------
# Layer helpers (NHWC, glue in JAX, compute in Pallas)
# -------------------------------------------------------------------------
def _im2col_nhwc(x, kh, kw, stride, pad):
    """x: (B,H,W,C) -> patches (B,Ho,Wo,C*kh*kw) flattened (C, kh, kw)-major."""
    B, H, W, C = x.shape
    if pad > 0:
        x = jnp.pad(x, ((0, 0), (pad, pad), (pad, pad), (0, 0)))
    Ho = (H + 2 * pad - kh) // stride + 1
    Wo = (W + 2 * pad - kw) // stride + 1
    rows = []
    for i in range(kh):
        cols = []
        for j in range(kw):
            cols.append(x[:, i:i + stride * Ho:stride, j:j + stride * Wo:stride, :])
        rows.append(jnp.stack(cols, axis=-1))        # (B,Ho,Wo,C,kw)
    p = jnp.stack(rows, axis=-2)                     # (B,Ho,Wo,C,kh,kw)
    return p.reshape(B, Ho, Wo, C * kh * kw), Ho, Wo


def conv_bn_relu(x, w_mat, bias, kh, kw, stride, pad):
    """Conv2d -> BatchNorm2d(batch stats) -> ReLU.  NHWC bf16 in / bf16 out."""
    B = x.shape[0]
    K, N = w_mat.shape
    patches, Ho, Wo = _im2col_nhwc(x, kh, kw, stride, pad)
    A = patches.reshape(B * Ho * Wo, K)
    bias2 = bias.astype(jnp.float32).reshape(1, N)
    y = _mm_bn_relu(A, w_mat, bias2, jnp.bfloat16)
    return y.reshape(B, Ho, Wo, N)


def bn_convT_relu(x, w_all, bias_all):
    """BatchNorm2d -> ConvTranspose2d(k=4, s=2, p=1) -> ReLU, one fused kernel.

    Sub-pixel decomposition: output phase (r,s) at (2i+r, 2j+s) is a 2x2
    stride-1 conv over the 1-padded normalized input starting at (i+r, j+s);
    the 4 phase sub-kernels are stacked along the output dim so a single
    matmul computes all phases.  The BN normalization happens inside the same
    kernel (statistics recovered from the patch columns, padding masked)."""
    B, H, W, Cin = x.shape
    cout = w_all.shape[1] // 4
    KK, NN = Cin * 4, 4 * cout
    patches, Ho, Wo = _im2col_nhwc(x, 2, 2, 1, 1)             # (B,H+1,W+1,Cin*4)
    A = patches.reshape(B * Ho * Wo, KK)
    # Constant {0,1} mask of which patch entries are real input (vs zero pad).
    mpatches, _, _ = _im2col_nhwc(jnp.ones((B, H, W, Cin), jnp.float32),
                                  2, 2, 1, 1)
    Amask = mpatches.reshape(B * Ho * Wo, KK)
    Mp = A.shape[0]
    M0 = B * H * W
    bias2 = bias_all.astype(jnp.float32).reshape(1, NN)
    w_all = w_all.astype(jnp.bfloat16)

    if (_fused_bytes_mm(Mp, KK, NN) + Mp * KK * 8) <= _FUSE_MAX_BYTES:
        args = (A.astype(jnp.bfloat16), Amask, w_all, bias2)
        R = pl.pallas_call(
            functools.partial(_bn_convT_relu_kernel, inv_m0=1.0 / M0),
            out_shape=jax.ShapeDtypeStruct((Mp, NN), jnp.bfloat16),
            grid=(1,),
            in_specs=_full_specs(*(a.shape for a in args)),
            out_specs=_full_specs((Mp, NN))[0],
            compiler_params=_cparams("arbitrary"),
        )(*args)
    else:
        # TODO(synk): over-budget fallback computes the BN statistics in XLA;
        #             a tiled masked-stats kernel would keep it fully on-chip.
        xs = x.reshape(M0, Cin).astype(jnp.float32)
        mu = jnp.mean(xs, axis=0)
        var = jnp.mean(jnp.square(xs - mu), axis=0)
        xb = ((xs - mu) * jax.lax.rsqrt(var + BN_EPS)).astype(jnp.bfloat16)
        p2, _, _ = _im2col_nhwc(xb.reshape(B, H, W, Cin), 2, 2, 1, 1)
        R = pallas_matmul_bias(p2.reshape(Mp, KK), w_all, bias2,
                               relu=True, out_dtype=jnp.bfloat16)

    R = R.reshape(B, Ho, Wo, 4, cout)
    # Phase de-interleave (bf16, pure layout glue).
    rows = []
    for r in range(2):
        cols = [R[:, r:r + H, s:s + W, 2 * r + s, :] for s in range(2)]
        rows.append(jnp.stack(cols, axis=3))                   # (B,H,W,2,Cout)
    y = jnp.stack(rows, axis=2)                                # (B,H,2,W,2,Cout)
    return y.reshape(B, 2 * H, 2 * W, cout)


def tail_skip_combine(p, bvals_slab, dec_slab):
    """skip1 -> BN -> ReLU -> skip2 -> BN -> ReLU -> concat(dec) -> comb,
    fused into a single pallas_call on (B*H*W, C) slabs."""
    M = bvals_slab.shape[0]
    approx_bytes = M * 64 * 12
    if approx_bytes <= _FUSE_MAX_BYTES:
        args = (bvals_slab.astype(jnp.bfloat16), dec_slab.astype(jnp.bfloat16),
                p["skip1_w"], p["skip1_b"].astype(jnp.float32).reshape(1, -1),
                p["skip2_w"], p["skip2_b"].astype(jnp.float32).reshape(1, -1),
                p["comb_w_dec"], p["comb_w_skip"],
                p["comb_b"].astype(jnp.float32).reshape(1, 1))
        return pl.pallas_call(
            functools.partial(_tail_kernel, inv_rows=1.0 / M),
            out_shape=jax.ShapeDtypeStruct((M, 1), jnp.float32),
            grid=(1,),
            in_specs=_full_specs(*(a.shape for a in args)),
            out_specs=_full_specs((M, 1))[0],
            compiler_params=_cparams("arbitrary"),
        )(*args)
    # Fallback for very large slabs: tiled kernels per stage.
    h = _mm_bn_relu(bvals_slab, p["skip1_w"],
                    p["skip1_b"].astype(jnp.float32).reshape(1, -1))
    h = _mm_bn_relu(h, p["skip2_w"],
                    p["skip2_b"].astype(jnp.float32).reshape(1, -1))
    cat = jnp.concatenate([dec_slab.astype(jnp.bfloat16), h], axis=-1)
    w_cat = jnp.concatenate([p["comb_w_dec"], p["comb_w_skip"]], axis=0)
    return pallas_matmul_bias(cat, w_cat,
                              p["comb_b"].astype(jnp.float32).reshape(1, 1),
                              relu=False, out_dtype=jnp.float32)


# -------------------------------------------------------------------------
# Parameters (deterministic init, PyTorch-default uniform bounds) + packing
# -------------------------------------------------------------------------
def init_params(key, k_ch):
    def conv_init(k, shape):                 # (Cout, Cin, kh, kw)
        fan_in = shape[1] * shape[2] * shape[3]
        bound = 1.0 / math.sqrt(fan_in)
        k1, k2 = jax.random.split(k)
        w = jax.random.uniform(k1, shape, jnp.float32, -bound, bound)
        b = jax.random.uniform(k2, (shape[0],), jnp.float32, -bound, bound)
        return w, b

    def convT_init(k, shape):                # (Cin, Cout, kh, kw)
        fan_in = shape[1] * shape[2] * shape[3]
        bound = 1.0 / math.sqrt(fan_in)
        k1, k2 = jax.random.split(k)
        w = jax.random.uniform(k1, shape, jnp.float32, -bound, bound)
        b = jax.random.uniform(k2, (shape[1],), jnp.float32, -bound, bound)
        return w, b

    ks = jax.random.split(key, 10)
    raw = {}
    raw["down1"] = conv_init(ks[0], (32, k_ch, 4, 4))
    raw["down2"] = conv_init(ks[1], (64, 32, 4, 4))
    raw["down3"] = conv_init(ks[2], (128, 64, 4, 4))
    raw["same1"] = conv_init(ks[3], (128, 128, 3, 3))
    raw["up1"] = convT_init(ks[4], (128, 64, 4, 4))
    raw["up2"] = convT_init(ks[5], (64, 32, 4, 4))
    raw["up3"] = convT_init(ks[6], (32, 8, 4, 4))
    raw["skip1"] = conv_init(ks[7], (8, k_ch, 1, 1))
    raw["skip2"] = conv_init(ks[8], (16, 8, 1, 1))
    raw["comb"] = conv_init(ks[9], (1, 24, 1, 1))
    return raw


def _pack_conv(w, b):
    """(Cout,Cin,kh,kw) -> im2col weight (Cin*kh*kw, Cout) in bf16, once."""
    cout = w.shape[0]
    return w.reshape(cout, -1).T.astype(jnp.bfloat16), b.astype(jnp.float32)


def _pack_convT(w, b):
    """ConvTranspose2d(k=4,s=2,p=1) weights -> (Cin*4, 4*Cout) sub-pixel form.

    For phase (r,s) and 2x2 patch offsets (a,bb) of the 1-padded input, the
    tap weight is w[cin, cout, 3-r-2a, 3-s-2bb]."""
    cin, cout = w.shape[0], w.shape[1]
    phase_cols = []
    for r in range(2):
        for s in range(2):
            rows = []
            for a in range(2):
                cols = []
                for bb in range(2):
                    cols.append(w[:, :, 3 - r - 2 * a, 3 - s - 2 * bb])  # (Cin,Cout)
                rows.append(jnp.stack(cols, axis=1))   # (Cin, 2, Cout)
            sub = jnp.stack(rows, axis=1)              # (Cin, 2, 2, Cout)
            phase_cols.append(sub.reshape(cin * 4, cout))
    w_all = jnp.concatenate(phase_cols, axis=1).astype(jnp.bfloat16)  # (Cin*4, 4*Cout)
    bias_all = jnp.tile(b.astype(jnp.float32), 4)                     # (4*Cout,)
    return w_all, bias_all


def pack_params(raw):
    p = {}
    for name in ("down1", "down2", "down3", "same1", "skip1", "skip2"):
        p[name + "_w"], p[name + "_b"] = _pack_conv(*raw[name])
    for name in ("up1", "up2", "up3"):
        p[name + "_w"], p[name + "_b"] = _pack_convT(*raw[name])
    wc, bc = _pack_conv(*raw["comb"])                 # (24, 1), (1,)
    p["comb_w_dec"] = wc[:8, :]                       # decoder channels (cat order)
    p["comb_w_skip"] = wc[8:, :]                      # skip channels
    p["comb_b"] = bc
    return p


# -------------------------------------------------------------------------
# Time-of-flight coding-function preamble
# TODO(synk): CodingFunctions.GetHamK3 and Utils.{ScaleMod, GetCorrelationFunctions,
#             ComputeBrightnessVals, GetClippedBSamples} are external to the module;
#             reimplemented in plain JAX following the public ToF coding repo.
# -------------------------------------------------------------------------
def get_ham_k3(N):
    ModFs = np.zeros((N, 3), np.float32)
    ModFs[: N // 6, :] = 6.0
    DemodFs = np.zeros((N, 3), np.float32)
    DemodFs[0:int(0.5 * N), 0] = 1.0
    DemodFs[int(0.3334 * N):int(0.8334 * N), 1] = 1.0
    DemodFs[0:int(0.1667 * N), 2] = 1.0
    DemodFs[int(0.3333 * N):int(0.5 * N), 2] = 1.0
    DemodFs[int(0.6667 * N):int(0.8333 * N), 2] = 1.0
    return ModFs, DemodFs


def scale_mod(ModFs, tau, pAveSource, dt):
    e_total = tau * pAveSource
    col_energy = jnp.sum(ModFs, axis=0) * dt
    return ModFs * (e_total / col_energy)[None, :]


def get_correlation_functions(ModFs, DemodFs, dt):
    # circular correlation: Corr[j,k] = dt * sum_n ModFs[(n-j)%N, k] * DemodFs[n, k]
    F = jnp.fft.fft(ModFs, axis=0)
    G = jnp.fft.fft(DemodFs, axis=0)
    corr = jnp.fft.ifft(jnp.conj(F) * G, axis=0).real
    return corr.astype(jnp.float32) * dt


# -------------------------------------------------------------------------
# Forward pass (mirrors CNN.forward with architecture='sequential')
# -------------------------------------------------------------------------
def cnn_network(p, bvals_nhwc):
    B, H, W, Kc = bvals_nhwc.shape
    x = bvals_nhwc.astype(jnp.bfloat16)
    d = conv_bn_relu(x, p["down1_w"], p["down1_b"], 4, 4, 2, 1)
    d = conv_bn_relu(d, p["down2_w"], p["down2_b"], 4, 4, 2, 1)
    d = conv_bn_relu(d, p["down3_w"], p["down3_b"], 4, 4, 2, 1)
    d = conv_bn_relu(d, p["same1_w"], p["same1_b"], 3, 3, 1, 1)
    d = bn_convT_relu(d, p["up1_w"], p["up1_b"])
    d = bn_convT_relu(d, p["up2_w"], p["up2_b"])
    d = bn_convT_relu(d, p["up3_w"], p["up3_b"])
    out = tail_skip_combine(p, x.reshape(B * H * W, Kc),
                            d.reshape(B * H * W, d.shape[-1]))
    return out.reshape(B, H, W, 1)


def cnn_forward(params, mod_fs_1d, demod_fs, gt_depths, noise_key):
    # --- ToF preamble (JAX glue) ---
    ModFs = mod_fs_1d[:, None]
    if K_CH == 2:
        ModFs = jnp.concatenate([ModFs, ModFs], axis=1)
    ModFs_scaled = scale_mod(ModFs, TAU_MIN, P_SOURCE, DT)
    CorrFs = get_correlation_functions(ModFs_scaled, demod_fs, DT)
    # (NormCorrFs of the reference is dead code in forward -- dropped.)

    kappas = jnp.sum(demod_fs, axis=0) * DT                               # (K,)
    BVals_all = GAMMA * MEAN_BETA * T_INT * (CorrFs + P_AMBIENT * kappas)  # (N,K)
    idx = jnp.clip(jnp.round(gt_depths).astype(jnp.int32), 0, N_SAMPLES - 1)
    BVals = BVals_all[idx]                                                # (B,H,W,K)

    noiseVar = BVals * GAMMA + (READ_NOISE * GAMMA) ** 2
    noise = jax.random.normal(noise_key, BVals.shape, jnp.float32)
    BVals = jnp.maximum(BVals + jnp.sqrt(noiseVar) * noise, 0.0)          # clipped

    BVals = (BVals - jnp.mean(BVals)) / jnp.std(BVals, ddof=1)
    # Stays NHWC -- the slab kernels consume (B*H*W, C) directly, no permute.

    out = cnn_network(params, BVals)                                      # (B,H,W,1)
    return out[..., 0]


# -------------------------------------------------------------------------
if __name__ == "__main__":
    ModFs_np, DemodFs_np = get_ham_k3(N_SAMPLES)
    mod_fs_1d = jnp.asarray(ModFs_np[:, 0])          # self.ModFs
    demod_fs = jnp.asarray(DemodFs_np[:, :K_CH])     # self.DemodFs

    key = jax.random.PRNGKey(0)
    k_depth, k_noise, k_param = jax.random.split(key, 3)

    B, H, W = 2, 16, 16
    gt_depths = jax.random.randint(k_depth, (B, H, W), 0, N_SAMPLES).astype(jnp.float32)
    params = pack_params(init_params(k_param, K_CH))

    fwd = jax.jit(cnn_forward)
    out = fwd(params, mod_fs_1d, demod_fs, gt_depths, k_noise)
    out = jax.block_until_ready(out)
    assert out.shape == (B, H, W), out.shape
    assert bool(jnp.all(jnp.isfinite(out)))
    print("KERNEL_OK")
</pallas_src>

<mosaic_0001>
module attributes {stable_mosaic.version = 11 : i64} {
  func.func @_conv_bn_relu_kernel(%arg0: i32, %arg1: memref<128x32xbf16, #tpu.memory_space<vmem>>, %arg2: memref<32x32xbf16, #tpu.memory_space<vmem>>, %arg3: memref<1x32xf32, #tpu.memory_space<vmem>>, %arg4: memref<128x32xbf16, #tpu.memory_space<vmem>>) attributes {dimension_semantics = [#tpu.dimension_semantics<arbitrary>], iteration_bounds = array<i64: 1>, scalar_prefetch = 0 : i64, scratch_operands = 0 : i64, tpu.core_type = #tpu.core_type<tc>, window_params = [{pipeline_mode = #tpu.pipeline_mode<synchronous>, transform_indices = @transform_0, window_bounds = array<i64: 128, 32>}, {pipeline_mode = #tpu.pipeline_mode<synchronous>, transform_indices = @transform_1, window_bounds = array<i64: 32, 32>}, {pipeline_mode = #tpu.pipeline_mode<synchronous>, transform_indices = @transform_2, window_bounds = array<i64: 1, 32>}, {pipeline_mode = #tpu.pipeline_mode<synchronous>, transform_indices = @transform_3, window_bounds = array<i64: 128, 32>}]} {
    %c0 = arith.constant 0 : index
    %c0_0 = arith.constant 0 : index
    %0 = vector.load %arg1[%c0, %c0_0] : memref<128x32xbf16, #tpu.memory_space<vmem>>, vector<128x32xbf16>
    %c0_1 = arith.constant 0 : index
    %c0_2 = arith.constant 0 : index
    %1 = vector.load %arg2[%c0_1, %c0_2] : memref<32x32xbf16, #tpu.memory_space<vmem>>, vector<32x32xbf16>
    %cst = arith.constant dense<0.000000e+00> : vector<128x32xf32>
    %2 = tpu.matmul %0, %1, %cst {dimension_numbers = #tpu.dot_dimension_numbers<[1], [0], [0], [1], [0, 0, 1, 1], [], []>} : vector<128x32xbf16>, vector<32x32xbf16>, vector<128x32xf32> -> vector<128x32xf32>
    %c0_3 = arith.constant 0 : index
    %c0_4 = arith.constant 0 : index
    %3 = vector.load %arg3[%c0_3, %c0_4] : memref<1x32xf32, #tpu.memory_space<vmem>>, vector<1x32xf32>
    %4 = vector.broadcast %3 : vector<1x32xf32> to vector<128x32xf32>
    %5 = arith.addf %2, %4 : vector<128x32xf32>
    %cst_5 = arith.constant dense<0.000000e+00> : vector<32xf32>
    %6 = vector.multi_reduction <add>, %5, %cst_5 [0] : vector<128x32xf32> to vector<32xf32>
    %7 = vector.shape_cast %6 : vector<32xf32> to vector<1x32xf32>
    %cst_6 = arith.constant 7.812500e-03 : f32
    %8 = vector.broadcast %cst_6 : f32 to vector<1x32xf32>
    %9 = arith.mulf %7, %8 : vector<1x32xf32>
    %10 = vector.broadcast %9 : vector<1x32xf32> to vector<128x32xf32>
    %11 = arith.subf %5, %10 : vector<128x32xf32>
    %12 = arith.mulf %11, %11 : vector<128x32xf32>
    %cst_7 = arith.constant dense<0.000000e+00> : vector<32xf32>
    %13 = vector.multi_reduction <add>, %12, %cst_7 [0] : vector<128x32xf32> to vector<32xf32>
    %14 = vector.shape_cast %13 : vector<32xf32> to vector<1x32xf32>
    %cst_8 = arith.constant 7.812500e-03 : f32
    %15 = vector.broadcast %cst_8 : f32 to vector<1x32xf32>
    %16 = arith.mulf %14, %15 : vector<1x32xf32>
    %cst_9 = arith.constant 9.99999974E-6 : f32
    %17 = vector.broadcast %cst_9 : f32 to vector<1x32xf32>
    %18 = arith.addf %16, %17 : vector<1x32xf32>
    %19 = math.rsqrt %18 : vector<1x32xf32>
    %20 = vector.broadcast %19 : vector<1x32xf32> to vector<128x32xf32>
    %21 = arith.mulf %11, %20 : vector<128x32xf32>
    %cst_10 = arith.constant 0.000000e+00 : f32
    %22 = vector.broadcast %cst_10 : f32 to vector<128x32xf32>
    %23 = arith.maximumf %21, %22 : vector<128x32xf32>
    %24 = arith.truncf %23 : vector<128x32xf32> to vector<128x32xbf16>
    %c0_11 = arith.constant 0 : index
    %c0_12 = arith.constant 0 : index
    %25 = vector.load %arg4[%c0_11, %c0_12] : memref<128x32xbf16, #tpu.memory_space<vmem>>, vector<128x32xbf16>
    tpu.vector_store %arg4[%c0_11, %c0_12], %24 {strides = array<i32>} : memref<128x32xbf16, #tpu.memory_space<vmem>>, vector<128x32xbf16>,
    return
  }
  func.func @transform_0(%arg0: i32) -> (i32, i32) {
    %c0_i32 = arith.constant 0 : i32
    %c0_i32_0 = arith.constant 0 : i32
    %c0_i32_1 = arith.constant 0 : i32
    return %c0_i32, %c0_i32_0 : i32, i32
  }
  func.func @transform_1(%arg0: i32) -> (i32, i32) {
    %c0_i32 = arith.constant 0 : i32
    %c0_i32_0 = arith.constant 0 : i32
    %c0_i32_1 = arith.constant 0 : i32
    return %c0_i32, %c0_i32_0 : i32, i32
  }
  func.func @transform_2(%arg0: i32) -> (i32, i32) {
    %c0_i32 = arith.constant 0 : i32
    %c0_i32_0 = arith.constant 0 : i32
    %c0_i32_1 = arith.constant 0 : i32
    return %c0_i32, %c0_i32_0 : i32, i32
  }
  func.func @transform_3(%arg0: i32) -> (i32, i32) {
    %c0_i32 = arith.constant 0 : i32
    %c0_i32_0 = arith.constant 0 : i32
    %c0_i32_1 = arith.constant 0 : i32
    return %c0_i32, %c0_i32_0 : i32, i32
  }
}

module attributes {stable_mosaic.version = 11 : i64} {
  func.func @_conv_bn_relu_kernel(%arg0: i32, %arg1: memref<32x512xbf16, #tpu.memory_space<vmem>>, %arg2: memref<512x64xbf16, #tpu.memory_space<vmem>>, %arg3: memref<1x64xf32, #tpu.memory_space<vmem>>, %arg4: memref<32x64xbf16, #tpu.memory_space<vmem>>) attributes {dimension_semantics = [#tpu.dimension_semantics<arbitrary>], iteration_bounds = array<i64: 1>, scalar_prefetch = 0 : i64, scratch_operands = 0 : i64, tpu.core_type = #tpu.core_type<tc>, window_params = [{pipeline_mode = #tpu.pipeline_mode<synchronous>, transform_indices = @transform_0, window_bounds = array<i64: 32, 512>}, {pipeline_mode = #tpu.pipeline_mode<synchronous>, transform_indices = @transform_1, window_bounds = array<i64: 512, 64>}, {pipeline_mode = #tpu.pipeline_mode<synchronous>, transform_indices = @transform_2, window_bounds = array<i64: 1, 64>}, {pipeline_mode = #tpu.pipeline_mode<synchronous>, transform_indices = @transform_3, window_bounds = array<i64: 32, 64>}]} {
    %c0 = arith.constant 0 : index
    %c0_0 = arith.constant 0 : index
    %0 = vector.load %arg1[%c0, %c0_0] : memref<32x512xbf16, #tpu.memory_space<vmem>>, vector<32x512xbf16>
    %c0_1 = arith.constant 0 : index
    %c0_2 = arith.constant 0 : index
    %1 = vector.load %arg2[%c0_1, %c0_2] : memref<512x64xbf16, #tpu.memory_space<vmem>>, vector<512x64xbf16>
    %cst = arith.constant dense<0.000000e+00> : vector<32x64xf32>
    %2 = tpu.matmul %0, %1, %cst {dimension_numbers = #tpu.dot_dimension_numbers<[1], [0], [0], [1], [0, 0, 1, 1], [], []>} : vector<32x512xbf16>, vector<512x64xbf16>, vector<32x64xf32> -> vector<32x64xf32>
    %c0_3 = arith.constant 0 : index
    %c0_4 = arith.constant 0 : index
    %3 = vector.load %arg3[%c0_3, %c0_4] : memref<1x64xf32, #tpu.memory_space<vmem>>, vector<1x64xf32>
    %4 = vector.broadcast %3 : vector<1x64xf32> to vector<32x64xf32>
    %5 = arith.addf %2, %4 : vector<32x64xf32>
    %cst_5 = arith.constant dense<0.000000e+00> : vector<64xf32>
    %6 = vector.multi_reduction <add>, %5, %cst_5 [0] : vector<32x64xf32> to vector<64xf32>
    %7 = vector.shape_cast %6 : vector<64xf32> to vector<1x64xf32>
    %cst_6 = arith.constant 3.125000e-02 : f32
    %8 = vector.broadcast %cst_6 : f32 to vector<1x64xf32>
    %9 = arith.mulf %7, %8 : vector<1x64xf32>
    %10 = vector.broadcast %9 : vector<1x64xf32> to vector<32x64xf32>
    %11 = arith.subf %5, %10 : vector<32x64xf32>
    %12 = arith.mulf %11, %11 : vector<32x64xf32>
    %cst_7 = arith.constant dense<0.000000e+00> : vector<64xf32>
    %13 = vector.multi_reduction <add>, %12, %cst_7 [0] : vector<32x64xf32> to vector<64xf32>
    %14 = vector.shape_cast %13 : vector<64xf32> to vector<1x64xf32>
    %cst_8 = arith.constant 3.125000e-02 : f32
    %15 = vector.broadcast %cst_8 : f32 to vector<1x64xf32>
    %16 = arith.mulf %14, %15 : vector<1x64xf32>
    %cst_9 = arith.constant 9.99999974E-6 : f32
    %17 = vector.broadcast %cst_9 : f32 to vector<1x64xf32>
    %18 = arith.addf %16, %17 : vector<1x64xf32>
    %19 = math.rsqrt %18 : vector<1x64xf32>
    %20 = vector.broadcast %19 : vector<1x64xf32> to vector<32x64xf32>
    %21 = arith.mulf %11, %20 : vector<32x64xf32>
    %cst_10 = arith.constant 0.000000e+00 : f32
    %22 = vector.broadcast %cst_10 : f32 to vector<32x64xf32>
    %23 = arith.maximumf %21, %22 : vector<32x64xf32>
    %24 = arith.truncf %23 : vector<32x64xf32> to vector<32x64xbf16>
    %c0_11 = arith.constant 0 : index
    %c0_12 = arith.constant 0 : index
    %25 = vector.load %arg4[%c0_11, %c0_12] : memref<32x64xbf16, #tpu.memory_space<vmem>>, vector<32x64xbf16>
    tpu.vector_store %arg4[%c0_11, %c0_12], %24 {strides = array<i32>} : memref<32x64xbf16, #tpu.memory_space<vmem>>, vector<32x64xbf16>,
    return
  }
  func.func @transform_0(%arg0: i32) -> (i32, i32) {
    %c0_i32 = arith.constant 0 : i32
    %c0_i32_0 = arith.constant 0 : i32
    %c0_i32_1 = arith.constant 0 : i32
    return %c0_i32, %c0_i32_0 : i32, i32
  }
  func.func @transform_1(%arg0: i32) -> (i32, i32) {
    %c0_i32 = arith.constant 0 : i32
    %c0_i32_0 = arith.constant 0 : i32
    %c0_i32_1 = arith.constant 0 : i32
    return %c0_i32, %c0_i32_0 : i32, i32
  }
  func.func @transform_2(%arg0: i32) -> (i32, i32) {
    %c0_i32 = arith.constant 0 : i32
    %c0_i32_0 = arith.constant 0 : i32
    %c0_i32_1 = arith.constant 0 : i32
    return %c0_i32, %c0_i32_0 : i32, i32
  }
  func.func @transform_3(%arg0: i32) -> (i32, i32) {
    %c0_i32 = arith.constant 0 : i32
    %c0_i32_0 = arith.constant 0 : i32
    %c0_i32_1 = arith.constant 0 : i32
    return %c0_i32, %c0_i32_0 : i32, i32
  }
}

module attributes {stable_mosaic.version = 11 : i64} {
  func.func @_conv_bn_relu_kernel(%arg0: i32, %arg1: memref<8x1024xbf16, #tpu.memory_space<vmem>>, %arg2: memref<1024x128xbf16, #tpu.memory_space<vmem>>, %arg3: memref<1x128xf32, #tpu.memory_space<vmem>>, %arg4: memref<8x128xbf16, #tpu.memory_space<vmem>>) attributes {dimension_semantics = [#tpu.dimension_semantics<arbitrary>], iteration_bounds = array<i64: 1>, scalar_prefetch = 0 : i64, scratch_operands = 0 : i64, tpu.core_type = #tpu.core_type<tc>, window_params = [{pipeline_mode = #tpu.pipeline_mode<synchronous>, transform_indices = @transform_0, window_bounds = array<i64: 8, 1024>}, {pipeline_mode = #tpu.pipeline_mode<synchronous>, transform_indices = @transform_1, window_bounds = array<i64: 1024, 128>}, {pipeline_mode = #tpu.pipeline_mode<synchronous>, transform_indices = @transform_2, window_bounds = array<i64: 1, 128>}, {pipeline_mode = #tpu.pipeline_mode<synchronous>, transform_indices = @transform_3, window_bounds = array<i64: 8, 128>}]} {
    %c0 = arith.constant 0 : index
    %c0_0 = arith.constant 0 : index
    %0 = vector.load %arg1[%c0, %c0_0] : memref<8x1024xbf16, #tpu.memory_space<vmem>>, vector<8x1024xbf16>
    %c0_1 = arith.constant 0 : index
    %c0_2 = arith.constant 0 : index
    %1 = vector.load %arg2[%c0_1, %c0_2] : memref<1024x128xbf16, #tpu.memory_space<vmem>>, vector<1024x128xbf16>
    %cst = arith.constant dense<0.000000e+00> : vector<8x128xf32>
    %2 = tpu.matmul %0, %1, %cst {dimension_numbers = #tpu.dot_dimension_numbers<[1], [0], [0], [1], [0, 0, 1, 1], [], []>} : vector<8x1024xbf16>, vector<1024x128xbf16>, vector<8x128xf32> -> vector<8x128xf32>
    %c0_3 = arith.constant 0 : index
    %c0_4 = arith.constant 0 : index
    %3 = vector.load %arg3[%c0_3, %c0_4] : memref<1x128xf32, #tpu.memory_space<vmem>>, vector<1x128xf32>
    %4 = vector.broadcast %3 : vector<1x128xf32> to vector<8x128xf32>
    %5 = arith.addf %2, %4 : vector<8x128xf32>
    %cst_5 = arith.constant dense<0.000000e+00> : vector<128xf32>
    %6 = vector.multi_reduction <add>, %5, %cst_5 [0] : vector<8x128xf32> to vector<128xf32>
    %7 = vector.shape_cast %6 : vector<128xf32> to vector<1x128xf32>
    %cst_6 = arith.constant 1.250000e-01 : f32
    %8 = vector.broadcast %cst_6 : f32 to vector<1x128xf32>
    %9 = arith.mulf %7, %8 : vector<1x128xf32>
    %10 = vector.broadcast %9 : vector<1x128xf32> to vector<8x128xf32>
    %11 = arith.subf %5, %10 : vector<8x128xf32>
    %12 = arith.mulf %11, %11 : vector<8x128xf32>
    %cst_7 = arith.constant dense<0.000000e+00> : vector<128xf32>
    %13 = vector.multi_reduction <add>, %12, %cst_7 [0] : vector<8x128xf32> to vector<128xf32>
    %14 = vector.shape_cast %13 : vector<128xf32> to vector<1x128xf32>
    %cst_8 = arith.constant 1.250000e-01 : f32
    %15 = vector.broadcast %cst_8 : f32 to vector<1x128xf32>
    %16 = arith.mulf %14, %15 : vector<1x128xf32>
    %cst_9 = arith.constant 9.99999974E-6 : f32
    %17 = vector.broadcast %cst_9 : f32 to vector<1x128xf32>
    %18 = arith.addf %16, %17 : vector<1x128xf32>
    %19 = math.rsqrt %18 : vector<1x128xf32>
    %20 = vector.broadcast %19 : vector<1x128xf32> to vector<8x128xf32>
    %21 = arith.mulf %11, %20 : vector<8x128xf32>
    %cst_10 = arith.constant 0.000000e+00 : f32
    %22 = vector.broadcast %cst_10 : f32 to vector<8x128xf32>
    %23 = arith.maximumf %21, %22 : vector<8x128xf32>
    %24 = arith.truncf %23 : vector<8x128xf32> to vector<8x128xbf16>
    %c0_11 = arith.constant 0 : index
    %c0_12 = arith.constant 0 : index
    %25 = vector.load %arg4[%c0_11, %c0_12] : memref<8x128xbf16, #tpu.memory_space<vmem>>, vector<8x128xbf16>
    tpu.vector_store %arg4[%c0_11, %c0_12], %24 {strides = array<i32>} : memref<8x128xbf16, #tpu.memory_space<vmem>>, vector<8x128xbf16>,
    return
  }
  func.func @transform_0(%arg0: i32) -> (i32, i32) {
    %c0_i32 = arith.constant 0 : i32
    %c0_i32_0 = arith.constant 0 : i32
    %c0_i32_1 = arith.constant 0 : i32
    return %c0_i32, %c0_i32_0 : i32, i32
  }
  func.func @transform_1(%arg0: i32) -> (i32, i32) {
    %c0_i32 = arith.constant 0 : i32
    %c0_i32_0 = arith.constant 0 : i32
    %c0_i32_1 = arith.constant 0 : i32
    return %c0_i32, %c0_i32_0 : i32, i32
  }
  func.func @transform_2(%arg0: i32) -> (i32, i32) {
    %c0_i32 = arith.constant 0 : i32
    %c0_i32_0 = arith.constant 0 : i32
    %c0_i32_1 = arith.constant 0 : i32
    return %c0_i32, %c0_i32_0 : i32, i32
  }
  func.func @transform_3(%arg0: i32) -> (i32, i32) {
    %c0_i32 = arith.constant 0 : i32
    %c0_i32_0 = arith.constant 0 : i32
    %c0_i32_1 = arith.constant 0 : i32
    return %c0_i32, %c0_i32_0 : i32, i32
  }
}

module attributes {stable_mosaic.version = 11 : i64} {
  func.func @_conv_bn_relu_kernel(%arg0: i32, %arg1: memref<8x1152xbf16, #tpu.memory_space<vmem>>, %arg2: memref<1152x128xbf16, #tpu.memory_space<vmem>>, %arg3: memref<1x128xf32, #tpu.memory_space<vmem>>, %arg4: memref<8x128xbf16, #tpu.memory_space<vmem>>) attributes {dimension_semantics = [#tpu.dimension_semantics<arbitrary>], iteration_bounds = array<i64: 1>, scalar_prefetch = 0 : i64, scratch_operands = 0 : i64, tpu.core_type = #tpu.core_type<tc>, window_params = [{pipeline_mode = #tpu.pipeline_mode<synchronous>, transform_indices = @transform_0, window_bounds = array<i64: 8, 1152>}, {pipeline_mode = #tpu.pipeline_mode<synchronous>, transform_indices = @transform_1, window_bounds = array<i64: 1152, 128>}, {pipeline_mode = #tpu.pipeline_mode<synchronous>, transform_indices = @transform_2, window_bounds = array<i64: 1, 128>}, {pipeline_mode = #tpu.pipeline_mode<synchronous>, transform_indices = @transform_3, window_bounds = array<i64: 8, 128>}]} {
    %c0 = arith.constant 0 : index
    %c0_0 = arith.constant 0 : index
    %0 = vector.load %arg1[%c0, %c0_0] : memref<8x1152xbf16, #tpu.memory_space<vmem>>, vector<8x1152xbf16>
    %c0_1 = arith.constant 0 : index
    %c0_2 = arith.constant 0 : index
    %1 = vector.load %arg2[%c0_1, %c0_2] : memref<1152x128xbf16, #tpu.memory_space<vmem>>, vector<1152x128xbf16>
    %cst = arith.constant dense<0.000000e+00> : vector<8x128xf32>
    %2 = tpu.matmul %0, %1, %cst {dimension_numbers = #tpu.dot_dimension_numbers<[1], [0], [0], [1], [0, 0, 1, 1], [], []>} : vector<8x1152xbf16>, vector<1152x128xbf16>, vector<8x128xf32> -> vector<8x128xf32>
    %c0_3 = arith.constant 0 : index
    %c0_4 = arith.constant 0 : index
    %3 = vector.load %arg3[%c0_3, %c0_4] : memref<1x128xf32, #tpu.memory_space<vmem>>, vector<1x128xf32>
    %4 = vector.broadcast %3 : vector<1x128xf32> to vector<8x128xf32>
    %5 = arith.addf %2, %4 : vector<8x128xf32>
    %cst_5 = arith.constant dense<0.000000e+00> : vector<128xf32>
    %6 = vector.multi_reduction <add>, %5, %cst_5 [0] : vector<8x128xf32> to vector<128xf32>
    %7 = vector.shape_cast %6 : vector<128xf32> to vector<1x128xf32>
    %cst_6 = arith.constant 1.250000e-01 : f32
    %8 = vector.broadcast %cst_6 : f32 to vector<1x128xf32>
    %9 = arith.mulf %7, %8 : vector<1x128xf32>
    %10 = vector.broadcast %9 : vector<1x128xf32> to vector<8x128xf32>
    %11 = arith.subf %5, %10 : vector<8x128xf32>
    %12 = arith.mulf %11, %11 : vector<8x128xf32>
    %cst_7 = arith.constant dense<0.000000e+00> : vector<128xf32>
    %13 = vector.multi_reduction <add>, %12, %cst_7 [0] : vector<8x128xf32> to vector<128xf32>
    %14 = vector.shape_cast %13 : vector<128xf32> to vector<1x128xf32>
    %cst_8 = arith.constant 1.250000e-01 : f32
    %15 = vector.broadcast %cst_8 : f32 to vector<1x128xf32>
    %16 = arith.mulf %14, %15 : vector<1x128xf32>
    %cst_9 = arith.constant 9.99999974E-6 : f32
    %17 = vector.broadcast %cst_9 : f32 to vector<1x128xf32>
    %18 = arith.addf %16, %17 : vector<1x128xf32>
    %19 = math.rsqrt %18 : vector<1x128xf32>
    %20 = vector.broadcast %19 : vector<1x128xf32> to vector<8x128xf32>
    %21 = arith.mulf %11, %20 : vector<8x128xf32>
    %cst_10 = arith.constant 0.000000e+00 : f32
    %22 = vector.broadcast %cst_10 : f32 to vector<8x128xf32>
    %23 = arith.maximumf %21, %22 : vector<8x128xf32>
    %24 = arith.truncf %23 : vector<8x128xf32> to vector<8x128xbf16>
    %c0_11 = arith.constant 0 : index
    %c0_12 = arith.constant 0 : index
    %25 = vector.load %arg4[%c0_11, %c0_12] : memref<8x128xbf16, #tpu.memory_space<vmem>>, vector<8x128xbf16>
    tpu.vector_store %arg4[%c0_11, %c0_12], %24 {strides = array<i32>} : memref<8x128xbf16, #tpu.memory_space<vmem>>, vector<8x128xbf16>,
    return
  }
  func.func @transform_0(%arg0: i32) -> (i32, i32) {
    %c0_i32 = arith.constant 0 : i32
    %c0_i32_0 = arith.constant 0 : i32
    %c0_i32_1 = arith.constant 0 : i32
    return %c0_i32, %c0_i32_0 : i32, i32
  }
  func.func @transform_1(%arg0: i32) -> (i32, i32) {
    %c0_i32 = arith.constant 0 : i32
    %c0_i32_0 = arith.constant 0 : i32
    %c0_i32_1 = arith.constant 0 : i32
    return %c0_i32, %c0_i32_0 : i32, i32
  }
  func.func @transform_2(%arg0: i32) -> (i32, i32) {
    %c0_i32 = arith.constant 0 : i32
    %c0_i32_0 = arith.constant 0 : i32
    %c0_i32_1 = arith.constant 0 : i32
    return %c0_i32, %c0_i32_0 : i32, i32
  }
  func.func @transform_3(%arg0: i32) -> (i32, i32) {
    %c0_i32 = arith.constant 0 : i32
    %c0_i32_0 = arith.constant 0 : i32
    %c0_i32_1 = arith.constant 0 : i32
    return %c0_i32, %c0_i32_0 : i32, i32
  }
}

module attributes {stable_mosaic.version = 11 : i64} {
  func.func @_bn_convT_relu_kernel(%arg0: i32, %arg1: memref<18x512xbf16, #tpu.memory_space<vmem>>, %arg2: memref<18x512xf32, #tpu.memory_space<vmem>>, %arg3: memref<512x256xbf16, #tpu.memory_space<vmem>>, %arg4: memref<1x256xf32, #tpu.memory_space<vmem>>, %arg5: memref<18x256xbf16, #tpu.memory_space<vmem>>) attributes {dimension_semantics = [#tpu.dimension_semantics<arbitrary>], iteration_bounds = array<i64: 1>, scalar_prefetch = 0 : i64, scratch_operands = 0 : i64, tpu.core_type = #tpu.core_type<tc>, window_params = [{pipeline_mode = #tpu.pipeline_mode<synchronous>, transform_indices = @transform_0, window_bounds = array<i64: 18, 512>}, {pipeline_mode = #tpu.pipeline_mode<synchronous>, transform_indices = @transform_1, window_bounds = array<i64: 18, 512>}, {pipeline_mode = #tpu.pipeline_mode<synchronous>, transform_indices = @transform_2, window_bounds = array<i64: 512, 256>}, {pipeline_mode = #tpu.pipeline_mode<synchronous>, transform_indices = @transform_3, window_bounds = array<i64: 1, 256>}, {pipeline_mode = #tpu.pipeline_mode<synchronous>, transform_indices = @transform_4, window_bounds = array<i64: 18, 256>}]} {
    %c0 = arith.constant 0 : index
    %c0_0 = arith.constant 0 : index
    %0 = vector.load %arg1[%c0, %c0_0] : memref<18x512xbf16, #tpu.memory_space<vmem>>, vector<18x512xbf16>
    %1 = arith.extf %0 : vector<18x512xbf16> to vector<18x512xf32>
    %c0_1 = arith.constant 0 : index
    %c0_2 = arith.constant 0 : index
    %2 = vector.load %arg2[%c0_1, %c0_2] : memref<18x512xf32, #tpu.memory_space<vmem>>, vector<18x512xf32>
    %cst = arith.constant dense<0.000000e+00> : vector<512xf32>
    %3 = vector.multi_reduction <add>, %1, %cst [0] : vector<18x512xf32> to vector<512xf32>
    %4 = vector.shape_cast %3 : vector<512xf32> to vector<1x512xf32>
    %cst_3 = arith.constant 1.250000e-01 : f32
    %5 = vector.broadcast %cst_3 : f32 to vector<1x512xf32>
    %6 = arith.mulf %4, %5 : vector<1x512xf32>
    %7 = vector.broadcast %6 : vector<1x512xf32> to vector<18x512xf32>
    %8 = arith.mulf %2, %7 : vector<18x512xf32>
    %9 = arith.subf %1, %8 : vector<18x512xf32>
    %10 = arith.mulf %9, %9 : vector<18x512xf32>
    %cst_4 = arith.constant dense<0.000000e+00> : vector<512xf32>
    %11 = vector.multi_reduction <add>, %10, %cst_4 [0] : vector<18x512xf32> to vector<512xf32>
    %12 = vector.shape_cast %11 : vector<512xf32> to vector<1x512xf32>
    %cst_5 = arith.constant 1.250000e-01 : f32
    %13 = vector.broadcast %cst_5 : f32 to vector<1x512xf32>
    %14 = arith.mulf %12, %13 : vector<1x512xf32>
    %cst_6 = arith.constant 9.99999974E-6 : f32
    %15 = vector.broadcast %cst_6 : f32 to vector<1x512xf32>
    %16 = arith.addf %14, %15 : vector<1x512xf32>
    %17 = math.rsqrt %16 : vector<1x512xf32>
    %18 = vector.broadcast %17 : vector<1x512xf32> to vector<18x512xf32>
    %19 = arith.mulf %9, %18 : vector<18x512xf32>
    %20 = arith.truncf %19 : vector<18x512xf32> to vector<18x512xbf16>
    %c0_7 = arith.constant 0 : index
    %c0_8 = arith.constant 0 : index
    %21 = vector.load %arg3[%c0_7, %c0_8] : memref<512x256xbf16, #tpu.memory_space<vmem>>, vector<512x256xbf16>
    %cst_9 = arith.constant dense<0.000000e+00> : vector<18x256xf32>
    %22 = tpu.matmul %20, %21, %cst_9 {dimension_numbers = #tpu.dot_dimension_numbers<[1], [0], [0], [1], [0, 0, 1, 1], [], []>} : vector<18x512xbf16>, vector<512x256xbf16>, vector<18x256xf32> -> vector<18x256xf32>
    %c0_10 = arith.constant 0 : index
    %c0_11 = arith.constant 0 : index
    %23 = vector.load %arg4[%c0_10, %c0_11] : memref<1x256xf32, #tpu.memory_space<vmem>>, vector<1x256xf32>
    %24 = vector.broadcast %23 : vector<1x256xf32> to vector<18x256xf32>
    %25 = arith.addf %22, %24 : vector<18x256xf32>
    %cst_12 = arith.constant 0.000000e+00 : f32
    %26 = vector.broadcast %cst_12 : f32 to vector<18x256xf32>
    %27 = arith.maximumf %25, %26 : vector<18x256xf32>
    %28 = arith.truncf %27 : vector<18x256xf32> to vector<18x256xbf16>
    %c0_13 = arith.constant 0 : index
    %c0_14 = arith.constant 0 : index
    %29 = vector.load %arg5[%c0_13, %c0_14] : memref<18x256xbf16, #tpu.memory_space<vmem>>, vector<18x256xbf16>
    tpu.vector_store %arg5[%c0_13, %c0_14], %28 {strides = array<i32>} : memref<18x256xbf16, #tpu.memory_space<vmem>>, vector<18x256xbf16>,
    return
  }
  func.func @transform_0(%arg0: i32) -> (i32, i32) {
    %c0_i32 = arith.constant 0 : i32
    %c0_i32_0 = arith.constant 0 : i32
    %c0_i32_1 = arith.constant 0 : i32
    return %c0_i32, %c0_i32_0 : i32, i32
  }
  func.func @transform_1(%arg0: i32) -> (i32, i32) {
    %c0_i32 = arith.constant 0 : i32
    %c0_i32_0 = arith.constant 0 : i32
    %c0_i32_1 = arith.constant 0 : i32
    return %c0_i32, %c0_i32_0 : i32, i32
  }
  func.func @transform_2(%arg0: i32) -> (i32, i32) {
    %c0_i32 = arith.constant 0 : i32
    %c0_i32_0 = arith.constant 0 : i32
    %c0_i32_1 = arith.constant 0 : i32
    return %c0_i32, %c0_i32_0 : i32, i32
  }
  func.func @transform_3(%arg0: i32) -> (i32, i32) {
    %c0_i32 = arith.constant 0 : i32
    %c0_i32_0 = arith.constant 0 : i32
    %c0_i32_1 = arith.constant 0 : i32
    return %c0_i32, %c0_i32_0 : i32, i32
  }
  func.func @transform_4(%arg0: i32) -> (i32, i32) {
    %c0_i32 = arith.constant 0 : i32
    %c0_i32_0 = arith.constant 0 : i32
    %c0_i32_1 = arith.constant 0 : i32
    return %c0_i32, %c0_i32_0 : i32, i32
  }
}

module attributes {stable_mosaic.version = 11 : i64} {
  func.func @_bn_convT_relu_kernel(%arg0: i32, %arg1: memref<50x256xbf16, #tpu.memory_space<vmem>>, %arg2: memref<50x256xf32, #tpu.memory_space<vmem>>, %arg3: memref<256x128xbf16, #tpu.memory_space<vmem>>, %arg4: memref<1x128xf32, #tpu.memory_space<vmem>>, %arg5: memref<50x128xbf16, #tpu.memory_space<vmem>>) attributes {dimension_semantics = [#tpu.dimension_semantics<arbitrary>], iteration_bounds = array<i64: 1>, scalar_prefetch = 0 : i64, scratch_operands = 0 : i64, tpu.core_type = #tpu.core_type<tc>, window_params = [{pipeline_mode = #tpu.pipeline_mode<synchronous>, transform_indices = @transform_0, window_bounds = array<i64: 50, 256>}, {pipeline_mode = #tpu.pipeline_mode<synchronous>, transform_indices = @transform_1, window_bounds = array<i64: 50, 256>}, {pipeline_mode = #tpu.pipeline_mode<synchronous>, transform_indices = @transform_2, window_bounds = array<i64: 256, 128>}, {pipeline_mode = #tpu.pipeline_mode<synchronous>, transform_indices = @transform_3, window_bounds = array<i64: 1, 128>}, {pipeline_mode = #tpu.pipeline_mode<synchronous>, transform_indices = @transform_4, window_bounds = array<i64: 50, 128>}]} {
    %c0 = arith.constant 0 : index
    %c0_0 = arith.constant 0 : index
    %0 = vector.load %arg1[%c0, %c0_0] : memref<50x256xbf16, #tpu.memory_space<vmem>>, vector<50x256xbf16>
    %1 = arith.extf %0 : vector<50x256xbf16> to vector<50x256xf32>
    %c0_1 = arith.constant 0 : index
    %c0_2 = arith.constant 0 : index
    %2 = vector.load %arg2[%c0_1, %c0_2] : memref<50x256xf32, #tpu.memory_space<vmem>>, vector<50x256xf32>
    %cst = arith.constant dense<0.000000e+00> : vector<256xf32>
    %3 = vector.multi_reduction <add>, %1, %cst [0] : vector<50x256xf32> to vector<256xf32>
    %4 = vector.shape_cast %3 : vector<256xf32> to vector<1x256xf32>
    %cst_3 = arith.constant 3.125000e-02 : f32
    %5 = vector.broadcast %cst_3 : f32 to vector<1x256xf32>
    %6 = arith.mulf %4, %5 : vector<1x256xf32>
    %7 = vector.broadcast %6 : vector<1x256xf32> to vector<50x256xf32>
    %8 = arith.mulf %2, %7 : vector<50x256xf32>
    %9 = arith.subf %1, %8 : vector<50x256xf32>
    %10 = arith.mulf %9, %9 : vector<50x256xf32>
    %cst_4 = arith.constant dense<0.000000e+00> : vector<256xf32>
    %11 = vector.multi_reduction <add>, %10, %cst_4 [0] : vector<50x256xf32> to vector<256xf32>
    %12 = vector.shape_cast %11 : vector<256xf32> to vector<1x256xf32>
    %cst_5 = arith.constant 3.125000e-02 : f32
    %13 = vector.broadcast %cst_5 : f32 to vector<1x256xf32>
    %14 = arith.mulf %12, %13 : vector<1x256xf32>
    %cst_6 = arith.constant 9.99999974E-6 : f32
    %15 = vector.broadcast %cst_6 : f32 to vector<1x256xf32>
    %16 = arith.addf %14, %15 : vector<1x256xf32>
    %17 = math.rsqrt %16 : vector<1x256xf32>
    %18 = vector.broadcast %17 : vector<1x256xf32> to vector<50x256xf32>
    %19 = arith.mulf %9, %18 : vector<50x256xf32>
    %20 = arith.truncf %19 : vector<50x256xf32> to vector<50x256xbf16>
    %c0_7 = arith.constant 0 : index
    %c0_8 = arith.constant 0 : index
    %21 = vector.load %arg3[%c0_7, %c0_8] : memref<256x128xbf16, #tpu.memory_space<vmem>>, vector<256x128xbf16>
    %cst_9 = arith.constant dense<0.000000e+00> : vector<50x128xf32>
    %22 = tpu.matmul %20, %21, %cst_9 {dimension_numbers = #tpu.dot_dimension_numbers<[1], [0], [0], [1], [0, 0, 1, 1], [], []>} : vector<50x256xbf16>, vector<256x128xbf16>, vector<50x128xf32> -> vector<50x128xf32>
    %c0_10 = arith.constant 0 : index
    %c0_11 = arith.constant 0 : index
    %23 = vector.load %arg4[%c0_10, %c0_11] : memref<1x128xf32, #tpu.memory_space<vmem>>, vector<1x128xf32>
    %24 = vector.broadcast %23 : vector<1x128xf32> to vector<50x128xf32>
    %25 = arith.addf %22, %24 : vector<50x128xf32>
    %cst_12 = arith.constant 0.000000e+00 : f32
    %26 = vector.broadcast %cst_12 : f32 to vector<50x128xf32>
    %27 = arith.maximumf %25, %26 : vector<50x128xf32>
    %28 = arith.truncf %27 : vector<50x128xf32> to vector<50x128xbf16>
    %c0_13 = arith.constant 0 : index
    %c0_14 = arith.constant 0 : index
    %29 = vector.load %arg5[%c0_13, %c0_14] : memref<50x128xbf16, #tpu.memory_space<vmem>>, vector<50x128xbf16>
    tpu.vector_store %arg5[%c0_13, %c0_14], %28 {strides = array<i32>} : memref<50x128xbf16, #tpu.memory_space<vmem>>, vector<50x128xbf16>,
    return
  }
  func.func @transform_0(%arg0: i32) -> (i32, i32) {
    %c0_i32 = arith.constant 0 : i32
    %c0_i32_0 = arith.constant 0 : i32
    %c0_i32_1 = arith.constant 0 : i32
    return %c0_i32, %c0_i32_0 : i32, i32
  }
  func.func @transform_1(%arg0: i32) -> (i32, i32) {
    %c0_i32 = arith.constant 0 : i32
    %c0_i32_0 = arith.constant 0 : i32
    %c0_i32_1 = arith.constant 0 : i32
    return %c0_i32, %c0_i32_0 : i32, i32
  }
  func.func @transform_2(%arg0: i32) -> (i32, i32) {
    %c0_i32 = arith.constant 0 : i32
    %c0_i32_0 = arith.constant 0 : i32
    %c0_i32_1 = arith.constant 0 : i32
    return %c0_i32, %c0_i32_0 : i32, i32
  }
  func.func @transform_3(%arg0: i32) -> (i32, i32) {
    %c0_i32 = arith.constant 0 : i32
    %c0_i32_0 = arith.constant 0 : i32
    %c0_i32_1 = arith.constant 0 : i32
    return %c0_i32, %c0_i32_0 : i32, i32
  }
  func.func @transform_4(%arg0: i32) -> (i32, i32) {
    %c0_i32 = arith.constant 0 : i32
    %c0_i32_0 = arith.constant 0 : i32
    %c0_i32_1 = arith.constant 0 : i32
    return %c0_i32, %c0_i32_0 : i32, i32
  }
}

module attributes {stable_mosaic.version = 11 : i64} {
  func.func @_bn_convT_relu_kernel(%arg0: i32, %arg1: memref<162x128xbf16, #tpu.memory_space<vmem>>, %arg2: memref<162x128xf32, #tpu.memory_space<vmem>>, %arg3: memref<128x32xbf16, #tpu.memory_space<vmem>>, %arg4: memref<1x32xf32, #tpu.memory_space<vmem>>, %arg5: memref<162x32xbf16, #tpu.memory_space<vmem>>) attributes {dimension_semantics = [#tpu.dimension_semantics<arbitrary>], iteration_bounds = array<i64: 1>, scalar_prefetch = 0 : i64, scratch_operands = 0 : i64, tpu.core_type = #tpu.core_type<tc>, window_params = [{pipeline_mode = #tpu.pipeline_mode<synchronous>, transform_indices = @transform_0, window_bounds = array<i64: 162, 128>}, {pipeline_mode = #tpu.pipeline_mode<synchronous>, transform_indices = @transform_1, window_bounds = array<i64: 162, 128>}, {pipeline_mode = #tpu.pipeline_mode<synchronous>, transform_indices = @transform_2, window_bounds = array<i64: 128, 32>}, {pipeline_mode = #tpu.pipeline_mode<synchronous>, transform_indices = @transform_3, window_bounds = array<i64: 1, 32>}, {pipeline_mode = #tpu.pipeline_mode<synchronous>, transform_indices = @transform_4, window_bounds = array<i64: 162, 32>}]} {
    %c0 = arith.constant 0 : index
    %c0_0 = arith.constant 0 : index
    %0 = vector.load %arg1[%c0, %c0_0] : memref<162x128xbf16, #tpu.memory_space<vmem>>, vector<162x128xbf16>
    %1 = arith.extf %0 : vector<162x128xbf16> to vector<162x128xf32>
    %c0_1 = arith.constant 0 : index
    %c0_2 = arith.constant 0 : index
    %2 = vector.load %arg2[%c0_1, %c0_2] : memref<162x128xf32, #tpu.memory_space<vmem>>, vector<162x128xf32>
    %cst = arith.constant dense<0.000000e+00> : vector<128xf32>
    %3 = vector.multi_reduction <add>, %1, %cst [0] : vector<162x128xf32> to vector<128xf32>
    %4 = vector.shape_cast %3 : vector<128xf32> to vector<1x128xf32>
    %cst_3 = arith.constant 7.812500e-03 : f32
    %5 = vector.broadcast %cst_3 : f32 to vector<1x128xf32>
    %6 = arith.mulf %4, %5 : vector<1x128xf32>
    %7 = vector.broadcast %6 : vector<1x128xf32> to vector<162x128xf32>
    %8 = arith.mulf %2, %7 : vector<162x128xf32>
    %9 = arith.subf %1, %8 : vector<162x128xf32>
    %10 = arith.mulf %9, %9 : vector<162x128xf32>
    %cst_4 = arith.constant dense<0.000000e+00> : vector<128xf32>
    %11 = vector.multi_reduction <add>, %10, %cst_4 [0] : vector<162x128xf32> to vector<128xf32>
    %12 = vector.shape_cast %11 : vector<128xf32> to vector<1x128xf32>
    %cst_5 = arith.constant 7.812500e-03 : f32
    %13 = vector.broadcast %cst_5 : f32 to vector<1x128xf32>
    %14 = arith.mulf %12, %13 : vector<1x128xf32>
    %cst_6 = arith.constant 9.99999974E-6 : f32
    %15 = vector.broadcast %cst_6 : f32 to vector<1x128xf32>
    %16 = arith.addf %14, %15 : vector<1x128xf32>
    %17 = math.rsqrt %16 : vector<1x128xf32>
    %18 = vector.broadcast %17 : vector<1x128xf32> to vector<162x128xf32>
    %19 = arith.mulf %9, %18 : vector<162x128xf32>
    %20 = arith.truncf %19 : vector<162x128xf32> to vector<162x128xbf16>
    %c0_7 = arith.constant 0 : index
    %c0_8 = arith.constant 0 : index
    %21 = vector.load %arg3[%c0_7, %c0_8] : memref<128x32xbf16, #tpu.memory_space<vmem>>, vector<128x32xbf16>
    %cst_9 = arith.constant dense<0.000000e+00> : vector<162x32xf32>
    %22 = tpu.matmul %20, %21, %cst_9 {dimension_numbers = #tpu.dot_dimension_numbers<[1], [0], [0], [1], [0, 0, 1, 1], [], []>} : vector<162x128xbf16>, vector<128x32xbf16>, vector<162x32xf32> -> vector<162x32xf32>
    %c0_10 = arith.constant 0 : index
    %c0_11 = arith.constant 0 : index
    %23 = vector.load %arg4[%c0_10, %c0_11] : memref<1x32xf32, #tpu.memory_space<vmem>>, vector<1x32xf32>
    %24 = vector.broadcast %23 : vector<1x32xf32> to vector<162x32xf32>
    %25 = arith.addf %22, %24 : vector<162x32xf32>
    %cst_12 = arith.constant 0.000000e+00 : f32
    %26 = vector.broadcast %cst_12 : f32 to vector<162x32xf32>
    %27 = arith.maximumf %25, %26 : vector<162x32xf32>
    %28 = arith.truncf %27 : vector<162x32xf32> to vector<162x32xbf16>
    %c0_13 = arith.constant 0 : index
    %c0_14 = arith.constant 0 : index
    %29 = vector.load %arg5[%c0_13, %c0_14] : memref<162x32xbf16, #tpu.memory_space<vmem>>, vector<162x32xbf16>
    tpu.vector_store %arg5[%c0_13, %c0_14], %28 {strides = array<i32>} : memref<162x32xbf16, #tpu.memory_space<vmem>>, vector<162x32xbf16>,
    return
  }
  func.func @transform_0(%arg0: i32) -> (i32, i32) {
    %c0_i32 = arith.constant 0 : i32
    %c0_i32_0 = arith.constant 0 : i32
    %c0_i32_1 = arith.constant 0 : i32
    return %c0_i32, %c0_i32_0 : i32, i32
  }
  func.func @transform_1(%arg0: i32) -> (i32, i32) {
    %c0_i32 = arith.constant 0 : i32
    %c0_i32_0 = arith.constant 0 : i32
    %c0_i32_1 = arith.constant 0 : i32
    return %c0_i32, %c0_i32_0 : i32, i32
  }
  func.func @transform_2(%arg0: i32) -> (i32, i32) {
    %c0_i32 = arith.constant 0 : i32
    %c0_i32_0 = arith.constant 0 : i32
    %c0_i32_1 = arith.constant 0 : i32
    return %c0_i32, %c0_i32_0 : i32, i32
  }
  func.func @transform_3(%arg0: i32) -> (i32, i32) {
    %c0_i32 = arith.constant 0 : i32
    %c0_i32_0 = arith.constant 0 : i32
    %c0_i32_1 = arith.constant 0 : i32
    return %c0_i32, %c0_i32_0 : i32, i32
  }
  func.func @transform_4(%arg0: i32) -> (i32, i32) {
    %c0_i32 = arith.constant 0 : i32
    %c0_i32_0 = arith.constant 0 : i32
    %c0_i32_1 = arith.constant 0 : i32
    return %c0_i32, %c0_i32_0 : i32, i32
  }
}

module attributes {stable_mosaic.version = 11 : i64} {
  func.func @_tail_kernel(%arg0: i32, %arg1: memref<512x2xbf16, #tpu.memory_space<vmem>>, %arg2: memref<512x8xbf16, #tpu.memory_space<vmem>>, %arg3: memref<2x8xbf16, #tpu.memory_space<vmem>>, %arg4: memref<1x8xf32, #tpu.memory_space<vmem>>, %arg5: memref<8x16xbf16, #tpu.memory_space<vmem>>, %arg6: memref<1x16xf32, #tpu.memory_space<vmem>>, %arg7: memref<8x1xbf16, #tpu.memory_space<vmem>>, %arg8: memref<16x1xbf16, #tpu.memory_space<vmem>>, %arg9: memref<1x1xf32, #tpu.memory_space<vmem>>, %arg10: memref<512x1xf32, #tpu.memory_space<vmem>>) attributes {dimension_semantics = [#tpu.dimension_semantics<arbitrary>], iteration_bounds = array<i64: 1>, scalar_prefetch = 0 : i64, scratch_operands = 0 : i64, tpu.core_type = #tpu.core_type<tc>, window_params = [{pipeline_mode = #tpu.pipeline_mode<synchronous>, transform_indices = @transform_0, window_bounds = array<i64: 512, 2>}, {pipeline_mode = #tpu.pipeline_mode<synchronous>, transform_indices = @transform_1, window_bounds = array<i64: 512, 8>}, {pipeline_mode = #tpu.pipeline_mode<synchronous>, transform_indices = @transform_2, window_bounds = array<i64: 2, 8>}, {pipeline_mode = #tpu.pipeline_mode<synchronous>, transform_indices = @transform_3, window_bounds = array<i64: 1, 8>}, {pipeline_mode = #tpu.pipeline_mode<synchronous>, transform_indices = @transform_4, window_bounds = array<i64: 8, 16>}, {pipeline_mode = #tpu.pipeline_mode<synchronous>, transform_indices = @transform_5, window_bounds = array<i64: 1, 16>}, {pipeline_mode = #tpu.pipeline_mode<synchronous>, transform_indices = @transform_6, window_bounds = array<i64: 8, 1>}, {pipeline_mode = #tpu.pipeline_mode<synchronous>, transform_indices = @transform_7, window_bounds = array<i64: 16, 1>}, {pipeline_mode = #tpu.pipeline_mode<synchronous>, transform_indices = @transform_8, window_bounds = array<i64: 1, 1>}, {pipeline_mode = #tpu.pipeline_mode<synchronous>, transform_indices = @transform_9, window_bounds = array<i64: 512, 1>}]} {
    %c0 = arith.constant 0 : index
    %c0_0 = arith.constant 0 : index
    %0 = vector.load %arg1[%c0, %c0_0] : memref<512x2xbf16, #tpu.memory_space<vmem>>, vector<512x2xbf16>
    %c0_1 = arith.constant 0 : index
    %c0_2 = arith.constant 0 : index
    %1 = vector.load %arg3[%c0_1, %c0_2] : memref<2x8xbf16, #tpu.memory_space<vmem>>, vector<2x8xbf16>
    %cst = arith.constant dense<0.000000e+00> : vector<512x8xf32>
    %2 = tpu.matmul %0, %1, %cst {dimension_numbers = #tpu.dot_dimension_numbers<[1], [0], [0], [1], [0, 0, 1, 1], [], []>} : vector<512x2xbf16>, vector<2x8xbf16>, vector<512x8xf32> -> vector<512x8xf32>
    %c0_3 = arith.constant 0 : index
    %c0_4 = arith.constant 0 : index
    %3 = vector.load %arg4[%c0_3, %c0_4] : memref<1x8xf32, #tpu.memory_space<vmem>>, vector<1x8xf32>
    %4 = vector.broadcast %3 : vector<1x8xf32> to vector<512x8xf32>
    %5 = arith.addf %2, %4 : vector<512x8xf32>
    %cst_5 = arith.constant dense<0.000000e+00> : vector<8xf32>
    %6 = vector.multi_reduction <add>, %5, %cst_5 [0] : vector<512x8xf32> to vector<8xf32>
    %7 = vector.shape_cast %6 : vector<8xf32> to vector<1x8xf32>
    %cst_6 = arith.constant 0.001953125 : f32
    %8 = vector.broadcast %cst_6 : f32 to vector<1x8xf32>
    %9 = arith.mulf %7, %8 : vector<1x8xf32>
    %10 = vector.broadcast %9 : vector<1x8xf32> to vector<512x8xf32>
    %11 = arith.subf %5, %10 : vector<512x8xf32>
    %12 = arith.mulf %11, %11 : vector<512x8xf32>
    %cst_7 = arith.constant dense<0.000000e+00> : vector<8xf32>
    %13 = vector.multi_reduction <add>, %12, %cst_7 [0] : vector<512x8xf32> to vector<8xf32>
    %14 = vector.shape_cast %13 : vector<8xf32> to vector<1x8xf32>
    %cst_8 = arith.constant 0.001953125 : f32
    %15 = vector.broadcast %cst_8 : f32 to vector<1x8xf32>
    %16 = arith.mulf %14, %15 : vector<1x8xf32>
    %cst_9 = arith.constant 9.99999974E-6 : f32
    %17 = vector.broadcast %cst_9 : f32 to vector<1x8xf32>
    %18 = arith.addf %16, %17 : vector<1x8xf32>
    %19 = math.rsqrt %18 : vector<1x8xf32>
    %20 = vector.broadcast %19 : vector<1x8xf32> to vector<512x8xf32>
    %21 = arith.mulf %11, %20 : vector<512x8xf32>
    %cst_10 = arith.constant 0.000000e+00 : f32
    %22 = vector.broadcast %cst_10 : f32 to vector<512x8xf32>
    %23 = arith.maximumf %21, %22 : vector<512x8xf32>
    %24 = arith.truncf %23 : vector<512x8xf32> to vector<512x8xbf16>
    %c0_11 = arith.constant 0 : index
    %c0_12 = arith.constant 0 : index
    %25 = vector.load %arg5[%c0_11, %c0_12] : memref<8x16xbf16, #tpu.memory_space<vmem>>, vector<8x16xbf16>
    %cst_13 = arith.constant dense<0.000000e+00> : vector<512x16xf32>
    %26 = tpu.matmul %24, %25, %cst_13 {dimension_numbers = #tpu.dot_dimension_numbers<[1], [0], [0], [1], [0, 0, 1, 1], [], []>} : vector<512x8xbf16>, vector<8x16xbf16>, vector<512x16xf32> -> vector<512x16xf32>
    %c0_14 = arith.constant 0 : index
    %c0_15 = arith.constant 0 : index
    %27 = vector.load %arg6[%c0_14, %c0_15] : memref<1x16xf32, #tpu.memory_space<vmem>>, vector<1x16xf32>
    %28 = vector.broadcast %27 : vector<1x16xf32> to vector<512x16xf32>
    %29 = arith.addf %26, %28 : vector<512x16xf32>
    %cst_16 = arith.constant dense<0.000000e+00> : vector<16xf32>
    %30 = vector.multi_reduction <add>, %29, %cst_16 [0] : vector<512x16xf32> to vector<16xf32>
    %31 = vector.shape_cast %30 : vector<16xf32> to vector<1x16xf32>
    %cst_17 = arith.constant 0.001953125 : f32
    %32 = vector.broadcast %cst_17 : f32 to vector<1x16xf32>
    %33 = arith.mulf %31, %32 : vector<1x16xf32>
    %34 = vector.broadcast %33 : vector<1x16xf32> to vector<512x16xf32>
    %35 = arith.subf %29, %34 : vector<512x16xf32>
    %36 = arith.mulf %35, %35 : vector<512x16xf32>
    %cst_18 = arith.constant dense<0.000000e+00> : vector<16xf32>
    %37 = vector.multi_reduction <add>, %36, %cst_18 [0] : vector<512x16xf32> to vector<16xf32>
    %38 = vector.shape_cast %37 : vector<16xf32> to vector<1x16xf32>
    %cst_19 = arith.constant 0.001953125 : f32
    %39 = vector.broadcast %cst_19 : f32 to vector<1x16xf32>
    %40 = arith.mulf %38, %39 : vector<1x16xf32>
    %cst_20 = arith.constant 9.99999974E-6 : f32
    %41 = vector.broadcast %cst_20 : f32 to vector<1x16xf32>
    %42 = arith.addf %40, %41 : vector<1x16xf32>
    %43 = math.rsqrt %42 : vector<1x16xf32>
    %44 = vector.broadcast %43 : vector<1x16xf32> to vector<512x16xf32>
    %45 = arith.mulf %35, %44 : vector<512x16xf32>
    %cst_21 = arith.constant 0.000000e+00 : f32
    %46 = vector.broadcast %cst_21 : f32 to vector<512x16xf32>
    %47 = arith.maximumf %45, %46 : vector<512x16xf32>
    %c0_22 = arith.constant 0 : index
    %c0_23 = arith.constant 0 : index
    %48 = vector.load %arg2[%c0_22, %c0_23] : memref<512x8xbf16, #tpu.memory_space<vmem>>, vector<512x8xbf16>
    %c0_24 = arith.constant 0 : index
    %c0_25 = arith.constant 0 : index
    %49 = vector.load %arg7[%c0_24, %c0_25] : memref<8x1xbf16, #tpu.memory_space<vmem>>, vector<8x1xbf16>
    %cst_26 = arith.constant dense<0.000000e+00> : vector<512x1xf32>
    %50 = tpu.matmul %48, %49, %cst_26 {dimension_numbers = #tpu.dot_dimension_numbers<[1], [0], [0], [1], [0, 0, 1, 1], [], []>} : vector<512x8xbf16>, vector<8x1xbf16>, vector<512x1xf32> -> vector<512x1xf32>
    %51 = arith.truncf %47 : vector<512x16xf32> to vector<512x16xbf16>
    %c0_27 = arith.constant 0 : index
    %c0_28 = arith.constant 0 : index
    %52 = vector.load %arg8[%c0_27, %c0_28] : memref<16x1xbf16, #tpu.memory_space<vmem>>, vector<16x1xbf16>
    %cst_29 = arith.constant dense<0.000000e+00> : vector<512x1xf32>
    %53 = tpu.matmul %51, %52, %cst_29 {dimension_numbers = #tpu.dot_dimension_numbers<[1], [0], [0], [1], [0, 0, 1, 1], [], []>} : vector<512x16xbf16>, vector<16x1xbf16>, vector<512x1xf32> -> vector<512x1xf32>
    %54 = arith.addf %50, %53 : vector<512x1xf32>
    %c0_30 = arith.constant 0 : index
    %c0_31 = arith.constant 0 : index
    %55 = vector.load %arg9[%c0_30, %c0_31] : memref<1x1xf32, #tpu.memory_space<vmem>>, vector<1x1xf32>
    %56 = vector.broadcast %55 : vector<1x1xf32> to vector<512x1xf32>
    %57 = arith.addf %54, %56 : vector<512x1xf32>
    %c0_32 = arith.constant 0 : index
    %c0_33 = arith.constant 0 : index
    %58 = vector.load %arg10[%c0_32, %c0_33] : memref<512x1xf32, #tpu.memory_space<vmem>>, vector<512x1xf32>
    tpu.vector_store %arg10[%c0_32, %c0_33], %57 {strides = array<i32>} : memref<512x1xf32, #tpu.memory_space<vmem>>, vector<512x1xf32>,
    return
  }
  func.func @transform_0(%arg0: i32) -> (i32, i32) {
    %c0_i32 = arith.constant 0 : i32
    %c0_i32_0 = arith.constant 0 : i32
    %c0_i32_1 = arith.constant 0 : i32
    return %c0_i32, %c0_i32_0 : i32, i32
  }
  func.func @transform_1(%arg0: i32) -> (i32, i32) {
    %c0_i32 = arith.constant 0 : i32
    %c0_i32_0 = arith.constant 0 : i32
    %c0_i32_1 = arith.constant 0 : i32
    return %c0_i32, %c0_i32_0 : i32, i32
  }
  func.func @transform_2(%arg0: i32) -> (i32, i32) {
    %c0_i32 = arith.constant 0 : i32
    %c0_i32_0 = arith.constant 0 : i32
    %c0_i32_1 = arith.constant 0 : i32
    return %c0_i32, %c0_i32_0 : i32, i32
  }
  func.func @transform_3(%arg0: i32) -> (i32, i32) {
    %c0_i32 = arith.constant 0 : i32
    %c0_i32_0 = arith.constant 0 : i32
    %c0_i32_1 = arith.constant 0 : i32
    return %c0_i32, %c0_i32_0 : i32, i32
  }
  func.func @transform_4(%arg0: i32) -> (i32, i32) {
    %c0_i32 = arith.constant 0 : i32
    %c0_i32_0 = arith.constant 0 : i32
    %c0_i32_1 = arith.constant 0 : i32
    return %c0_i32, %c0_i32_0 : i32, i32
  }
  func.func @transform_5(%arg0: i32) -> (i32, i32) {
    %c0_i32 = arith.constant 0 : i32
    %c0_i32_0 = arith.constant 0 : i32
    %c0_i32_1 = arith.constant 0 : i32
    return %c0_i32, %c0_i32_0 : i32, i32
  }
  func.func @transform_6(%arg0: i32) -> (i32, i32) {
    %c0_i32 = arith.constant 0 : i32
    %c0_i32_0 = arith.constant 0 : i32
    %c0_i32_1 = arith.constant 0 : i32
    return %c0_i32, %c0_i32_0 : i32, i32
  }
  func.func @transform_7(%arg0: i32) -> (i32, i32) {
    %c0_i32 = arith.constant 0 : i32
    %c0_i32_0 = arith.constant 0 : i32
    %c0_i32_1 = arith.constant 0 : i32
    return %c0_i32, %c0_i32_0 : i32, i32
  }
  func.func @transform_8(%arg0: i32) -> (i32, i32) {
    %c0_i32 = arith.constant 0 : i32
    %c0_i32_0 = arith.constant 0 : i32
    %c0_i32_1 = arith.constant 0 : i32
    return %c0_i32, %c0_i32_0 : i32, i32
  }
  func.func @transform_9(%arg0: i32) -> (i32, i32) {
    %c0_i32 = arith.constant 0 : i32
    %c0_i32_0 = arith.constant 0 : i32
    %c0_i32_1 = arith.constant 0 : i32
    return %c0_i32, %c0_i32_0 : i32, i32
  }
}

</mosaic_0001>

<llo_original>
// kernel: cnn_forward.8
$region0: #{cnn_forward.8}
  #allocation0 [shape = 'u32[]', space=smem, size = 0x4, offset = 0x4, fixed_abs, tag = 'smem constant byte address 0x4 - core index']
  #allocation1 [shape = 'u32[144,128]{1,0:T(1,128)}', space=vmem, size = 0x12000, scoped, tag = 'internal scratch']
  %s0 = inlined_call_operand.vmem [shape: bf16[128,32], index: 0, kind: input, shape index: {}]
  %s1 = inlined_call_operand.vmem [shape: bf16[32,32], index: 1, kind: input, shape index: {}]
  %s2 = inlined_call_operand.vmem [shape: f32[1,32], index: 2, kind: input, shape index: {}]
  %s3 = inlined_call_operand.vmem [shape: bf16[128,32], index: 3, kind: output, shape index: {}]
  %s4 = sld [smem:[#allocation0]]
  $region22: #{cnn_forward.8} parent=0
    _
  %s6 = ssub.s32 1, %s4
  %s7 = scalar_select 0, %s6, %s4
  // Predicated region
  $region2: #{cnn_forward.8} parent=0 // pred_check
    _
  $region3: #{cnn_forward.8} parent=0 // pred_check_branch
    %9 = sbr.rel (0) target = $region5
  $region4: #{cnn_forward.8} parent=0 // pred_region
    _
  $region5: #{cnn_forward.8} parent=0 // pred_fallthru
    _
  // Predicated region
  $region6: #{cnn_forward.8} parent=0 // pred_check
    _
  $region7: #{cnn_forward.8} parent=0 // pred_check_branch
    %11 = sbr.rel (0) target = $region9
  $region8: #{cnn_forward.8} parent=0 // pred_region
    _
  $region9: #{cnn_forward.8} parent=0 // pred_fallthru
    _
  // Predicated region
  $region10: #{cnn_forward.8} parent=0 // pred_check
    _
  $region11: #{cnn_forward.8} parent=0 // pred_check_branch
    %13 = sbr.rel (0) target = $region13
  $region12: #{cnn_forward.8} parent=0 // pred_region
    _
  $region13: #{cnn_forward.8} parent=0 // pred_fallthru
    _
  %v15 = vld [vmem:[%s0] sm:$0xf]
  %v16 = vld [vmem:[%s0 + $0x4] sm:$0xf]
  %v17 = vld [vmem:[%s0 + $0x8] sm:$0xf]
  %v18 = vld [vmem:[%s0 + $0xc] sm:$0xf]
  %v19 = vld [vmem:[%s0 + $0x10] sm:$0xf]
  %v20 = vld [vmem:[%s0 + $0x14] sm:$0xf]
  %v21 = vld [vmem:[%s0 + $0x18] sm:$0xf]
  %v22 = vld [vmem:[%s0 + $0x1c] sm:$0xf]
  %v23 = vld [vmem:[%s0 + $0x20] sm:$0xf]
  %v24 = vld [vmem:[%s0 + $0x24] sm:$0xf]
  %v25 = vld [vmem:[%s0 + $0x28] sm:$0xf]
  %v26 = vld [vmem:[%s0 + $0x2c] sm:$0xf]
  %v27 = vld [vmem:[%s0 + $0x30] sm:$0xf]
  %v28 = vld [vmem:[%s0 + $0x34] sm:$0xf]
  %v29 = vld [vmem:[%s0 + $0x38] sm:$0xf]
  %v30 = vld [vmem:[%s0 + $0x3c] sm:$0xf]
  %v31 = vld [vmem:[%s1] sm:$0xf]
  %v32 = vld [vmem:[%s1 + $0x4] sm:$0xf]
  %v33 = vld [vmem:[%s1 + $0x8] sm:$0xf]
  %v34 = vld [vmem:[%s1 + $0xc] sm:$0xf]
  %v35 = vld [vmem:[%s2] sm:$0x1]
  %v37 = vlaneseq
  %v38 = vshrl.u32 %v37, 7
  %v39 = vsub.s32 0, %v38
  %v40 = vrot.slane %v35, %v39
  %v58 = vunpack.c.l.b16 %v15
  %v59 = vunpack.c.l.b16 %v16
  %v60 = vunpack.c.l.b16 %v17
  %v61 = vunpack.c.l.b16 %v18
  %v62 = vunpack.c.l.b16 %v19
  %v63 = vunpack.c.l.b16 %v20
  %v64 = vunpack.c.l.b16 %v21
  %v65 = vunpack.c.l.b16 %v22
  %v66 = vunpack.c.l.b16 %v23
  %v67 = vunpack.c.l.b16 %v24
  %v68 = vunpack.c.l.b16 %v25
  %v69 = vunpack.c.l.b16 %v26
  %v70 = vunpack.c.l.b16 %v27
  %v71 = vunpack.c.l.b16 %v28
  %v72 = vunpack.c.l.b16 %v29
  %v73 = vunpack.c.l.b16 %v30
  %v74 = vpack.c.b16 %v59, %v58
  %v75 = vpack.c.b16 %v61, %v60
  %v76 = vpack.c.b16 %v63, %v62
  %v77 = vpack.c.b16 %v65, %v64
  %v78 = vpack.c.b16 %v67, %v66
  %v79 = vpack.c.b16 %v69, %v68
  %v80 = vpack.c.b16 %v71, %v70
  %v81 = vpack.c.b16 %v73, %v72
  %v86 = vunpack.c.l.b16 %v31
  %v87 = vunpack.c.l.b16 %v32
  %v88 = vunpack.c.l.b16 %v33
  %v89 = vunpack.c.l.b16 %v34
  %v90 = vpack.c.b16 %v87, %v86
  %v91 = vpack.c.b16 %v89, %v88
  %vm94 = vcmask 261120
  %v96 = vsel %vm94, %v74, 0
  %v99 = vsel %vm94, %v75, 0
  %v102 = vsel %vm94, %v76, 0
  %v105 = vsel %vm94, %v77, 0
  %v108 = vsel %vm94, %v78, 0
  %v111 = vsel %vm94, %v79, 0
  %v114 = vsel %vm94, %v80, 0
  %v117 = vsel %vm94, %v81, 0
  %119 = vmatprep.subr.bf16.mxu0 0
  %120 = vmatpush1.bf16.msra.mxu0 0
  %121 = vmatprep.subr.bf16.mxu0 0
  %122 = vmatpush1.bf16.msra.mxu0 0
  %123 = vmatprep.subr.bf16.mxu0 0
  %124 = vmatpush1.bf16.msra.mxu0 0
  %125 = vmatprep.subr.bf16.mxu0 0
  %126 = vmatpush1.bf16.msra.mxu0 0
  %127 = vmatprep.subr.bf16.mxu0 0
  %128 = vmatpush1.bf16.msra.mxu0 0
  %129 = vmatprep.subr.bf16.mxu0 0
  %130 = vmatpush1.bf16.msra.mxu0 0
  %131 = vmatprep.subr.bf16.mxu0 0
  %132 = vmatpush1.bf16.msra.mxu0 %v91
  %133 = vmatprep.subr.bf16.mxu0 0
  %134 = vmatpush1.bf16.msra.mxu0 %v90
  %135 = vmatprep.subr.bf16.mxu0 0
  %136 = vmatpush2.bf16.msra.mxu0 0
  %137 = vmatprep.subr.bf16.mxu0 0
  %138 = vmatpush2.bf16.msra.mxu0 0
  %139 = vmatprep.subr.bf16.mxu0 0
  %140 = vmatpush2.bf16.msra.mxu0 0
  %141 = vmatprep.subr.bf16.mxu0 0
  %142 = vmatpush2.bf16.msra.mxu0 0
  %143 = vmatprep.subr.bf16.mxu0 0
  %144 = vmatpush2.bf16.msra.mxu0 0
  %145 = vmatprep.subr.bf16.mxu0 0
  %146 = vmatpush2.bf16.msra.mxu0 0
  %147 = vmatprep.subr.bf16.mxu0 0
  %148 = vmatpush2.bf16.msra.mxu0 0
  %149 = vmatprep.subr.bf16.mxu0 0
  %150 = vmatpush2.bf16.msra.mxu0 0
  %151 = vmatprep.mubr.bf16.mxu0 0
  %152 = vmatmul.mubr.bf16.gmra.mxu0 %v96
  %v153 = vpop.f32.mrf.mxu0
  %v154 = vadd.f32 %v40, %v153
  %v155 = vpop.f32.mrf.mxu0
  %v156 = vpop.f32.mrf.mxu0
  %v157 = vadd.f32 %v40, %v156
  %v158 = vpop.f32.mrf.mxu0
  %159 = vmatprep.mubr.bf16.mxu0 0
  %160 = vmatmul.mubr.bf16.gmra.mxu0 %v99
  %v161 = vpop.f32.mrf.mxu0
  %v162 = vadd.f32 %v40, %v161
  %v163 = vpop.f32.mrf.mxu0
  %v164 = vpop.f32.mrf.mxu0
  %v165 = vadd.f32 %v40, %v164
  %v166 = vpop.f32.mrf.mxu0
  %167 = vmatprep.mubr.bf16.mxu0 0
  %168 = vmatmul.mubr.bf16.gmra.mxu0 %v102
  %v169 = vpop.f32.mrf.mxu0
  %v170 = vadd.f32 %v40, %v169
  %v171 = vpop.f32.mrf.mxu0
  %v172 = vpop.f32.mrf.mxu0
  %v173 = vadd.f32 %v40, %v172
  %v174 = vpop.f32.mrf.mxu0
  %175 = vmatprep.mubr.bf16.mxu0 0
  %176 = vmatmul.mubr.bf16.gmra.mxu0 %v105
  %v177 = vpop.f32.mrf.mxu0
  %v178 = vadd.f32 %v40, %v177
  %v179 = vpop.f32.mrf.mxu0
  %v180 = vpop.f32.mrf.mxu0
  %v181 = vadd.f32 %v40, %v180
  %v182 = vpop.f32.mrf.mxu0
  %183 = vmatprep.mubr.bf16.mxu0 0
  %184 = vmatmul.mubr.bf16.gmra.mxu0 %v108
  %v185 = vpop.f32.mrf.mxu0
  %v186 = vadd.f32 %v40, %v185
  %v187 = vpop.f32.mrf.mxu0
  %v188 = vpop.f32.mrf.mxu0
  %v189 = vadd.f32 %v40, %v188
  %v190 = vpop.f32.mrf.mxu0
  %191 = vmatprep.mubr.bf16.mxu0 0
  %192 = vmatmul.mubr.bf16.gmra.mxu0 %v111
  %v193 = vpop.f32.mrf.mxu0
  %v194 = vadd.f32 %v40, %v193
  %v195 = vpop.f32.mrf.mxu0
  %v196 = vpop.f32.mrf.mxu0
  %v197 = vadd.f32 %v40, %v196
  %v198 = vpop.f32.mrf.mxu0
  %199 = vmatprep.mubr.bf16.mxu0 0
  %200 = vmatmul.mubr.bf16.gmra.mxu0 %v114
  %v201 = vpop.f32.mrf.mxu0
  %v202 = vadd.f32 %v40, %v201
  %v203 = vpop.f32.mrf.mxu0
  %v204 = vpop.f32.mrf.mxu0
  %v205 = vadd.f32 %v40, %v204
  %v206 = vpop.f32.mrf.mxu0
  %207 = vmatprep.mubr.bf16.mxu0 0
  %208 = vmatmul.mubr.bf16.gmra.mxu0 %v117
  %v209 = vpop.f32.mrf.mxu0
  %v210 = vadd.f32 %v40, %v209
  %v211 = vpop.f32.mrf.mxu0
  %v212 = vpop.f32.mrf.mxu0
  %v213 = vadd.f32 %v40, %v212
  %v214 = vpop.f32.mrf.mxu0
  %215 = vdwg.mxu0
  %v216 = vsel %vm94, %v154, 0.0
  %v217 = vsel %vm94, %v157, 0.0
  %v218 = vadd.f32 %v216, %v217
  %v219 = vsel %vm94, %v162, 0.0
  %v220 = vadd.f32 %v218, %v219
  %v221 = vsel %vm94, %v165, 0.0
  %v222 = vadd.f32 %v220, %v221
  %v223 = vsel %vm94, %v170, 0.0
  %v224 = vadd.f32 %v222, %v223
  %v225 = vsel %vm94, %v173, 0.0
  %v226 = vadd.f32 %v224, %v225
  %v227 = vsel %vm94, %v178, 0.0
  %v228 = vadd.f32 %v226, %v227
  %v229 = vsel %vm94, %v181, 0.0
  %v230 = vadd.f32 %v228, %v229
  %v231 = vsel %vm94, %v186, 0.0
  %v232 = vadd.f32 %v230, %v231
  %v233 = vsel %vm94, %v189, 0.0
  %v234 = vadd.f32 %v232, %v233
  %v235 = vsel %vm94, %v194, 0.0
  %v236 = vadd.f32 %v234, %v235
  %v237 = vsel %vm94, %v197, 0.0
  %v238 = vadd.f32 %v236, %v237
  %v239 = vsel %vm94, %v202, 0.0
  %v240 = vadd.f32 %v238, %v239
  %v241 = vsel %vm94, %v205, 0.0
  %v242 = vadd.f32 %v240, %v241
  %v243 = vsel %vm94, %v210, 0.0
  %v244 = vadd.f32 %v242, %v243
  %v245 = vsel %vm94, %v213, 0.0
  %v246 = vadd.f32 %v244, %v245
  %v247 = vrot.slane %v246, 4
  %v248 = vadd.f32 %v246, %v247
  %v249 = vrot.slane %v248, 2
  %v250 = vadd.f32 %v248, %v249
  %v251 = vrot.slane %v250, 1
  %v252 = vadd.f32 %v250, %v251
  %v253 = vmul.f32 %v252, 0.0078125
  %v254 = vsub.f32 %v154, %v253
  %v255 = vsub.f32 %v157, %v253
  %v256 = vsub.f32 %v162, %v253
  %v257 = vsub.f32 %v165, %v253
  %v258 = vsub.f32 %v170, %v253
  %v259 = vsub.f32 %v173, %v253
  %v260 = vsub.f32 %v178, %v253
  %v261 = vsub.f32 %v181, %v253
  %v262 = vsub.f32 %v186, %v253
  %v263 = vsub.f32 %v189, %v253
  %v264 = vsub.f32 %v194, %v253
  %v265 = vsub.f32 %v197, %v253
  %v266 = vsub.f32 %v202, %v253
  %v267 = vsub.f32 %v205, %v253
  %v268 = vsub.f32 %v210, %v253
  %v269 = vsub.f32 %v213, %v253
  %v270 = vmul.f32 %v254, %v254
  %v271 = vmul.f32 %v255, %v255
  %v272 = vmul.f32 %v256, %v256
  %v273 = vmul.f32 %v257, %v257
  %v274 = vmul.f32 %v258, %v258
  %v275 = vmul.f32 %v259, %v259
  %v276 = vmul.f32 %v260, %v260
  %v277 = vmul.f32 %v261, %v261
  %v278 = vmul.f32 %v262, %v262
  %v279 = vmul.f32 %v263, %v263
  %v280 = vmul.f32 %v264, %v264
  %v281 = vmul.f32 %v265, %v265
  %v282 = vmul.f32 %v266, %v266
  %v283 = vmul.f32 %v267, %v267
  %v284 = vmul.f32 %v268, %v268
  %v285 = vmul.f32 %v269, %v269
  %v286 = vsel %vm94, %v270, 0.0
  %v287 = vsel %vm94, %v271, 0.0
  %v288 = vadd.f32 %v286, %v287
  %v289 = vsel %vm94, %v272, 0.0
  %v290 = vadd.f32 %v288, %v289
  %v291 = vsel %vm94, %v273, 0.0
  %v292 = vadd.f32 %v290, %v291
  %v293 = vsel %vm94, %v274, 0.0
  %v294 = vadd.f32 %v292, %v293
  %v295 = vsel %vm94, %v275, 0.0
  %v296 = vadd.f32 %v294, %v295
  %v297 = vsel %vm94, %v276, 0.0
  %v298 = vadd.f32 %v296, %v297
  %v299 = vsel %vm94, %v277, 0.0
  %v300 = vadd.f32 %v298, %v299
  %v301 = vsel %vm94, %v278, 0.0
  %v302 = vadd.f32 %v300, %v301
  %v303 = vsel %vm94, %v279, 0.0
  %v304 = vadd.f32 %v302, %v303
  %v305 = vsel %vm94, %v280, 0.0
  %v306 = vadd.f32 %v304, %v305
  %v307 = vsel %vm94, %v281, 0.0
  %v308 = vadd.f32 %v306, %v307
  %v309 = vsel %vm94, %v282, 0.0
  %v310 = vadd.f32 %v308, %v309
  %v311 = vsel %vm94, %v283, 0.0
  %v312 = vadd.f32 %v310, %v311
  %v313 = vsel %vm94, %v284, 0.0
  %v314 = vadd.f32 %v312, %v313
  %v315 = vsel %vm94, %v285, 0.0
  %v316 = vadd.f32 %v314, %v315
  %v317 = vrot.slane %v316, 4
  %v318 = vadd.f32 %v316, %v317
  %v319 = vrot.slane %v318, 2
  %v320 = vadd.f32 %v318, %v319
  %v321 = vrot.slane %v320, 1
  %v322 = vadd.f32 %v320, %v321
  %v323 = vmul.f32 %v322, 0.0078125
  %v324 = vadd.f32 %v323, 1e-05
  %v325 = vrsqrt.pop %v324
  %v326 = vmul.f32 %v254, %v325
  %v327 = vmul.f32 %v255, %v325
  %v328 = vmul.f32 %v256, %v325
  %v329 = vmul.f32 %v257, %v325
  %v330 = vmul.f32 %v258, %v325
  %v331 = vmul.f32 %v259, %v325
  %v332 = vmul.f32 %v260, %v325
  %v333 = vmul.f32 %v261, %v325
  %v334 = vmul.f32 %v262, %v325
  %v335 = vmul.f32 %v263, %v325
  %v336 = vmul.f32 %v264, %v325
  %v337 = vmul.f32 %v265, %v325
  %v338 = vmul.f32 %v266, %v325
  %v339 = vmul.f32 %v267, %v325
  %v340 = vmul.f32 %v268, %v325
  %v341 = vmul.f32 %v269, %v325
  %v342 = vmax.f32 %v326, 0.0
  %v343 = vmax.f32 %v327, 0.0
  %v344 = vmax.f32 %v328, 0.0
  %v345 = vmax.f32 %v329, 0.0
  %v346 = vmax.f32 %v330, 0.0
  %v347 = vmax.f32 %v331, 0.0
  %v348 = vmax.f32 %v332, 0.0
  %v349 = vmax.f32 %v333, 0.0
  %v350 = vmax.f32 %v334, 0.0
  %v351 = vmax.f32 %v335, 0.0
  %v352 = vmax.f32 %v336, 0.0
  %v353 = vmax.f32 %v337, 0.0
  %v354 = vmax.f32 %v338, 0.0
  %v355 = vmax.f32 %v339, 0.0
  %v356 = vmax.f32 %v340, 0.0
  %v357 = vmax.f32 %v341, 0.0
  %v358 = vpack.c.bf16 %v343, %v342
  %v359 = vpack.c.bf16 %v345, %v344
  %v360 = vpack.c.bf16 %v347, %v346
  %v361 = vpack.c.bf16 %v349, %v348
  %v362 = vpack.c.bf16 %v351, %v350
  %v363 = vpack.c.bf16 %v353, %v352
  %v364 = vpack.c.bf16 %v355, %v354
  %v365 = vpack.c.bf16 %v357, %v356
  %v374 = vunpack.c.l.b16 %v358
  %v375 = vunpack.c.h.b16 %v358
  %v376 = vunpack.c.l.b16 %v359
  %v377 = vunpack.c.h.b16 %v359
  %v378 = vunpack.c.l.b16 %v360
  %v379 = vunpack.c.h.b16 %v360
  %v380 = vunpack.c.l.b16 %v361
  %v381 = vunpack.c.h.b16 %v361
  %v382 = vunpack.c.l.b16 %v362
  %v383 = vunpack.c.h.b16 %v362
  %v384 = vunpack.c.l.b16 %v363
  %v385 = vunpack.c.h.b16 %v363
  %v386 = vunpack.c.l.b16 %v364
  %v387 = vunpack.c.h.b16 %v364
  %v388 = vunpack.c.l.b16 %v365
  %v389 = vunpack.c.h.b16 %v365
  %v390 = vpack.c.b16 %v374, %v374
  %v391 = vpack.c.b16 %v375, %v375
  %v392 = vpack.c.b16 %v376, %v376
  %v393 = vpack.c.b16 %v377, %v377
  %v394 = vpack.c.b16 %v378, %v378
  %v395 = vpack.c.b16 %v379, %v379
  %v396 = vpack.c.b16 %v380, %v380
  %v397 = vpack.c.b16 %v381, %v381
  %v398 = vpack.c.b16 %v382, %v382
  %v399 = vpack.c.b16 %v383, %v383
  %v400 = vpack.c.b16 %v384, %v384
  %v401 = vpack.c.b16 %v385, %v385
  %v402 = vpack.c.b16 %v386, %v386
  %v403 = vpack.c.b16 %v387, %v387
  %v404 = vpack.c.b16 %v388, %v388
  %v405 = vpack.c.b16 %v389, %v389
  %vm422 = vcmask 257024
  %423 = vst.msk [vmem:[%s3] sm:$0xf] %vm422, %v390
  %424 = vst.msk [vmem:[%s3 + $0x4] sm:$0xf] %vm422, %v391
  %425 = vst.msk [vmem:[%s3 + $0x8] sm:$0xf] %vm422, %v392
  %426 = vst.msk [vmem:[%s3 + $0xc] sm:$0xf] %vm422, %v393
  %427 = vst.msk [vmem:[%s3 + $0x10] sm:$0xf] %vm422, %v394
  %428 = vst.msk [vmem:[%s3 + $0x14] sm:$0xf] %vm422, %v395
  %429 = vst.msk [vmem:[%s3 + $0x18] sm:$0xf] %vm422, %v396
  %430 = vst.msk [vmem:[%s3 + $0x1c] sm:$0xf] %vm422, %v397
  %431 = vst.msk [vmem:[%s3 + $0x20] sm:$0xf] %vm422, %v398
  %432 = vst.msk [vmem:[%s3 + $0x24] sm:$0xf] %vm422, %v399
  %433 = vst.msk [vmem:[%s3 + $0x28] sm:$0xf] %vm422, %v400
  %434 = vst.msk [vmem:[%s3 + $0x2c] sm:$0xf] %vm422, %v401
  %435 = vst.msk [vmem:[%s3 + $0x30] sm:$0xf] %vm422, %v402
  %436 = vst.msk [vmem:[%s3 + $0x34] sm:$0xf] %vm422, %v403
  %437 = vst.msk [vmem:[%s3 + $0x38] sm:$0xf] %vm422, %v404
  %438 = vst.msk [vmem:[%s3 + $0x3c] sm:$0xf] %vm422, %v405
  // Predicated region
  $region14: #{cnn_forward.8} parent=0 // pred_check
    _
  $region15: #{cnn_forward.8} parent=0 // pred_check_branch
    %440 = sbr.rel (0) target = $region17
  $region16: #{cnn_forward.8} parent=0 // pred_region
    _
  $region17: #{cnn_forward.8} parent=0 // pred_fallthru
    _
  // Predicated region
  $region18: #{cnn_forward.8} parent=0 // pred_check
    _
  $region19: #{cnn_forward.8} parent=0 // pred_check_branch
    %442 = sbr.rel (0) target = $region21
  $region20: #{cnn_forward.8} parent=0 // pred_region
    _
  $region21: #{cnn_forward.8} parent=0 // pred_fallthru
    _

// kernel: cnn_forward.9
$region0: #{cnn_forward.9}
  #allocation0 [shape = 'u32[]', space=smem, size = 0x4, offset = 0x4, fixed_abs, tag = 'smem constant byte address 0x4 - core index']
  #allocation1 [shape = 'u32[144,128]{1,0:T(1,128)}', space=vmem, size = 0x12000, scoped, tag = 'internal scratch']
  %s0 = inlined_call_operand.vmem [shape: bf16[32,512], index: 0, kind: input, shape index: {}]
  %s1 = inlined_call_operand.vmem [shape: bf16[512,64], index: 1, kind: input, shape index: {}]
  %s2 = inlined_call_operand.vmem [shape: f32[1,64], index: 2, kind: input, shape index: {}]
  %s3 = inlined_call_operand.vmem [shape: bf16[32,64], index: 3, kind: output, shape index: {}]
  %s4 = sld [smem:[#allocation0]]
  $region22: #{cnn_forward.9} parent=0
    _
  %s6 = ssub.s32 1, %s4
  %s7 = scalar_select 0, %s6, %s4
  // Predicated region
  $region2: #{cnn_forward.9} parent=0 // pred_check
    _
  $region3: #{cnn_forward.9} parent=0 // pred_check_branch
    %9 = sbr.rel (0) target = $region5
  $region4: #{cnn_forward.9} parent=0 // pred_region
    _
  $region5: #{cnn_forward.9} parent=0 // pred_fallthru
    _
  // Predicated region
  $region6: #{cnn_forward.9} parent=0 // pred_check
    _
  $region7: #{cnn_forward.9} parent=0 // pred_check_branch
    %11 = sbr.rel (0) target = $region9
  $region8: #{cnn_forward.9} parent=0 // pred_region
    _
  $region9: #{cnn_forward.9} parent=0 // pred_fallthru
    _
  // Predicated region
  $region10: #{cnn_forward.9} parent=0 // pred_check
    _
  $region11: #{cnn_forward.9} parent=0 // pred_check_branch
    %13 = sbr.rel (0) target = $region13
  $region12: #{cnn_forward.9} parent=0 // pred_region
    _
  $region13: #{cnn_forward.9} parent=0 // pred_fallthru
    _
  %v15 = vld [vmem:[%s0] sm:$0xff]
  %v16 = vld [vmem:[%s0 + $0x8] sm:$0xff]
  %v17 = vld [vmem:[%s0 + $0x10] sm:$0xff]
  %v18 = vld [vmem:[%s0 + $0x18] sm:$0xff]
  %v19 = vld [vmem:[%s0 + $0x20] sm:$0xff]
  %v20 = vld [vmem:[%s0 + $0x28] sm:$0xff]
  %v21 = vld [vmem:[%s0 + $0x30] sm:$0xff]
  %v22 = vld [vmem:[%s0 + $0x38] sm:$0xff]
  %v23 = vld [vmem:[%s1] sm:$0xf]
  %v24 = vld [vmem:[%s1 + $0x4] sm:$0xf]
  %v25 = vld [vmem:[%s1 + $0x8] sm:$0xf]
  %v26 = vld [vmem:[%s1 + $0xc] sm:$0xf]
  %v27 = vld [vmem:[%s1 + $0x10] sm:$0xf]
  %v28 = vld [vmem:[%s1 + $0x14] sm:$0xf]
  %v29 = vld [vmem:[%s1 + $0x18] sm:$0xf]
  %v30 = vld [vmem:[%s1 + $0x1c] sm:$0xf]
  %v31 = vld [vmem:[%s1 + $0x20] sm:$0xf]
  %v32 = vld [vmem:[%s1 + $0x24] sm:$0xf]
  %v33 = vld [vmem:[%s1 + $0x28] sm:$0xf]
  %v34 = vld [vmem:[%s1 + $0x2c] sm:$0xf]
  %v35 = vld [vmem:[%s1 + $0x30] sm:$0xf]
  %v36 = vld [vmem:[%s1 + $0x34] sm:$0xf]
  %v37 = vld [vmem:[%s1 + $0x38] sm:$0xf]
  %v38 = vld [vmem:[%s1 + $0x3c] sm:$0xf]
  %v39 = vld [vmem:[%s1 + $0x40] sm:$0xf]
  %v40 = vld [vmem:[%s1 + $0x44] sm:$0xf]
  %v41 = vld [vmem:[%s1 + $0x48] sm:$0xf]
  %v42 = vld [vmem:[%s1 + $0x4c] sm:$0xf]
  %v43 = vld [vmem:[%s1 + $0x50] sm:$0xf]
  %v44 = vld [vmem:[%s1 + $0x54] sm:$0xf]
  %v45 = vld [vmem:[%s1 + $0x58] sm:$0xf]
  %v46 = vld [vmem:[%s1 + $0x5c] sm:$0xf]
  %v47 = vld [vmem:[%s1 + $0x60] sm:$0xf]
  %v48 = vld [vmem:[%s1 + $0x64] sm:$0xf]
  %v49 = vld [vmem:[%s1 + $0x68] sm:$0xf]
  %v50 = vld [vmem:[%s1 + $0x6c] sm:$0xf]
  %v51 = vld [vmem:[%s1 + $0x70] sm:$0xf]
  %v52 = vld [vmem:[%s1 + $0x74] sm:$0xf]
  %v53 = vld [vmem:[%s1 + $0x78] sm:$0xf]
  %v54 = vld [vmem:[%s1 + $0x7c] sm:$0xf]
  %v55 = vld [vmem:[%s1 + $0x80] sm:$0xf]
  %v56 = vld [vmem:[%s1 + $0x84] sm:$0xf]
  %v57 = vld [vmem:[%s1 + $0x88] sm:$0xf]
  %v58 = vld [vmem:[%s1 + $0x8c] sm:$0xf]
  %v59 = vld [vmem:[%s1 + $0x90] sm:$0xf]
  %v60 = vld [vmem:[%s1 + $0x94] sm:$0xf]
  %v61 = vld [vmem:[%s1 + $0x98] sm:$0xf]
  %v62 = vld [vmem:[%s1 + $0x9c] sm:$0xf]
  %v63 = vld [vmem:[%s1 + $0xa0] sm:$0xf]
  %v64 = vld [vmem:[%s1 + $0xa4] sm:$0xf]
  %v65 = vld [vmem:[%s1 + $0xa8] sm:$0xf]
  %v66 = vld [vmem:[%s1 + $0xac] sm:$0xf]
  %v67 = vld [vmem:[%s1 + $0xb0] sm:$0xf]
  %v68 = vld [vmem:[%s1 + $0xb4] sm:$0xf]
  %v69 = vld [vmem:[%s1 + $0xb8] sm:$0xf]
  %v70 = vld [vmem:[%s1 + $0xbc] sm:$0xf]
  %v71 = vld [vmem:[%s1 + $0xc0] sm:$0xf]
  %v72 = vld [vmem:[%s1 + $0xc4] sm:$0xf]
  %v73 = vld [vmem:[%s1 + $0xc8] sm:$0xf]
  %v74 = vld [vmem:[%s1 + $0xcc] sm:$0xf]
  %v75 = vld [vmem:[%s1 + $0xd0] sm:$0xf]
  %v76 = vld [vmem:[%s1 + $0xd4] sm:$0xf]
  %v77 = vld [vmem:[%s1 + $0xd8] sm:$0xf]
  %v78 = vld [vmem:[%s1 + $0xdc] sm:$0xf]
  %v79 = vld [vmem:[%s1 + $0xe0] sm:$0xf]
  %v80 = vld [vmem:[%s1 + $0xe4] sm:$0xf]
  %v81 = vld [vmem:[%s1 + $0xe8] sm:$0xf]
  %v82 = vld [vmem:[%s1 + $0xec] sm:$0xf]
  %v83 = vld [vmem:[%s1 + $0xf0] sm:$0xf]
  %v84 = vld [vmem:[%s1 + $0xf4] sm:$0xf]
  %v85 = vld [vmem:[%s1 + $0xf8] sm:$0xf]
  %v86 = vld [vmem:[%s1 + $0xfc] sm:$0xf]
  %v87 = vld [vmem:[%s2] sm:$0x1]
  %v89 = vlaneseq
  %v90 = vshrl.u32 %v89, 7
  %v91 = vsub.s32 0, %v90
  %v92 = vrot.slane %v87, %v91
  %v102 = vunpack.c.l.b16 %v15
  %v103 = vunpack.c.h.b16 %v15
  %v104 = vunpack.c.l.b16 %v16
  %v105 = vunpack.c.h.b16 %v16
  %v106 = vunpack.c.l.b16 %v17
  %v107 = vunpack.c.h.b16 %v17
  %v108 = vunpack.c.l.b16 %v18
  %v109 = vunpack.c.h.b16 %v18
  %v110 = vunpack.c.l.b16 %v19
  %v111 = vunpack.c.h.b16 %v19
  %v112 = vunpack.c.l.b16 %v20
  %v113 = vunpack.c.h.b16 %v20
  %v114 = vunpack.c.l.b16 %v21
  %v115 = vunpack.c.h.b16 %v21
  %v116 = vunpack.c.l.b16 %v22
  %v117 = vunpack.c.h.b16 %v22
  %v118 = vpack.c.b16 %v106, %v102
  %v119 = vpack.c.b16 %v107, %v103
  %v120 = vpack.c.b16 %v108, %v104
  %v121 = vpack.c.b16 %v109, %v105
  %v122 = vpack.c.b16 %v114, %v110
  %v123 = vpack.c.b16 %v115, %v111
  %v124 = vpack.c.b16 %v116, %v112
  %v125 = vpack.c.b16 %v117, %v113
  %v198 = vunpack.c.l.b16 %v23
  %v199 = vunpack.c.l.b16 %v24
  %v200 = vunpack.c.l.b16 %v25
  %v201 = vunpack.c.l.b16 %v26
  %v202 = vunpack.c.l.b16 %v27
  %v203 = vunpack.c.l.b16 %v28
  %v204 = vunpack.c.l.b16 %v29
  %v205 = vunpack.c.l.b16 %v30
  %v206 = vunpack.c.l.b16 %v31
  %v207 = vunpack.c.l.b16 %v32
  %v208 = vunpack.c.l.b16 %v33
  %v209 = vunpack.c.l.b16 %v34
  %v210 = vunpack.c.l.b16 %v35
  %v211 = vunpack.c.l.b16 %v36
  %v212 = vunpack.c.l.b16 %v37
  %v213 = vunpack.c.l.b16 %v38
  %v214 = vunpack.c.l.b16 %v39
  %v215 = vunpack.c.l.b16 %v40
  %v216 = vunpack.c.l.b16 %v41
  %v217 = vunpack.c.l.b16 %v42
  %v218 = vunpack.c.l.b16 %v43
  %v219 = vunpack.c.l.b16 %v44
  %v220 = vunpack.c.l.b16 %v45
  %v221 = vunpack.c.l.b16 %v46
  %v222 = vunpack.c.l.b16 %v47
  %v223 = vunpack.c.l.b16 %v48
  %v224 = vunpack.c.l.b16 %v49
  %v225 = vunpack.c.l.b16 %v50
  %v226 = vunpack.c.l.b16 %v51
  %v227 = vunpack.c.l.b16 %v52
  %v228 = vunpack.c.l.b16 %v53
  %v229 = vunpack.c.l.b16 %v54
  %v230 = vunpack.c.l.b16 %v55
  %v231 = vunpack.c.l.b16 %v56
  %v232 = vunpack.c.l.b16 %v57
  %v233 = vunpack.c.l.b16 %v58
  %v234 = vunpack.c.l.b16 %v59
  %v235 = vunpack.c.l.b16 %v60
  %v236 = vunpack.c.l.b16 %v61
  %v237 = vunpack.c.l.b16 %v62
  %v238 = vunpack.c.l.b16 %v63
  %v239 = vunpack.c.l.b16 %v64
  %v240 = vunpack.c.l.b16 %v65
  %v241 = vunpack.c.l.b16 %v66
  %v242 = vunpack.c.l.b16 %v67
  %v243 = vunpack.c.l.b16 %v68
  %v244 = vunpack.c.l.b16 %v69
  %v245 = vunpack.c.l.b16 %v70
  %v246 = vunpack.c.l.b16 %v71
  %v247 = vunpack.c.l.b16 %v72
  %v248 = vunpack.c.l.b16 %v73
  %v249 = vunpack.c.l.b16 %v74
  %v250 = vunpack.c.l.b16 %v75
  %v251 = vunpack.c.l.b16 %v76
  %v252 = vunpack.c.l.b16 %v77
  %v253 = vunpack.c.l.b16 %v78
  %v254 = vunpack.c.l.b16 %v79
  %v255 = vunpack.c.l.b16 %v80
  %v256 = vunpack.c.l.b16 %v81
  %v257 = vunpack.c.l.b16 %v82
  %v258 = vunpack.c.l.b16 %v83
  %v259 = vunpack.c.l.b16 %v84
  %v260 = vunpack.c.l.b16 %v85
  %v261 = vunpack.c.l.b16 %v86
  %v262 = vpack.c.b16 %v199, %v198
  %v263 = vpack.c.b16 %v201, %v200
  %v264 = vpack.c.b16 %v203, %v202
  %v265 = vpack.c.b16 %v205, %v204
  %v266 = vpack.c.b16 %v207, %v206
  %v267 = vpack.c.b16 %v209, %v208
  %v268 = vpack.c.b16 %v211, %v210
  %v269 = vpack.c.b16 %v213, %v212
  %v270 = vpack.c.b16 %v215, %v214
  %v271 = vpack.c.b16 %v217, %v216
  %v272 = vpack.c.b16 %v219, %v218
  %v273 = vpack.c.b16 %v221, %v220
  %v274 = vpack.c.b16 %v223, %v222
  %v275 = vpack.c.b16 %v225, %v224
  %v276 = vpack.c.b16 %v227, %v226
  %v277 = vpack.c.b16 %v229, %v228
  %v278 = vpack.c.b16 %v231, %v230
  %v279 = vpack.c.b16 %v233, %v232
  %v280 = vpack.c.b16 %v235, %v234
  %v281 = vpack.c.b16 %v237, %v236
  %v282 = vpack.c.b16 %v239, %v238
  %v283 = vpack.c.b16 %v241, %v240
  %v284 = vpack.c.b16 %v243, %v242
  %v285 = vpack.c.b16 %v245, %v244
  %v286 = vpack.c.b16 %v247, %v246
  %v287 = vpack.c.b16 %v249, %v248
  %v288 = vpack.c.b16 %v251, %v250
  %v289 = vpack.c.b16 %v253, %v252
  %v290 = vpack.c.b16 %v255, %v254
  %v291 = vpack.c.b16 %v257, %v256
  %v292 = vpack.c.b16 %v259, %v258
  %v293 = vpack.c.b16 %v261, %v260
  %326 = vmatprep.subr.bf16.mxu0 0
  %327 = vmatpush1.bf16.msra.mxu0 %v269
  %328 = vmatprep.subr.bf16.mxu0 0
  %329 = vmatpush1.bf16.msra.mxu0 %v268
  %330 = vmatprep.subr.bf16.mxu0 0
  %331 = vmatpush1.bf16.msra.mxu0 %v267
  %332 = vmatprep.subr.bf16.mxu0 0
  %333 = vmatpush1.bf16.msra.mxu0 %v266
  %334 = vmatprep.subr.bf16.mxu0 0
  %335 = vmatpush1.bf16.msra.mxu0 %v265
  %336 = vmatprep.subr.bf16.mxu0 0
  %337 = vmatpush1.bf16.msra.mxu0 %v264
  %338 = vmatprep.subr.bf16.mxu0 0
  %339 = vmatpush1.bf16.msra.mxu0 %v263
  %340 = vmatprep.subr.bf16.mxu0 0
  %341 = vmatpush1.bf16.msra.mxu0 %v262
  %342 = vmatprep.subr.bf16.mxu0 0
  %343 = vmatpush2.bf16.msra.mxu0 %v277
  %344 = vmatprep.subr.bf16.mxu0 0
  %345 = vmatpush2.bf16.msra.mxu0 %v276
  %346 = vmatprep.subr.bf16.mxu0 0
  %347 = vmatpush2.bf16.msra.mxu0 %v275
  %348 = vmatprep.subr.bf16.mxu0 0
  %349 = vmatpush2.bf16.msra.mxu0 %v274
  %350 = vmatprep.subr.bf16.mxu0 0
  %351 = vmatpush2.bf16.msra.mxu0 %v273
  %352 = vmatprep.subr.bf16.mxu0 0
  %353 = vmatpush2.bf16.msra.mxu0 %v272
  %354 = vmatprep.subr.bf16.mxu0 0
  %355 = vmatpush2.bf16.msra.mxu0 %v271
  %356 = vmatprep.subr.bf16.mxu0 0
  %357 = vmatpush2.bf16.msra.mxu0 %v270
  %358 = vmatprep.mubr.bf16.mxu0 %v119
  %359 = vmatmul.mubr.bf16.gmra.mxu0 %v118
  %v360 = vpop.f32.mrf.mxu0
  %v361 = vadd.f32 %v92, %v360
  %v362 = vpop.f32.mrf.mxu0
  %v363 = vpop.f32.mrf.mxu0
  %v364 = vadd.f32 %v92, %v363
  %v365 = vpop.f32.mrf.mxu0
  %366 = vmatprep.mubr.bf16.mxu0 %v123
  %367 = vmatmul.mubr.bf16.gmra.mxu0 %v122
  %v368 = vpop.f32.mrf.mxu0
  %v369 = vadd.f32 %v92, %v368
  %v370 = vpop.f32.mrf.mxu0
  %v371 = vpop.f32.mrf.mxu0
  %v372 = vadd.f32 %v92, %v371
  %v373 = vpop.f32.mrf.mxu0
  %374 = vdwg.mxu0
  %375 = vmatprep.subr.bf16.mxu0 0
  %376 = vmatpush1.bf16.msra.mxu0 %v285
  %377 = vmatprep.subr.bf16.mxu0 0
  %378 = vmatpush1.bf16.msra.mxu0 %v284
  %379 = vmatprep.subr.bf16.mxu0 0
  %380 = vmatpush1.bf16.msra.mxu0 %v283
  %381 = vmatprep.subr.bf16.mxu0 0
  %382 = vmatpush1.bf16.msra.mxu0 %v282
  %383 = vmatprep.subr.bf16.mxu0 0
  %384 = vmatpush1.bf16.msra.mxu0 %v281
  %385 = vmatprep.subr.bf16.mxu0 0
  %386 = vmatpush1.bf16.msra.mxu0 %v280
  %387 = vmatprep.subr.bf16.mxu0 0
  %388 = vmatpush1.bf16.msra.mxu0 %v279
  %389 = vmatprep.subr.bf16.mxu0 0
  %390 = vmatpush1.bf16.msra.mxu0 %v278
  %391 = vmatprep.subr.bf16.mxu0 0
  %392 = vmatpush2.bf16.msra.mxu0 %v293
  %393 = vmatprep.subr.bf16.mxu0 0
  %394 = vmatpush2.bf16.msra.mxu0 %v292
  %395 = vmatprep.subr.bf16.mxu0 0
  %396 = vmatpush2.bf16.msra.mxu0 %v291
  %397 = vmatprep.subr.bf16.mxu0 0
  %398 = vmatpush2.bf16.msra.mxu0 %v290
  %399 = vmatprep.subr.bf16.mxu0 0
  %400 = vmatpush2.bf16.msra.mxu0 %v289
  %401 = vmatprep.subr.bf16.mxu0 0
  %402 = vmatpush2.bf16.msra.mxu0 %v288
  %403 = vmatprep.subr.bf16.mxu0 0
  %404 = vmatpush2.bf16.msra.mxu0 %v287
  %405 = vmatprep.subr.bf16.mxu0 0
  %406 = vmatpush2.bf16.msra.mxu0 %v286
  %407 = vmatprep.mubr.bf16.mxu0 %v121
  %408 = vmatmul.mubr.bf16.gmra.mxu0 %v120
  %v409 = vpop.f32.mrf.mxu0
  %v410 = vadd.f32 %v361, %v409
  %v411 = vpop.f32.mrf.mxu0
  %v412 = vpop.f32.mrf.mxu0
  %v413 = vadd.f32 %v364, %v412
  %v414 = vpop.f32.mrf.mxu0
  %415 = vmatprep.mubr.bf16.mxu0 %v125
  %416 = vmatmul.mubr.bf16.gmra.mxu0 %v124
  %v417 = vpop.f32.mrf.mxu0
  %v418 = vadd.f32 %v369, %v417
  %v419 = vpop.f32.mrf.mxu0
  %v420 = vpop.f32.mrf.mxu0
  %v421 = vadd.f32 %v372, %v420
  %v422 = vpop.f32.mrf.mxu0
  %423 = vdwg.mxu0
  %vm424 = vcmask 523264
  %v425 = vsel %vm424, %v410, 0.0
  %v426 = vsel %vm424, %v413, 0.0
  %v427 = vadd.f32 %v425, %v426
  %v428 = vsel %vm424, %v418, 0.0
  %v429 = vadd.f32 %v427, %v428
  %v430 = vsel %vm424, %v421, 0.0
  %v431 = vadd.f32 %v429, %v430
  %v432 = vrot.slane %v431, 4
  %v433 = vadd.f32 %v431, %v432
  %v434 = vrot.slane %v433, 2
  %v435 = vadd.f32 %v433, %v434
  %v436 = vrot.slane %v435, 1
  %v437 = vadd.f32 %v435, %v436
  %v438 = vmul.f32 %v437, 0.03125
  %v439 = vsub.f32 %v410, %v438
  %v440 = vsub.f32 %v413, %v438
  %v441 = vsub.f32 %v418, %v438
  %v442 = vsub.f32 %v421, %v438
  %v443 = vmul.f32 %v439, %v439
  %v444 = vmul.f32 %v440, %v440
  %v445 = vmul.f32 %v441, %v441
  %v446 = vmul.f32 %v442, %v442
  %v447 = vsel %vm424, %v443, 0.0
  %v448 = vsel %vm424, %v444, 0.0
  %v449 = vadd.f32 %v447, %v448
  %v450 = vsel %vm424, %v445, 0.0
  %v451 = vadd.f32 %v449, %v450
  %v452 = vsel %vm424, %v446, 0.0
  %v453 = vadd.f32 %v451, %v452
  %v454 = vrot.slane %v453, 4
  %v455 = vadd.f32 %v453, %v454
  %v456 = vrot.slane %v455, 2
  %v457 = vadd.f32 %v455, %v456
  %v458 = vrot.slane %v457, 1
  %v459 = vadd.f32 %v457, %v458
  %v460 = vmul.f32 %v459, 0.03125
  %v461 = vadd.f32 %v460, 1e-05
  %v462 = vrsqrt.pop %v461
  %v463 = vmul.f32 %v439, %v462
  %v464 = vmul.f32 %v440, %v462
  %v465 = vmul.f32 %v441, %v462
  %v466 = vmul.f32 %v442, %v462
  %v467 = vmax.f32 %v463, 0.0
  %v468 = vmax.f32 %v464, 0.0
  %v469 = vmax.f32 %v465, 0.0
  %v470 = vmax.f32 %v466, 0.0
  %v471 = vpack.c.bf16 %v468, %v467
  %v472 = vpack.c.bf16 %v470, %v469
  %v475 = vunpack.c.l.b16 %v471
  %v476 = vunpack.c.h.b16 %v471
  %v477 = vunpack.c.l.b16 %v472
  %v478 = vunpack.c.h.b16 %v472
  %v479 = vpack.c.b16 %v475, %v475
  %v480 = vpack.c.b16 %v476, %v476
  %v481 = vpack.c.b16 %v477, %v477
  %v482 = vpack.c.b16 %v478, %v478
  %vm487 = vcmask 519168
  %488 = vst.msk [vmem:[%s3] sm:$0xf] %vm487, %v479
  %489 = vst.msk [vmem:[%s3 + $0x4] sm:$0xf] %vm487, %v480
  %490 = vst.msk [vmem:[%s3 + $0x8] sm:$0xf] %vm487, %v481
  %491 = vst.msk [vmem:[%s3 + $0xc] sm:$0xf] %vm487, %v482
  // Predicated region
  $region14: #{cnn_forward.9} parent=0 // pred_check
    _
  $region15: #{cnn_forward.9} parent=0 // pred_check_branch
    %493 = sbr.rel (0) target = $region17
  $region16: #{cnn_forward.9} parent=0 // pred_region
    _
  $region17: #{cnn_forward.9} parent=0 // pred_fallthru
    _
  // Predicated region
  $region18: #{cnn_forward.9} parent=0 // pred_check
    _
  $region19: #{cnn_forward.9} parent=0 // pred_check_branch
    %495 = sbr.rel (0) target = $region21
  $region20: #{cnn_forward.9} parent=0 // pred_region
    _
  $region21: #{cnn_forward.9} parent=0 // pred_fallthru
    _

// kernel: cnn_forward.10
$region0: #{cnn_forward.10}
  #allocation0 [shape = 'u32[]', space=smem, size = 0x4, offset = 0x4, fixed_abs, tag = 'smem constant byte address 0x4 - core index']
  #allocation1 [shape = 'u32[144,128]{1,0:T(1,128)}', space=vmem, size = 0x12000, scoped, tag = 'internal scratch']
  %s0 = inlined_call_operand.vmem [shape: bf16[8,1024], index: 0, kind: input, shape index: {}]
  %s1 = inlined_call_operand.vmem [shape: bf16[1024,128], index: 1, kind: input, shape index: {}]
  %s2 = inlined_call_operand.vmem [shape: f32[1,128], index: 2, kind: input, shape index: {}]
  %s3 = inlined_call_operand.vmem [shape: bf16[8,128], index: 3, kind: output, shape index: {}]
  %s4 = sld [smem:[#allocation0]]
  $region22: #{cnn_forward.10} parent=0
    _
  %s6 = ssub.s32 1, %s4
  %s7 = scalar_select 0, %s6, %s4
  // Predicated region
  $region2: #{cnn_forward.10} parent=0 // pred_check
    _
  $region3: #{cnn_forward.10} parent=0 // pred_check_branch
    %9 = sbr.rel (0) target = $region5
  $region4: #{cnn_forward.10} parent=0 // pred_region
    _
  $region5: #{cnn_forward.10} parent=0 // pred_fallthru
    _
  // Predicated region
  $region6: #{cnn_forward.10} parent=0 // pred_check
    _
  $region7: #{cnn_forward.10} parent=0 // pred_check_branch
    %11 = sbr.rel (0) target = $region9
  $region8: #{cnn_forward.10} parent=0 // pred_region
    _
  $region9: #{cnn_forward.10} parent=0 // pred_fallthru
    _
  // Predicated region
  $region10: #{cnn_forward.10} parent=0 // pred_check
    _
  $region11: #{cnn_forward.10} parent=0 // pred_check_branch
    %13 = sbr.rel (0) target = $region13
  $region12: #{cnn_forward.10} parent=0 // pred_region
    _
  $region13: #{cnn_forward.10} parent=0 // pred_fallthru
    _
  %v15 = vld [vmem:[%s0] sm:$0xff]
  %v16 = vld [vmem:[%s0 + $0x8] sm:$0xff]
  %v17 = vld [vmem:[%s0 + $0x10] sm:$0xff]
  %v18 = vld [vmem:[%s0 + $0x18] sm:$0xff]
  %v19 = vld [vmem:[%s1] sm:$0xf]
  %v20 = vld [vmem:[%s1 + $0x4] sm:$0xf]
  %v21 = vld [vmem:[%s1 + $0x8] sm:$0xf]
  %v22 = vld [vmem:[%s1 + $0xc] sm:$0xf]
  %v23 = vld [vmem:[%s1 + $0x10] sm:$0xf]
  %v24 = vld [vmem:[%s1 + $0x14] sm:$0xf]
  %v25 = vld [vmem:[%s1 + $0x18] sm:$0xf]
  %v26 = vld [vmem:[%s1 + $0x1c] sm:$0xf]
  %v27 = vld [vmem:[%s1 + $0x20] sm:$0xf]
  %v28 = vld [vmem:[%s1 + $0x24] sm:$0xf]
  %v29 = vld [vmem:[%s1 + $0x28] sm:$0xf]
  %v30 = vld [vmem:[%s1 + $0x2c] sm:$0xf]
  %v31 = vld [vmem:[%s1 + $0x30] sm:$0xf]
  %v32 = vld [vmem:[%s1 + $0x34] sm:$0xf]
  %v33 = vld [vmem:[%s1 + $0x38] sm:$0xf]
  %v34 = vld [vmem:[%s1 + $0x3c] sm:$0xf]
  %v35 = vld [vmem:[%s1 + $0x40] sm:$0xf]
  %v36 = vld [vmem:[%s1 + $0x44] sm:$0xf]
  %v37 = vld [vmem:[%s1 + $0x48] sm:$0xf]
  %v38 = vld [vmem:[%s1 + $0x4c] sm:$0xf]
  %v39 = vld [vmem:[%s1 + $0x50] sm:$0xf]
  %v40 = vld [vmem:[%s1 + $0x54] sm:$0xf]
  %v41 = vld [vmem:[%s1 + $0x58] sm:$0xf]
  %v42 = vld [vmem:[%s1 + $0x5c] sm:$0xf]
  %v43 = vld [vmem:[%s1 + $0x60] sm:$0xf]
  %v44 = vld [vmem:[%s1 + $0x64] sm:$0xf]
  %v45 = vld [vmem:[%s1 + $0x68] sm:$0xf]
  %v46 = vld [vmem:[%s1 + $0x6c] sm:$0xf]
  %v47 = vld [vmem:[%s1 + $0x70] sm:$0xf]
  %v48 = vld [vmem:[%s1 + $0x74] sm:$0xf]
  %v49 = vld [vmem:[%s1 + $0x78] sm:$0xf]
  %v50 = vld [vmem:[%s1 + $0x7c] sm:$0xf]
  %v51 = vld [vmem:[%s1 + $0x80] sm:$0xf]
  %v52 = vld [vmem:[%s1 + $0x84] sm:$0xf]
  %v53 = vld [vmem:[%s1 + $0x88] sm:$0xf]
  %v54 = vld [vmem:[%s1 + $0x8c] sm:$0xf]
  %v55 = vld [vmem:[%s1 + $0x90] sm:$0xf]
  %v56 = vld [vmem:[%s1 + $0x94] sm:$0xf]
  %v57 = vld [vmem:[%s1 + $0x98] sm:$0xf]
  %v58 = vld [vmem:[%s1 + $0x9c] sm:$0xf]
  %v59 = vld [vmem:[%s1 + $0xa0] sm:$0xf]
  %v60 = vld [vmem:[%s1 + $0xa4] sm:$0xf]
  %v61 = vld [vmem:[%s1 + $0xa8] sm:$0xf]
  %v62 = vld [vmem:[%s1 + $0xac] sm:$0xf]
  %v63 = vld [vmem:[%s1 + $0xb0] sm:$0xf]
  %v64 = vld [vmem:[%s1 + $0xb4] sm:$0xf]
  %v65 = vld [vmem:[%s1 + $0xb8] sm:$0xf]
  %v66 = vld [vmem:[%s1 + $0xbc] sm:$0xf]
  %v67 = vld [vmem:[%s1 + $0xc0] sm:$0xf]
  %v68 = vld [vmem:[%s1 + $0xc4] sm:$0xf]
  %v69 = vld [vmem:[%s1 + $0xc8] sm:$0xf]
  %v70 = vld [vmem:[%s1 + $0xcc] sm:$0xf]
  %v71 = vld [vmem:[%s1 + $0xd0] sm:$0xf]
  %v72 = vld [vmem:[%s1 + $0xd4] sm:$0xf]
  %v73 = vld [vmem:[%s1 + $0xd8] sm:$0xf]
  %v74 = vld [vmem:[%s1 + $0xdc] sm:$0xf]
  %v75 = vld [vmem:[%s1 + $0xe0] sm:$0xf]
  %v76 = vld [vmem:[%s1 + $0xe4] sm:$0xf]
  %v77 = vld [vmem:[%s1 + $0xe8] sm:$0xf]
  %v78 = vld [vmem:[%s1 + $0xec] sm:$0xf]
  %v79 = vld [vmem:[%s1 + $0xf0] sm:$0xf]
  %v80 = vld [vmem:[%s1 + $0xf4] sm:$0xf]
  %v81 = vld [vmem:[%s1 + $0xf8] sm:$0xf]
  %v82 = vld [vmem:[%s1 + $0xfc] sm:$0xf]
  %v83 = vld [vmem:[%s1 + $0x100] sm:$0xf]
  %v84 = vld [vmem:[%s1 + $0x104] sm:$0xf]
  %v85 = vld [vmem:[%s1 + $0x108] sm:$0xf]
  %v86 = vld [vmem:[%s1 + $0x10c] sm:$0xf]
  %v87 = vld [vmem:[%s1 + $0x110] sm:$0xf]
  %v88 = vld [vmem:[%s1 + $0x114] sm:$0xf]
  %v89 = vld [vmem:[%s1 + $0x118] sm:$0xf]
  %v90 = vld [vmem:[%s1 + $0x11c] sm:$0xf]
  %v91 = vld [vmem:[%s1 + $0x120] sm:$0xf]
  %v92 = vld [vmem:[%s1 + $0x124] sm:$0xf]
  %v93 = vld [vmem:[%s1 + $0x128] sm:$0xf]
  %v94 = vld [vmem:[%s1 + $0x12c] sm:$0xf]
  %v95 = vld [vmem:[%s1 + $0x130] sm:$0xf]
  %v96 = vld [vmem:[%s1 + $0x134] sm:$0xf]
  %v97 = vld [vmem:[%s1 + $0x138] sm:$0xf]
  %v98 = vld [vmem:[%s1 + $0x13c] sm:$0xf]
  %v99 = vld [vmem:[%s1 + $0x140] sm:$0xf]
  %v100 = vld [vmem:[%s1 + $0x144] sm:$0xf]
  %v101 = vld [vmem:[%s1 + $0x148] sm:$0xf]
  %v102 = vld [vmem:[%s1 + $0x14c] sm:$0xf]
  %v103 = vld [vmem:[%s1 + $0x150] sm:$0xf]
  %v104 = vld [vmem:[%s1 + $0x154] sm:$0xf]
  %v105 = vld [vmem:[%s1 + $0x158] sm:$0xf]
  %v106 = vld [vmem:[%s1 + $0x15c] sm:$0xf]
  %v107 = vld [vmem:[%s1 + $0x160] sm:$0xf]
  %v108 = vld [vmem:[%s1 + $0x164] sm:$0xf]
  %v109 = vld [vmem:[%s1 + $0x168] sm:$0xf]
  %v110 = vld [vmem:[%s1 + $0x16c] sm:$0xf]
  %v111 = vld [vmem:[%s1 + $0x170] sm:$0xf]
  %v112 = vld [vmem:[%s1 + $0x174] sm:$0xf]
  %v113 = vld [vmem:[%s1 + $0x178] sm:$0xf]
  %v114 = vld [vmem:[%s1 + $0x17c] sm:$0xf]
  %v115 = vld [vmem:[%s1 + $0x180] sm:$0xf]
  %v116 = vld [vmem:[%s1 + $0x184] sm:$0xf]
  %v117 = vld [vmem:[%s1 + $0x188] sm:$0xf]
  %v118 = vld [vmem:[%s1 + $0x18c] sm:$0xf]
  %v119 = vld [vmem:[%s1 + $0x190] sm:$0xf]
  %v120 = vld [vmem:[%s1 + $0x194] sm:$0xf]
  %v121 = vld [vmem:[%s1 + $0x198] sm:$0xf]
  %v122 = vld [vmem:[%s1 + $0x19c] sm:$0xf]
  %v123 = vld [vmem:[%s1 + $0x1a0] sm:$0xf]
  %v124 = vld [vmem:[%s1 + $0x1a4] sm:$0xf]
  %v125 = vld [vmem:[%s1 + $0x1a8] sm:$0xf]
  %v126 = vld [vmem:[%s1 + $0x1ac] sm:$0xf]
  %v127 = vld [vmem:[%s1 + $0x1b0] sm:$0xf]
  %v128 = vld [vmem:[%s1 + $0x1b4] sm:$0xf]
  %v129 = vld [vmem:[%s1 + $0x1b8] sm:$0xf]
  %v130 = vld [vmem:[%s1 + $0x1bc] sm:$0xf]
  %v131 = vld [vmem:[%s1 + $0x1c0] sm:$0xf]
  %v132 = vld [vmem:[%s1 + $0x1c4] sm:$0xf]
  %v133 = vld [vmem:[%s1 + $0x1c8] sm:$0xf]
  %v134 = vld [vmem:[%s1 + $0x1cc] sm:$0xf]
  %v135 = vld [vmem:[%s1 + $0x1d0] sm:$0xf]
  %v136 = vld [vmem:[%s1 + $0x1d4] sm:$0xf]
  %v137 = vld [vmem:[%s1 + $0x1d8] sm:$0xf]
  %v138 = vld [vmem:[%s1 + $0x1dc] sm:$0xf]
  %v139 = vld [vmem:[%s1 + $0x1e0] sm:$0xf]
  %v140 = vld [vmem:[%s1 + $0x1e4] sm:$0xf]
  %v141 = vld [vmem:[%s1 + $0x1e8] sm:$0xf]
  %v142 = vld [vmem:[%s1 + $0x1ec] sm:$0xf]
  %v143 = vld [vmem:[%s1 + $0x1f0] sm:$0xf]
  %v144 = vld [vmem:[%s1 + $0x1f4] sm:$0xf]
  %v145 = vld [vmem:[%s1 + $0x1f8] sm:$0xf]
  %v146 = vld [vmem:[%s1 + $0x1fc] sm:$0xf]
  %v147 = vld [vmem:[%s2] sm:$0x1]
  %v149 = vlaneseq
  %v150 = vshrl.u32 %v149, 7
  %v151 = vsub.s32 0, %v150
  %v152 = vrot.slane %v147, %v151
  %v158 = vunpack.c.l.b16 %v15
  %v159 = vunpack.c.h.b16 %v15
  %v160 = vunpack.c.l.b16 %v16
  %v161 = vunpack.c.h.b16 %v16
  %v162 = vunpack.c.l.b16 %v17
  %v163 = vunpack.c.h.b16 %v17
  %v164 = vunpack.c.l.b16 %v18
  %v165 = vunpack.c.h.b16 %v18
  %v166 = vpack.c.b16 %v158, %v158
  %v167 = vpack.c.b16 %v159, %v159
  %v168 = vpack.c.b16 %v160, %v160
  %v169 = vpack.c.b16 %v161, %v161
  %v170 = vpack.c.b16 %v162, %v162
  %v171 = vpack.c.b16 %v163, %v163
  %v172 = vpack.c.b16 %v164, %v164
  %v173 = vpack.c.b16 %v165, %v165
  %v310 = vunpack.c.l.b16 %v19
  %v311 = vunpack.c.l.b16 %v20
  %v312 = vunpack.c.l.b16 %v21
  %v313 = vunpack.c.l.b16 %v22
  %v314 = vunpack.c.l.b16 %v23
  %v315 = vunpack.c.l.b16 %v24
  %v316 = vunpack.c.l.b16 %v25
  %v317 = vunpack.c.l.b16 %v26
  %v318 = vunpack.c.l.b16 %v27
  %v319 = vunpack.c.l.b16 %v28
  %v320 = vunpack.c.l.b16 %v29
  %v321 = vunpack.c.l.b16 %v30
  %v322 = vunpack.c.l.b16 %v31
  %v323 = vunpack.c.l.b16 %v32
  %v324 = vunpack.c.l.b16 %v33
  %v325 = vunpack.c.l.b16 %v34
  %v326 = vunpack.c.l.b16 %v35
  %v327 = vunpack.c.l.b16 %v36
  %v328 = vunpack.c.l.b16 %v37
  %v329 = vunpack.c.l.b16 %v38
  %v330 = vunpack.c.l.b16 %v39
  %v331 = vunpack.c.l.b16 %v40
  %v332 = vunpack.c.l.b16 %v41
  %v333 = vunpack.c.l.b16 %v42
  %v334 = vunpack.c.l.b16 %v43
  %v335 = vunpack.c.l.b16 %v44
  %v336 = vunpack.c.l.b16 %v45
  %v337 = vunpack.c.l.b16 %v46
  %v338 = vunpack.c.l.b16 %v47
  %v339 = vunpack.c.l.b16 %v48
  %v340 = vunpack.c.l.b16 %v49
  %v341 = vunpack.c.l.b16 %v50
  %v342 = vunpack.c.l.b16 %v51
  %v343 = vunpack.c.l.b16 %v52
  %v344 = vunpack.c.l.b16 %v53
  %v345 = vunpack.c.l.b16 %v54
  %v346 = vunpack.c.l.b16 %v55
  %v347 = vunpack.c.l.b16 %v56
  %v348 = vunpack.c.l.b16 %v57
  %v349 = vunpack.c.l.b16 %v58
  %v350 = vunpack.c.l.b16 %v59
  %v351 = vunpack.c.l.b16 %v60
  %v352 = vunpack.c.l.b16 %v61
  %v353 = vunpack.c.l.b16 %v62
  %v354 = vunpack.c.l.b16 %v63
  %v355 = vunpack.c.l.b16 %v64
  %v356 = vunpack.c.l.b16 %v65
  %v357 = vunpack.c.l.b16 %v66
  %v358 = vunpack.c.l.b16 %v67
  %v359 = vunpack.c.l.b16 %v68
  %v360 = vunpack.c.l.b16 %v69
  %v361 = vunpack.c.l.b16 %v70
  %v362 = vunpack.c.l.b16 %v71
  %v363 = vunpack.c.l.b16 %v72
  %v364 = vunpack.c.l.b16 %v73
  %v365 = vunpack.c.l.b16 %v74
  %v366 = vunpack.c.l.b16 %v75
  %v367 = vunpack.c.l.b16 %v76
  %v368 = vunpack.c.l.b16 %v77
  %v369 = vunpack.c.l.b16 %v78
  %v370 = vunpack.c.l.b16 %v79
  %v371 = vunpack.c.l.b16 %v80
  %v372 = vunpack.c.l.b16 %v81
  %v373 = vunpack.c.l.b16 %v82
  %v374 = vunpack.c.l.b16 %v83
  %v375 = vunpack.c.l.b16 %v84
  %v376 = vunpack.c.l.b16 %v85
  %v377 = vunpack.c.l.b16 %v86
  %v378 = vunpack.c.l.b16 %v87
  %v379 = vunpack.c.l.b16 %v88
  %v380 = vunpack.c.l.b16 %v89
  %v381 = vunpack.c.l.b16 %v90
  %v382 = vunpack.c.l.b16 %v91
  %v383 = vunpack.c.l.b16 %v92
  %v384 = vunpack.c.l.b16 %v93
  %v385 = vunpack.c.l.b16 %v94
  %v386 = vunpack.c.l.b16 %v95
  %v387 = vunpack.c.l.b16 %v96
  %v388 = vunpack.c.l.b16 %v97
  %v389 = vunpack.c.l.b16 %v98
  %v390 = vunpack.c.l.b16 %v99
  %v391 = vunpack.c.l.b16 %v100
  %v392 = vunpack.c.l.b16 %v101
  %v393 = vunpack.c.l.b16 %v102
  %v394 = vunpack.c.l.b16 %v103
  %v395 = vunpack.c.l.b16 %v104
  %v396 = vunpack.c.l.b16 %v105
  %v397 = vunpack.c.l.b16 %v106
  %v398 = vunpack.c.l.b16 %v107
  %v399 = vunpack.c.l.b16 %v108
  %v400 = vunpack.c.l.b16 %v109
  %v401 = vunpack.c.l.b16 %v110
  %v402 = vunpack.c.l.b16 %v111
  %v403 = vunpack.c.l.b16 %v112
  %v404 = vunpack.c.l.b16 %v113
  %v405 = vunpack.c.l.b16 %v114
  %v406 = vunpack.c.l.b16 %v115
  %v407 = vunpack.c.l.b16 %v116
  %v408 = vunpack.c.l.b16 %v117
  %v409 = vunpack.c.l.b16 %v118
  %v410 = vunpack.c.l.b16 %v119
  %v411 = vunpack.c.l.b16 %v120
  %v412 = vunpack.c.l.b16 %v121
  %v413 = vunpack.c.l.b16 %v122
  %v414 = vunpack.c.l.b16 %v123
  %v415 = vunpack.c.l.b16 %v124
  %v416 = vunpack.c.l.b16 %v125
  %v417 = vunpack.c.l.b16 %v126
  %v418 = vunpack.c.l.b16 %v127
  %v419 = vunpack.c.l.b16 %v128
  %v420 = vunpack.c.l.b16 %v129
  %v421 = vunpack.c.l.b16 %v130
  %v422 = vunpack.c.l.b16 %v131
  %v423 = vunpack.c.l.b16 %v132
  %v424 = vunpack.c.l.b16 %v133
  %v425 = vunpack.c.l.b16 %v134
  %v426 = vunpack.c.l.b16 %v135
  %v427 = vunpack.c.l.b16 %v136
  %v428 = vunpack.c.l.b16 %v137
  %v429 = vunpack.c.l.b16 %v138
  %v430 = vunpack.c.l.b16 %v139
  %v431 = vunpack.c.l.b16 %v140
  %v432 = vunpack.c.l.b16 %v141
  %v433 = vunpack.c.l.b16 %v142
  %v434 = vunpack.c.l.b16 %v143
  %v435 = vunpack.c.l.b16 %v144
  %v436 = vunpack.c.l.b16 %v145
  %v437 = vunpack.c.l.b16 %v146
  %v438 = vpack.c.b16 %v311, %v310
  %v439 = vpack.c.b16 %v313, %v312
  %v440 = vpack.c.b16 %v315, %v314
  %v441 = vpack.c.b16 %v317, %v316
  %v442 = vpack.c.b16 %v319, %v318
  %v443 = vpack.c.b16 %v321, %v320
  %v444 = vpack.c.b16 %v323, %v322
  %v445 = vpack.c.b16 %v325, %v324
  %v446 = vpack.c.b16 %v327, %v326
  %v447 = vpack.c.b16 %v329, %v328
  %v448 = vpack.c.b16 %v331, %v330
  %v449 = vpack.c.b16 %v333, %v332
  %v450 = vpack.c.b16 %v335, %v334
  %v451 = vpack.c.b16 %v337, %v336
  %v452 = vpack.c.b16 %v339, %v338
  %v453 = vpack.c.b16 %v341, %v340
  %v454 = vpack.c.b16 %v343, %v342
  %v455 = vpack.c.b16 %v345, %v344
  %v456 = vpack.c.b16 %v347, %v346
  %v457 = vpack.c.b16 %v349, %v348
  %v458 = vpack.c.b16 %v351, %v350
  %v459 = vpack.c.b16 %v353, %v352
  %v460 = vpack.c.b16 %v355, %v354
  %v461 = vpack.c.b16 %v357, %v356
  %v462 = vpack.c.b16 %v359, %v358
  %v463 = vpack.c.b16 %v361, %v360
  %v464 = vpack.c.b16 %v363, %v362
  %v465 = vpack.c.b16 %v365, %v364
  %v466 = vpack.c.b16 %v367, %v366
  %v467 = vpack.c.b16 %v369, %v368
  %v468 = vpack.c.b16 %v371, %v370
  %v469 = vpack.c.b16 %v373, %v372
  %v470 = vpack.c.b16 %v375, %v374
  %v471 = vpack.c.b16 %v377, %v376
  %v472 = vpack.c.b16 %v379, %v378
  %v473 = vpack.c.b16 %v381, %v380
  %v474 = vpack.c.b16 %v383, %v382
  %v475 = vpack.c.b16 %v385, %v384
  %v476 = vpack.c.b16 %v387, %v386
  %v477 = vpack.c.b16 %v389, %v388
  %v478 = vpack.c.b16 %v391, %v390
  %v479 = vpack.c.b16 %v393, %v392
  %v480 = vpack.c.b16 %v395, %v394
  %v481 = vpack.c.b16 %v397, %v396
  %v482 = vpack.c.b16 %v399, %v398
  %v483 = vpack.c.b16 %v401, %v400
  %v484 = vpack.c.b16 %v403, %v402
  %v485 = vpack.c.b16 %v405, %v404
  %v486 = vpack.c.b16 %v407, %v406
  %v487 = vpack.c.b16 %v409, %v408
  %v488 = vpack.c.b16 %v411, %v410
  %v489 = vpack.c.b16 %v413, %v412
  %v490 = vpack.c.b16 %v415, %v414
  %v491 = vpack.c.b16 %v417, %v416
  %v492 = vpack.c.b16 %v419, %v418
  %v493 = vpack.c.b16 %v421, %v420
  %v494 = vpack.c.b16 %v423, %v422
  %v495 = vpack.c.b16 %v425, %v424
  %v496 = vpack.c.b16 %v427, %v426
  %v497 = vpack.c.b16 %v429, %v428
  %v498 = vpack.c.b16 %v431, %v430
  %v499 = vpack.c.b16 %v433, %v432
  %v500 = vpack.c.b16 %v435, %v434
  %v501 = vpack.c.b16 %v437, %v436
  %566 = vmatprep.subr.bf16.mxu0 0
  %567 = vmatpush1.bf16.msra.mxu0 %v445
  %568 = vmatprep.subr.bf16.mxu0 0
  %569 = vmatpush1.bf16.msra.mxu0 %v444
  %570 = vmatprep.subr.bf16.mxu0 0
  %571 = vmatpush1.bf16.msra.mxu0 %v443
  %572 = vmatprep.subr.bf16.mxu0 0
  %573 = vmatpush1.bf16.msra.mxu0 %v442
  %574 = vmatprep.subr.bf16.mxu0 0
  %575 = vmatpush1.bf16.msra.mxu0 %v441
  %576 = vmatprep.subr.bf16.mxu0 0
  %577 = vmatpush1.bf16.msra.mxu0 %v440
  %578 = vmatprep.subr.bf16.mxu0 0
  %579 = vmatpush1.bf16.msra.mxu0 %v439
  %580 = vmatprep.subr.bf16.mxu0 0
  %581 = vmatpush1.bf16.msra.mxu0 %v438
  %582 = vmatprep.subr.bf16.mxu0 0
  %583 = vmatpush2.bf16.msra.mxu0 %v453
  %584 = vmatprep.subr.bf16.mxu0 0
  %585 = vmatpush2.bf16.msra.mxu0 %v452
  %586 = vmatprep.subr.bf16.mxu0 0
  %587 = vmatpush2.bf16.msra.mxu0 %v451
  %588 = vmatprep.subr.bf16.mxu0 0
  %589 = vmatpush2.bf16.msra.mxu0 %v450
  %590 = vmatprep.subr.bf16.mxu0 0
  %591 = vmatpush2.bf16.msra.mxu0 %v449
  %592 = vmatprep.subr.bf16.mxu0 0
  %593 = vmatpush2.bf16.msra.mxu0 %v448
  %594 = vmatprep.subr.bf16.mxu0 0
  %595 = vmatpush2.bf16.msra.mxu0 %v447
  %596 = vmatprep.subr.bf16.mxu0 0
  %597 = vmatpush2.bf16.msra.mxu0 %v446
  %598 = vmatprep.mubr.bf16.mxu0 %v167
  %599 = vmatmul.mubr.bf16.gmra.mxu0 %v166
  %v600 = vpop.f32.mrf.mxu0
  %v601 = vadd.f32 %v152, %v600
  %v602 = vpop.f32.mrf.mxu0
  %v603 = vpop.f32.mrf.mxu0
  %v604 = vpop.f32.mrf.mxu0
  %605 = vdwg.mxu0
  %606 = vmatprep.subr.bf16.mxu0 0
  %607 = vmatpush1.bf16.msra.mxu0 %v461
  %608 = vmatprep.subr.bf16.mxu0 0
  %609 = vmatpush1.bf16.msra.mxu0 %v460
  %610 = vmatprep.subr.bf16.mxu0 0
  %611 = vmatpush1.bf16.msra.mxu0 %v459
  %612 = vmatprep.subr.bf16.mxu0 0
  %613 = vmatpush1.bf16.msra.mxu0 %v458
  %614 = vmatprep.subr.bf16.mxu0 0
  %615 = vmatpush1.bf16.msra.mxu0 %v457
  %616 = vmatprep.subr.bf16.mxu0 0
  %617 = vmatpush1.bf16.msra.mxu0 %v456
  %618 = vmatprep.subr.bf16.mxu0 0
  %619 = vmatpush1.bf16.msra.mxu0 %v455
  %620 = vmatprep.subr.bf16.mxu0 0
  %621 = vmatpush1.bf16.msra.mxu0 %v454
  %622 = vmatprep.subr.bf16.mxu0 0
  %623 = vmatpush2.bf16.msra.mxu0 %v469
  %624 = vmatprep.subr.bf16.mxu0 0
  %625 = vmatpush2.bf16.msra.mxu0 %v468
  %626 = vmatprep.subr.bf16.mxu0 0
  %627 = vmatpush2.bf16.msra.mxu0 %v467
  %628 = vmatprep.subr.bf16.mxu0 0
  %629 = vmatpush2.bf16.msra.mxu0 %v466
  %630 = vmatprep.subr.bf16.mxu0 0
  %631 = vmatpush2.bf16.msra.mxu0 %v465
  %632 = vmatprep.subr.bf16.mxu0 0
  %633 = vmatpush2.bf16.msra.mxu0 %v464
  %634 = vmatprep.subr.bf16.mxu0 0
  %635 = vmatpush2.bf16.msra.mxu0 %v463
  %636 = vmatprep.subr.bf16.mxu0 0
  %637 = vmatpush2.bf16.msra.mxu0 %v462
  %638 = vmatprep.mubr.bf16.mxu0 %v169
  %639 = vmatmul.mubr.bf16.gmra.mxu0 %v168
  %v640 = vpop.f32.mrf.mxu0
  %v641 = vadd.f32 %v601, %v640
  %v642 = vpop.f32.mrf.mxu0
  %v643 = vpop.f32.mrf.mxu0
  %v644 = vpop.f32.mrf.mxu0
  %645 = vdwg.mxu0
  %646 = vmatprep.subr.bf16.mxu0 0
  %647 = vmatpush1.bf16.msra.mxu0 %v477
  %648 = vmatprep.subr.bf16.mxu0 0
  %649 = vmatpush1.bf16.msra.mxu0 %v476
  %650 = vmatprep.subr.bf16.mxu0 0
  %651 = vmatpush1.bf16.msra.mxu0 %v475
  %652 = vmatprep.subr.bf16.mxu0 0
  %653 = vmatpush1.bf16.msra.mxu0 %v474
  %654 = vmatprep.subr.bf16.mxu0 0
  %655 = vmatpush1.bf16.msra.mxu0 %v473
  %656 = vmatprep.subr.bf16.mxu0 0
  %657 = vmatpush1.bf16.msra.mxu0 %v472
  %658 = vmatprep.subr.bf16.mxu0 0
  %659 = vmatpush1.bf16.msra.mxu0 %v471
  %660 = vmatprep.subr.bf16.mxu0 0
  %661 = vmatpush1.bf16.msra.mxu0 %v470
  %662 = vmatprep.subr.bf16.mxu0 0
  %663 = vmatpush2.bf16.msra.mxu0 %v485
  %664 = vmatprep.subr.bf16.mxu0 0
  %665 = vmatpush2.bf16.msra.mxu0 %v484
  %666 = vmatprep.subr.bf16.mxu0 0
  %667 = vmatpush2.bf16.msra.mxu0 %v483
  %668 = vmatprep.subr.bf16.mxu0 0
  %669 = vmatpush2.bf16.msra.mxu0 %v482
  %670 = vmatprep.subr.bf16.mxu0 0
  %671 = vmatpush2.bf16.msra.mxu0 %v481
  %672 = vmatprep.subr.bf16.mxu0 0
  %673 = vmatpush2.bf16.msra.mxu0 %v480
  %674 = vmatprep.subr.bf16.mxu0 0
  %675 = vmatpush2.bf16.msra.mxu0 %v479
  %676 = vmatprep.subr.bf16.mxu0 0
  %677 = vmatpush2.bf16.msra.mxu0 %v478
  %678 = vmatprep.mubr.bf16.mxu0 %v171
  %679 = vmatmul.mubr.bf16.gmra.mxu0 %v170
  %v680 = vpop.f32.mrf.mxu0
  %v681 = vadd.f32 %v641, %v680
  %v682 = vpop.f32.mrf.mxu0
  %v683 = vpop.f32.mrf.mxu0
  %v684 = vpop.f32.mrf.mxu0
  %685 = vdwg.mxu0
  %686 = vmatprep.subr.bf16.mxu0 0
  %687 = vmatpush1.bf16.msra.mxu0 %v493
  %688 = vmatprep.subr.bf16.mxu0 0
  %689 = vmatpush1.bf16.msra.mxu0 %v492
  %690 = vmatprep.subr.bf16.mxu0 0
  %691 = vmatpush1.bf16.msra.mxu0 %v491
  %692 = vmatprep.subr.bf16.mxu0 0
  %693 = vmatpush1.bf16.msra.mxu0 %v490
  %694 = vmatprep.subr.bf16.mxu0 0
  %695 = vmatpush1.bf16.msra.mxu0 %v489
  %696 = vmatprep.subr.bf16.mxu0 0
  %697 = vmatpush1.bf16.msra.mxu0 %v488
  %698 = vmatprep.subr.bf16.mxu0 0
  %699 = vmatpush1.bf16.msra.mxu0 %v487
  %700 = vmatprep.subr.bf16.mxu0 0
  %701 = vmatpush1.bf16.msra.mxu0 %v486
  %702 = vmatprep.subr.bf16.mxu0 0
  %703 = vmatpush2.bf16.msra.mxu0 %v501
  %704 = vmatprep.subr.bf16.mxu0 0
  %705 = vmatpush2.bf16.msra.mxu0 %v500
  %706 = vmatprep.subr.bf16.mxu0 0
  %707 = vmatpush2.bf16.msra.mxu0 %v499
  %708 = vmatprep.subr.bf16.mxu0 0
  %709 = vmatpush2.bf16.msra.mxu0 %v498
  %710 = vmatprep.subr.bf16.mxu0 0
  %711 = vmatpush2.bf16.msra.mxu0 %v497
  %712 = vmatprep.subr.bf16.mxu0 0
  %713 = vmatpush2.bf16.msra.mxu0 %v496
  %714 = vmatprep.subr.bf16.mxu0 0
  %715 = vmatpush2.bf16.msra.mxu0 %v495
  %716 = vmatprep.subr.bf16.mxu0 0
  %717 = vmatpush2.bf16.msra.mxu0 %v494
  %718 = vmatprep.mubr.bf16.mxu0 %v173
  %719 = vmatmul.mubr.bf16.gmra.mxu0 %v172
  %v720 = vpop.f32.mrf.mxu0
  %v721 = vadd.f32 %v681, %v720
  %v722 = vpop.f32.mrf.mxu0
  %v723 = vpop.f32.mrf.mxu0
  %v724 = vpop.f32.mrf.mxu0
  %725 = vdwg.mxu0
  %v726 = vrot.slane %v721, 4
  %v727 = vadd.f32 %v721, %v726
  %v728 = vrot.slane %v727, 2
  %v729 = vadd.f32 %v727, %v728
  %v730 = vrot.slane %v729, 1
  %v731 = vadd.f32 %v729, %v730
  %v732 = vmul.f32 %v731, 0.125
  %v733 = vsub.f32 %v721, %v732
  %v734 = vmul.f32 %v733, %v733
  %v735 = vrot.slane %v734, 4
  %v736 = vadd.f32 %v734, %v735
  %v737 = vrot.slane %v736, 2
  %v738 = vadd.f32 %v736, %v737
  %v739 = vrot.slane %v738, 1
  %v740 = vadd.f32 %v738, %v739
  %v741 = vmul.f32 %v740, 0.125
  %v742 = vadd.f32 %v741, 1e-05
  %v743 = vrsqrt.pop %v742
  %v744 = vmul.f32 %v733, %v743
  %v745 = vmax.f32 %v744, 0.0
  %v746 = vpack.c.bf16 %v745, %v745
  %747 = vst [vmem:[%s3] sm:$0xf] %v746
  // Predicated region
  $region14: #{cnn_forward.10} parent=0 // pred_check
    _
  $region15: #{cnn_forward.10} parent=0 // pred_check_branch
    %749 = sbr.rel (0) target = $region17
  $region16: #{cnn_forward.10} parent=0 // pred_region
    _
  $region17: #{cnn_forward.10} parent=0 // pred_fallthru
    _
  // Predicated region
  $region18: #{cnn_forward.10} parent=0 // pred_check
    _
  $region19: #{cnn_forward.10} parent=0 // pred_check_branch
    %751 = sbr.rel (0) target = $region21
  $region20: #{cnn_forward.10} parent=0 // pred_region
    _
  $region21: #{cnn_forward.10} parent=0 // pred_fallthru
    _

// kernel: cnn_forward.11
$region0: #{cnn_forward.11}
  #allocation0 [shape = 'u32[]', space=smem, size = 0x4, offset = 0x4, fixed_abs, tag = 'smem constant byte address 0x4 - core index']
  #allocation1 [shape = 'u32[144,128]{1,0:T(1,128)}', space=vmem, size = 0x12000, scoped, tag = 'internal scratch']
  %s0 = inlined_call_operand.vmem [shape: bf16[8,1152], index: 0, kind: input, shape index: {}]
  %s1 = inlined_call_operand.vmem [shape: bf16[1152,128], index: 1, kind: input, shape index: {}]
  %s2 = inlined_call_operand.vmem [shape: f32[1,128], index: 2, kind: input, shape index: {}]
  %s3 = inlined_call_operand.vmem [shape: bf16[8,128], index: 3, kind: output, shape index: {}]
  %s4 = sld [smem:[#allocation0]]
  $region22: #{cnn_forward.11} parent=0
    _
  %s6 = ssub.s32 1, %s4
  %s7 = scalar_select 0, %s6, %s4
  // Predicated region
  $region2: #{cnn_forward.11} parent=0 // pred_check
    _
  $region3: #{cnn_forward.11} parent=0 // pred_check_branch
    %9 = sbr.rel (0) target = $region5
  $region4: #{cnn_forward.11} parent=0 // pred_region
    _
  $region5: #{cnn_forward.11} parent=0 // pred_fallthru
    _
  // Predicated region
  $region6: #{cnn_forward.11} parent=0 // pred_check
    _
  $region7: #{cnn_forward.11} parent=0 // pred_check_branch
    %11 = sbr.rel (0) target = $region9
  $region8: #{cnn_forward.11} parent=0 // pred_region
    _
  $region9: #{cnn_forward.11} parent=0 // pred_fallthru
    _
  // Predicated region
  $region10: #{cnn_forward.11} parent=0 // pred_check
    _
  $region11: #{cnn_forward.11} parent=0 // pred_check_branch
    %13 = sbr.rel (0) target = $region13
  $region12: #{cnn_forward.11} parent=0 // pred_region
    _
  $region13: #{cnn_forward.11} parent=0 // pred_fallthru
    _
  %v15 = vld [vmem:[%s0] sm:$0xff]
  %v16 = vld [vmem:[%s0 + $0x8] sm:$0xff]
  %v17 = vld [vmem:[%s0 + $0x10] sm:$0xff]
  %v18 = vld [vmem:[%s0 + $0x18] sm:$0xff]
  %v19 = vld [vmem:[%s0 + $0x20] sm:$0xf]
  %v20 = vld [vmem:[%s1] sm:$0xf]
  %v21 = vld [vmem:[%s1 + $0x4] sm:$0xf]
  %v22 = vld [vmem:[%s1 + $0x8] sm:$0xf]
  %v23 = vld [vmem:[%s1 + $0xc] sm:$0xf]
  %v24 = vld [vmem:[%s1 + $0x10] sm:$0xf]
  %v25 = vld [vmem:[%s1 + $0x14] sm:$0xf]
  %v26 = vld [vmem:[%s1 + $0x18] sm:$0xf]
  %v27 = vld [vmem:[%s1 + $0x1c] sm:$0xf]
  %v28 = vld [vmem:[%s1 + $0x20] sm:$0xf]
  %v29 = vld [vmem:[%s1 + $0x24] sm:$0xf]
  %v30 = vld [vmem:[%s1 + $0x28] sm:$0xf]
  %v31 = vld [vmem:[%s1 + $0x2c] sm:$0xf]
  %v32 = vld [vmem:[%s1 + $0x30] sm:$0xf]
  %v33 = vld [vmem:[%s1 + $0x34] sm:$0xf]
  %v34 = vld [vmem:[%s1 + $0x38] sm:$0xf]
  %v35 = vld [vmem:[%s1 + $0x3c] sm:$0xf]
  %v36 = vld [vmem:[%s1 + $0x40] sm:$0xf]
  %v37 = vld [vmem:[%s1 + $0x44] sm:$0xf]
  %v38 = vld [vmem:[%s1 + $0x48] sm:$0xf]
  %v39 = vld [vmem:[%s1 + $0x4c] sm:$0xf]
  %v40 = vld [vmem:[%s1 + $0x50] sm:$0xf]
  %v41 = vld [vmem:[%s1 + $0x54] sm:$0xf]
  %v42 = vld [vmem:[%s1 + $0x58] sm:$0xf]
  %v43 = vld [vmem:[%s1 + $0x5c] sm:$0xf]
  %v44 = vld [vmem:[%s1 + $0x60] sm:$0xf]
  %v45 = vld [vmem:[%s1 + $0x64] sm:$0xf]
  %v46 = vld [vmem:[%s1 + $0x68] sm:$0xf]
  %v47 = vld [vmem:[%s1 + $0x6c] sm:$0xf]
  %v48 = vld [vmem:[%s1 + $0x70] sm:$0xf]
  %v49 = vld [vmem:[%s1 + $0x74] sm:$0xf]
  %v50 = vld [vmem:[%s1 + $0x78] sm:$0xf]
  %v51 = vld [vmem:[%s1 + $0x7c] sm:$0xf]
  %v52 = vld [vmem:[%s1 + $0x80] sm:$0xf]
  %v53 = vld [vmem:[%s1 + $0x84] sm:$0xf]
  %v54 = vld [vmem:[%s1 + $0x88] sm:$0xf]
  %v55 = vld [vmem:[%s1 + $0x8c] sm:$0xf]
  %v56 = vld [vmem:[%s1 + $0x90] sm:$0xf]
  %v57 = vld [vmem:[%s1 + $0x94] sm:$0xf]
  %v58 = vld [vmem:[%s1 + $0x98] sm:$0xf]
  %v59 = vld [vmem:[%s1 + $0x9c] sm:$0xf]
  %v60 = vld [vmem:[%s1 + $0xa0] sm:$0xf]
  %v61 = vld [vmem:[%s1 + $0xa4] sm:$0xf]
  %v62 = vld [vmem:[%s1 + $0xa8] sm:$0xf]
  %v63 = vld [vmem:[%s1 + $0xac] sm:$0xf]
  %v64 = vld [vmem:[%s1 + $0xb0] sm:$0xf]
  %v65 = vld [vmem:[%s1 + $0xb4] sm:$0xf]
  %v66 = vld [vmem:[%s1 + $0xb8] sm:$0xf]
  %v67 = vld [vmem:[%s1 + $0xbc] sm:$0xf]
  %v68 = vld [vmem:[%s1 + $0xc0] sm:$0xf]
  %v69 = vld [vmem:[%s1 + $0xc4] sm:$0xf]
  %v70 = vld [vmem:[%s1 + $0xc8] sm:$0xf]
  %v71 = vld [vmem:[%s1 + $0xcc] sm:$0xf]
  %v72 = vld [vmem:[%s1 + $0xd0] sm:$0xf]
  %v73 = vld [vmem:[%s1 + $0xd4] sm:$0xf]
  %v74 = vld [vmem:[%s1 + $0xd8] sm:$0xf]
  %v75 = vld [vmem:[%s1 + $0xdc] sm:$0xf]
  %v76 = vld [vmem:[%s1 + $0xe0] sm:$0xf]
  %v77 = vld [vmem:[%s1 + $0xe4] sm:$0xf]
  %v78 = vld [vmem:[%s1 + $0xe8] sm:$0xf]
  %v79 = vld [vmem:[%s1 + $0xec] sm:$0xf]
  %v80 = vld [vmem:[%s1 + $0xf0] sm:$0xf]
  %v81 = vld [vmem:[%s1 + $0xf4] sm:$0xf]
  %v82 = vld [vmem:[%s1 + $0xf8] sm:$0xf]
  %v83 = vld [vmem:[%s1 + $0xfc] sm:$0xf]
  %v84 = vld [vmem:[%s1 + $0x100] sm:$0xf]
  %v85 = vld [vmem:[%s1 + $0x104] sm:$0xf]
  %v86 = vld [vmem:[%s1 + $0x108] sm:$0xf]
  %v87 = vld [vmem:[%s1 + $0x10c] sm:$0xf]
  %v88 = vld [vmem:[%s1 + $0x110] sm:$0xf]
  %v89 = vld [vmem:[%s1 + $0x114] sm:$0xf]
  %v90 = vld [vmem:[%s1 + $0x118] sm:$0xf]
  %v91 = vld [vmem:[%s1 + $0x11c] sm:$0xf]
  %v92 = vld [vmem:[%s1 + $0x120] sm:$0xf]
  %v93 = vld [vmem:[%s1 + $0x124] sm:$0xf]
  %v94 = vld [vmem:[%s1 + $0x128] sm:$0xf]
  %v95 = vld [vmem:[%s1 + $0x12c] sm:$0xf]
  %v96 = vld [vmem:[%s1 + $0x130] sm:$0xf]
  %v97 = vld [vmem:[%s1 + $0x134] sm:$0xf]
  %v98 = vld [vmem:[%s1 + $0x138] sm:$0xf]
  %v99 = vld [vmem:[%s1 + $0x13c] sm:$0xf]
  %v100 = vld [vmem:[%s1 + $0x140] sm:$0xf]
  %v101 = vld [vmem:[%s1 + $0x144] sm:$0xf]
  %v102 = vld [vmem:[%s1 + $0x148] sm:$0xf]
  %v103 = vld [vmem:[%s1 + $0x14c] sm:$0xf]
  %v104 = vld [vmem:[%s1 + $0x150] sm:$0xf]
  %v105 = vld [vmem:[%s1 + $0x154] sm:$0xf]
  %v106 = vld [vmem:[%s1 + $0x158] sm:$0xf]
  %v107 = vld [vmem:[%s1 + $0x15c] sm:$0xf]
  %v108 = vld [vmem:[%s1 + $0x160] sm:$0xf]
  %v109 = vld [vmem:[%s1 + $0x164] sm:$0xf]
  %v110 = vld [vmem:[%s1 + $0x168] sm:$0xf]
  %v111 = vld [vmem:[%s1 + $0x16c] sm:$0xf]
  %v112 = vld [vmem:[%s1 + $0x170] sm:$0xf]
  %v113 = vld [vmem:[%s1 + $0x174] sm:$0xf]
  %v114 = vld [vmem:[%s1 + $0x178] sm:$0xf]
  %v115 = vld [vmem:[%s1 + $0x17c] sm:$0xf]
  %v116 = vld [vmem:[%s1 + $0x180] sm:$0xf]
  %v117 = vld [vmem:[%s1 + $0x184] sm:$0xf]
  %v118 = vld [vmem:[%s1 + $0x188] sm:$0xf]
  %v119 = vld [vmem:[%s1 + $0x18c] sm:$0xf]
  %v120 = vld [vmem:[%s1 + $0x190] sm:$0xf]
  %v121 = vld [vmem:[%s1 + $0x194] sm:$0xf]
  %v122 = vld [vmem:[%s1 + $0x198] sm:$0xf]
  %v123 = vld [vmem:[%s1 + $0x19c] sm:$0xf]
  %v124 = vld [vmem:[%s1 + $0x1a0] sm:$0xf]
  %v125 = vld [vmem:[%s1 + $0x1a4] sm:$0xf]
  %v126 = vld [vmem:[%s1 + $0x1a8] sm:$0xf]
  %v127 = vld [vmem:[%s1 + $0x1ac] sm:$0xf]
  %v128 = vld [vmem:[%s1 + $0x1b0] sm:$0xf]
  %v129 = vld [vmem:[%s1 + $0x1b4] sm:$0xf]
  %v130 = vld [vmem:[%s1 + $0x1b8] sm:$0xf]
  %v131 = vld [vmem:[%s1 + $0x1bc] sm:$0xf]
  %v132 = vld [vmem:[%s1 + $0x1c0] sm:$0xf]
  %v133 = vld [vmem:[%s1 + $0x1c4] sm:$0xf]
  %v134 = vld [vmem:[%s1 + $0x1c8] sm:$0xf]
  %v135 = vld [vmem:[%s1 + $0x1cc] sm:$0xf]
  %v136 = vld [vmem:[%s1 + $0x1d0] sm:$0xf]
  %v137 = vld [vmem:[%s1 + $0x1d4] sm:$0xf]
  %v138 = vld [vmem:[%s1 + $0x1d8] sm:$0xf]
  %v139 = vld [vmem:[%s1 + $0x1dc] sm:$0xf]
  %v140 = vld [vmem:[%s1 + $0x1e0] sm:$0xf]
  %v141 = vld [vmem:[%s1 + $0x1e4] sm:$0xf]
  %v142 = vld [vmem:[%s1 + $0x1e8] sm:$0xf]
  %v143 = vld [vmem:[%s1 + $0x1ec] sm:$0xf]
  %v144 = vld [vmem:[%s1 + $0x1f0] sm:$0xf]
  %v145 = vld [vmem:[%s1 + $0x1f4] sm:$0xf]
  %v146 = vld [vmem:[%s1 + $0x1f8] sm:$0xf]
  %v147 = vld [vmem:[%s1 + $0x1fc] sm:$0xf]
  %v148 = vld [vmem:[%s1 + $0x200] sm:$0xf]
  %v149 = vld [vmem:[%s1 + $0x204] sm:$0xf]
  %v150 = vld [vmem:[%s1 + $0x208] sm:$0xf]
  %v151 = vld [vmem:[%s1 + $0x20c] sm:$0xf]
  %v152 = vld [vmem:[%s1 + $0x210] sm:$0xf]
  %v153 = vld [vmem:[%s1 + $0x214] sm:$0xf]
  %v154 = vld [vmem:[%s1 + $0x218] sm:$0xf]
  %v155 = vld [vmem:[%s1 + $0x21c] sm:$0xf]
  %v156 = vld [vmem:[%s1 + $0x220] sm:$0xf]
  %v157 = vld [vmem:[%s1 + $0x224] sm:$0xf]
  %v158 = vld [vmem:[%s1 + $0x228] sm:$0xf]
  %v159 = vld [vmem:[%s1 + $0x22c] sm:$0xf]
  %v160 = vld [vmem:[%s1 + $0x230] sm:$0xf]
  %v161 = vld [vmem:[%s1 + $0x234] sm:$0xf]
  %v162 = vld [vmem:[%s1 + $0x238] sm:$0xf]
  %v163 = vld [vmem:[%s1 + $0x23c] sm:$0xf]
  %v164 = vld [vmem:[%s2] sm:$0x1]
  %v166 = vlaneseq
  %v167 = vshrl.u32 %v166, 7
  %v168 = vsub.s32 0, %v167
  %v169 = vrot.slane %v164, %v168
  %v176 = vunpack.c.l.b16 %v15
  %v177 = vunpack.c.h.b16 %v15
  %v178 = vunpack.c.l.b16 %v16
  %v179 = vunpack.c.h.b16 %v16
  %v180 = vunpack.c.l.b16 %v17
  %v181 = vunpack.c.h.b16 %v17
  %v182 = vunpack.c.l.b16 %v18
  %v183 = vunpack.c.h.b16 %v18
  %v184 = vunpack.c.l.b16 %v19
  %v185 = vpack.c.b16 %v176, %v176
  %v186 = vpack.c.b16 %v177, %v177
  %v187 = vpack.c.b16 %v178, %v178
  %v188 = vpack.c.b16 %v179, %v179
  %v189 = vpack.c.b16 %v180, %v180
  %v190 = vpack.c.b16 %v181, %v181
  %v191 = vpack.c.b16 %v182, %v182
  %v192 = vpack.c.b16 %v183, %v183
  %v193 = vpack.c.b16 %v184, %v184
  %v347 = vunpack.c.l.b16 %v20
  %v348 = vunpack.c.l.b16 %v21
  %v349 = vunpack.c.l.b16 %v22
  %v350 = vunpack.c.l.b16 %v23
  %v351 = vunpack.c.l.b16 %v24
  %v352 = vunpack.c.l.b16 %v25
  %v353 = vunpack.c.l.b16 %v26
  %v354 = vunpack.c.l.b16 %v27
  %v355 = vunpack.c.l.b16 %v28
  %v356 = vunpack.c.l.b16 %v29
  %v357 = vunpack.c.l.b16 %v30
  %v358 = vunpack.c.l.b16 %v31
  %v359 = vunpack.c.l.b16 %v32
  %v360 = vunpack.c.l.b16 %v33
  %v361 = vunpack.c.l.b16 %v34
  %v362 = vunpack.c.l.b16 %v35
  %v363 = vunpack.c.l.b16 %v36
  %v364 = vunpack.c.l.b16 %v37
  %v365 = vunpack.c.l.b16 %v38
  %v366 = vunpack.c.l.b16 %v39
  %v367 = vunpack.c.l.b16 %v40
  %v368 = vunpack.c.l.b16 %v41
  %v369 = vunpack.c.l.b16 %v42
  %v370 = vunpack.c.l.b16 %v43
  %v371 = vunpack.c.l.b16 %v44
  %v372 = vunpack.c.l.b16 %v45
  %v373 = vunpack.c.l.b16 %v46
  %v374 = vunpack.c.l.b16 %v47
  %v375 = vunpack.c.l.b16 %v48
  %v376 = vunpack.c.l.b16 %v49
  %v377 = vunpack.c.l.b16 %v50
  %v378 = vunpack.c.l.b16 %v51
  %v379 = vunpack.c.l.b16 %v52
  %v380 = vunpack.c.l.b16 %v53
  %v381 = vunpack.c.l.b16 %v54
  %v382 = vunpack.c.l.b16 %v55
  %v383 = vunpack.c.l.b16 %v56
  %v384 = vunpack.c.l.b16 %v57
  %v385 = vunpack.c.l.b16 %v58
  %v386 = vunpack.c.l.b16 %v59
  %v387 = vunpack.c.l.b16 %v60
  %v388 = vunpack.c.l.b16 %v61
  %v389 = vunpack.c.l.b16 %v62
  %v390 = vunpack.c.l.b16 %v63
  %v391 = vunpack.c.l.b16 %v64
  %v392 = vunpack.c.l.b16 %v65
  %v393 = vunpack.c.l.b16 %v66
  %v394 = vunpack.c.l.b16 %v67
  %v395 = vunpack.c.l.b16 %v68
  %v396 = vunpack.c.l.b16 %v69
  %v397 = vunpack.c.l.b16 %v70
  %v398 = vunpack.c.l.b16 %v71
  %v399 = vunpack.c.l.b16 %v72
  %v400 = vunpack.c.l.b16 %v73
  %v401 = vunpack.c.l.b16 %v74
  %v402 = vunpack.c.l.b16 %v75
  %v403 = vunpack.c.l.b16 %v76
  %v404 = vunpack.c.l.b16 %v77
  %v405 = vunpack.c.l.b16 %v78
  %v406 = vunpack.c.l.b16 %v79
  %v407 = vunpack.c.l.b16 %v80
  %v408 = vunpack.c.l.b16 %v81
  %v409 = vunpack.c.l.b16 %v82
  %v410 = vunpack.c.l.b16 %v83
  %v411 = vunpack.c.l.b16 %v84
  %v412 = vunpack.c.l.b16 %v85
  %v413 = vunpack.c.l.b16 %v86
  %v414 = vunpack.c.l.b16 %v87
  %v415 = vunpack.c.l.b16 %v88
  %v416 = vunpack.c.l.b16 %v89
  %v417 = vunpack.c.l.b16 %v90
  %v418 = vunpack.c.l.b16 %v91
  %v419 = vunpack.c.l.b16 %v92
  %v420 = vunpack.c.l.b16 %v93
  %v421 = vunpack.c.l.b16 %v94
  %v422 = vunpack.c.l.b16 %v95
  %v423 = vunpack.c.l.b16 %v96
  %v424 = vunpack.c.l.b16 %v97
  %v425 = vunpack.c.l.b16 %v98
  %v426 = vunpack.c.l.b16 %v99
  %v427 = vunpack.c.l.b16 %v100
  %v428 = vunpack.c.l.b16 %v101
  %v429 = vunpack.c.l.b16 %v102
  %v430 = vunpack.c.l.b16 %v103
  %v431 = vunpack.c.l.b16 %v104
  %v432 = vunpack.c.l.b16 %v105
  %v433 = vunpack.c.l.b16 %v106
  %v434 = vunpack.c.l.b16 %v107
  %v435 = vunpack.c.l.b16 %v108
  %v436 = vunpack.c.l.b16 %v109
  %v437 = vunpack.c.l.b16 %v110
  %v438 = vunpack.c.l.b16 %v111
  %v439 = vunpack.c.l.b16 %v112
  %v440 = vunpack.c.l.b16 %v113
  %v441 = vunpack.c.l.b16 %v114
  %v442 = vunpack.c.l.b16 %v115
  %v443 = vunpack.c.l.b16 %v116
  %v444 = vunpack.c.l.b16 %v117
  %v445 = vunpack.c.l.b16 %v118
  %v446 = vunpack.c.l.b16 %v119
  %v447 = vunpack.c.l.b16 %v120
  %v448 = vunpack.c.l.b16 %v121
  %v449 = vunpack.c.l.b16 %v122
  %v450 = vunpack.c.l.b16 %v123
  %v451 = vunpack.c.l.b16 %v124
  %v452 = vunpack.c.l.b16 %v125
  %v453 = vunpack.c.l.b16 %v126
  %v454 = vunpack.c.l.b16 %v127
  %v455 = vunpack.c.l.b16 %v128
  %v456 = vunpack.c.l.b16 %v129
  %v457 = vunpack.c.l.b16 %v130
  %v458 = vunpack.c.l.b16 %v131
  %v459 = vunpack.c.l.b16 %v132
  %v460 = vunpack.c.l.b16 %v133
  %v461 = vunpack.c.l.b16 %v134
  %v462 = vunpack.c.l.b16 %v135
  %v463 = vunpack.c.l.b16 %v136
  %v464 = vunpack.c.l.b16 %v137
  %v465 = vunpack.c.l.b16 %v138
  %v466 = vunpack.c.l.b16 %v139
  %v467 = vunpack.c.l.b16 %v140
  %v468 = vunpack.c.l.b16 %v141
  %v469 = vunpack.c.l.b16 %v142
  %v470 = vunpack.c.l.b16 %v143
  %v471 = vunpack.c.l.b16 %v144
  %v472 = vunpack.c.l.b16 %v145
  %v473 = vunpack.c.l.b16 %v146
  %v474 = vunpack.c.l.b16 %v147
  %v475 = vunpack.c.l.b16 %v148
  %v476 = vunpack.c.l.b16 %v149
  %v477 = vunpack.c.l.b16 %v150
  %v478 = vunpack.c.l.b16 %v151
  %v479 = vunpack.c.l.b16 %v152
  %v480 = vunpack.c.l.b16 %v153
  %v481 = vunpack.c.l.b16 %v154
  %v482 = vunpack.c.l.b16 %v155
  %v483 = vunpack.c.l.b16 %v156
  %v484 = vunpack.c.l.b16 %v157
  %v485 = vunpack.c.l.b16 %v158
  %v486 = vunpack.c.l.b16 %v159
  %v487 = vunpack.c.l.b16 %v160
  %v488 = vunpack.c.l.b16 %v161
  %v489 = vunpack.c.l.b16 %v162
  %v490 = vunpack.c.l.b16 %v163
  %v491 = vpack.c.b16 %v348, %v347
  %v492 = vpack.c.b16 %v350, %v349
  %v493 = vpack.c.b16 %v352, %v351
  %v494 = vpack.c.b16 %v354, %v353
  %v495 = vpack.c.b16 %v356, %v355
  %v496 = vpack.c.b16 %v358, %v357
  %v497 = vpack.c.b16 %v360, %v359
  %v498 = vpack.c.b16 %v362, %v361
  %v499 = vpack.c.b16 %v364, %v363
  %v500 = vpack.c.b16 %v366, %v365
  %v501 = vpack.c.b16 %v368, %v367
  %v502 = vpack.c.b16 %v370, %v369
  %v503 = vpack.c.b16 %v372, %v371
  %v504 = vpack.c.b16 %v374, %v373
  %v505 = vpack.c.b16 %v376, %v375
  %v506 = vpack.c.b16 %v378, %v377
  %v507 = vpack.c.b16 %v380, %v379
  %v508 = vpack.c.b16 %v382, %v381
  %v509 = vpack.c.b16 %v384, %v383
  %v510 = vpack.c.b16 %v386, %v385
  %v511 = vpack.c.b16 %v388, %v387
  %v512 = vpack.c.b16 %v390, %v389
  %v513 = vpack.c.b16 %v392, %v391
  %v514 = vpack.c.b16 %v394, %v393
  %v515 = vpack.c.b16 %v396, %v395
  %v516 = vpack.c.b16 %v398, %v397
  %v517 = vpack.c.b16 %v400, %v399
  %v518 = vpack.c.b16 %v402, %v401
  %v519 = vpack.c.b16 %v404, %v403
  %v520 = vpack.c.b16 %v406, %v405
  %v521 = vpack.c.b16 %v408, %v407
  %v522 = vpack.c.b16 %v410, %v409
  %v523 = vpack.c.b16 %v412, %v411
  %v524 = vpack.c.b16 %v414, %v413
  %v525 = vpack.c.b16 %v416, %v415
  %v526 = vpack.c.b16 %v418, %v417
  %v527 = vpack.c.b16 %v420, %v419
  %v528 = vpack.c.b16 %v422, %v421
  %v529 = vpack.c.b16 %v424, %v423
  %v530 = vpack.c.b16 %v426, %v425
  %v531 = vpack.c.b16 %v428, %v427
  %v532 = vpack.c.b16 %v430, %v429
  %v533 = vpack.c.b16 %v432, %v431
  %v534 = vpack.c.b16 %v434, %v433
  %v535 = vpack.c.b16 %v436, %v435
  %v536 = vpack.c.b16 %v438, %v437
  %v537 = vpack.c.b16 %v440, %v439
  %v538 = vpack.c.b16 %v442, %v441
  %v539 = vpack.c.b16 %v444, %v443
  %v540 = vpack.c.b16 %v446, %v445
  %v541 = vpack.c.b16 %v448, %v447
  %v542 = vpack.c.b16 %v450, %v449
  %v543 = vpack.c.b16 %v452, %v451
  %v544 = vpack.c.b16 %v454, %v453
  %v545 = vpack.c.b16 %v456, %v455
  %v546 = vpack.c.b16 %v458, %v457
  %v547 = vpack.c.b16 %v460, %v459
  %v548 = vpack.c.b16 %v462, %v461
  %v549 = vpack.c.b16 %v464, %v463
  %v550 = vpack.c.b16 %v466, %v465
  %v551 = vpack.c.b16 %v468, %v467
  %v552 = vpack.c.b16 %v470, %v469
  %v553 = vpack.c.b16 %v472, %v471
  %v554 = vpack.c.b16 %v474, %v473
  %v555 = vpack.c.b16 %v476, %v475
  %v556 = vpack.c.b16 %v478, %v477
  %v557 = vpack.c.b16 %v480, %v479
  %v558 = vpack.c.b16 %v482, %v481
  %v559 = vpack.c.b16 %v484, %v483
  %v560 = vpack.c.b16 %v486, %v485
  %v561 = vpack.c.b16 %v488, %v487
  %v562 = vpack.c.b16 %v490, %v489
  %635 = vmatprep.subr.bf16.mxu0 0
  %636 = vmatpush1.bf16.msra.mxu0 %v498
  %637 = vmatprep.subr.bf16.mxu0 0
  %638 = vmatpush1.bf16.msra.mxu0 %v497
  %639 = vmatprep.subr.bf16.mxu0 0
  %640 = vmatpush1.bf16.msra.mxu0 %v496
  %641 = vmatprep.subr.bf16.mxu0 0
  %642 = vmatpush1.bf16.msra.mxu0 %v495
  %643 = vmatprep.subr.bf16.mxu0 0
  %644 = vmatpush1.bf16.msra.mxu0 %v494
  %645 = vmatprep.subr.bf16.mxu0 0
  %646 = vmatpush1.bf16.msra.mxu0 %v493
  %647 = vmatprep.subr.bf16.mxu0 0
  %648 = vmatpush1.bf16.msra.mxu0 %v492
  %649 = vmatprep.subr.bf16.mxu0 0
  %650 = vmatpush1.bf16.msra.mxu0 %v491
  %651 = vmatprep.subr.bf16.mxu0 0
  %652 = vmatpush2.bf16.msra.mxu0 %v506
  %653 = vmatprep.subr.bf16.mxu0 0
  %654 = vmatpush2.bf16.msra.mxu0 %v505
  %655 = vmatprep.subr.bf16.mxu0 0
  %656 = vmatpush2.bf16.msra.mxu0 %v504
  %657 = vmatprep.subr.bf16.mxu0 0
  %658 = vmatpush2.bf16.msra.mxu0 %v503
  %659 = vmatprep.subr.bf16.mxu0 0
  %660 = vmatpush2.bf16.msra.mxu0 %v502
  %661 = vmatprep.subr.bf16.mxu0 0
  %662 = vmatpush2.bf16.msra.mxu0 %v501
  %663 = vmatprep.subr.bf16.mxu0 0
  %664 = vmatpush2.bf16.msra.mxu0 %v500
  %665 = vmatprep.subr.bf16.mxu0 0
  %666 = vmatpush2.bf16.msra.mxu0 %v499
  %667 = vmatprep.mubr.bf16.mxu0 %v186
  %668 = vmatmul.mubr.bf16.gmra.mxu0 %v185
  %v669 = vpop.f32.mrf.mxu0
  %v670 = vadd.f32 %v169, %v669
  %v671 = vpop.f32.mrf.mxu0
  %v672 = vpop.f32.mrf.mxu0
  %v673 = vpop.f32.mrf.mxu0
  %674 = vdwg.mxu0
  %675 = vmatprep.subr.bf16.mxu0 0
  %676 = vmatpush1.bf16.msra.mxu0 %v514
  %677 = vmatprep.subr.bf16.mxu0 0
  %678 = vmatpush1.bf16.msra.mxu0 %v513
  %679 = vmatprep.subr.bf16.mxu0 0
  %680 = vmatpush1.bf16.msra.mxu0 %v512
  %681 = vmatprep.subr.bf16.mxu0 0
  %682 = vmatpush1.bf16.msra.mxu0 %v511
  %683 = vmatprep.subr.bf16.mxu0 0
  %684 = vmatpush1.bf16.msra.mxu0 %v510
  %685 = vmatprep.subr.bf16.mxu0 0
  %686 = vmatpush1.bf16.msra.mxu0 %v509
  %687 = vmatprep.subr.bf16.mxu0 0
  %688 = vmatpush1.bf16.msra.mxu0 %v508
  %689 = vmatprep.subr.bf16.mxu0 0
  %690 = vmatpush1.bf16.msra.mxu0 %v507
  %691 = vmatprep.subr.bf16.mxu0 0
  %692 = vmatpush2.bf16.msra.mxu0 %v522
  %693 = vmatprep.subr.bf16.mxu0 0
  %694 = vmatpush2.bf16.msra.mxu0 %v521
  %695 = vmatprep.subr.bf16.mxu0 0
  %696 = vmatpush2.bf16.msra.mxu0 %v520
  %697 = vmatprep.subr.bf16.mxu0 0
  %698 = vmatpush2.bf16.msra.mxu0 %v519
  %699 = vmatprep.subr.bf16.mxu0 0
  %700 = vmatpush2.bf16.msra.mxu0 %v518
  %701 = vmatprep.subr.bf16.mxu0 0
  %702 = vmatpush2.bf16.msra.mxu0 %v517
  %703 = vmatprep.subr.bf16.mxu0 0
  %704 = vmatpush2.bf16.msra.mxu0 %v516
  %705 = vmatprep.subr.bf16.mxu0 0
  %706 = vmatpush2.bf16.msra.mxu0 %v515
  %707 = vmatprep.mubr.bf16.mxu0 %v188
  %708 = vmatmul.mubr.bf16.gmra.mxu0 %v187
  %v709 = vpop.f32.mrf.mxu0
  %v710 = vadd.f32 %v670, %v709
  %v711 = vpop.f32.mrf.mxu0
  %v712 = vpop.f32.mrf.mxu0
  %v713 = vpop.f32.mrf.mxu0
  %714 = vdwg.mxu0
  %715 = vmatprep.subr.bf16.mxu0 0
  %716 = vmatpush1.bf16.msra.mxu0 %v530
  %717 = vmatprep.subr.bf16.mxu0 0
  %718 = vmatpush1.bf16.msra.mxu0 %v529
  %719 = vmatprep.subr.bf16.mxu0 0
  %720 = vmatpush1.bf16.msra.mxu0 %v528
  %721 = vmatprep.subr.bf16.mxu0 0
  %722 = vmatpush1.bf16.msra.mxu0 %v527
  %723 = vmatprep.subr.bf16.mxu0 0
  %724 = vmatpush1.bf16.msra.mxu0 %v526
  %725 = vmatprep.subr.bf16.mxu0 0
  %726 = vmatpush1.bf16.msra.mxu0 %v525
  %727 = vmatprep.subr.bf16.mxu0 0
  %728 = vmatpush1.bf16.msra.mxu0 %v524
  %729 = vmatprep.subr.bf16.mxu0 0
  %730 = vmatpush1.bf16.msra.mxu0 %v523
  %731 = vmatprep.subr.bf16.mxu0 0
  %732 = vmatpush2.bf16.msra.mxu0 %v538
  %733 = vmatprep.subr.bf16.mxu0 0
  %734 = vmatpush2.bf16.msra.mxu0 %v537
  %735 = vmatprep.subr.bf16.mxu0 0
  %736 = vmatpush2.bf16.msra.mxu0 %v536
  %737 = vmatprep.subr.bf16.mxu0 0
  %738 = vmatpush2.bf16.msra.mxu0 %v535
  %739 = vmatprep.subr.bf16.mxu0 0
  %740 = vmatpush2.bf16.msra.mxu0 %v534
  %741 = vmatprep.subr.bf16.mxu0 0
  %742 = vmatpush2.bf16.msra.mxu0 %v533
  %743 = vmatprep.subr.bf16.mxu0 0
  %744 = vmatpush2.bf16.msra.mxu0 %v532
  %745 = vmatprep.subr.bf16.mxu0 0
  %746 = vmatpush2.bf16.msra.mxu0 %v531
  %747 = vmatprep.mubr.bf16.mxu0 %v190
  %748 = vmatmul.mubr.bf16.gmra.mxu0 %v189
  %v749 = vpop.f32.mrf.mxu0
  %v750 = vadd.f32 %v710, %v749
  %v751 = vpop.f32.mrf.mxu0
  %v752 = vpop.f32.mrf.mxu0
  %v753 = vpop.f32.mrf.mxu0
  %754 = vdwg.mxu0
  %755 = vmatprep.subr.bf16.mxu0 0
  %756 = vmatpush1.bf16.msra.mxu0 %v546
  %757 = vmatprep.subr.bf16.mxu0 0
  %758 = vmatpush1.bf16.msra.mxu0 %v545
  %759 = vmatprep.subr.bf16.mxu0 0
  %760 = vmatpush1.bf16.msra.mxu0 %v544
  %761 = vmatprep.subr.bf16.mxu0 0
  %762 = vmatpush1.bf16.msra.mxu0 %v543
  %763 = vmatprep.subr.bf16.mxu0 0
  %764 = vmatpush1.bf16.msra.mxu0 %v542
  %765 = vmatprep.subr.bf16.mxu0 0
  %766 = vmatpush1.bf16.msra.mxu0 %v541
  %767 = vmatprep.subr.bf16.mxu0 0
  %768 = vmatpush1.bf16.msra.mxu0 %v540
  %769 = vmatprep.subr.bf16.mxu0 0
  %770 = vmatpush1.bf16.msra.mxu0 %v539
  %771 = vmatprep.subr.bf16.mxu0 0
  %772 = vmatpush2.bf16.msra.mxu0 %v554
  %773 = vmatprep.subr.bf16.mxu0 0
  %774 = vmatpush2.bf16.msra.mxu0 %v553
  %775 = vmatprep.subr.bf16.mxu0 0
  %776 = vmatpush2.bf16.msra.mxu0 %v552
  %777 = vmatprep.subr.bf16.mxu0 0
  %778 = vmatpush2.bf16.msra.mxu0 %v551
  %779 = vmatprep.subr.bf16.mxu0 0
  %780 = vmatpush2.bf16.msra.mxu0 %v550
  %781 = vmatprep.subr.bf16.mxu0 0
  %782 = vmatpush2.bf16.msra.mxu0 %v549
  %783 = vmatprep.subr.bf16.mxu0 0
  %784 = vmatpush2.bf16.msra.mxu0 %v548
  %785 = vmatprep.subr.bf16.mxu0 0
  %786 = vmatpush2.bf16.msra.mxu0 %v547
  %787 = vmatprep.mubr.bf16.mxu0 %v192
  %788 = vmatmul.mubr.bf16.gmra.mxu0 %v191
  %v789 = vpop.f32.mrf.mxu0
  %v790 = vadd.f32 %v750, %v789
  %v791 = vpop.f32.mrf.mxu0
  %v792 = vpop.f32.mrf.mxu0
  %v793 = vpop.f32.mrf.mxu0
  %794 = vdwg.mxu0
  %795 = vmatprep.subr.bf16.mxu0 0
  %796 = vmatpush1.bf16.msra.mxu0 %v562
  %797 = vmatprep.subr.bf16.mxu0 0
  %798 = vmatpush1.bf16.msra.mxu0 %v561
  %799 = vmatprep.subr.bf16.mxu0 0
  %800 = vmatpush1.bf16.msra.mxu0 %v560
  %801 = vmatprep.subr.bf16.mxu0 0
  %802 = vmatpush1.bf16.msra.mxu0 %v559
  %803 = vmatprep.subr.bf16.mxu0 0
  %804 = vmatpush1.bf16.msra.mxu0 %v558
  %805 = vmatprep.subr.bf16.mxu0 0
  %806 = vmatpush1.bf16.msra.mxu0 %v557
  %807 = vmatprep.subr.bf16.mxu0 0
  %808 = vmatpush1.bf16.msra.mxu0 %v556
  %809 = vmatprep.subr.bf16.mxu0 0
  %810 = vmatpush1.bf16.msra.mxu0 %v555
  %811 = vmatprep.subr.bf16.mxu0 0
  %812 = vmatpush2.bf16.msra.mxu0 0
  %813 = vmatprep.subr.bf16.mxu0 0
  %814 = vmatpush2.bf16.msra.mxu0 0
  %815 = vmatprep.subr.bf16.mxu0 0
  %816 = vmatpush2.bf16.msra.mxu0 0
  %817 = vmatprep.subr.bf16.mxu0 0
  %818 = vmatpush2.bf16.msra.mxu0 0
  %819 = vmatprep.subr.bf16.mxu0 0
  %820 = vmatpush2.bf16.msra.mxu0 0
  %821 = vmatprep.subr.bf16.mxu0 0
  %822 = vmatpush2.bf16.msra.mxu0 0
  %823 = vmatprep.subr.bf16.mxu0 0
  %824 = vmatpush2.bf16.msra.mxu0 0
  %825 = vmatprep.subr.bf16.mxu0 0
  %826 = vmatpush2.bf16.msra.mxu0 0
  %827 = vmatprep.mubr.bf16.mxu0 0
  %828 = vmatmul.mubr.bf16.gmra.mxu0 %v193
  %v829 = vpop.f32.mrf.mxu0
  %v830 = vadd.f32 %v790, %v829
  %v831 = vpop.f32.mrf.mxu0
  %v832 = vpop.f32.mrf.mxu0
  %v833 = vpop.f32.mrf.mxu0
  %834 = vdwg.mxu0
  %v835 = vrot.slane %v830, 4
  %v836 = vadd.f32 %v830, %v835
  %v837 = vrot.slane %v836, 2
  %v838 = vadd.f32 %v836, %v837
  %v839 = vrot.slane %v838, 1
  %v840 = vadd.f32 %v838, %v839
  %v841 = vmul.f32 %v840, 0.125
  %v842 = vsub.f32 %v830, %v841
  %v843 = vmul.f32 %v842, %v842
  %v844 = vrot.slane %v843, 4
  %v845 = vadd.f32 %v843, %v844
  %v846 = vrot.slane %v845, 2
  %v847 = vadd.f32 %v845, %v846
  %v848 = vrot.slane %v847, 1
  %v849 = vadd.f32 %v847, %v848
  %v850 = vmul.f32 %v849, 0.125
  %v851 = vadd.f32 %v850, 1e-05
  %v852 = vrsqrt.pop %v851
  %v853 = vmul.f32 %v842, %v852
  %v854 = vmax.f32 %v853, 0.0
  %v855 = vpack.c.bf16 %v854, %v854
  %856 = vst [vmem:[%s3] sm:$0xf] %v855
  // Predicated region
  $region14: #{cnn_forward.11} parent=0 // pred_check
    _
  $region15: #{cnn_forward.11} parent=0 // pred_check_branch
    %858 = sbr.rel (0) target = $region17
  $region16: #{cnn_forward.11} parent=0 // pred_region
    _
  $region17: #{cnn_forward.11} parent=0 // pred_fallthru
    _
  // Predicated region
  $region18: #{cnn_forward.11} parent=0 // pred_check
    _
  $region19: #{cnn_forward.11} parent=0 // pred_check_branch
    %860 = sbr.rel (0) target = $region21
  $region20: #{cnn_forward.11} parent=0 // pred_region
    _
  $region21: #{cnn_forward.11} parent=0 // pred_fallthru
    _

// kernel: cnn_forward.12
$region0: #{cnn_forward.12}
  #allocation0 [shape = 'u32[]', space=smem, size = 0x4, offset = 0x4, fixed_abs, tag = 'smem constant byte address 0x4 - core index']
  #allocation1 [shape = 'u32[144,128]{1,0:T(1,128)}', space=vmem, size = 0x12000, scoped, tag = 'internal scratch']
  %s0 = inlined_call_operand.vmem [shape: bf16[18,512], index: 0, kind: input, shape index: {}]
  %s1 = inlined_call_operand.vmem [shape: f32[18,512], index: 1, kind: input, shape index: {}]
  %s2 = inlined_call_operand.vmem [shape: bf16[512,256], index: 2, kind: input, shape index: {}]
  %s3 = inlined_call_operand.vmem [shape: f32[1,256], index: 3, kind: input, shape index: {}]
  %s4 = inlined_call_operand.vmem [shape: bf16[18,256], index: 4, kind: output, shape index: {}]
  %s5 = sld [smem:[#allocation0]]
  $region26: #{cnn_forward.12} parent=0
    _
  %s7 = ssub.s32 1, %s5
  %s8 = scalar_select 0, %s7, %s5
  // Predicated region
  $region2: #{cnn_forward.12} parent=0 // pred_check
    _
  $region3: #{cnn_forward.12} parent=0 // pred_check_branch
    %10 = sbr.rel (0) target = $region5
  $region4: #{cnn_forward.12} parent=0 // pred_region
    _
  $region5: #{cnn_forward.12} parent=0 // pred_fallthru
    _
  // Predicated region
  $region6: #{cnn_forward.12} parent=0 // pred_check
    _
  $region7: #{cnn_forward.12} parent=0 // pred_check_branch
    %12 = sbr.rel (0) target = $region9
  $region8: #{cnn_forward.12} parent=0 // pred_region
    _
  $region9: #{cnn_forward.12} parent=0 // pred_fallthru
    _
  // Predicated region
  $region10: #{cnn_forward.12} parent=0 // pred_check
    _
  $region11: #{cnn_forward.12} parent=0 // pred_check_branch
    %14 = sbr.rel (0) target = $region13
  $region12: #{cnn_forward.12} parent=0 // pred_region
    _
  $region13: #{cnn_forward.12} parent=0 // pred_fallthru
    _
  // Predicated region
  $region14: #{cnn_forward.12} parent=0 // pred_check
    _
  $region15: #{cnn_forward.12} parent=0 // pred_check_branch
    %16 = sbr.rel (0) target = $region17
  $region16: #{cnn_forward.12} parent=0 // pred_region
    _
  $region17: #{cnn_forward.12} parent=0 // pred_fallthru
    _
  %v17 = vld [vmem:[%s0] sm:$0xff]
  %v18 = vld [vmem:[%s0 + $0x8] sm:$0xff]
  %v19 = vld [vmem:[%s0 + $0x10] sm:$0xff]
  %v20 = vld [vmem:[%s0 + $0x18] sm:$0xff]
  %v21 = vld [vmem:[%s0 + $0x20] sm:$0x11]
  %v22 = vld [vmem:[%s0 + $0x28] sm:$0x11]
  %v23 = vunpack.c.l.bf16 %v17
  %v24 = vunpack.c.h.bf16 %v17
  %v25 = vunpack.c.l.bf16 %v18
  %v26 = vunpack.c.h.bf16 %v18
  %v27 = vunpack.c.l.bf16 %v19
  %v28 = vunpack.c.h.bf16 %v19
  %v29 = vunpack.c.l.bf16 %v20
  %v30 = vunpack.c.h.bf16 %v20
  %v31 = vunpack.c.l.bf16 %v21
  %v32 = vunpack.c.h.bf16 %v21
  %v33 = vunpack.c.l.bf16 %v22
  %v34 = vunpack.c.h.bf16 %v22
  %v35 = vld [vmem:[%s1] sm:$0xff]
  %v36 = vld [vmem:[%s1 + $0x8] sm:$0xff]
  %v37 = vld [vmem:[%s1 + $0x10] sm:$0xff]
  %v38 = vld [vmem:[%s1 + $0x18] sm:$0xff]
  %v39 = vld [vmem:[%s1 + $0x20] sm:$0xff]
  %v40 = vld [vmem:[%s1 + $0x28] sm:$0xff]
  %v41 = vld [vmem:[%s1 + $0x30] sm:$0xff]
  %v42 = vld [vmem:[%s1 + $0x38] sm:$0xff]
  %v43 = vld [vmem:[%s1 + $0x40] sm:$0x3]
  %v44 = vld [vmem:[%s1 + $0x48] sm:$0x3]
  %v45 = vld [vmem:[%s1 + $0x50] sm:$0x3]
  %v46 = vld [vmem:[%s1 + $0x58] sm:$0x3]
  %v47 = vadd.f32 %v23, %v27
  %vm48 = vcmask 1041408
  %v49 = vsel %vm48, %v31, 0.0
  %v50 = vadd.f32 %v47, %v49
  %v51 = vrot.slane %v50, 4
  %v52 = vadd.f32 %v50, %v51
  %v53 = vrot.slane %v52, 2
  %v54 = vadd.f32 %v52, %v53
  %v55 = vrot.slane %v54, 1
  %v56 = vadd.f32 %v54, %v55
  %v57 = vadd.f32 %v24, %v28
  %v58 = vsel %vm48, %v32, 0.0
  %v59 = vadd.f32 %v57, %v58
  %v60 = vrot.slane %v59, 4
  %v61 = vadd.f32 %v59, %v60
  %v62 = vrot.slane %v61, 2
  %v63 = vadd.f32 %v61, %v62
  %v64 = vrot.slane %v63, 1
  %v65 = vadd.f32 %v63, %v64
  %v66 = vadd.f32 %v25, %v29
  %v67 = vsel %vm48, %v33, 0.0
  %v68 = vadd.f32 %v66, %v67
  %v69 = vrot.slane %v68, 4
  %v70 = vadd.f32 %v68, %v69
  %v71 = vrot.slane %v70, 2
  %v72 = vadd.f32 %v70, %v71
  %v73 = vrot.slane %v72, 1
  %v74 = vadd.f32 %v72, %v73
  %v75 = vadd.f32 %v26, %v30
  %v76 = vsel %vm48, %v34, 0.0
  %v77 = vadd.f32 %v75, %v76
  %v78 = vrot.slane %v77, 4
  %v79 = vadd.f32 %v77, %v78
  %v80 = vrot.slane %v79, 2
  %v81 = vadd.f32 %v79, %v80
  %v82 = vrot.slane %v81, 1
  %v83 = vadd.f32 %v81, %v82
  %v84 = vmul.f32 %v56, 0.125
  %v85 = vmul.f32 %v65, 0.125
  %v86 = vmul.f32 %v74, 0.125
  %v87 = vmul.f32 %v83, 0.125
  %v88 = vmul.f32 %v35, %v84
  %v89 = vmul.f32 %v36, %v85
  %v90 = vmul.f32 %v37, %v86
  %v91 = vmul.f32 %v38, %v87
  %v92 = vmul.f32 %v39, %v84
  %v93 = vmul.f32 %v40, %v85
  %v94 = vmul.f32 %v41, %v86
  %v95 = vmul.f32 %v42, %v87
  %v96 = vmul.f32 %v43, %v84
  %v97 = vmul.f32 %v44, %v85
  %v98 = vmul.f32 %v45, %v86
  %v99 = vmul.f32 %v46, %v87
  %v100 = vsub.f32 %v23, %v88
  %v101 = vsub.f32 %v24, %v89
  %v102 = vsub.f32 %v25, %v90
  %v103 = vsub.f32 %v26, %v91
  %v104 = vsub.f32 %v27, %v92
  %v105 = vsub.f32 %v28, %v93
  %v106 = vsub.f32 %v29, %v94
  %v107 = vsub.f32 %v30, %v95
  %v108 = vsub.f32 %v31, %v96
  %v109 = vsub.f32 %v32, %v97
  %v110 = vsub.f32 %v33, %v98
  %v111 = vsub.f32 %v34, %v99
  %v112 = vmul.f32 %v100, %v100
  %v113 = vmul.f32 %v101, %v101
  %v114 = vmul.f32 %v102, %v102
  %v115 = vmul.f32 %v103, %v103
  %v116 = vmul.f32 %v104, %v104
  %v117 = vmul.f32 %v105, %v105
  %v118 = vmul.f32 %v106, %v106
  %v119 = vmul.f32 %v107, %v107
  %v120 = vmul.f32 %v108, %v108
  %v121 = vmul.f32 %v109, %v109
  %v122 = vmul.f32 %v110, %v110
  %v123 = vmul.f32 %v111, %v111
  %v124 = vadd.f32 %v112, %v116
  %v125 = vsel %vm48, %v120, 0.0
  %v126 = vadd.f32 %v124, %v125
  %v127 = vrot.slane %v126, 4
  %v128 = vadd.f32 %v126, %v127
  %v129 = vrot.slane %v128, 2
  %v130 = vadd.f32 %v128, %v129
  %v131 = vrot.slane %v130, 1
  %v132 = vadd.f32 %v130, %v131
  %v133 = vadd.f32 %v113, %v117
  %v134 = vsel %vm48, %v121, 0.0
  %v135 = vadd.f32 %v133, %v134
  %v136 = vrot.slane %v135, 4
  %v137 = vadd.f32 %v135, %v136
  %v138 = vrot.slane %v137, 2
  %v139 = vadd.f32 %v137, %v138
  %v140 = vrot.slane %v139, 1
  %v141 = vadd.f32 %v139, %v140
  %v142 = vadd.f32 %v114, %v118
  %v143 = vsel %vm48, %v122, 0.0
  %v144 = vadd.f32 %v142, %v143
  %v145 = vrot.slane %v144, 4
  %v146 = vadd.f32 %v144, %v145
  %v147 = vrot.slane %v146, 2
  %v148 = vadd.f32 %v146, %v147
  %v149 = vrot.slane %v148, 1
  %v150 = vadd.f32 %v148, %v149
  %v151 = vadd.f32 %v115, %v119
  %v152 = vsel %vm48, %v123, 0.0
  %v153 = vadd.f32 %v151, %v152
  %v154 = vrot.slane %v153, 4
  %v155 = vadd.f32 %v153, %v154
  %v156 = vrot.slane %v155, 2
  %v157 = vadd.f32 %v155, %v156
  %v158 = vrot.slane %v157, 1
  %v159 = vadd.f32 %v157, %v158
  %v160 = vmul.f32 %v132, 0.125
  %v161 = vmul.f32 %v141, 0.125
  %v162 = vmul.f32 %v150, 0.125
  %v163 = vmul.f32 %v159, 0.125
  %v164 = vadd.f32 %v160, 1e-05
  %v165 = vadd.f32 %v161, 1e-05
  %v166 = vadd.f32 %v162, 1e-05
  %v167 = vadd.f32 %v163, 1e-05
  %v168 = vrsqrt.pop %v164
  %v169 = vrsqrt.pop %v165
  %v170 = vrsqrt.pop %v166
  %v171 = vrsqrt.pop %v167
  %v172 = vmul.f32 %v100, %v168
  %v173 = vmul.f32 %v101, %v169
  %v174 = vmul.f32 %v102, %v170
  %v175 = vmul.f32 %v103, %v171
  %v176 = vmul.f32 %v104, %v168
  %v177 = vmul.f32 %v105, %v169
  %v178 = vmul.f32 %v106, %v170
  %v179 = vmul.f32 %v107, %v171
  %v180 = vmul.f32 %v108, %v168
  %v181 = vmul.f32 %v109, %v169
  %v182 = vmul.f32 %v110, %v170
  %v183 = vmul.f32 %v111, %v171
  %v184 = vpack.c.bf16 %v176, %v172
  %v185 = vpack.c.bf16 %v177, %v173
  %v186 = vpack.c.bf16 %v178, %v174
  %v187 = vpack.c.bf16 %v179, %v175
  %v188 = vpack.c.bf16 %v180, %v180
  %v189 = vpack.c.bf16 %v181, %v181
  %v190 = vpack.c.bf16 %v182, %v182
  %v191 = vpack.c.bf16 %v183, %v183
  %v192 = vld [vmem:[%s2] sm:$0xff]
  %v193 = vld [vmem:[%s2 + $0x8] sm:$0xff]
  %v194 = vld [vmem:[%s2 + $0x10] sm:$0xff]
  %v195 = vld [vmem:[%s2 + $0x18] sm:$0xff]
  %v196 = vld [vmem:[%s2 + $0x20] sm:$0xff]
  %v197 = vld [vmem:[%s2 + $0x28] sm:$0xff]
  %v198 = vld [vmem:[%s2 + $0x30] sm:$0xff]
  %v199 = vld [vmem:[%s2 + $0x38] sm:$0xff]
  %v200 = vld [vmem:[%s2 + $0x40] sm:$0xff]
  %v201 = vld [vmem:[%s2 + $0x48] sm:$0xff]
  %v202 = vld [vmem:[%s2 + $0x50] sm:$0xff]
  %v203 = vld [vmem:[%s2 + $0x58] sm:$0xff]
  %v204 = vld [vmem:[%s2 + $0x60] sm:$0xff]
  %v205 = vld [vmem:[%s2 + $0x68] sm:$0xff]
  %v206 = vld [vmem:[%s2 + $0x70] sm:$0xff]
  %v207 = vld [vmem:[%s2 + $0x78] sm:$0xff]
  %v208 = vld [vmem:[%s2 + $0x80] sm:$0xff]
  %v209 = vld [vmem:[%s2 + $0x88] sm:$0xff]
  %v210 = vld [vmem:[%s2 + $0x90] sm:$0xff]
  %v211 = vld [vmem:[%s2 + $0x98] sm:$0xff]
  %v212 = vld [vmem:[%s2 + $0xa0] sm:$0xff]
  %v213 = vld [vmem:[%s2 + $0xa8] sm:$0xff]
  %v214 = vld [vmem:[%s2 + $0xb0] sm:$0xff]
  %v215 = vld [vmem:[%s2 + $0xb8] sm:$0xff]
  %v216 = vld [vmem:[%s2 + $0xc0] sm:$0xff]
  %v217 = vld [vmem:[%s2 + $0xc8] sm:$0xff]
  %v218 = vld [vmem:[%s2 + $0xd0] sm:$0xff]
  %v219 = vld [vmem:[%s2 + $0xd8] sm:$0xff]
  %v220 = vld [vmem:[%s2 + $0xe0] sm:$0xff]
  %v221 = vld [vmem:[%s2 + $0xe8] sm:$0xff]
  %v222 = vld [vmem:[%s2 + $0xf0] sm:$0xff]
  %v223 = vld [vmem:[%s2 + $0xf8] sm:$0xff]
  %v224 = vld [vmem:[%s2 + $0x100] sm:$0xff]
  %v225 = vld [vmem:[%s2 + $0x108] sm:$0xff]
  %v226 = vld [vmem:[%s2 + $0x110] sm:$0xff]
  %v227 = vld [vmem:[%s2 + $0x118] sm:$0xff]
  %v228 = vld [vmem:[%s2 + $0x120] sm:$0xff]
  %v229 = vld [vmem:[%s2 + $0x128] sm:$0xff]
  %v230 = vld [vmem:[%s2 + $0x130] sm:$0xff]
  %v231 = vld [vmem:[%s2 + $0x138] sm:$0xff]
  %v232 = vld [vmem:[%s2 + $0x140] sm:$0xff]
  %v233 = vld [vmem:[%s2 + $0x148] sm:$0xff]
  %v234 = vld [vmem:[%s2 + $0x150] sm:$0xff]
  %v235 = vld [vmem:[%s2 + $0x158] sm:$0xff]
  %v236 = vld [vmem:[%s2 + $0x160] sm:$0xff]
  %v237 = vld [vmem:[%s2 + $0x168] sm:$0xff]
  %v238 = vld [vmem:[%s2 + $0x170] sm:$0xff]
  %v239 = vld [vmem:[%s2 + $0x178] sm:$0xff]
  %v240 = vld [vmem:[%s2 + $0x180] sm:$0xff]
  %v241 = vld [vmem:[%s2 + $0x188] sm:$0xff]
  %v242 = vld [vmem:[%s2 + $0x190] sm:$0xff]
  %v243 = vld [vmem:[%s2 + $0x198] sm:$0xff]
  %v244 = vld [vmem:[%s2 + $0x1a0] sm:$0xff]
  %v245 = vld [vmem:[%s2 + $0x1a8] sm:$0xff]
  %v246 = vld [vmem:[%s2 + $0x1b0] sm:$0xff]
  %v247 = vld [vmem:[%s2 + $0x1b8] sm:$0xff]
  %v248 = vld [vmem:[%s2 + $0x1c0] sm:$0xff]
  %v249 = vld [vmem:[%s2 + $0x1c8] sm:$0xff]
  %v250 = vld [vmem:[%s2 + $0x1d0] sm:$0xff]
  %v251 = vld [vmem:[%s2 + $0x1d8] sm:$0xff]
  %v252 = vld [vmem:[%s2 + $0x1e0] sm:$0xff]
  %v253 = vld [vmem:[%s2 + $0x1e8] sm:$0xff]
  %v254 = vld [vmem:[%s2 + $0x1f0] sm:$0xff]
  %v255 = vld [vmem:[%s2 + $0x1f8] sm:$0xff]
  %v256 = vld [vmem:[%s3] sm:$0x3]
  %v258 = vlaneseq
  %v259 = vshrl.u32 %v258, 7
  %v260 = vsub.s32 0, %v259
  %v261 = vrot.slane %v256, %v260
  %v262 = vlaneseq
  %v263 = vshrl.u32 %v262, 7
  %v264 = vsub.s32 1, %v263
  %v265 = vrot.slane %v256, %v264
  %v332 = vunpack.c.l.b16 %v192
  %v333 = vunpack.c.h.b16 %v192
  %v334 = vunpack.c.l.b16 %v193
  %v335 = vunpack.c.h.b16 %v193
  %v336 = vunpack.c.l.b16 %v194
  %v337 = vunpack.c.h.b16 %v194
  %v338 = vunpack.c.l.b16 %v195
  %v339 = vunpack.c.h.b16 %v195
  %v340 = vunpack.c.l.b16 %v196
  %v341 = vunpack.c.h.b16 %v196
  %v342 = vunpack.c.l.b16 %v197
  %v343 = vunpack.c.h.b16 %v197
  %v344 = vunpack.c.l.b16 %v198
  %v345 = vunpack.c.h.b16 %v198
  %v346 = vunpack.c.l.b16 %v199
  %v347 = vunpack.c.h.b16 %v199
  %v348 = vunpack.c.l.b16 %v200
  %v349 = vunpack.c.h.b16 %v200
  %v350 = vunpack.c.l.b16 %v201
  %v351 = vunpack.c.h.b16 %v201
  %v352 = vunpack.c.l.b16 %v202
  %v353 = vunpack.c.h.b16 %v202
  %v354 = vunpack.c.l.b16 %v203
  %v355 = vunpack.c.h.b16 %v203
  %v356 = vunpack.c.l.b16 %v204
  %v357 = vunpack.c.h.b16 %v204
  %v358 = vunpack.c.l.b16 %v205
  %v359 = vunpack.c.h.b16 %v205
  %v360 = vunpack.c.l.b16 %v206
  %v361 = vunpack.c.h.b16 %v206
  %v362 = vunpack.c.l.b16 %v207
  %v363 = vunpack.c.h.b16 %v207
  %v364 = vunpack.c.l.b16 %v208
  %v365 = vunpack.c.h.b16 %v208
  %v366 = vunpack.c.l.b16 %v209
  %v367 = vunpack.c.h.b16 %v209
  %v368 = vunpack.c.l.b16 %v210
  %v369 = vunpack.c.h.b16 %v210
  %v370 = vunpack.c.l.b16 %v211
  %v371 = vunpack.c.h.b16 %v211
  %v372 = vunpack.c.l.b16 %v212
  %v373 = vunpack.c.h.b16 %v212
  %v374 = vunpack.c.l.b16 %v213
  %v375 = vunpack.c.h.b16 %v213
  %v376 = vunpack.c.l.b16 %v214
  %v377 = vunpack.c.h.b16 %v214
  %v378 = vunpack.c.l.b16 %v215
  %v379 = vunpack.c.h.b16 %v215
  %v380 = vunpack.c.l.b16 %v216
  %v381 = vunpack.c.h.b16 %v216
  %v382 = vunpack.c.l.b16 %v217
  %v383 = vunpack.c.h.b16 %v217
  %v384 = vunpack.c.l.b16 %v218
  %v385 = vunpack.c.h.b16 %v218
  %v386 = vunpack.c.l.b16 %v219
  %v387 = vunpack.c.h.b16 %v219
  %v388 = vunpack.c.l.b16 %v220
  %v389 = vunpack.c.h.b16 %v220
  %v390 = vunpack.c.l.b16 %v221
  %v391 = vunpack.c.h.b16 %v221
  %v392 = vunpack.c.l.b16 %v222
  %v393 = vunpack.c.h.b16 %v222
  %v394 = vunpack.c.l.b16 %v223
  %v395 = vunpack.c.h.b16 %v223
  %v396 = vunpack.c.l.b16 %v224
  %v397 = vunpack.c.h.b16 %v224
  %v398 = vunpack.c.l.b16 %v225
  %v399 = vunpack.c.h.b16 %v225
  %v400 = vunpack.c.l.b16 %v226
  %v401 = vunpack.c.h.b16 %v226
  %v402 = vunpack.c.l.b16 %v227
  %v403 = vunpack.c.h.b16 %v227
  %v404 = vunpack.c.l.b16 %v228
  %v405 = vunpack.c.h.b16 %v228
  %v406 = vunpack.c.l.b16 %v229
  %v407 = vunpack.c.h.b16 %v229
  %v408 = vunpack.c.l.b16 %v230
  %v409 = vunpack.c.h.b16 %v230
  %v410 = vunpack.c.l.b16 %v231
  %v411 = vunpack.c.h.b16 %v231
  %v412 = vunpack.c.l.b16 %v232
  %v413 = vunpack.c.h.b16 %v232
  %v414 = vunpack.c.l.b16 %v233
  %v415 = vunpack.c.h.b16 %v233
  %v416 = vunpack.c.l.b16 %v234
  %v417 = vunpack.c.h.b16 %v234
  %v418 = vunpack.c.l.b16 %v235
  %v419 = vunpack.c.h.b16 %v235
  %v420 = vunpack.c.l.b16 %v236
  %v421 = vunpack.c.h.b16 %v236
  %v422 = vunpack.c.l.b16 %v237
  %v423 = vunpack.c.h.b16 %v237
  %v424 = vunpack.c.l.b16 %v238
  %v425 = vunpack.c.h.b16 %v238
  %v426 = vunpack.c.l.b16 %v239
  %v427 = vunpack.c.h.b16 %v239
  %v428 = vunpack.c.l.b16 %v240
  %v429 = vunpack.c.h.b16 %v240
  %v430 = vunpack.c.l.b16 %v241
  %v431 = vunpack.c.h.b16 %v241
  %v432 = vunpack.c.l.b16 %v242
  %v433 = vunpack.c.h.b16 %v242
  %v434 = vunpack.c.l.b16 %v243
  %v435 = vunpack.c.h.b16 %v243
  %v436 = vunpack.c.l.b16 %v244
  %v437 = vunpack.c.h.b16 %v244
  %v438 = vunpack.c.l.b16 %v245
  %v439 = vunpack.c.h.b16 %v245
  %v440 = vunpack.c.l.b16 %v246
  %v441 = vunpack.c.h.b16 %v246
  %v442 = vunpack.c.l.b16 %v247
  %v443 = vunpack.c.h.b16 %v247
  %v444 = vunpack.c.l.b16 %v248
  %v445 = vunpack.c.h.b16 %v248
  %v446 = vunpack.c.l.b16 %v249
  %v447 = vunpack.c.h.b16 %v249
  %v448 = vunpack.c.l.b16 %v250
  %v449 = vunpack.c.h.b16 %v250
  %v450 = vunpack.c.l.b16 %v251
  %v451 = vunpack.c.h.b16 %v251
  %v452 = vunpack.c.l.b16 %v252
  %v453 = vunpack.c.h.b16 %v252
  %v454 = vunpack.c.l.b16 %v253
  %v455 = vunpack.c.h.b16 %v253
  %v456 = vunpack.c.l.b16 %v254
  %v457 = vunpack.c.h.b16 %v254
  %v458 = vunpack.c.l.b16 %v255
  %v459 = vunpack.c.h.b16 %v255
  %v460 = vpack.c.b16 %v334, %v332
  %v461 = vpack.c.b16 %v335, %v333
  %v462 = vpack.c.b16 %v338, %v336
  %v463 = vpack.c.b16 %v339, %v337
  %v464 = vpack.c.b16 %v342, %v340
  %v465 = vpack.c.b16 %v343, %v341
  %v466 = vpack.c.b16 %v346, %v344
  %v467 = vpack.c.b16 %v347, %v345
  %v468 = vpack.c.b16 %v350, %v348
  %v469 = vpack.c.b16 %v351, %v349
  %v470 = vpack.c.b16 %v354, %v352
  %v471 = vpack.c.b16 %v355, %v353
  %v472 = vpack.c.b16 %v358, %v356
  %v473 = vpack.c.b16 %v359, %v357
  %v474 = vpack.c.b16 %v362, %v360
  %v475 = vpack.c.b16 %v363, %v361
  %v476 = vpack.c.b16 %v366, %v364
  %v477 = vpack.c.b16 %v367, %v365
  %v478 = vpack.c.b16 %v370, %v368
  %v479 = vpack.c.b16 %v371, %v369
  %v480 = vpack.c.b16 %v374, %v372
  %v481 = vpack.c.b16 %v375, %v373
  %v482 = vpack.c.b16 %v378, %v376
  %v483 = vpack.c.b16 %v379, %v377
  %v484 = vpack.c.b16 %v382, %v380
  %v485 = vpack.c.b16 %v383, %v381
  %v486 = vpack.c.b16 %v386, %v384
  %v487 = vpack.c.b16 %v387, %v385
  %v488 = vpack.c.b16 %v390, %v388
  %v489 = vpack.c.b16 %v391, %v389
  %v490 = vpack.c.b16 %v394, %v392
  %v491 = vpack.c.b16 %v395, %v393
  %v492 = vpack.c.b16 %v398, %v396
  %v493 = vpack.c.b16 %v399, %v397
  %v494 = vpack.c.b16 %v402, %v400
  %v495 = vpack.c.b16 %v403, %v401
  %v496 = vpack.c.b16 %v406, %v404
  %v497 = vpack.c.b16 %v407, %v405
  %v498 = vpack.c.b16 %v410, %v408
  %v499 = vpack.c.b16 %v411, %v409
  %v500 = vpack.c.b16 %v414, %v412
  %v501 = vpack.c.b16 %v415, %v413
  %v502 = vpack.c.b16 %v418, %v416
  %v503 = vpack.c.b16 %v419, %v417
  %v504 = vpack.c.b16 %v422, %v420
  %v505 = vpack.c.b16 %v423, %v421
  %v506 = vpack.c.b16 %v426, %v424
  %v507 = vpack.c.b16 %v427, %v425
  %v508 = vpack.c.b16 %v430, %v428
  %v509 = vpack.c.b16 %v431, %v429
  %v510 = vpack.c.b16 %v434, %v432
  %v511 = vpack.c.b16 %v435, %v433
  %v512 = vpack.c.b16 %v438, %v436
  %v513 = vpack.c.b16 %v439, %v437
  %v514 = vpack.c.b16 %v442, %v440
  %v515 = vpack.c.b16 %v443, %v441
  %v516 = vpack.c.b16 %v446, %v444
  %v517 = vpack.c.b16 %v447, %v445
  %v518 = vpack.c.b16 %v450, %v448
  %v519 = vpack.c.b16 %v451, %v449
  %v520 = vpack.c.b16 %v454, %v452
  %v521 = vpack.c.b16 %v455, %v453
  %v522 = vpack.c.b16 %v458, %v456
  %v523 = vpack.c.b16 %v459, %v457
  %588 = vmatprep.subr.bf16.mxu0 %v475
  %589 = vmatpush1.bf16.msra.mxu0 %v474
  %590 = vmatprep.subr.bf16.mxu0 %v473
  %591 = vmatpush1.bf16.msra.mxu0 %v472
  %592 = vmatprep.subr.bf16.mxu0 %v471
  %593 = vmatpush1.bf16.msra.mxu0 %v470
  %594 = vmatprep.subr.bf16.mxu0 %v469
  %595 = vmatpush1.bf16.msra.mxu0 %v468
  %596 = vmatprep.subr.bf16.mxu0 %v467
  %597 = vmatpush1.bf16.msra.mxu0 %v466
  %598 = vmatprep.subr.bf16.mxu0 %v465
  %599 = vmatpush1.bf16.msra.mxu0 %v464
  %600 = vmatprep.subr.bf16.mxu0 %v463
  %601 = vmatpush1.bf16.msra.mxu0 %v462
  %602 = vmatprep.subr.bf16.mxu0 %v461
  %603 = vmatpush1.bf16.msra.mxu0 %v460
  %604 = vmatprep.subr.bf16.mxu0 %v491
  %605 = vmatpush2.bf16.msra.mxu0 %v490
  %606 = vmatprep.subr.bf16.mxu0 %v489
  %607 = vmatpush2.bf16.msra.mxu0 %v488
  %608 = vmatprep.subr.bf16.mxu0 %v487
  %609 = vmatpush2.bf16.msra.mxu0 %v486
  %610 = vmatprep.subr.bf16.mxu0 %v485
  %611 = vmatpush2.bf16.msra.mxu0 %v484
  %612 = vmatprep.subr.bf16.mxu0 %v483
  %613 = vmatpush2.bf16.msra.mxu0 %v482
  %614 = vmatprep.subr.bf16.mxu0 %v481
  %615 = vmatpush2.bf16.msra.mxu0 %v480
  %616 = vmatprep.subr.bf16.mxu0 %v479
  %617 = vmatpush2.bf16.msra.mxu0 %v478
  %618 = vmatprep.subr.bf16.mxu0 %v477
  %619 = vmatpush2.bf16.msra.mxu0 %v476
  %620 = vmatprep.mubr.bf16.mxu0 %v185
  %621 = vmatmul.mubr.bf16.gmra.mxu0 %v184
  %v622 = vpop.f32.mrf.mxu0
  %v623 = vadd.f32 %v261, %v622
  %v624 = vpop.f32.mrf.mxu0
  %v625 = vadd.f32 %v265, %v624
  %v626 = vpop.f32.mrf.mxu0
  %v627 = vadd.f32 %v261, %v626
  %v628 = vpop.f32.mrf.mxu0
  %v629 = vadd.f32 %v265, %v628
  %630 = vmatprep.mubr.bf16.mxu0 %v189
  %631 = vmatmul.mubr.bf16.gmra.mxu0 %v188
  %v632 = vpop.f32.mrf.mxu0
  %v633 = vadd.f32 %v261, %v632
  %v634 = vpop.f32.mrf.mxu0
  %v635 = vadd.f32 %v265, %v634
  %v636 = vpop.f32.mrf.mxu0
  %v637 = vpop.f32.mrf.mxu0
  %638 = vdwg.mxu0
  %639 = vmatprep.subr.bf16.mxu0 %v507
  %640 = vmatpush1.bf16.msra.mxu0 %v506
  %641 = vmatprep.subr.bf16.mxu0 %v505
  %642 = vmatpush1.bf16.msra.mxu0 %v504
  %643 = vmatprep.subr.bf16.mxu0 %v503
  %644 = vmatpush1.bf16.msra.mxu0 %v502
  %645 = vmatprep.subr.bf16.mxu0 %v501
  %646 = vmatpush1.bf16.msra.mxu0 %v500
  %647 = vmatprep.subr.bf16.mxu0 %v499
  %648 = vmatpush1.bf16.msra.mxu0 %v498
  %649 = vmatprep.subr.bf16.mxu0 %v497
  %650 = vmatpush1.bf16.msra.mxu0 %v496
  %651 = vmatprep.subr.bf16.mxu0 %v495
  %652 = vmatpush1.bf16.msra.mxu0 %v494
  %653 = vmatprep.subr.bf16.mxu0 %v493
  %654 = vmatpush1.bf16.msra.mxu0 %v492
  %655 = vmatprep.subr.bf16.mxu0 %v523
  %656 = vmatpush2.bf16.msra.mxu0 %v522
  %657 = vmatprep.subr.bf16.mxu0 %v521
  %658 = vmatpush2.bf16.msra.mxu0 %v520
  %659 = vmatprep.subr.bf16.mxu0 %v519
  %660 = vmatpush2.bf16.msra.mxu0 %v518
  %661 = vmatprep.subr.bf16.mxu0 %v517
  %662 = vmatpush2.bf16.msra.mxu0 %v516
  %663 = vmatprep.subr.bf16.mxu0 %v515
  %664 = vmatpush2.bf16.msra.mxu0 %v514
  %665 = vmatprep.subr.bf16.mxu0 %v513
  %666 = vmatpush2.bf16.msra.mxu0 %v512
  %667 = vmatprep.subr.bf16.mxu0 %v511
  %668 = vmatpush2.bf16.msra.mxu0 %v510
  %669 = vmatprep.subr.bf16.mxu0 %v509
  %670 = vmatpush2.bf16.msra.mxu0 %v508
  %671 = vmatprep.mubr.bf16.mxu0 %v187
  %672 = vmatmul.mubr.bf16.gmra.mxu0 %v186
  %v673 = vpop.f32.mrf.mxu0
  %v674 = vadd.f32 %v623, %v673
  %v675 = vpop.f32.mrf.mxu0
  %v676 = vadd.f32 %v625, %v675
  %v677 = vpop.f32.mrf.mxu0
  %v678 = vadd.f32 %v627, %v677
  %v679 = vpop.f32.mrf.mxu0
  %v680 = vadd.f32 %v629, %v679
  %681 = vmatprep.mubr.bf16.mxu0 %v191
  %682 = vmatmul.mubr.bf16.gmra.mxu0 %v190
  %v683 = vpop.f32.mrf.mxu0
  %v684 = vadd.f32 %v633, %v683
  %v685 = vpop.f32.mrf.mxu0
  %v686 = vadd.f32 %v635, %v685
  %v687 = vpop.f32.mrf.mxu0
  %v688 = vpop.f32.mrf.mxu0
  %689 = vdwg.mxu0
  %v690 = vmax.f32 %v674, 0.0
  %v691 = vmax.f32 %v676, 0.0
  %v692 = vmax.f32 %v678, 0.0
  %v693 = vmax.f32 %v680, 0.0
  %v694 = vmax.f32 %v684, 0.0
  %v695 = vmax.f32 %v686, 0.0
  %v696 = vpack.c.bf16 %v692, %v690
  %v697 = vpack.c.bf16 %v693, %v691
  %v698 = vpack.c.bf16 %v694, %v694
  %v699 = vpack.c.bf16 %v695, %v695
  %v704 = vunpack.c.l.b16 %v696
  %v705 = vunpack.c.l.b16 %v697
  %v706 = vunpack.c.h.b16 %v696
  %v707 = vunpack.c.h.b16 %v697
  %v708 = vunpack.c.l.b16 %v698
  %v709 = vunpack.c.l.b16 %v699
  %v710 = vpack.c.b16 %v705, %v704
  %v711 = vpack.c.b16 %v707, %v706
  %v712 = vpack.c.b16 %v709, %v708
  %716 = vst [vmem:[%s4] sm:$0xff] %v710
  %717 = vst [vmem:[%s4 + $0x8] sm:$0xff] %v711
  %718 = vst [vmem:[%s4 + $0x10] sm:$0x11] %v712
  // Predicated region
  $region18: #{cnn_forward.12} parent=0 // pred_check
    _
  $region19: #{cnn_forward.12} parent=0 // pred_check_branch
    %720 = sbr.rel (0) target = $region21
  $region20: #{cnn_forward.12} parent=0 // pred_region
    _
  $region21: #{cnn_forward.12} parent=0 // pred_fallthru
    _
  // Predicated region
  $region22: #{cnn_forward.12} parent=0 // pred_check
    _
  $region23: #{cnn_forward.12} parent=0 // pred_check_branch
    %722 = sbr.rel (0) target = $region25
  $region24: #{cnn_forward.12} parent=0 // pred_region
    _
  $region25: #{cnn_forward.12} parent=0 // pred_fallthru
    _

// kernel: cnn_forward.13
$region0: #{cnn_forward.13}
  #allocation0 [shape = 'u32[]', space=smem, size = 0x4, offset = 0x4, fixed_abs, tag = 'smem constant byte address 0x4 - core index']
  #allocation1 [shape = 'u32[144,128]{1,0:T(1,128)}', space=vmem, size = 0x12000, scoped, tag = 'internal scratch']
  %s0 = inlined_call_operand.vmem [shape: bf16[50,256], index: 0, kind: input, shape index: {}]
  %s1 = inlined_call_operand.vmem [shape: f32[50,256], index: 1, kind: input, shape index: {}]
  %s2 = inlined_call_operand.vmem [shape: bf16[256,128], index: 2, kind: input, shape index: {}]
  %s3 = inlined_call_operand.vmem [shape: f32[1,128], index: 3, kind: input, shape index: {}]
  %s4 = inlined_call_operand.vmem [shape: bf16[50,128], index: 4, kind: output, shape index: {}]
  %s5 = sld [smem:[#allocation0]]
  $region26: #{cnn_forward.13} parent=0
    _
  %s7 = ssub.s32 1, %s5
  %s8 = scalar_select 0, %s7, %s5
  // Predicated region
  $region2: #{cnn_forward.13} parent=0 // pred_check
    _
  $region3: #{cnn_forward.13} parent=0 // pred_check_branch
    %10 = sbr.rel (0) target = $region5
  $region4: #{cnn_forward.13} parent=0 // pred_region
    _
  $region5: #{cnn_forward.13} parent=0 // pred_fallthru
    _
  // Predicated region
  $region6: #{cnn_forward.13} parent=0 // pred_check
    _
  $region7: #{cnn_forward.13} parent=0 // pred_check_branch
    %12 = sbr.rel (0) target = $region9
  $region8: #{cnn_forward.13} parent=0 // pred_region
    _
  $region9: #{cnn_forward.13} parent=0 // pred_fallthru
    _
  // Predicated region
  $region10: #{cnn_forward.13} parent=0 // pred_check
    _
  $region11: #{cnn_forward.13} parent=0 // pred_check_branch
    %14 = sbr.rel (0) target = $region13
  $region12: #{cnn_forward.13} parent=0 // pred_region
    _
  $region13: #{cnn_forward.13} parent=0 // pred_fallthru
    _
  // Predicated region
  $region14: #{cnn_forward.13} parent=0 // pred_check
    _
  $region15: #{cnn_forward.13} parent=0 // pred_check_branch
    %16 = sbr.rel (0) target = $region17
  $region16: #{cnn_forward.13} parent=0 // pred_region
    _
  $region17: #{cnn_forward.13} parent=0 // pred_fallthru
    _
  %v18 = vld [vmem:[%s0] sm:$0xff]
  %v19 = vld [vmem:[%s0 + $0x8] sm:$0xff]
  %v20 = vld [vmem:[%s0 + $0x10] sm:$0xff]
  %v21 = vld [vmem:[%s0 + $0x18] sm:$0xff]
  %v22 = vld [vmem:[%s0 + $0x20] sm:$0xff]
  %v23 = vld [vmem:[%s0 + $0x28] sm:$0xff]
  %v24 = vld [vmem:[%s0 + $0x30] sm:$0x11]
  %v25 = vunpack.c.l.bf16 %v18
  %v26 = vunpack.c.h.bf16 %v18
  %v27 = vunpack.c.l.bf16 %v19
  %v28 = vunpack.c.h.bf16 %v19
  %v29 = vunpack.c.l.bf16 %v20
  %v30 = vunpack.c.h.bf16 %v20
  %v31 = vunpack.c.l.bf16 %v21
  %v32 = vunpack.c.h.bf16 %v21
  %v33 = vunpack.c.l.bf16 %v22
  %v34 = vunpack.c.h.bf16 %v22
  %v35 = vunpack.c.l.bf16 %v23
  %v36 = vunpack.c.h.bf16 %v23
  %v37 = vunpack.c.l.bf16 %v24
  %v38 = vunpack.c.h.bf16 %v24
  %v39 = vld [vmem:[%s1] sm:$0xff]
  %v40 = vld [vmem:[%s1 + $0x8] sm:$0xff]
  %v41 = vld [vmem:[%s1 + $0x10] sm:$0xff]
  %v42 = vld [vmem:[%s1 + $0x18] sm:$0xff]
  %v43 = vld [vmem:[%s1 + $0x20] sm:$0xff]
  %v44 = vld [vmem:[%s1 + $0x28] sm:$0xff]
  %v45 = vld [vmem:[%s1 + $0x30] sm:$0xff]
  %v46 = vld [vmem:[%s1 + $0x38] sm:$0xff]
  %v47 = vld [vmem:[%s1 + $0x40] sm:$0xff]
  %v48 = vld [vmem:[%s1 + $0x48] sm:$0xff]
  %v49 = vld [vmem:[%s1 + $0x50] sm:$0xff]
  %v50 = vld [vmem:[%s1 + $0x58] sm:$0xff]
  %v51 = vld [vmem:[%s1 + $0x60] sm:$0x3]
  %v52 = vld [vmem:[%s1 + $0x68] sm:$0x3]
  %v53 = vadd.f32 %v25, %v27
  %v54 = vadd.f32 %v53, %v29
  %v55 = vadd.f32 %v54, %v31
  %v56 = vadd.f32 %v55, %v33
  %v57 = vadd.f32 %v56, %v35
  %vm58 = vcmask 1041408
  %v59 = vsel %vm58, %v37, 0.0
  %v60 = vadd.f32 %v57, %v59
  %v61 = vrot.slane %v60, 4
  %v62 = vadd.f32 %v60, %v61
  %v63 = vrot.slane %v62, 2
  %v64 = vadd.f32 %v62, %v63
  %v65 = vrot.slane %v64, 1
  %v66 = vadd.f32 %v64, %v65
  %v67 = vadd.f32 %v26, %v28
  %v68 = vadd.f32 %v67, %v30
  %v69 = vadd.f32 %v68, %v32
  %v70 = vadd.f32 %v69, %v34
  %v71 = vadd.f32 %v70, %v36
  %v72 = vsel %vm58, %v38, 0.0
  %v73 = vadd.f32 %v71, %v72
  %v74 = vrot.slane %v73, 4
  %v75 = vadd.f32 %v73, %v74
  %v76 = vrot.slane %v75, 2
  %v77 = vadd.f32 %v75, %v76
  %v78 = vrot.slane %v77, 1
  %v79 = vadd.f32 %v77, %v78
  %v80 = vmul.f32 %v66, 0.03125
  %v81 = vmul.f32 %v79, 0.03125
  %v82 = vmul.f32 %v39, %v80
  %v83 = vmul.f32 %v40, %v81
  %v84 = vmul.f32 %v41, %v80
  %v85 = vmul.f32 %v42, %v81
  %v86 = vmul.f32 %v43, %v80
  %v87 = vmul.f32 %v44, %v81
  %v88 = vmul.f32 %v45, %v80
  %v89 = vmul.f32 %v46, %v81
  %v90 = vmul.f32 %v47, %v80
  %v91 = vmul.f32 %v48, %v81
  %v92 = vmul.f32 %v49, %v80
  %v93 = vmul.f32 %v50, %v81
  %v94 = vmul.f32 %v51, %v80
  %v95 = vmul.f32 %v52, %v81
  %v96 = vsub.f32 %v25, %v82
  %v97 = vsub.f32 %v26, %v83
  %v98 = vsub.f32 %v27, %v84
  %v99 = vsub.f32 %v28, %v85
  %v100 = vsub.f32 %v29, %v86
  %v101 = vsub.f32 %v30, %v87
  %v102 = vsub.f32 %v31, %v88
  %v103 = vsub.f32 %v32, %v89
  %v104 = vsub.f32 %v33, %v90
  %v105 = vsub.f32 %v34, %v91
  %v106 = vsub.f32 %v35, %v92
  %v107 = vsub.f32 %v36, %v93
  %v108 = vsub.f32 %v37, %v94
  %v109 = vsub.f32 %v38, %v95
  %v110 = vmul.f32 %v96, %v96
  %v111 = vmul.f32 %v97, %v97
  %v112 = vmul.f32 %v98, %v98
  %v113 = vmul.f32 %v99, %v99
  %v114 = vmul.f32 %v100, %v100
  %v115 = vmul.f32 %v101, %v101
  %v116 = vmul.f32 %v102, %v102
  %v117 = vmul.f32 %v103, %v103
  %v118 = vmul.f32 %v104, %v104
  %v119 = vmul.f32 %v105, %v105
  %v120 = vmul.f32 %v106, %v106
  %v121 = vmul.f32 %v107, %v107
  %v122 = vmul.f32 %v108, %v108
  %v123 = vmul.f32 %v109, %v109
  %v124 = vadd.f32 %v110, %v112
  %v125 = vadd.f32 %v124, %v114
  %v126 = vadd.f32 %v125, %v116
  %v127 = vadd.f32 %v126, %v118
  %v128 = vadd.f32 %v127, %v120
  %v129 = vsel %vm58, %v122, 0.0
  %v130 = vadd.f32 %v128, %v129
  %v131 = vrot.slane %v130, 4
  %v132 = vadd.f32 %v130, %v131
  %v133 = vrot.slane %v132, 2
  %v134 = vadd.f32 %v132, %v133
  %v135 = vrot.slane %v134, 1
  %v136 = vadd.f32 %v134, %v135
  %v137 = vadd.f32 %v111, %v113
  %v138 = vadd.f32 %v137, %v115
  %v139 = vadd.f32 %v138, %v117
  %v140 = vadd.f32 %v139, %v119
  %v141 = vadd.f32 %v140, %v121
  %v142 = vsel %vm58, %v123, 0.0
  %v143 = vadd.f32 %v141, %v142
  %v144 = vrot.slane %v143, 4
  %v145 = vadd.f32 %v143, %v144
  %v146 = vrot.slane %v145, 2
  %v147 = vadd.f32 %v145, %v146
  %v148 = vrot.slane %v147, 1
  %v149 = vadd.f32 %v147, %v148
  %v150 = vmul.f32 %v136, 0.03125
  %v151 = vmul.f32 %v149, 0.03125
  %v152 = vadd.f32 %v150, 1e-05
  %v153 = vadd.f32 %v151, 1e-05
  %v154 = vrsqrt.pop %v152
  %v155 = vrsqrt.pop %v153
  %v156 = vmul.f32 %v96, %v154
  %v157 = vmul.f32 %v97, %v155
  %v158 = vmul.f32 %v98, %v154
  %v159 = vmul.f32 %v99, %v155
  %v160 = vmul.f32 %v100, %v154
  %v161 = vmul.f32 %v101, %v155
  %v162 = vmul.f32 %v102, %v154
  %v163 = vmul.f32 %v103, %v155
  %v164 = vmul.f32 %v104, %v154
  %v165 = vmul.f32 %v105, %v155
  %v166 = vmul.f32 %v106, %v154
  %v167 = vmul.f32 %v107, %v155
  %v168 = vmul.f32 %v108, %v154
  %v169 = vmul.f32 %v109, %v155
  %v170 = vpack.c.bf16 %v158, %v156
  %v171 = vpack.c.bf16 %v159, %v157
  %v172 = vpack.c.bf16 %v162, %v160
  %v173 = vpack.c.bf16 %v163, %v161
  %v174 = vpack.c.bf16 %v166, %v164
  %v175 = vpack.c.bf16 %v167, %v165
  %v176 = vpack.c.bf16 %v168, %v168
  %v177 = vpack.c.bf16 %v169, %v169
  %v178 = vld [vmem:[%s2] sm:$0xf]
  %v179 = vld [vmem:[%s2 + $0x4] sm:$0xf]
  %v180 = vld [vmem:[%s2 + $0x8] sm:$0xf]
  %v181 = vld [vmem:[%s2 + $0xc] sm:$0xf]
  %v182 = vld [vmem:[%s2 + $0x10] sm:$0xf]
  %v183 = vld [vmem:[%s2 + $0x14] sm:$0xf]
  %v184 = vld [vmem:[%s2 + $0x18] sm:$0xf]
  %v185 = vld [vmem:[%s2 + $0x1c] sm:$0xf]
  %v186 = vld [vmem:[%s2 + $0x20] sm:$0xf]
  %v187 = vld [vmem:[%s2 + $0x24] sm:$0xf]
  %v188 = vld [vmem:[%s2 + $0x28] sm:$0xf]
  %v189 = vld [vmem:[%s2 + $0x2c] sm:$0xf]
  %v190 = vld [vmem:[%s2 + $0x30] sm:$0xf]
  %v191 = vld [vmem:[%s2 + $0x34] sm:$0xf]
  %v192 = vld [vmem:[%s2 + $0x38] sm:$0xf]
  %v193 = vld [vmem:[%s2 + $0x3c] sm:$0xf]
  %v194 = vld [vmem:[%s2 + $0x40] sm:$0xf]
  %v195 = vld [vmem:[%s2 + $0x44] sm:$0xf]
  %v196 = vld [vmem:[%s2 + $0x48] sm:$0xf]
  %v197 = vld [vmem:[%s2 + $0x4c] sm:$0xf]
  %v198 = vld [vmem:[%s2 + $0x50] sm:$0xf]
  %v199 = vld [vmem:[%s2 + $0x54] sm:$0xf]
  %v200 = vld [vmem:[%s2 + $0x58] sm:$0xf]
  %v201 = vld [vmem:[%s2 + $0x5c] sm:$0xf]
  %v202 = vld [vmem:[%s2 + $0x60] sm:$0xf]
  %v203 = vld [vmem:[%s2 + $0x64] sm:$0xf]
  %v204 = vld [vmem:[%s2 + $0x68] sm:$0xf]
  %v205 = vld [vmem:[%s2 + $0x6c] sm:$0xf]
  %v206 = vld [vmem:[%s2 + $0x70] sm:$0xf]
  %v207 = vld [vmem:[%s2 + $0x74] sm:$0xf]
  %v208 = vld [vmem:[%s2 + $0x78] sm:$0xf]
  %v209 = vld [vmem:[%s2 + $0x7c] sm:$0xf]
  %v210 = vld [vmem:[%s3] sm:$0x1]
  %v212 = vlaneseq
  %v213 = vshrl.u32 %v212, 7
  %v214 = vsub.s32 0, %v213
  %v215 = vrot.slane %v210, %v214
  %v249 = vunpack.c.l.b16 %v178
  %v250 = vunpack.c.l.b16 %v179
  %v251 = vunpack.c.l.b16 %v180
  %v252 = vunpack.c.l.b16 %v181
  %v253 = vunpack.c.l.b16 %v182
  %v254 = vunpack.c.l.b16 %v183
  %v255 = vunpack.c.l.b16 %v184
  %v256 = vunpack.c.l.b16 %v185
  %v257 = vunpack.c.l.b16 %v186
  %v258 = vunpack.c.l.b16 %v187
  %v259 = vunpack.c.l.b16 %v188
  %v260 = vunpack.c.l.b16 %v189
  %v261 = vunpack.c.l.b16 %v190
  %v262 = vunpack.c.l.b16 %v191
  %v263 = vunpack.c.l.b16 %v192
  %v264 = vunpack.c.l.b16 %v193
  %v265 = vunpack.c.l.b16 %v194
  %v266 = vunpack.c.l.b16 %v195
  %v267 = vunpack.c.l.b16 %v196
  %v268 = vunpack.c.l.b16 %v197
  %v269 = vunpack.c.l.b16 %v198
  %v270 = vunpack.c.l.b16 %v199
  %v271 = vunpack.c.l.b16 %v200
  %v272 = vunpack.c.l.b16 %v201
  %v273 = vunpack.c.l.b16 %v202
  %v274 = vunpack.c.l.b16 %v203
  %v275 = vunpack.c.l.b16 %v204
  %v276 = vunpack.c.l.b16 %v205
  %v277 = vunpack.c.l.b16 %v206
  %v278 = vunpack.c.l.b16 %v207
  %v279 = vunpack.c.l.b16 %v208
  %v280 = vunpack.c.l.b16 %v209
  %v281 = vpack.c.b16 %v250, %v249
  %v282 = vpack.c.b16 %v252, %v251
  %v283 = vpack.c.b16 %v254, %v253
  %v284 = vpack.c.b16 %v256, %v255
  %v285 = vpack.c.b16 %v258, %v257
  %v286 = vpack.c.b16 %v260, %v259
  %v287 = vpack.c.b16 %v262, %v261
  %v288 = vpack.c.b16 %v264, %v263
  %v289 = vpack.c.b16 %v266, %v265
  %v290 = vpack.c.b16 %v268, %v267
  %v291 = vpack.c.b16 %v270, %v269
  %v292 = vpack.c.b16 %v272, %v271
  %v293 = vpack.c.b16 %v274, %v273
  %v294 = vpack.c.b16 %v276, %v275
  %v295 = vpack.c.b16 %v278, %v277
  %v296 = vpack.c.b16 %v280, %v279
  %313 = vmatprep.subr.bf16.mxu0 0
  %314 = vmatpush1.bf16.msra.mxu0 %v288
  %315 = vmatprep.subr.bf16.mxu0 0
  %316 = vmatpush1.bf16.msra.mxu0 %v287
  %317 = vmatprep.subr.bf16.mxu0 0
  %318 = vmatpush1.bf16.msra.mxu0 %v286
  %319 = vmatprep.subr.bf16.mxu0 0
  %320 = vmatpush1.bf16.msra.mxu0 %v285
  %321 = vmatprep.subr.bf16.mxu0 0
  %322 = vmatpush1.bf16.msra.mxu0 %v284
  %323 = vmatprep.subr.bf16.mxu0 0
  %324 = vmatpush1.bf16.msra.mxu0 %v283
  %325 = vmatprep.subr.bf16.mxu0 0
  %326 = vmatpush1.bf16.msra.mxu0 %v282
  %327 = vmatprep.subr.bf16.mxu0 0
  %328 = vmatpush1.bf16.msra.mxu0 %v281
  %329 = vmatprep.subr.bf16.mxu0 0
  %330 = vmatpush2.bf16.msra.mxu0 %v296
  %331 = vmatprep.subr.bf16.mxu0 0
  %332 = vmatpush2.bf16.msra.mxu0 %v295
  %333 = vmatprep.subr.bf16.mxu0 0
  %334 = vmatpush2.bf16.msra.mxu0 %v294
  %335 = vmatprep.subr.bf16.mxu0 0
  %336 = vmatpush2.bf16.msra.mxu0 %v293
  %337 = vmatprep.subr.bf16.mxu0 0
  %338 = vmatpush2.bf16.msra.mxu0 %v292
  %339 = vmatprep.subr.bf16.mxu0 0
  %340 = vmatpush2.bf16.msra.mxu0 %v291
  %341 = vmatprep.subr.bf16.mxu0 0
  %342 = vmatpush2.bf16.msra.mxu0 %v290
  %343 = vmatprep.subr.bf16.mxu0 0
  %344 = vmatpush2.bf16.msra.mxu0 %v289
  %345 = vmatprep.mubr.bf16.mxu0 %v171
  %346 = vmatmul.mubr.bf16.gmra.mxu0 %v170
  %v347 = vpop.f32.mrf.mxu0
  %v348 = vadd.f32 %v215, %v347
  %v349 = vpop.f32.mrf.mxu0
  %v350 = vpop.f32.mrf.mxu0
  %v351 = vadd.f32 %v215, %v350
  %v352 = vpop.f32.mrf.mxu0
  %353 = vmatprep.mubr.bf16.mxu0 %v173
  %354 = vmatmul.mubr.bf16.gmra.mxu0 %v172
  %v355 = vpop.f32.mrf.mxu0
  %v356 = vadd.f32 %v215, %v355
  %v357 = vpop.f32.mrf.mxu0
  %v358 = vpop.f32.mrf.mxu0
  %v359 = vadd.f32 %v215, %v358
  %v360 = vpop.f32.mrf.mxu0
  %361 = vmatprep.mubr.bf16.mxu0 %v175
  %362 = vmatmul.mubr.bf16.gmra.mxu0 %v174
  %v363 = vpop.f32.mrf.mxu0
  %v364 = vadd.f32 %v215, %v363
  %v365 = vpop.f32.mrf.mxu0
  %v366 = vpop.f32.mrf.mxu0
  %v367 = vadd.f32 %v215, %v366
  %v368 = vpop.f32.mrf.mxu0
  %369 = vmatprep.mubr.bf16.mxu0 %v177
  %370 = vmatmul.mubr.bf16.gmra.mxu0 %v176
  %v371 = vpop.f32.mrf.mxu0
  %v372 = vadd.f32 %v215, %v371
  %v373 = vpop.f32.mrf.mxu0
  %v374 = vpop.f32.mrf.mxu0
  %v375 = vpop.f32.mrf.mxu0
  %376 = vdwg.mxu0
  %v377 = vmax.f32 %v348, 0.0
  %v378 = vmax.f32 %v351, 0.0
  %v379 = vmax.f32 %v356, 0.0
  %v380 = vmax.f32 %v359, 0.0
  %v381 = vmax.f32 %v364, 0.0
  %v382 = vmax.f32 %v367, 0.0
  %v383 = vmax.f32 %v372, 0.0
  %v384 = vpack.c.bf16 %v378, %v377
  %v385 = vpack.c.bf16 %v380, %v379
  %v386 = vpack.c.bf16 %v382, %v381
  %v387 = vpack.c.bf16 %v383, %v383
  %v392 = vunpack.c.l.b16 %v384
  %v393 = vunpack.c.h.b16 %v384
  %v394 = vunpack.c.l.b16 %v385
  %v395 = vunpack.c.h.b16 %v385
  %v396 = vunpack.c.l.b16 %v386
  %v397 = vunpack.c.h.b16 %v386
  %v398 = vunpack.c.l.b16 %v387
  %v399 = vpack.c.b16 %v392, %v392
  %v400 = vpack.c.b16 %v393, %v393
  %v401 = vpack.c.b16 %v394, %v394
  %v402 = vpack.c.b16 %v395, %v395
  %v403 = vpack.c.b16 %v396, %v396
  %v404 = vpack.c.b16 %v397, %v397
  %v405 = vpack.c.b16 %v398, %v398
  %413 = vst [vmem:[%s4] sm:$0xf] %v399
  %414 = vst [vmem:[%s4 + $0x4] sm:$0xf] %v400
  %415 = vst [vmem:[%s4 + $0x8] sm:$0xf] %v401
  %416 = vst [vmem:[%s4 + $0xc] sm:$0xf] %v402
  %417 = vst [vmem:[%s4 + $0x10] sm:$0xf] %v403
  %418 = vst [vmem:[%s4 + $0x14] sm:$0xf] %v404
  %419 = vst [vmem:[%s4 + $0x18] sm:$0x1] %v405
  // Predicated region
  $region18: #{cnn_forward.13} parent=0 // pred_check
    _
  $region19: #{cnn_forward.13} parent=0 // pred_check_branch
    %421 = sbr.rel (0) target = $region21
  $region20: #{cnn_forward.13} parent=0 // pred_region
    _
  $region21: #{cnn_forward.13} parent=0 // pred_fallthru
    _
  // Predicated region
  $region22: #{cnn_forward.13} parent=0 // pred_check
    _
  $region23: #{cnn_forward.13} parent=0 // pred_check_branch
    %423 = sbr.rel (0) target = $region25
  $region24: #{cnn_forward.13} parent=0 // pred_region
    _
  $region25: #{cnn_forward.13} parent=0 // pred_fallthru
    _

// kernel: cnn_forward.14
$region0: #{cnn_forward.14}
  #allocation0 [shape = 'u32[]', space=smem, size = 0x4, offset = 0x4, fixed_abs, tag = 'smem constant byte address 0x4 - core index']
  #allocation1 [shape = 'u32[144,128]{1,0:T(1,128)}', space=vmem, size = 0x12000, scoped, tag = 'internal scratch']
  %s0 = inlined_call_operand.vmem [shape: bf16[162,128], index: 0, kind: input, shape index: {}]
  %s1 = inlined_call_operand.vmem [shape: f32[162,128], index: 1, kind: input, shape index: {}]
  %s2 = inlined_call_operand.vmem [shape: bf16[128,32], index: 2, kind: input, shape index: {}]
  %s3 = inlined_call_operand.vmem [shape: f32[1,32], index: 3, kind: input, shape index: {}]
  %s4 = inlined_call_operand.vmem [shape: bf16[162,32], index: 4, kind: output, shape index: {}]
  %s5 = sld [smem:[#allocation0]]
  $region26: #{cnn_forward.14} parent=0
    _
  %s7 = ssub.s32 1, %s5
  %s8 = scalar_select 0, %s7, %s5
  // Predicated region
  $region2: #{cnn_forward.14} parent=0 // pred_check
    _
  $region3: #{cnn_forward.14} parent=0 // pred_check_branch
    %10 = sbr.rel (0) target = $region5
  $region4: #{cnn_forward.14} parent=0 // pred_region
    _
  $region5: #{cnn_forward.14} parent=0 // pred_fallthru
    _
  // Predicated region
  $region6: #{cnn_forward.14} parent=0 // pred_check
    _
  $region7: #{cnn_forward.14} parent=0 // pred_check_branch
    %12 = sbr.rel (0) target = $region9
  $region8: #{cnn_forward.14} parent=0 // pred_region
    _
  $region9: #{cnn_forward.14} parent=0 // pred_fallthru
    _
  // Predicated region
  $region10: #{cnn_forward.14} parent=0 // pred_check
    _
  $region11: #{cnn_forward.14} parent=0 // pred_check_branch
    %14 = sbr.rel (0) target = $region13
  $region12: #{cnn_forward.14} parent=0 // pred_region
    _
  $region13: #{cnn_forward.14} parent=0 // pred_fallthru
    _
  // Predicated region
  $region14: #{cnn_forward.14} parent=0 // pred_check
    _
  $region15: #{cnn_forward.14} parent=0 // pred_check_branch
    %16 = sbr.rel (0) target = $region17
  $region16: #{cnn_forward.14} parent=0 // pred_region
    _
  $region17: #{cnn_forward.14} parent=0 // pred_fallthru
    _
  %v18 = vld [vmem:[%s0] sm:$0xf]
  %v19 = vld [vmem:[%s0 + $0x4] sm:$0xf]
  %v20 = vld [vmem:[%s0 + $0x8] sm:$0xf]
  %v21 = vld [vmem:[%s0 + $0xc] sm:$0xf]
  %v22 = vld [vmem:[%s0 + $0x10] sm:$0xf]
  %v23 = vld [vmem:[%s0 + $0x14] sm:$0xf]
  %v24 = vld [vmem:[%s0 + $0x18] sm:$0xf]
  %v25 = vld [vmem:[%s0 + $0x1c] sm:$0xf]
  %v26 = vld [vmem:[%s0 + $0x20] sm:$0xf]
  %v27 = vld [vmem:[%s0 + $0x24] sm:$0xf]
  %v28 = vld [vmem:[%s0 + $0x28] sm:$0xf]
  %v29 = vld [vmem:[%s0 + $0x2c] sm:$0xf]
  %v30 = vld [vmem:[%s0 + $0x30] sm:$0xf]
  %v31 = vld [vmem:[%s0 + $0x34] sm:$0xf]
  %v32 = vld [vmem:[%s0 + $0x38] sm:$0xf]
  %v33 = vld [vmem:[%s0 + $0x3c] sm:$0xf]
  %v34 = vld [vmem:[%s0 + $0x40] sm:$0xf]
  %v35 = vld [vmem:[%s0 + $0x44] sm:$0xf]
  %v36 = vld [vmem:[%s0 + $0x48] sm:$0xf]
  %v37 = vld [vmem:[%s0 + $0x4c] sm:$0xf]
  %v38 = vld [vmem:[%s0 + $0x50] sm:$0x1]
  %v39 = vunpack.c.l.bf16 %v18
  %v40 = vunpack.c.l.bf16 %v19
  %v41 = vunpack.c.l.bf16 %v20
  %v42 = vunpack.c.l.bf16 %v21
  %v43 = vunpack.c.l.bf16 %v22
  %v44 = vunpack.c.l.bf16 %v23
  %v45 = vunpack.c.l.bf16 %v24
  %v46 = vunpack.c.l.bf16 %v25
  %v47 = vunpack.c.l.bf16 %v26
  %v48 = vunpack.c.l.bf16 %v27
  %v49 = vunpack.c.l.bf16 %v28
  %v50 = vunpack.c.l.bf16 %v29
  %v51 = vunpack.c.l.bf16 %v30
  %v52 = vunpack.c.l.bf16 %v31
  %v53 = vunpack.c.l.bf16 %v32
  %v54 = vunpack.c.l.bf16 %v33
  %v55 = vunpack.c.l.bf16 %v34
  %v56 = vunpack.c.l.bf16 %v35
  %v57 = vunpack.c.l.bf16 %v36
  %v58 = vunpack.c.l.bf16 %v37
  %v59 = vunpack.c.l.bf16 %v38
  %v60 = vld [vmem:[%s1] sm:$0xff]
  %v61 = vld [vmem:[%s1 + $0x8] sm:$0xff]
  %v62 = vld [vmem:[%s1 + $0x10] sm:$0xff]
  %v63 = vld [vmem:[%s1 + $0x18] sm:$0xff]
  %v64 = vld [vmem:[%s1 + $0x20] sm:$0xff]
  %v65 = vld [vmem:[%s1 + $0x28] sm:$0xff]
  %v66 = vld [vmem:[%s1 + $0x30] sm:$0xff]
  %v67 = vld [vmem:[%s1 + $0x38] sm:$0xff]
  %v68 = vld [vmem:[%s1 + $0x40] sm:$0xff]
  %v69 = vld [vmem:[%s1 + $0x48] sm:$0xff]
  %v70 = vld [vmem:[%s1 + $0x50] sm:$0xff]
  %v71 = vld [vmem:[%s1 + $0x58] sm:$0xff]
  %v72 = vld [vmem:[%s1 + $0x60] sm:$0xff]
  %v73 = vld [vmem:[%s1 + $0x68] sm:$0xff]
  %v74 = vld [vmem:[%s1 + $0x70] sm:$0xff]
  %v75 = vld [vmem:[%s1 + $0x78] sm:$0xff]
  %v76 = vld [vmem:[%s1 + $0x80] sm:$0xff]
  %v77 = vld [vmem:[%s1 + $0x88] sm:$0xff]
  %v78 = vld [vmem:[%s1 + $0x90] sm:$0xff]
  %v79 = vld [vmem:[%s1 + $0x98] sm:$0xff]
  %v80 = vld [vmem:[%s1 + $0xa0] sm:$0x3]
  %v81 = vadd.f32 %v39, %v40
  %v82 = vadd.f32 %v81, %v41
  %v83 = vadd.f32 %v82, %v42
  %v84 = vadd.f32 %v83, %v43
  %v85 = vadd.f32 %v84, %v44
  %v86 = vadd.f32 %v85, %v45
  %v87 = vadd.f32 %v86, %v46
  %v88 = vadd.f32 %v87, %v47
  %v89 = vadd.f32 %v88, %v48
  %v90 = vadd.f32 %v89, %v49
  %v91 = vadd.f32 %v90, %v50
  %v92 = vadd.f32 %v91, %v51
  %v93 = vadd.f32 %v92, %v52
  %v94 = vadd.f32 %v93, %v53
  %v95 = vadd.f32 %v94, %v54
  %v96 = vadd.f32 %v95, %v55
  %v97 = vadd.f32 %v96, %v56
  %v98 = vadd.f32 %v97, %v57
  %v99 = vadd.f32 %v98, %v58
  %vm100 = vcmask 1041408
  %v101 = vsel %vm100, %v59, 0.0
  %v102 = vadd.f32 %v99, %v101
  %v103 = vrot.slane %v102, 4
  %v104 = vadd.f32 %v102, %v103
  %v105 = vrot.slane %v104, 2
  %v106 = vadd.f32 %v104, %v105
  %v107 = vrot.slane %v106, 1
  %v108 = vadd.f32 %v106, %v107
  %v109 = vmul.f32 %v108, 0.0078125
  %v110 = vmul.f32 %v60, %v109
  %v111 = vmul.f32 %v61, %v109
  %v112 = vmul.f32 %v62, %v109
  %v113 = vmul.f32 %v63, %v109
  %v114 = vmul.f32 %v64, %v109
  %v115 = vmul.f32 %v65, %v109
  %v116 = vmul.f32 %v66, %v109
  %v117 = vmul.f32 %v67, %v109
  %v118 = vmul.f32 %v68, %v109
  %v119 = vmul.f32 %v69, %v109
  %v120 = vmul.f32 %v70, %v109
  %v121 = vmul.f32 %v71, %v109
  %v122 = vmul.f32 %v72, %v109
  %v123 = vmul.f32 %v73, %v109
  %v124 = vmul.f32 %v74, %v109
  %v125 = vmul.f32 %v75, %v109
  %v126 = vmul.f32 %v76, %v109
  %v127 = vmul.f32 %v77, %v109
  %v128 = vmul.f32 %v78, %v109
  %v129 = vmul.f32 %v79, %v109
  %v130 = vmul.f32 %v80, %v109
  %v131 = vsub.f32 %v39, %v110
  %v132 = vsub.f32 %v40, %v111
  %v133 = vsub.f32 %v41, %v112
  %v134 = vsub.f32 %v42, %v113
  %v135 = vsub.f32 %v43, %v114
  %v136 = vsub.f32 %v44, %v115
  %v137 = vsub.f32 %v45, %v116
  %v138 = vsub.f32 %v46, %v117
  %v139 = vsub.f32 %v47, %v118
  %v140 = vsub.f32 %v48, %v119
  %v141 = vsub.f32 %v49, %v120
  %v142 = vsub.f32 %v50, %v121
  %v143 = vsub.f32 %v51, %v122
  %v144 = vsub.f32 %v52, %v123
  %v145 = vsub.f32 %v53, %v124
  %v146 = vsub.f32 %v54, %v125
  %v147 = vsub.f32 %v55, %v126
  %v148 = vsub.f32 %v56, %v127
  %v149 = vsub.f32 %v57, %v128
  %v150 = vsub.f32 %v58, %v129
  %v151 = vsub.f32 %v59, %v130
  %v152 = vmul.f32 %v131, %v131
  %v153 = vmul.f32 %v132, %v132
  %v154 = vmul.f32 %v133, %v133
  %v155 = vmul.f32 %v134, %v134
  %v156 = vmul.f32 %v135, %v135
  %v157 = vmul.f32 %v136, %v136
  %v158 = vmul.f32 %v137, %v137
  %v159 = vmul.f32 %v138, %v138
  %v160 = vmul.f32 %v139, %v139
  %v161 = vmul.f32 %v140, %v140
  %v162 = vmul.f32 %v141, %v141
  %v163 = vmul.f32 %v142, %v142
  %v164 = vmul.f32 %v143, %v143
  %v165 = vmul.f32 %v144, %v144
  %v166 = vmul.f32 %v145, %v145
  %v167 = vmul.f32 %v146, %v146
  %v168 = vmul.f32 %v147, %v147
  %v169 = vmul.f32 %v148, %v148
  %v170 = vmul.f32 %v149, %v149
  %v171 = vmul.f32 %v150, %v150
  %v172 = vmul.f32 %v151, %v151
  %v173 = vadd.f32 %v152, %v153
  %v174 = vadd.f32 %v173, %v154
  %v175 = vadd.f32 %v174, %v155
  %v176 = vadd.f32 %v175, %v156
  %v177 = vadd.f32 %v176, %v157
  %v178 = vadd.f32 %v177, %v158
  %v179 = vadd.f32 %v178, %v159
  %v180 = vadd.f32 %v179, %v160
  %v181 = vadd.f32 %v180, %v161
  %v182 = vadd.f32 %v181, %v162
  %v183 = vadd.f32 %v182, %v163
  %v184 = vadd.f32 %v183, %v164
  %v185 = vadd.f32 %v184, %v165
  %v186 = vadd.f32 %v185, %v166
  %v187 = vadd.f32 %v186, %v167
  %v188 = vadd.f32 %v187, %v168
  %v189 = vadd.f32 %v188, %v169
  %v190 = vadd.f32 %v189, %v170
  %v191 = vadd.f32 %v190, %v171
  %v192 = vsel %vm100, %v172, 0.0
  %v193 = vadd.f32 %v191, %v192
  %v194 = vrot.slane %v193, 4
  %v195 = vadd.f32 %v193, %v194
  %v196 = vrot.slane %v195, 2
  %v197 = vadd.f32 %v195, %v196
  %v198 = vrot.slane %v197, 1
  %v199 = vadd.f32 %v197, %v198
  %v200 = vmul.f32 %v199, 0.0078125
  %v201 = vadd.f32 %v200, 1e-05
  %v202 = vrsqrt.pop %v201
  %v203 = vmul.f32 %v131, %v202
  %v204 = vmul.f32 %v132, %v202
  %v205 = vmul.f32 %v133, %v202
  %v206 = vmul.f32 %v134, %v202
  %v207 = vmul.f32 %v135, %v202
  %v208 = vmul.f32 %v136, %v202
  %v209 = vmul.f32 %v137, %v202
  %v210 = vmul.f32 %v138, %v202
  %v211 = vmul.f32 %v139, %v202
  %v212 = vmul.f32 %v140, %v202
  %v213 = vmul.f32 %v141, %v202
  %v214 = vmul.f32 %v142, %v202
  %v215 = vmul.f32 %v143, %v202
  %v216 = vmul.f32 %v144, %v202
  %v217 = vmul.f32 %v145, %v202
  %v218 = vmul.f32 %v146, %v202
  %v219 = vmul.f32 %v147, %v202
  %v220 = vmul.f32 %v148, %v202
  %v221 = vmul.f32 %v149, %v202
  %v222 = vmul.f32 %v150, %v202
  %v223 = vmul.f32 %v151, %v202
  %v224 = vpack.c.bf16 %v204, %v203
  %v225 = vpack.c.bf16 %v206, %v205
  %v226 = vpack.c.bf16 %v208, %v207
  %v227 = vpack.c.bf16 %v210, %v209
  %v228 = vpack.c.bf16 %v212, %v211
  %v229 = vpack.c.bf16 %v214, %v213
  %v230 = vpack.c.bf16 %v216, %v215
  %v231 = vpack.c.bf16 %v218, %v217
  %v232 = vpack.c.bf16 %v220, %v219
  %v233 = vpack.c.bf16 %v222, %v221
  %v234 = vpack.c.bf16 %v223, %v223
  %v235 = vld [vmem:[%s2] sm:$0xf]
  %v236 = vld [vmem:[%s2 + $0x4] sm:$0xf]
  %v237 = vld [vmem:[%s2 + $0x8] sm:$0xf]
  %v238 = vld [vmem:[%s2 + $0xc] sm:$0xf]
  %v239 = vld [vmem:[%s2 + $0x10] sm:$0xf]
  %v240 = vld [vmem:[%s2 + $0x14] sm:$0xf]
  %v241 = vld [vmem:[%s2 + $0x18] sm:$0xf]
  %v242 = vld [vmem:[%s2 + $0x1c] sm:$0xf]
  %v243 = vld [vmem:[%s2 + $0x20] sm:$0xf]
  %v244 = vld [vmem:[%s2 + $0x24] sm:$0xf]
  %v245 = vld [vmem:[%s2 + $0x28] sm:$0xf]
  %v246 = vld [vmem:[%s2 + $0x2c] sm:$0xf]
  %v247 = vld [vmem:[%s2 + $0x30] sm:$0xf]
  %v248 = vld [vmem:[%s2 + $0x34] sm:$0xf]
  %v249 = vld [vmem:[%s2 + $0x38] sm:$0xf]
  %v250 = vld [vmem:[%s2 + $0x3c] sm:$0xf]
  %v251 = vld [vmem:[%s3] sm:$0x1]
  %v253 = vlaneseq
  %v254 = vshrl.u32 %v253, 7
  %v255 = vsub.s32 0, %v254
  %v256 = vrot.slane %v251, %v255
  %v274 = vunpack.c.l.b16 %v235
  %v275 = vunpack.c.l.b16 %v236
  %v276 = vunpack.c.l.b16 %v237
  %v277 = vunpack.c.l.b16 %v238
  %v278 = vunpack.c.l.b16 %v239
  %v279 = vunpack.c.l.b16 %v240
  %v280 = vunpack.c.l.b16 %v241
  %v281 = vunpack.c.l.b16 %v242
  %v282 = vunpack.c.l.b16 %v243
  %v283 = vunpack.c.l.b16 %v244
  %v284 = vunpack.c.l.b16 %v245
  %v285 = vunpack.c.l.b16 %v246
  %v286 = vunpack.c.l.b16 %v247
  %v287 = vunpack.c.l.b16 %v248
  %v288 = vunpack.c.l.b16 %v249
  %v289 = vunpack.c.l.b16 %v250
  %v290 = vpack.c.b16 %v275, %v274
  %v291 = vpack.c.b16 %v277, %v276
  %v292 = vpack.c.b16 %v279, %v278
  %v293 = vpack.c.b16 %v281, %v280
  %v294 = vpack.c.b16 %v283, %v282
  %v295 = vpack.c.b16 %v285, %v284
  %v296 = vpack.c.b16 %v287, %v286
  %v297 = vpack.c.b16 %v289, %v288
  %306 = vmatprep.subr.bf16.mxu0 0
  %307 = vmatpush1.bf16.msra.mxu0 %v297
  %308 = vmatprep.subr.bf16.mxu0 0
  %309 = vmatpush1.bf16.msra.mxu0 %v296
  %310 = vmatprep.subr.bf16.mxu0 0
  %311 = vmatpush1.bf16.msra.mxu0 %v295
  %312 = vmatprep.subr.bf16.mxu0 0
  %313 = vmatpush1.bf16.msra.mxu0 %v294
  %314 = vmatprep.subr.bf16.mxu0 0
  %315 = vmatpush1.bf16.msra.mxu0 %v293
  %316 = vmatprep.subr.bf16.mxu0 0
  %317 = vmatpush1.bf16.msra.mxu0 %v292
  %318 = vmatprep.subr.bf16.mxu0 0
  %319 = vmatpush1.bf16.msra.mxu0 %v291
  %320 = vmatprep.subr.bf16.mxu0 0
  %321 = vmatpush1.bf16.msra.mxu0 %v290
  %322 = vmatprep.subr.bf16.mxu0 0
  %323 = vmatpush2.bf16.msra.mxu0 0
  %324 = vmatprep.subr.bf16.mxu0 0
  %325 = vmatpush2.bf16.msra.mxu0 0
  %326 = vmatprep.subr.bf16.mxu0 0
  %327 = vmatpush2.bf16.msra.mxu0 0
  %328 = vmatprep.subr.bf16.mxu0 0
  %329 = vmatpush2.bf16.msra.mxu0 0
  %330 = vmatprep.subr.bf16.mxu0 0
  %331 = vmatpush2.bf16.msra.mxu0 0
  %332 = vmatprep.subr.bf16.mxu0 0
  %333 = vmatpush2.bf16.msra.mxu0 0
  %334 = vmatprep.subr.bf16.mxu0 0
  %335 = vmatpush2.bf16.msra.mxu0 0
  %336 = vmatprep.subr.bf16.mxu0 0
  %337 = vmatpush2.bf16.msra.mxu0 0
  %338 = vmatprep.mubr.bf16.mxu0 0
  %339 = vmatmul.mubr.bf16.gmra.mxu0 %v224
  %v340 = vpop.f32.mrf.mxu0
  %v341 = vadd.f32 %v256, %v340
  %v342 = vpop.f32.mrf.mxu0
  %v343 = vpop.f32.mrf.mxu0
  %v344 = vadd.f32 %v256, %v343
  %v345 = vpop.f32.mrf.mxu0
  %346 = vmatprep.mubr.bf16.mxu0 0
  %347 = vmatmul.mubr.bf16.gmra.mxu0 %v225
  %v348 = vpop.f32.mrf.mxu0
  %v349 = vadd.f32 %v256, %v348
  %v350 = vpop.f32.mrf.mxu0
  %v351 = vpop.f32.mrf.mxu0
  %v352 = vadd.f32 %v256, %v351
  %v353 = vpop.f32.mrf.mxu0
  %354 = vmatprep.mubr.bf16.mxu0 0
  %355 = vmatmul.mubr.bf16.gmra.mxu0 %v226
  %v356 = vpop.f32.mrf.mxu0
  %v357 = vadd.f32 %v256, %v356
  %v358 = vpop.f32.mrf.mxu0
  %v359 = vpop.f32.mrf.mxu0
  %v360 = vadd.f32 %v256, %v359
  %v361 = vpop.f32.mrf.mxu0
  %362 = vmatprep.mubr.bf16.mxu0 0
  %363 = vmatmul.mubr.bf16.gmra.mxu0 %v227
  %v364 = vpop.f32.mrf.mxu0
  %v365 = vadd.f32 %v256, %v364
  %v366 = vpop.f32.mrf.mxu0
  %v367 = vpop.f32.mrf.mxu0
  %v368 = vadd.f32 %v256, %v367
  %v369 = vpop.f32.mrf.mxu0
  %370 = vmatprep.mubr.bf16.mxu0 0
  %371 = vmatmul.mubr.bf16.gmra.mxu0 %v228
  %v372 = vpop.f32.mrf.mxu0
  %v373 = vadd.f32 %v256, %v372
  %v374 = vpop.f32.mrf.mxu0
  %v375 = vpop.f32.mrf.mxu0
  %v376 = vadd.f32 %v256, %v375
  %v377 = vpop.f32.mrf.mxu0
  %378 = vmatprep.mubr.bf16.mxu0 0
  %379 = vmatmul.mubr.bf16.gmra.mxu0 %v229
  %v380 = vpop.f32.mrf.mxu0
  %v381 = vadd.f32 %v256, %v380
  %v382 = vpop.f32.mrf.mxu0
  %v383 = vpop.f32.mrf.mxu0
  %v384 = vadd.f32 %v256, %v383
  %v385 = vpop.f32.mrf.mxu0
  %386 = vmatprep.mubr.bf16.mxu0 0
  %387 = vmatmul.mubr.bf16.gmra.mxu0 %v230
  %v388 = vpop.f32.mrf.mxu0
  %v389 = vadd.f32 %v256, %v388
  %v390 = vpop.f32.mrf.mxu0
  %v391 = vpop.f32.mrf.mxu0
  %v392 = vadd.f32 %v256, %v391
  %v393 = vpop.f32.mrf.mxu0
  %394 = vmatprep.mubr.bf16.mxu0 0
  %395 = vmatmul.mubr.bf16.gmra.mxu0 %v231
  %v396 = vpop.f32.mrf.mxu0
  %v397 = vadd.f32 %v256, %v396
  %v398 = vpop.f32.mrf.mxu0
  %v399 = vpop.f32.mrf.mxu0
  %v400 = vadd.f32 %v256, %v399
  %v401 = vpop.f32.mrf.mxu0
  %402 = vmatprep.mubr.bf16.mxu0 0
  %403 = vmatmul.mubr.bf16.gmra.mxu0 %v232
  %v404 = vpop.f32.mrf.mxu0
  %v405 = vadd.f32 %v256, %v404
  %v406 = vpop.f32.mrf.mxu0
  %v407 = vpop.f32.mrf.mxu0
  %v408 = vadd.f32 %v256, %v407
  %v409 = vpop.f32.mrf.mxu0
  %410 = vmatprep.mubr.bf16.mxu0 0
  %411 = vmatmul.mubr.bf16.gmra.mxu0 %v233
  %v412 = vpop.f32.mrf.mxu0
  %v413 = vadd.f32 %v256, %v412
  %v414 = vpop.f32.mrf.mxu0
  %v415 = vpop.f32.mrf.mxu0
  %v416 = vadd.f32 %v256, %v415
  %v417 = vpop.f32.mrf.mxu0
  %418 = vmatprep.mubr.bf16.mxu0 0
  %419 = vmatmul.mubr.bf16.gmra.mxu0 %v234
  %v420 = vpop.f32.mrf.mxu0
  %v421 = vadd.f32 %v256, %v420
  %v422 = vpop.f32.mrf.mxu0
  %v423 = vpop.f32.mrf.mxu0
  %v424 = vpop.f32.mrf.mxu0
  %425 = vdwg.mxu0
  %v426 = vmax.f32 %v341, 0.0
  %v427 = vmax.f32 %v344, 0.0
  %v428 = vmax.f32 %v349, 0.0
  %v429 = vmax.f32 %v352, 0.0
  %v430 = vmax.f32 %v357, 0.0
  %v431 = vmax.f32 %v360, 0.0
  %v432 = vmax.f32 %v365, 0.0
  %v433 = vmax.f32 %v368, 0.0
  %v434 = vmax.f32 %v373, 0.0
  %v435 = vmax.f32 %v376, 0.0
  %v436 = vmax.f32 %v381, 0.0
  %v437 = vmax.f32 %v384, 0.0
  %v438 = vmax.f32 %v389, 0.0
  %v439 = vmax.f32 %v392, 0.0
  %v440 = vmax.f32 %v397, 0.0
  %v441 = vmax.f32 %v400, 0.0
  %v442 = vmax.f32 %v405, 0.0
  %v443 = vmax.f32 %v408, 0.0
  %v444 = vmax.f32 %v413, 0.0
  %v445 = vmax.f32 %v416, 0.0
  %v446 = vmax.f32 %v421, 0.0
  %v447 = vpack.c.bf16 %v427, %v426
  %v448 = vpack.c.bf16 %v429, %v428
  %v449 = vpack.c.bf16 %v431, %v430
  %v450 = vpack.c.bf16 %v433, %v432
  %v451 = vpack.c.bf16 %v435, %v434
  %v452 = vpack.c.bf16 %v437, %v436
  %v453 = vpack.c.bf16 %v439, %v438
  %v454 = vpack.c.bf16 %v441, %v440
  %v455 = vpack.c.bf16 %v443, %v442
  %v456 = vpack.c.bf16 %v445, %v444
  %v457 = vpack.c.bf16 %v446, %v446
  %v469 = vunpack.c.l.b16 %v447
  %v470 = vunpack.c.h.b16 %v447
  %v471 = vunpack.c.l.b16 %v448
  %v472 = vunpack.c.h.b16 %v448
  %v473 = vunpack.c.l.b16 %v449
  %v474 = vunpack.c.h.b16 %v449
  %v475 = vunpack.c.l.b16 %v450
  %v476 = vunpack.c.h.b16 %v450
  %v477 = vunpack.c.l.b16 %v451
  %v478 = vunpack.c.h.b16 %v451
  %v479 = vunpack.c.l.b16 %v452
  %v480 = vunpack.c.h.b16 %v452
  %v481 = vunpack.c.l.b16 %v453
  %v482 = vunpack.c.h.b16 %v453
  %v483 = vunpack.c.l.b16 %v454
  %v484 = vunpack.c.h.b16 %v454
  %v485 = vunpack.c.l.b16 %v455
  %v486 = vunpack.c.h.b16 %v455
  %v487 = vunpack.c.l.b16 %v456
  %v488 = vunpack.c.h.b16 %v456
  %v489 = vunpack.c.l.b16 %v457
  %v490 = vpack.c.b16 %v469, %v469
  %v491 = vpack.c.b16 %v470, %v470
  %v492 = vpack.c.b16 %v471, %v471
  %v493 = vpack.c.b16 %v472, %v472
  %v494 = vpack.c.b16 %v473, %v473
  %v495 = vpack.c.b16 %v474, %v474
  %v496 = vpack.c.b16 %v475, %v475
  %v497 = vpack.c.b16 %v476, %v476
  %v498 = vpack.c.b16 %v477, %v477
  %v499 = vpack.c.b16 %v478, %v478
  %v500 = vpack.c.b16 %v479, %v479
  %v501 = vpack.c.b16 %v480, %v480
  %v502 = vpack.c.b16 %v481, %v481
  %v503 = vpack.c.b16 %v482, %v482
  %v504 = vpack.c.b16 %v483, %v483
  %v505 = vpack.c.b16 %v484, %v484
  %v506 = vpack.c.b16 %v485, %v485
  %v507 = vpack.c.b16 %v486, %v486
  %v508 = vpack.c.b16 %v487, %v487
  %v509 = vpack.c.b16 %v488, %v488
  %v510 = vpack.c.b16 %v489, %v489
  %vm532 = vcmask 257024
  %533 = vst.msk [vmem:[%s4] sm:$0xf] %vm532, %v490
  %534 = vst.msk [vmem:[%s4 + $0x4] sm:$0xf] %vm532, %v491
  %535 = vst.msk [vmem:[%s4 + $0x8] sm:$0xf] %vm532, %v492
  %536 = vst.msk [vmem:[%s4 + $0xc] sm:$0xf] %vm532, %v493
  %537 = vst.msk [vmem:[%s4 + $0x10] sm:$0xf] %vm532, %v494
  %538 = vst.msk [vmem:[%s4 + $0x14] sm:$0xf] %vm532, %v495
  %539 = vst.msk [vmem:[%s4 + $0x18] sm:$0xf] %vm532, %v496
  %540 = vst.msk [vmem:[%s4 + $0x1c] sm:$0xf] %vm532, %v497
  %541 = vst.msk [vmem:[%s4 + $0x20] sm:$0xf] %vm532, %v498
  %542 = vst.msk [vmem:[%s4 + $0x24] sm:$0xf] %vm532, %v499
  %543 = vst.msk [vmem:[%s4 + $0x28] sm:$0xf] %vm532, %v500
  %544 = vst.msk [vmem:[%s4 + $0x2c] sm:$0xf] %vm532, %v501
  %545 = vst.msk [vmem:[%s4 + $0x30] sm:$0xf] %vm532, %v502
  %546 = vst.msk [vmem:[%s4 + $0x34] sm:$0xf] %vm532, %v503
  %547 = vst.msk [vmem:[%s4 + $0x38] sm:$0xf] %vm532, %v504
  %548 = vst.msk [vmem:[%s4 + $0x3c] sm:$0xf] %vm532, %v505
  %549 = vst.msk [vmem:[%s4 + $0x40] sm:$0xf] %vm532, %v506
  %550 = vst.msk [vmem:[%s4 + $0x44] sm:$0xf] %vm532, %v507
  %551 = vst.msk [vmem:[%s4 + $0x48] sm:$0xf] %vm532, %v508
  %552 = vst.msk [vmem:[%s4 + $0x4c] sm:$0xf] %vm532, %v509
  %vm553 = vcmask 253952
  %554 = vst.msk [vmem:[%s4 + $0x50] sm:$0x1] %vm553, %v510
  // Predicated region
  $region18: #{cnn_forward.14} parent=0 // pred_check
    _
  $region19: #{cnn_forward.14} parent=0 // pred_check_branch
    %556 = sbr.rel (0) target = $region21
  $region20: #{cnn_forward.14} parent=0 // pred_region
    _
  $region21: #{cnn_forward.14} parent=0 // pred_fallthru
    _
  // Predicated region
  $region22: #{cnn_forward.14} parent=0 // pred_check
    _
  $region23: #{cnn_forward.14} parent=0 // pred_check_branch
    %558 = sbr.rel (0) target = $region25
  $region24: #{cnn_forward.14} parent=0 // pred_region
    _
  $region25: #{cnn_forward.14} parent=0 // pred_fallthru
    _

// kernel: cnn_forward.15
$region0: #{cnn_forward.15}
  #allocation0 [shape = 'u32[]', space=smem, size = 0x4, offset = 0x4, fixed_abs, tag = 'smem constant byte address 0x4 - core index']
  #allocation1 [shape = 'u32[144,128]{1,0:T(1,128)}', space=vmem, size = 0x12000, scoped, tag = 'internal scratch']
  #allocation2 [shape = 'f32[1,1]{1,0:T(1,128)S(1)}', space=vmem, size = 0x200, scoped, tag = 'scoped memory for cnn_forward.15']
  %s0 = inlined_call_operand.vmem [shape: bf16[512,2], index: 0, kind: input, shape index: {}]
  %s1 = inlined_call_operand.vmem [shape: bf16[512,8], index: 1, kind: input, shape index: {}]
  %s2 = inlined_call_operand.vmem [shape: bf16[2,8], index: 2, kind: input, shape index: {}]
  %s3 = inlined_call_operand.vmem [shape: f32[1,8], index: 3, kind: input, shape index: {}]
  %s4 = inlined_call_operand.vmem [shape: bf16[8,16], index: 4, kind: input, shape index: {}]
  %s5 = inlined_call_operand.vmem [shape: f32[1,16], index: 5, kind: input, shape index: {}]
  %s6 = inlined_call_operand.vmem [shape: bf16[8,1], index: 6, kind: input, shape index: {}]
  %s7 = inlined_call_operand.vmem [shape: bf16[16,1], index: 7, kind: input, shape index: {}]
  %s8 = inlined_call_operand.<no memory space> [shape: f32[1,1], index: 8, kind: input, shape index: {}]
  %s9 = inlined_call_operand.vmem [shape: f32[512,1], index: 9, kind: output, shape index: {}]
  %s10 = sld [smem:[#allocation0]]
  $region46: #{cnn_forward.15} parent=0
    _
  %s12 = ssub.s32 1, %s10
  %s13 = scalar_select 0, %s12, %s10
  %v14 = vstv %s8
  %15 = vst [vmem:[#allocation2] sm:$0x1] %v14
  // Predicated region
  $region2: #{cnn_forward.15} parent=0 // pred_check
    _
  $region3: #{cnn_forward.15} parent=0 // pred_check_branch
    %17 = sbr.rel (0) target = $region5
  $region4: #{cnn_forward.15} parent=0 // pred_region
    _
  $region5: #{cnn_forward.15} parent=0 // pred_fallthru
    _
  // Predicated region
  $region6: #{cnn_forward.15} parent=0 // pred_check
    _
  $region7: #{cnn_forward.15} parent=0 // pred_check_branch
    %19 = sbr.rel (0) target = $region9
  $region8: #{cnn_forward.15} parent=0 // pred_region
    _
  $region9: #{cnn_forward.15} parent=0 // pred_fallthru
    _
  // Predicated region
  $region10: #{cnn_forward.15} parent=0 // pred_check
    _
  $region11: #{cnn_forward.15} parent=0 // pred_check_branch
    %21 = sbr.rel (0) target = $region13
  $region12: #{cnn_forward.15} parent=0 // pred_region
    _
  $region13: #{cnn_forward.15} parent=0 // pred_fallthru
    _
  // Predicated region
  $region14: #{cnn_forward.15} parent=0 // pred_check
    _
  $region15: #{cnn_forward.15} parent=0 // pred_check_branch
    %23 = sbr.rel (0) target = $region17
  $region16: #{cnn_forward.15} parent=0 // pred_region
    _
  $region17: #{cnn_forward.15} parent=0 // pred_fallthru
    _
  // Predicated region
  $region18: #{cnn_forward.15} parent=0 // pred_check
    _
  $region19: #{cnn_forward.15} parent=0 // pred_check_branch
    %25 = sbr.rel (0) target = $region21
  $region20: #{cnn_forward.15} parent=0 // pred_region
    _
  $region21: #{cnn_forward.15} parent=0 // pred_fallthru
    _
  // Predicated region
  $region22: #{cnn_forward.15} parent=0 // pred_check
    _
  $region23: #{cnn_forward.15} parent=0 // pred_check_branch
    %27 = sbr.rel (0) target = $region25
  $region24: #{cnn_forward.15} parent=0 // pred_region
    _
  $region25: #{cnn_forward.15} parent=0 // pred_fallthru
    _
  // Predicated region
  $region26: #{cnn_forward.15} parent=0 // pred_check
    _
  $region27: #{cnn_forward.15} parent=0 // pred_check_branch
    %29 = sbr.rel (0) target = $region29
  $region28: #{cnn_forward.15} parent=0 // pred_region
    _
  $region29: #{cnn_forward.15} parent=0 // pred_fallthru
    _
  // Predicated region
  $region30: #{cnn_forward.15} parent=0 // pred_check
    _
  $region31: #{cnn_forward.15} parent=0 // pred_check_branch
    %31 = sbr.rel (0) target = $region33
  $region32: #{cnn_forward.15} parent=0 // pred_region
    _
  $region33: #{cnn_forward.15} parent=0 // pred_fallthru
    _
  // Predicated region
  $region34: #{cnn_forward.15} parent=0 // pred_check
    _
  $region35: #{cnn_forward.15} parent=0 // pred_check_branch
    %33 = sbr.rel (0) target = $region37
  $region36: #{cnn_forward.15} parent=0 // pred_region
    _
  $region37: #{cnn_forward.15} parent=0 // pred_fallthru
    _
  %v35 = vld [vmem:[%s0] sm:$0xf]
  %v36 = vld [vmem:[%s0 + $0x4] sm:$0xf]
  %v37 = vld [vmem:[%s0 + $0x8] sm:$0xf]
  %v38 = vld [vmem:[%s0 + $0xc] sm:$0xf]
  %v39 = vld [vmem:[%s0 + $0x10] sm:$0xf]
  %v40 = vld [vmem:[%s0 + $0x14] sm:$0xf]
  %v41 = vld [vmem:[%s0 + $0x18] sm:$0xf]
  %v42 = vld [vmem:[%s0 + $0x1c] sm:$0xf]
  %v43 = vld [vmem:[%s0 + $0x20] sm:$0xf]
  %v44 = vld [vmem:[%s0 + $0x24] sm:$0xf]
  %v45 = vld [vmem:[%s0 + $0x28] sm:$0xf]
  %v46 = vld [vmem:[%s0 + $0x2c] sm:$0xf]
  %v47 = vld [vmem:[%s0 + $0x30] sm:$0xf]
  %v48 = vld [vmem:[%s0 + $0x34] sm:$0xf]
  %v49 = vld [vmem:[%s0 + $0x38] sm:$0xf]
  %v50 = vld [vmem:[%s0 + $0x3c] sm:$0xf]
  %v51 = vld [vmem:[%s0 + $0x40] sm:$0xf]
  %v52 = vld [vmem:[%s0 + $0x44] sm:$0xf]
  %v53 = vld [vmem:[%s0 + $0x48] sm:$0xf]
  %v54 = vld [vmem:[%s0 + $0x4c] sm:$0xf]
  %v55 = vld [vmem:[%s0 + $0x50] sm:$0xf]
  %v56 = vld [vmem:[%s0 + $0x54] sm:$0xf]
  %v57 = vld [vmem:[%s0 + $0x58] sm:$0xf]
  %v58 = vld [vmem:[%s0 + $0x5c] sm:$0xf]
  %v59 = vld [vmem:[%s0 + $0x60] sm:$0xf]
  %v60 = vld [vmem:[%s0 + $0x64] sm:$0xf]
  %v61 = vld [vmem:[%s0 + $0x68] sm:$0xf]
  %v62 = vld [vmem:[%s0 + $0x6c] sm:$0xf]
  %v63 = vld [vmem:[%s0 + $0x70] sm:$0xf]
  %v64 = vld [vmem:[%s0 + $0x74] sm:$0xf]
  %v65 = vld [vmem:[%s0 + $0x78] sm:$0xf]
  %v66 = vld [vmem:[%s0 + $0x7c] sm:$0xf]
  %v67 = vld [vmem:[%s0 + $0x80] sm:$0xf]
  %v68 = vld [vmem:[%s0 + $0x84] sm:$0xf]
  %v69 = vld [vmem:[%s0 + $0x88] sm:$0xf]
  %v70 = vld [vmem:[%s0 + $0x8c] sm:$0xf]
  %v71 = vld [vmem:[%s0 + $0x90] sm:$0xf]
  %v72 = vld [vmem:[%s0 + $0x94] sm:$0xf]
  %v73 = vld [vmem:[%s0 + $0x98] sm:$0xf]
  %v74 = vld [vmem:[%s0 + $0x9c] sm:$0xf]
  %v75 = vld [vmem:[%s0 + $0xa0] sm:$0xf]
  %v76 = vld [vmem:[%s0 + $0xa4] sm:$0xf]
  %v77 = vld [vmem:[%s0 + $0xa8] sm:$0xf]
  %v78 = vld [vmem:[%s0 + $0xac] sm:$0xf]
  %v79 = vld [vmem:[%s0 + $0xb0] sm:$0xf]
  %v80 = vld [vmem:[%s0 + $0xb4] sm:$0xf]
  %v81 = vld [vmem:[%s0 + $0xb8] sm:$0xf]
  %v82 = vld [vmem:[%s0 + $0xbc] sm:$0xf]
  %v83 = vld [vmem:[%s0 + $0xc0] sm:$0xf]
  %v84 = vld [vmem:[%s0 + $0xc4] sm:$0xf]
  %v85 = vld [vmem:[%s0 + $0xc8] sm:$0xf]
  %v86 = vld [vmem:[%s0 + $0xcc] sm:$0xf]
  %v87 = vld [vmem:[%s0 + $0xd0] sm:$0xf]
  %v88 = vld [vmem:[%s0 + $0xd4] sm:$0xf]
  %v89 = vld [vmem:[%s0 + $0xd8] sm:$0xf]
  %v90 = vld [vmem:[%s0 + $0xdc] sm:$0xf]
  %v91 = vld [vmem:[%s0 + $0xe0] sm:$0xf]
  %v92 = vld [vmem:[%s0 + $0xe4] sm:$0xf]
  %v93 = vld [vmem:[%s0 + $0xe8] sm:$0xf]
  %v94 = vld [vmem:[%s0 + $0xec] sm:$0xf]
  %v95 = vld [vmem:[%s0 + $0xf0] sm:$0xf]
  %v96 = vld [vmem:[%s0 + $0xf4] sm:$0xf]
  %v97 = vld [vmem:[%s0 + $0xf8] sm:$0xf]
  %v98 = vld [vmem:[%s0 + $0xfc] sm:$0xf]
  %v99 = vld [vmem:[%s2] sm:$0x1]
  %v100 = vld [vmem:[%s3] sm:$0x1]
  %v102 = vlaneseq
  %v103 = vshrl.u32 %v102, 7
  %v104 = vsub.s32 0, %v103
  %v105 = vrot.slane %v100, %v104
  %v171 = vunpack.c.l.b16 %v35
  %v172 = vunpack.c.l.b16 %v36
  %v173 = vunpack.c.l.b16 %v37
  %v174 = vunpack.c.l.b16 %v38
  %v175 = vunpack.c.l.b16 %v39
  %v176 = vunpack.c.l.b16 %v40
  %v177 = vunpack.c.l.b16 %v41
  %v178 = vunpack.c.l.b16 %v42
  %v179 = vunpack.c.l.b16 %v43
  %v180 = vunpack.c.l.b16 %v44
  %v181 = vunpack.c.l.b16 %v45
  %v182 = vunpack.c.l.b16 %v46
  %v183 = vunpack.c.l.b16 %v47
  %v184 = vunpack.c.l.b16 %v48
  %v185 = vunpack.c.l.b16 %v49
  %v186 = vunpack.c.l.b16 %v50
  %v187 = vunpack.c.l.b16 %v51
  %v188 = vunpack.c.l.b16 %v52
  %v189 = vunpack.c.l.b16 %v53
  %v190 = vunpack.c.l.b16 %v54
  %v191 = vunpack.c.l.b16 %v55
  %v192 = vunpack.c.l.b16 %v56
  %v193 = vunpack.c.l.b16 %v57
  %v194 = vunpack.c.l.b16 %v58
  %v195 = vunpack.c.l.b16 %v59
  %v196 = vunpack.c.l.b16 %v60
  %v197 = vunpack.c.l.b16 %v61
  %v198 = vunpack.c.l.b16 %v62
  %v199 = vunpack.c.l.b16 %v63
  %v200 = vunpack.c.l.b16 %v64
  %v201 = vunpack.c.l.b16 %v65
  %v202 = vunpack.c.l.b16 %v66
  %v203 = vunpack.c.l.b16 %v67
  %v204 = vunpack.c.l.b16 %v68
  %v205 = vunpack.c.l.b16 %v69
  %v206 = vunpack.c.l.b16 %v70
  %v207 = vunpack.c.l.b16 %v71
  %v208 = vunpack.c.l.b16 %v72
  %v209 = vunpack.c.l.b16 %v73
  %v210 = vunpack.c.l.b16 %v74
  %v211 = vunpack.c.l.b16 %v75
  %v212 = vunpack.c.l.b16 %v76
  %v213 = vunpack.c.l.b16 %v77
  %v214 = vunpack.c.l.b16 %v78
  %v215 = vunpack.c.l.b16 %v79
  %v216 = vunpack.c.l.b16 %v80
  %v217 = vunpack.c.l.b16 %v81
  %v218 = vunpack.c.l.b16 %v82
  %v219 = vunpack.c.l.b16 %v83
  %v220 = vunpack.c.l.b16 %v84
  %v221 = vunpack.c.l.b16 %v85
  %v222 = vunpack.c.l.b16 %v86
  %v223 = vunpack.c.l.b16 %v87
  %v224 = vunpack.c.l.b16 %v88
  %v225 = vunpack.c.l.b16 %v89
  %v226 = vunpack.c.l.b16 %v90
  %v227 = vunpack.c.l.b16 %v91
  %v228 = vunpack.c.l.b16 %v92
  %v229 = vunpack.c.l.b16 %v93
  %v230 = vunpack.c.l.b16 %v94
  %v231 = vunpack.c.l.b16 %v95
  %v232 = vunpack.c.l.b16 %v96
  %v233 = vunpack.c.l.b16 %v97
  %v234 = vunpack.c.l.b16 %v98
  %v235 = vpack.c.b16 %v172, %v171
  %v236 = vpack.c.b16 %v174, %v173
  %v237 = vpack.c.b16 %v176, %v175
  %v238 = vpack.c.b16 %v178, %v177
  %v239 = vpack.c.b16 %v180, %v179
  %v240 = vpack.c.b16 %v182, %v181
  %v241 = vpack.c.b16 %v184, %v183
  %v242 = vpack.c.b16 %v186, %v185
  %v243 = vpack.c.b16 %v188, %v187
  %v244 = vpack.c.b16 %v190, %v189
  %v245 = vpack.c.b16 %v192, %v191
  %v246 = vpack.c.b16 %v194, %v193
  %v247 = vpack.c.b16 %v196, %v195
  %v248 = vpack.c.b16 %v198, %v197
  %v249 = vpack.c.b16 %v200, %v199
  %v250 = vpack.c.b16 %v202, %v201
  %v251 = vpack.c.b16 %v204, %v203
  %v252 = vpack.c.b16 %v206, %v205
  %v253 = vpack.c.b16 %v208, %v207
  %v254 = vpack.c.b16 %v210, %v209
  %v255 = vpack.c.b16 %v212, %v211
  %v256 = vpack.c.b16 %v214, %v213
  %v257 = vpack.c.b16 %v216, %v215
  %v258 = vpack.c.b16 %v218, %v217
  %v259 = vpack.c.b16 %v220, %v219
  %v260 = vpack.c.b16 %v222, %v221
  %v261 = vpack.c.b16 %v224, %v223
  %v262 = vpack.c.b16 %v226, %v225
  %v263 = vpack.c.b16 %v228, %v227
  %v264 = vpack.c.b16 %v230, %v229
  %v265 = vpack.c.b16 %v232, %v231
  %v266 = vpack.c.b16 %v234, %v233
  %vm267 = vcmask 15360
  %v269 = vsel %vm267, %v235, 0
  %v272 = vsel %vm267, %v236, 0
  %v275 = vsel %vm267, %v237, 0
  %v278 = vsel %vm267, %v238, 0
  %v281 = vsel %vm267, %v239, 0
  %v284 = vsel %vm267, %v240, 0
  %v287 = vsel %vm267, %v241, 0
  %v290 = vsel %vm267, %v242, 0
  %v293 = vsel %vm267, %v243, 0
  %v296 = vsel %vm267, %v244, 0
  %v299 = vsel %vm267, %v245, 0
  %v302 = vsel %vm267, %v246, 0
  %v305 = vsel %vm267, %v247, 0
  %v308 = vsel %vm267, %v248, 0
  %v311 = vsel %vm267, %v249, 0
  %v314 = vsel %vm267, %v250, 0
  %v317 = vsel %vm267, %v251, 0
  %v320 = vsel %vm267, %v252, 0
  %v323 = vsel %vm267, %v253, 0
  %v326 = vsel %vm267, %v254, 0
  %v329 = vsel %vm267, %v255, 0
  %v332 = vsel %vm267, %v256, 0
  %v335 = vsel %vm267, %v257, 0
  %v338 = vsel %vm267, %v258, 0
  %v341 = vsel %vm267, %v259, 0
  %v344 = vsel %vm267, %v260, 0
  %v347 = vsel %vm267, %v261, 0
  %v350 = vsel %vm267, %v262, 0
  %v353 = vsel %vm267, %v263, 0
  %v356 = vsel %vm267, %v264, 0
  %v359 = vsel %vm267, %v265, 0
  %v362 = vsel %vm267, %v266, 0
  %vm364 = vcmask 1040384
  %v366 = vsel %vm364, %v99, 0
  %368 = vmatprep.subr.bf16.mxu0 0
  %369 = vmatpush1.bf16.msra.mxu0 0
  %370 = vmatprep.subr.bf16.mxu0 0
  %371 = vmatpush1.bf16.msra.mxu0 0
  %372 = vmatprep.subr.bf16.mxu0 0
  %373 = vmatpush1.bf16.msra.mxu0 0
  %374 = vmatprep.subr.bf16.mxu0 0
  %375 = vmatpush1.bf16.msra.mxu0 0
  %376 = vmatprep.subr.bf16.mxu0 0
  %377 = vmatpush1.bf16.msra.mxu0 0
  %378 = vmatprep.subr.bf16.mxu0 0
  %379 = vmatpush1.bf16.msra.mxu0 0
  %380 = vmatprep.subr.bf16.mxu0 0
  %381 = vmatpush1.bf16.msra.mxu0 0
  %382 = vmatprep.subr.bf16.mxu0 0
  %383 = vmatpush1.bf16.msra.mxu0 %v366
  %384 = vmatprep.subr.bf16.mxu0 0
  %385 = vmatpush2.bf16.msra.mxu0 0
  %386 = vmatprep.subr.bf16.mxu0 0
  %387 = vmatpush2.bf16.msra.mxu0 0
  %388 = vmatprep.subr.bf16.mxu0 0
  %389 = vmatpush2.bf16.msra.mxu0 0
  %390 = vmatprep.subr.bf16.mxu0 0
  %391 = vmatpush2.bf16.msra.mxu0 0
  %392 = vmatprep.subr.bf16.mxu0 0
  %393 = vmatpush2.bf16.msra.mxu0 0
  %394 = vmatprep.subr.bf16.mxu0 0
  %395 = vmatpush2.bf16.msra.mxu0 0
  %396 = vmatprep.subr.bf16.mxu0 0
  %397 = vmatpush2.bf16.msra.mxu0 0
  %398 = vmatprep.subr.bf16.mxu0 0
  %399 = vmatpush2.bf16.msra.mxu0 0
  %400 = vmatprep.mubr.bf16.mxu0 0
  %401 = vmatmul.mubr.bf16.gmra.mxu0 %v269
  %v402 = vpop.f32.mrf.mxu0
  %v403 = vadd.f32 %v105, %v402
  %v404 = vpop.f32.mrf.mxu0
  %v405 = vpop.f32.mrf.mxu0
  %v406 = vadd.f32 %v105, %v405
  %v407 = vpop.f32.mrf.mxu0
  %408 = vmatprep.mubr.bf16.mxu0 0
  %409 = vmatmul.mubr.bf16.gmra.mxu0 %v272
  %v410 = vpop.f32.mrf.mxu0
  %v411 = vadd.f32 %v105, %v410
  %v412 = vpop.f32.mrf.mxu0
  %v413 = vpop.f32.mrf.mxu0
  %v414 = vadd.f32 %v105, %v413
  %v415 = vpop.f32.mrf.mxu0
  %416 = vmatprep.mubr.bf16.mxu0 0
  %417 = vmatmul.mubr.bf16.gmra.mxu0 %v275
  %v418 = vpop.f32.mrf.mxu0
  %v419 = vadd.f32 %v105, %v418
  %v420 = vpop.f32.mrf.mxu0
  %v421 = vpop.f32.mrf.mxu0
  %v422 = vadd.f32 %v105, %v421
  %v423 = vpop.f32.mrf.mxu0
  %424 = vmatprep.mubr.bf16.mxu0 0
  %425 = vmatmul.mubr.bf16.gmra.mxu0 %v278
  %v426 = vpop.f32.mrf.mxu0
  %v427 = vadd.f32 %v105, %v426
  %v428 = vpop.f32.mrf.mxu0
  %v429 = vpop.f32.mrf.mxu0
  %v430 = vadd.f32 %v105, %v429
  %v431 = vpop.f32.mrf.mxu0
  %432 = vmatprep.mubr.bf16.mxu0 0
  %433 = vmatmul.mubr.bf16.gmra.mxu0 %v281
  %v434 = vpop.f32.mrf.mxu0
  %v435 = vadd.f32 %v105, %v434
  %v436 = vpop.f32.mrf.mxu0
  %v437 = vpop.f32.mrf.mxu0
  %v438 = vadd.f32 %v105, %v437
  %v439 = vpop.f32.mrf.mxu0
  %440 = vmatprep.mubr.bf16.mxu0 0
  %441 = vmatmul.mubr.bf16.gmra.mxu0 %v284
  %v442 = vpop.f32.mrf.mxu0
  %v443 = vadd.f32 %v105, %v442
  %v444 = vpop.f32.mrf.mxu0
  %v445 = vpop.f32.mrf.mxu0
  %v446 = vadd.f32 %v105, %v445
  %v447 = vpop.f32.mrf.mxu0
  %448 = vmatprep.mubr.bf16.mxu0 0
  %449 = vmatmul.mubr.bf16.gmra.mxu0 %v287
  %v450 = vpop.f32.mrf.mxu0
  %v451 = vadd.f32 %v105, %v450
  %v452 = vpop.f32.mrf.mxu0
  %v453 = vpop.f32.mrf.mxu0
  %v454 = vadd.f32 %v105, %v453
  %v455 = vpop.f32.mrf.mxu0
  %456 = vmatprep.mubr.bf16.mxu0 0
  %457 = vmatmul.mubr.bf16.gmra.mxu0 %v290
  %v458 = vpop.f32.mrf.mxu0
  %v459 = vadd.f32 %v105, %v458
  %v460 = vpop.f32.mrf.mxu0
  %v461 = vpop.f32.mrf.mxu0
  %v462 = vadd.f32 %v105, %v461
  %v463 = vpop.f32.mrf.mxu0
  %464 = vmatprep.mubr.bf16.mxu0 0
  %465 = vmatmul.mubr.bf16.gmra.mxu0 %v293
  %v466 = vpop.f32.mrf.mxu0
  %v467 = vadd.f32 %v105, %v466
  %v468 = vpop.f32.mrf.mxu0
  %v469 = vpop.f32.mrf.mxu0
  %v470 = vadd.f32 %v105, %v469
  %v471 = vpop.f32.mrf.mxu0
  %472 = vmatprep.mubr.bf16.mxu0 0
  %473 = vmatmul.mubr.bf16.gmra.mxu0 %v296
  %v474 = vpop.f32.mrf.mxu0
  %v475 = vadd.f32 %v105, %v474
  %v476 = vpop.f32.mrf.mxu0
  %v477 = vpop.f32.mrf.mxu0
  %v478 = vadd.f32 %v105, %v477
  %v479 = vpop.f32.mrf.mxu0
  %480 = vmatprep.mubr.bf16.mxu0 0
  %481 = vmatmul.mubr.bf16.gmra.mxu0 %v299
  %v482 = vpop.f32.mrf.mxu0
  %v483 = vadd.f32 %v105, %v482
  %v484 = vpop.f32.mrf.mxu0
  %v485 = vpop.f32.mrf.mxu0
  %v486 = vadd.f32 %v105, %v485
  %v487 = vpop.f32.mrf.mxu0
  %488 = vmatprep.mubr.bf16.mxu0 0
  %489 = vmatmul.mubr.bf16.gmra.mxu0 %v302
  %v490 = vpop.f32.mrf.mxu0
  %v491 = vadd.f32 %v105, %v490
  %v492 = vpop.f32.mrf.mxu0
  %v493 = vpop.f32.mrf.mxu0
  %v494 = vadd.f32 %v105, %v493
  %v495 = vpop.f32.mrf.mxu0
  %496 = vmatprep.mubr.bf16.mxu0 0
  %497 = vmatmul.mubr.bf16.gmra.mxu0 %v305
  %v498 = vpop.f32.mrf.mxu0
  %v499 = vadd.f32 %v105, %v498
  %v500 = vpop.f32.mrf.mxu0
  %v501 = vpop.f32.mrf.mxu0
  %v502 = vadd.f32 %v105, %v501
  %v503 = vpop.f32.mrf.mxu0
  %504 = vmatprep.mubr.bf16.mxu0 0
  %505 = vmatmul.mubr.bf16.gmra.mxu0 %v308
  %v506 = vpop.f32.mrf.mxu0
  %v507 = vadd.f32 %v105, %v506
  %v508 = vpop.f32.mrf.mxu0
  %v509 = vpop.f32.mrf.mxu0
  %v510 = vadd.f32 %v105, %v509
  %v511 = vpop.f32.mrf.mxu0
  %512 = vmatprep.mubr.bf16.mxu0 0
  %513 = vmatmul.mubr.bf16.gmra.mxu0 %v311
  %v514 = vpop.f32.mrf.mxu0
  %v515 = vadd.f32 %v105, %v514
  %v516 = vpop.f32.mrf.mxu0
  %v517 = vpop.f32.mrf.mxu0
  %v518 = vadd.f32 %v105, %v517
  %v519 = vpop.f32.mrf.mxu0
  %520 = vmatprep.mubr.bf16.mxu0 0
  %521 = vmatmul.mubr.bf16.gmra.mxu0 %v314
  %v522 = vpop.f32.mrf.mxu0
  %v523 = vadd.f32 %v105, %v522
  %v524 = vpop.f32.mrf.mxu0
  %v525 = vpop.f32.mrf.mxu0
  %v526 = vadd.f32 %v105, %v525
  %v527 = vpop.f32.mrf.mxu0
  %528 = vmatprep.mubr.bf16.mxu0 0
  %529 = vmatmul.mubr.bf16.gmra.mxu0 %v317
  %v530 = vpop.f32.mrf.mxu0
  %v531 = vadd.f32 %v105, %v530
  %v532 = vpop.f32.mrf.mxu0
  %v533 = vpop.f32.mrf.mxu0
  %v534 = vadd.f32 %v105, %v533
  %v535 = vpop.f32.mrf.mxu0
  %536 = vmatprep.mubr.bf16.mxu0 0
  %537 = vmatmul.mubr.bf16.gmra.mxu0 %v320
  %v538 = vpop.f32.mrf.mxu0
  %v539 = vadd.f32 %v105, %v538
  %v540 = vpop.f32.mrf.mxu0
  %v541 = vpop.f32.mrf.mxu0
  %v542 = vadd.f32 %v105, %v541
  %v543 = vpop.f32.mrf.mxu0
  %544 = vmatprep.mubr.bf16.mxu0 0
  %545 = vmatmul.mubr.bf16.gmra.mxu0 %v323
  %v546 = vpop.f32.mrf.mxu0
  %v547 = vadd.f32 %v105, %v546
  %v548 = vpop.f32.mrf.mxu0
  %v549 = vpop.f32.mrf.mxu0
  %v550 = vadd.f32 %v105, %v549
  %v551 = vpop.f32.mrf.mxu0
  %552 = vmatprep.mubr.bf16.mxu0 0
  %553 = vmatmul.mubr.bf16.gmra.mxu0 %v326
  %v554 = vpop.f32.mrf.mxu0
  %v555 = vadd.f32 %v105, %v554
  %v556 = vpop.f32.mrf.mxu0
  %v557 = vpop.f32.mrf.mxu0
  %v558 = vadd.f32 %v105, %v557
  %v559 = vpop.f32.mrf.mxu0
  %560 = vmatprep.mubr.bf16.mxu0 0
  %561 = vmatmul.mubr.bf16.gmra.mxu0 %v329
  %v562 = vpop.f32.mrf.mxu0
  %v563 = vadd.f32 %v105, %v562
  %v564 = vpop.f32.mrf.mxu0
  %v565 = vpop.f32.mrf.mxu0
  %v566 = vadd.f32 %v105, %v565
  %v567 = vpop.f32.mrf.mxu0
  %568 = vmatprep.mubr.bf16.mxu0 0
  %569 = vmatmul.mubr.bf16.gmra.mxu0 %v332
  %v570 = vpop.f32.mrf.mxu0
  %v571 = vadd.f32 %v105, %v570
  %v572 = vpop.f32.mrf.mxu0
  %v573 = vpop.f32.mrf.mxu0
  %v574 = vadd.f32 %v105, %v573
  %v575 = vpop.f32.mrf.mxu0
  %576 = vmatprep.mubr.bf16.mxu0 0
  %577 = vmatmul.mubr.bf16.gmra.mxu0 %v335
  %v578 = vpop.f32.mrf.mxu0
  %v579 = vadd.f32 %v105, %v578
  %v580 = vpop.f32.mrf.mxu0
  %v581 = vpop.f32.mrf.mxu0
  %v582 = vadd.f32 %v105, %v581
  %v583 = vpop.f32.mrf.mxu0
  %584 = vmatprep.mubr.bf16.mxu0 0
  %585 = vmatmul.mubr.bf16.gmra.mxu0 %v338
  %v586 = vpop.f32.mrf.mxu0
  %v587 = vadd.f32 %v105, %v586
  %v588 = vpop.f32.mrf.mxu0
  %v589 = vpop.f32.mrf.mxu0
  %v590 = vadd.f32 %v105, %v589
  %v591 = vpop.f32.mrf.mxu0
  %592 = vmatprep.mubr.bf16.mxu0 0
  %593 = vmatmul.mubr.bf16.gmra.mxu0 %v341
  %v594 = vpop.f32.mrf.mxu0
  %v595 = vadd.f32 %v105, %v594
  %v596 = vpop.f32.mrf.mxu0
  %v597 = vpop.f32.mrf.mxu0
  %v598 = vadd.f32 %v105, %v597
  %v599 = vpop.f32.mrf.mxu0
  %600 = vmatprep.mubr.bf16.mxu0 0
  %601 = vmatmul.mubr.bf16.gmra.mxu0 %v344
  %v602 = vpop.f32.mrf.mxu0
  %v603 = vadd.f32 %v105, %v602
  %v604 = vpop.f32.mrf.mxu0
  %v605 = vpop.f32.mrf.mxu0
  %v606 = vadd.f32 %v105, %v605
  %v607 = vpop.f32.mrf.mxu0
  %608 = vmatprep.mubr.bf16.mxu0 0
  %609 = vmatmul.mubr.bf16.gmra.mxu0 %v347
  %v610 = vpop.f32.mrf.mxu0
  %v611 = vadd.f32 %v105, %v610
  %v612 = vpop.f32.mrf.mxu0
  %v613 = vpop.f32.mrf.mxu0
  %v614 = vadd.f32 %v105, %v613
  %v615 = vpop.f32.mrf.mxu0
  %616 = vmatprep.mubr.bf16.mxu0 0
  %617 = vmatmul.mubr.bf16.gmra.mxu0 %v350
  %v618 = vpop.f32.mrf.mxu0
  %v619 = vadd.f32 %v105, %v618
  %v620 = vpop.f32.mrf.mxu0
  %v621 = vpop.f32.mrf.mxu0
  %v622 = vadd.f32 %v105, %v621
  %v623 = vpop.f32.mrf.mxu0
  %624 = vmatprep.mubr.bf16.mxu0 0
  %625 = vmatmul.mubr.bf16.gmra.mxu0 %v353
  %v626 = vpop.f32.mrf.mxu0
  %v627 = vadd.f32 %v105, %v626
  %v628 = vpop.f32.mrf.mxu0
  %v629 = vpop.f32.mrf.mxu0
  %v630 = vadd.f32 %v105, %v629
  %v631 = vpop.f32.mrf.mxu0
  %632 = vmatprep.mubr.bf16.mxu0 0
  %633 = vmatmul.mubr.bf16.gmra.mxu0 %v356
  %v634 = vpop.f32.mrf.mxu0
  %v635 = vadd.f32 %v105, %v634
  %v636 = vpop.f32.mrf.mxu0
  %v637 = vpop.f32.mrf.mxu0
  %v638 = vadd.f32 %v105, %v637
  %v639 = vpop.f32.mrf.mxu0
  %640 = vmatprep.mubr.bf16.mxu0 0
  %641 = vmatmul.mubr.bf16.gmra.mxu0 %v359
  %v642 = vpop.f32.mrf.mxu0
  %v643 = vadd.f32 %v105, %v642
  %v644 = vpop.f32.mrf.mxu0
  %v645 = vpop.f32.mrf.mxu0
  %v646 = vadd.f32 %v105, %v645
  %v647 = vpop.f32.mrf.mxu0
  %648 = vmatprep.mubr.bf16.mxu0 0
  %649 = vmatmul.mubr.bf16.gmra.mxu0 %v362
  %v650 = vpop.f32.mrf.mxu0
  %v651 = vadd.f32 %v105, %v650
  %v652 = vpop.f32.mrf.mxu0
  %v653 = vpop.f32.mrf.mxu0
  %v654 = vadd.f32 %v105, %v653
  %v655 = vpop.f32.mrf.mxu0
  %656 = vdwg.mxu0
  %vm657 = vcmask 64512
  %v658 = vsel %vm657, %v403, 0.0
  %v659 = vsel %vm657, %v406, 0.0
  %v660 = vadd.f32 %v658, %v659
  %v661 = vsel %vm657, %v411, 0.0
  %v662 = vadd.f32 %v660, %v661
  %v663 = vsel %vm657, %v414, 0.0
  %v664 = vadd.f32 %v662, %v663
  %v665 = vsel %vm657, %v419, 0.0
  %v666 = vadd.f32 %v664, %v665
  %v667 = vsel %vm657, %v422, 0.0
  %v668 = vadd.f32 %v666, %v667
  %v669 = vsel %vm657, %v427, 0.0
  %v670 = vadd.f32 %v668, %v669
  %v671 = vsel %vm657, %v430, 0.0
  %v672 = vadd.f32 %v670, %v671
  %v673 = vsel %vm657, %v435, 0.0
  %v674 = vadd.f32 %v672, %v673
  %v675 = vsel %vm657, %v438, 0.0
  %v676 = vadd.f32 %v674, %v675
  %v677 = vsel %vm657, %v443, 0.0
  %v678 = vadd.f32 %v676, %v677
  %v679 = vsel %vm657, %v446, 0.0
  %v680 = vadd.f32 %v678, %v679
  %v681 = vsel %vm657, %v451, 0.0
  %v682 = vadd.f32 %v680, %v681
  %v683 = vsel %vm657, %v454, 0.0
  %v684 = vadd.f32 %v682, %v683
  %v685 = vsel %vm657, %v459, 0.0
  %v686 = vadd.f32 %v684, %v685
  %v687 = vsel %vm657, %v462, 0.0
  %v688 = vadd.f32 %v686, %v687
  %v689 = vsel %vm657, %v467, 0.0
  %v690 = vadd.f32 %v688, %v689
  %v691 = vsel %vm657, %v470, 0.0
  %v692 = vadd.f32 %v690, %v691
  %v693 = vsel %vm657, %v475, 0.0
  %v694 = vadd.f32 %v692, %v693
  %v695 = vsel %vm657, %v478, 0.0
  %v696 = vadd.f32 %v694, %v695
  %v697 = vsel %vm657, %v483, 0.0
  %v698 = vadd.f32 %v696, %v697
  %v699 = vsel %vm657, %v486, 0.0
  %v700 = vadd.f32 %v698, %v699
  %v701 = vsel %vm657, %v491, 0.0
  %v702 = vadd.f32 %v700, %v701
  %v703 = vsel %vm657, %v494, 0.0
  %v704 = vadd.f32 %v702, %v703
  %v705 = vsel %vm657, %v499, 0.0
  %v706 = vadd.f32 %v704, %v705
  %v707 = vsel %vm657, %v502, 0.0
  %v708 = vadd.f32 %v706, %v707
  %v709 = vsel %vm657, %v507, 0.0
  %v710 = vadd.f32 %v708, %v709
  %v711 = vsel %vm657, %v510, 0.0
  %v712 = vadd.f32 %v710, %v711
  %v713 = vsel %vm657, %v515, 0.0
  %v714 = vadd.f32 %v712, %v713
  %v715 = vsel %vm657, %v518, 0.0
  %v716 = vadd.f32 %v714, %v715
  %v717 = vsel %vm657, %v523, 0.0
  %v718 = vadd.f32 %v716, %v717
  %v719 = vsel %vm657, %v526, 0.0
  %v720 = vadd.f32 %v718, %v719
  %v721 = vsel %vm657, %v531, 0.0
  %v722 = vadd.f32 %v720, %v721
  %v723 = vsel %vm657, %v534, 0.0
  %v724 = vadd.f32 %v722, %v723
  %v725 = vsel %vm657, %v539, 0.0
  %v726 = vadd.f32 %v724, %v725
  %v727 = vsel %vm657, %v542, 0.0
  %v728 = vadd.f32 %v726, %v727
  %v729 = vsel %vm657, %v547, 0.0
  %v730 = vadd.f32 %v728, %v729
  %v731 = vsel %vm657, %v550, 0.0
  %v732 = vadd.f32 %v730, %v731
  %v733 = vsel %vm657, %v555, 0.0
  %v734 = vadd.f32 %v732, %v733
  %v735 = vsel %vm657, %v558, 0.0
  %v736 = vadd.f32 %v734, %v735
  %v737 = vsel %vm657, %v563, 0.0
  %v738 = vadd.f32 %v736, %v737
  %v739 = vsel %vm657, %v566, 0.0
  %v740 = vadd.f32 %v738, %v739
  %v741 = vsel %vm657, %v571, 0.0
  %v742 = vadd.f32 %v740, %v741
  %v743 = vsel %vm657, %v574, 0.0
  %v744 = vadd.f32 %v742, %v743
  %v745 = vsel %vm657, %v579, 0.0
  %v746 = vadd.f32 %v744, %v745
  %v747 = vsel %vm657, %v582, 0.0
  %v748 = vadd.f32 %v746, %v747
  %v749 = vsel %vm657, %v587, 0.0
  %v750 = vadd.f32 %v748, %v749
  %v751 = vsel %vm657, %v590, 0.0
  %v752 = vadd.f32 %v750, %v751
  %v753 = vsel %vm657, %v595, 0.0
  %v754 = vadd.f32 %v752, %v753
  %v755 = vsel %vm657, %v598, 0.0
  %v756 = vadd.f32 %v754, %v755
  %v757 = vsel %vm657, %v603, 0.0
  %v758 = vadd.f32 %v756, %v757
  %v759 = vsel %vm657, %v606, 0.0
  %v760 = vadd.f32 %v758, %v759
  %v761 = vsel %vm657, %v611, 0.0
  %v762 = vadd.f32 %v760, %v761
  %v763 = vsel %vm657, %v614, 0.0
  %v764 = vadd.f32 %v762, %v763
  %v765 = vsel %vm657, %v619, 0.0
  %v766 = vadd.f32 %v764, %v765
  %v767 = vsel %vm657, %v622, 0.0
  %v768 = vadd.f32 %v766, %v767
  %v769 = vsel %vm657, %v627, 0.0
  %v770 = vadd.f32 %v768, %v769
  %v771 = vsel %vm657, %v630, 0.0
  %v772 = vadd.f32 %v770, %v771
  %v773 = vsel %vm657, %v635, 0.0
  %v774 = vadd.f32 %v772, %v773
  %v775 = vsel %vm657, %v638, 0.0
  %v776 = vadd.f32 %v774, %v775
  %v777 = vsel %vm657, %v643, 0.0
  %v778 = vadd.f32 %v776, %v777
  %v779 = vsel %vm657, %v646, 0.0
  %v780 = vadd.f32 %v778, %v779
  %v781 = vsel %vm657, %v651, 0.0
  %v782 = vadd.f32 %v780, %v781
  %v783 = vsel %vm657, %v654, 0.0
  %v784 = vadd.f32 %v782, %v783
  %v785 = vrot.slane %v784, 4
  %v786 = vadd.f32 %v784, %v785
  %v787 = vrot.slane %v786, 2
  %v788 = vadd.f32 %v786, %v787
  %v789 = vrot.slane %v788, 1
  %v790 = vadd.f32 %v788, %v789
  %v791 = vmul.f32 %v790, 0.001953125
  %v792 = vsub.f32 %v403, %v791
  %v793 = vsub.f32 %v406, %v791
  %v794 = vsub.f32 %v411, %v791
  %v795 = vsub.f32 %v414, %v791
  %v796 = vsub.f32 %v419, %v791
  %v797 = vsub.f32 %v422, %v791
  %v798 = vsub.f32 %v427, %v791
  %v799 = vsub.f32 %v430, %v791
  %v800 = vsub.f32 %v435, %v791
  %v801 = vsub.f32 %v438, %v791
  %v802 = vsub.f32 %v443, %v791
  %v803 = vsub.f32 %v446, %v791
  %v804 = vsub.f32 %v451, %v791
  %v805 = vsub.f32 %v454, %v791
  %v806 = vsub.f32 %v459, %v791
  %v807 = vsub.f32 %v462, %v791
  %v808 = vsub.f32 %v467, %v791
  %v809 = vsub.f32 %v470, %v791
  %v810 = vsub.f32 %v475, %v791
  %v811 = vsub.f32 %v478, %v791
  %v812 = vsub.f32 %v483, %v791
  %v813 = vsub.f32 %v486, %v791
  %v814 = vsub.f32 %v491, %v791
  %v815 = vsub.f32 %v494, %v791
  %v816 = vsub.f32 %v499, %v791
  %v817 = vsub.f32 %v502, %v791
  %v818 = vsub.f32 %v507, %v791
  %v819 = vsub.f32 %v510, %v791
  %v820 = vsub.f32 %v515, %v791
  %v821 = vsub.f32 %v518, %v791
  %v822 = vsub.f32 %v523, %v791
  %v823 = vsub.f32 %v526, %v791
  %v824 = vsub.f32 %v531, %v791
  %v825 = vsub.f32 %v534, %v791
  %v826 = vsub.f32 %v539, %v791
  %v827 = vsub.f32 %v542, %v791
  %v828 = vsub.f32 %v547, %v791
  %v829 = vsub.f32 %v550, %v791
  %v830 = vsub.f32 %v555, %v791
  %v831 = vsub.f32 %v558, %v791
  %v832 = vsub.f32 %v563, %v791
  %v833 = vsub.f32 %v566, %v791
  %v834 = vsub.f32 %v571, %v791
  %v835 = vsub.f32 %v574, %v791
  %v836 = vsub.f32 %v579, %v791
  %v837 = vsub.f32 %v582, %v791
  %v838 = vsub.f32 %v587, %v791
  %v839 = vsub.f32 %v590, %v791
  %v840 = vsub.f32 %v595, %v791
  %v841 = vsub.f32 %v598, %v791
  %v842 = vsub.f32 %v603, %v791
  %v843 = vsub.f32 %v606, %v791
  %v844 = vsub.f32 %v611, %v791
  %v845 = vsub.f32 %v614, %v791
  %v846 = vsub.f32 %v619, %v791
  %v847 = vsub.f32 %v622, %v791
  %v848 = vsub.f32 %v627, %v791
  %v849 = vsub.f32 %v630, %v791
  %v850 = vsub.f32 %v635, %v791
  %v851 = vsub.f32 %v638, %v791
  %v852 = vsub.f32 %v643, %v791
  %v853 = vsub.f32 %v646, %v791
  %v854 = vsub.f32 %v651, %v791
  %v855 = vsub.f32 %v654, %v791
  %v856 = vmul.f32 %v792, %v792
  %v857 = vmul.f32 %v793, %v793
  %v858 = vmul.f32 %v794, %v794
  %v859 = vmul.f32 %v795, %v795
  %v860 = vmul.f32 %v796, %v796
  %v861 = vmul.f32 %v797, %v797
  %v862 = vmul.f32 %v798, %v798
  %v863 = vmul.f32 %v799, %v799
  %v864 = vmul.f32 %v800, %v800
  %v865 = vmul.f32 %v801, %v801
  %v866 = vmul.f32 %v802, %v802
  %v867 = vmul.f32 %v803, %v803
  %v868 = vmul.f32 %v804, %v804
  %v869 = vmul.f32 %v805, %v805
  %v870 = vmul.f32 %v806, %v806
  %v871 = vmul.f32 %v807, %v807
  %v872 = vmul.f32 %v808, %v808
  %v873 = vmul.f32 %v809, %v809
  %v874 = vmul.f32 %v810, %v810
  %v875 = vmul.f32 %v811, %v811
  %v876 = vmul.f32 %v812, %v812
  %v877 = vmul.f32 %v813, %v813
  %v878 = vmul.f32 %v814, %v814
  %v879 = vmul.f32 %v815, %v815
  %v880 = vmul.f32 %v816, %v816
  %v881 = vmul.f32 %v817, %v817
  %v882 = vmul.f32 %v818, %v818
  %v883 = vmul.f32 %v819, %v819
  %v884 = vmul.f32 %v820, %v820
  %v885 = vmul.f32 %v821, %v821
  %v886 = vmul.f32 %v822, %v822
  %v887 = vmul.f32 %v823, %v823
  %v888 = vmul.f32 %v824, %v824
  %v889 = vmul.f32 %v825, %v825
  %v890 = vmul.f32 %v826, %v826
  %v891 = vmul.f32 %v827, %v827
  %v892 = vmul.f32 %v828, %v828
  %v893 = vmul.f32 %v829, %v829
  %v894 = vmul.f32 %v830, %v830
  %v895 = vmul.f32 %v831, %v831
  %v896 = vmul.f32 %v832, %v832
  %v897 = vmul.f32 %v833, %v833
  %v898 = vmul.f32 %v834, %v834
  %v899 = vmul.f32 %v835, %v835
  %v900 = vmul.f32 %v836, %v836
  %v901 = vmul.f32 %v837, %v837
  %v902 = vmul.f32 %v838, %v838
  %v903 = vmul.f32 %v839, %v839
  %v904 = vmul.f32 %v840, %v840
  %v905 = vmul.f32 %v841, %v841
  %v906 = vmul.f32 %v842, %v842
  %v907 = vmul.f32 %v843, %v843
  %v908 = vmul.f32 %v844, %v844
  %v909 = vmul.f32 %v845, %v845
  %v910 = vmul.f32 %v846, %v846
  %v911 = vmul.f32 %v847, %v847
  %v912 = vmul.f32 %v848, %v848
  %v913 = vmul.f32 %v849, %v849
  %v914 = vmul.f32 %v850, %v850
  %v915 = vmul.f32 %v851, %v851
  %v916 = vmul.f32 %v852, %v852
  %v917 = vmul.f32 %v853, %v853
  %v918 = vmul.f32 %v854, %v854
  %v919 = vmul.f32 %v855, %v855
  %v920 = vsel %vm657, %v856, 0.0
  %v921 = vsel %vm657, %v857, 0.0
  %v922 = vadd.f32 %v920, %v921
  %v923 = vsel %vm657, %v858, 0.0
  %v924 = vadd.f32 %v922, %v923
  %v925 = vsel %vm657, %v859, 0.0
  %v926 = vadd.f32 %v924, %v925
  %v927 = vsel %vm657, %v860, 0.0
  %v928 = vadd.f32 %v926, %v927
  %v929 = vsel %vm657, %v861, 0.0
  %v930 = vadd.f32 %v928, %v929
  %v931 = vsel %vm657, %v862, 0.0
  %v932 = vadd.f32 %v930, %v931
  %v933 = vsel %vm657, %v863, 0.0
  %v934 = vadd.f32 %v932, %v933
  %v935 = vsel %vm657, %v864, 0.0
  %v936 = vadd.f32 %v934, %v935
  %v937 = vsel %vm657, %v865, 0.0
  %v938 = vadd.f32 %v936, %v937
  %v939 = vsel %vm657, %v866, 0.0
  %v940 = vadd.f32 %v938, %v939
  %v941 = vsel %vm657, %v867, 0.0
  %v942 = vadd.f32 %v940, %v941
  %v943 = vsel %vm657, %v868, 0.0
  %v944 = vadd.f32 %v942, %v943
  %v945 = vsel %vm657, %v869, 0.0
  %v946 = vadd.f32 %v944, %v945
  %v947 = vsel %vm657, %v870, 0.0
  %v948 = vadd.f32 %v946, %v947
  %v949 = vsel %vm657, %v871, 0.0
  %v950 = vadd.f32 %v948, %v949
  %v951 = vsel %vm657, %v872, 0.0
  %v952 = vadd.f32 %v950, %v951
  %v953 = vsel %vm657, %v873, 0.0
  %v954 = vadd.f32 %v952, %v953
  %v955 = vsel %vm657, %v874, 0.0
  %v956 = vadd.f32 %v954, %v955
  %v957 = vsel %vm657, %v875, 0.0
  %v958 = vadd.f32 %v956, %v957
  %v959 = vsel %vm657, %v876, 0.0
  %v960 = vadd.f32 %v958, %v959
  %v961 = vsel %vm657, %v877, 0.0
  %v962 = vadd.f32 %v960, %v961
  %v963 = vsel %vm657, %v878, 0.0
  %v964 = vadd.f32 %v962, %v963
  %v965 = vsel %vm657, %v879, 0.0
  %v966 = vadd.f32 %v964, %v965
  %v967 = vsel %vm657, %v880, 0.0
  %v968 = vadd.f32 %v966, %v967
  %v969 = vsel %vm657, %v881, 0.0
  %v970 = vadd.f32 %v968, %v969
  %v971 = vsel %vm657, %v882, 0.0
  %v972 = vadd.f32 %v970, %v971
  %v973 = vsel %vm657, %v883, 0.0
  %v974 = vadd.f32 %v972, %v973
  %v975 = vsel %vm657, %v884, 0.0
  %v976 = vadd.f32 %v974, %v975
  %v977 = vsel %vm657, %v885, 0.0
  %v978 = vadd.f32 %v976, %v977
  %v979 = vsel %vm657, %v886, 0.0
  %v980 = vadd.f32 %v978, %v979
  %v981 = vsel %vm657, %v887, 0.0
  %v982 = vadd.f32 %v980, %v981
  %v983 = vsel %vm657, %v888, 0.0
  %v984 = vadd.f32 %v982, %v983
  %v985 = vsel %vm657, %v889, 0.0
  %v986 = vadd.f32 %v984, %v985
  %v987 = vsel %vm657, %v890, 0.0
  %v988 = vadd.f32 %v986, %v987
  %v989 = vsel %vm657, %v891, 0.0
  %v990 = vadd.f32 %v988, %v989
  %v991 = vsel %vm657, %v892, 0.0
  %v992 = vadd.f32 %v990, %v991
  %v993 = vsel %vm657, %v893, 0.0
  %v994 = vadd.f32 %v992, %v993
  %v995 = vsel %vm657, %v894, 0.0
  %v996 = vadd.f32 %v994, %v995
  %v997 = vsel %vm657, %v895, 0.0
  %v998 = vadd.f32 %v996, %v997
  %v999 = vsel %vm657, %v896, 0.0
  %v1000 = vadd.f32 %v998, %v999
  %v1001 = vsel %vm657, %v897, 0.0
  %v1002 = vadd.f32 %v1000, %v1001
  %v1003 = vsel %vm657, %v898, 0.0
  %v1004 = vadd.f32 %v1002, %v1003
  %v1005 = vsel %vm657, %v899, 0.0
  %v1006 = vadd.f32 %v1004, %v1005
  %v1007 = vsel %vm657, %v900, 0.0
  %v1008 = vadd.f32 %v1006, %v1007
  %v1009 = vsel %vm657, %v901, 0.0
  %v1010 = vadd.f32 %v1008, %v1009
  %v1011 = vsel %vm657, %v902, 0.0
  %v1012 = vadd.f32 %v1010, %v1011
  %v1013 = vsel %vm657, %v903, 0.0
  %v1014 = vadd.f32 %v1012, %v1013
  %v1015 = vsel %vm657, %v904, 0.0
  %v1016 = vadd.f32 %v1014, %v1015
  %v1017 = vsel %vm657, %v905, 0.0
  %v1018 = vadd.f32 %v1016, %v1017
  %v1019 = vsel %vm657, %v906, 0.0
  %v1020 = vadd.f32 %v1018, %v1019
  %v1021 = vsel %vm657, %v907, 0.0
  %v1022 = vadd.f32 %v1020, %v1021
  %v1023 = vsel %vm657, %v908, 0.0
  %v1024 = vadd.f32 %v1022, %v1023
  %v1025 = vsel %vm657, %v909, 0.0
  %v1026 = vadd.f32 %v1024, %v1025
  %v1027 = vsel %vm657, %v910, 0.0
  %v1028 = vadd.f32 %v1026, %v1027
  %v1029 = vsel %vm657, %v911, 0.0
  %v1030 = vadd.f32 %v1028, %v1029
  %v1031 = vsel %vm657, %v912, 0.0
  %v1032 = vadd.f32 %v1030, %v1031
  %v1033 = vsel %vm657, %v913, 0.0
  %v1034 = vadd.f32 %v1032, %v1033
  %v1035 = vsel %vm657, %v914, 0.0
  %v1036 = vadd.f32 %v1034, %v1035
  %v1037 = vsel %vm657, %v915, 0.0
  %v1038 = vadd.f32 %v1036, %v1037
  %v1039 = vsel %vm657, %v916, 0.0
  %v1040 = vadd.f32 %v1038, %v1039
  %v1041 = vsel %vm657, %v917, 0.0
  %v1042 = vadd.f32 %v1040, %v1041
  %v1043 = vsel %vm657, %v918, 0.0
  %v1044 = vadd.f32 %v1042, %v1043
  %v1045 = vsel %vm657, %v919, 0.0
  %v1046 = vadd.f32 %v1044, %v1045
  %v1047 = vrot.slane %v1046, 4
  %v1048 = vadd.f32 %v1046, %v1047
  %v1049 = vrot.slane %v1048, 2
  %v1050 = vadd.f32 %v1048, %v1049
  %v1051 = vrot.slane %v1050, 1
  %v1052 = vadd.f32 %v1050, %v1051
  %v1053 = vmul.f32 %v1052, 0.001953125
  %v1054 = vadd.f32 %v1053, 1e-05
  %v1055 = vrsqrt.pop %v1054
  %v1056 = vmul.f32 %v792, %v1055
  %v1057 = vmul.f32 %v793, %v1055
  %v1058 = vmul.f32 %v794, %v1055
  %v1059 = vmul.f32 %v795, %v1055
  %v1060 = vmul.f32 %v796, %v1055
  %v1061 = vmul.f32 %v797, %v1055
  %v1062 = vmul.f32 %v798, %v1055
  %v1063 = vmul.f32 %v799, %v1055
  %v1064 = vmul.f32 %v800, %v1055
  %v1065 = vmul.f32 %v801, %v1055
  %v1066 = vmul.f32 %v802, %v1055
  %v1067 = vmul.f32 %v803, %v1055
  %v1068 = vmul.f32 %v804, %v1055
  %v1069 = vmul.f32 %v805, %v1055
  %v1070 = vmul.f32 %v806, %v1055
  %v1071 = vmul.f32 %v807, %v1055
  %v1072 = vmul.f32 %v808, %v1055
  %v1073 = vmul.f32 %v809, %v1055
  %v1074 = vmul.f32 %v810, %v1055
  %v1075 = vmul.f32 %v811, %v1055
  %v1076 = vmul.f32 %v812, %v1055
  %v1077 = vmul.f32 %v813, %v1055
  %v1078 = vmul.f32 %v814, %v1055
  %v1079 = vmul.f32 %v815, %v1055
  %v1080 = vmul.f32 %v816, %v1055
  %v1081 = vmul.f32 %v817, %v1055
  %v1082 = vmul.f32 %v818, %v1055
  %v1083 = vmul.f32 %v819, %v1055
  %v1084 = vmul.f32 %v820, %v1055
  %v1085 = vmul.f32 %v821, %v1055
  %v1086 = vmul.f32 %v822, %v1055
  %v1087 = vmul.f32 %v823, %v1055
  %v1088 = vmul.f32 %v824, %v1055
  %v1089 = vmul.f32 %v825, %v1055
  %v1090 = vmul.f32 %v826, %v1055
  %v1091 = vmul.f32 %v827, %v1055
  %v1092 = vmul.f32 %v828, %v1055
  %v1093 = vmul.f32 %v829, %v1055
  %v1094 = vmul.f32 %v830, %v1055
  %v1095 = vmul.f32 %v831, %v1055
  %v1096 = vmul.f32 %v832, %v1055
  %v1097 = vmul.f32 %v833, %v1055
  %v1098 = vmul.f32 %v834, %v1055
  %v1099 = vmul.f32 %v835, %v1055
  %v1100 = vmul.f32 %v836, %v1055
  %v1101 = vmul.f32 %v837, %v1055
  %v1102 = vmul.f32 %v838, %v1055
  %v1103 = vmul.f32 %v839, %v1055
  %v1104 = vmul.f32 %v840, %v1055
  %v1105 = vmul.f32 %v841, %v1055
  %v1106 = vmul.f32 %v842, %v1055
  %v1107 = vmul.f32 %v843, %v1055
  %v1108 = vmul.f32 %v844, %v1055
  %v1109 = vmul.f32 %v845, %v1055
  %v1110 = vmul.f32 %v846, %v1055
  %v1111 = vmul.f32 %v847, %v1055
  %v1112 = vmul.f32 %v848, %v1055
  %v1113 = vmul.f32 %v849, %v1055
  %v1114 = vmul.f32 %v850, %v1055
  %v1115 = vmul.f32 %v851, %v1055
  %v1116 = vmul.f32 %v852, %v1055
  %v1117 = vmul.f32 %v853, %v1055
  %v1118 = vmul.f32 %v854, %v1055
  %v1119 = vmul.f32 %v855, %v1055
  %v1120 = vmax.f32 %v1056, 0.0
  %v1121 = vmax.f32 %v1057, 0.0
  %v1122 = vmax.f32 %v1058, 0.0
  %v1123 = vmax.f32 %v1059, 0.0
  %v1124 = vmax.f32 %v1060, 0.0
  %v1125 = vmax.f32 %v1061, 0.0
  %v1126 = vmax.f32 %v1062, 0.0
  %v1127 = vmax.f32 %v1063, 0.0
  %v1128 = vmax.f32 %v1064, 0.0
  %v1129 = vmax.f32 %v1065, 0.0
  %v1130 = vmax.f32 %v1066, 0.0
  %v1131 = vmax.f32 %v1067, 0.0
  %v1132 = vmax.f32 %v1068, 0.0
  %v1133 = vmax.f32 %v1069, 0.0
  %v1134 = vmax.f32 %v1070, 0.0
  %v1135 = vmax.f32 %v1071, 0.0
  %v1136 = vmax.f32 %v1072, 0.0
  %v1137 = vmax.f32 %v1073, 0.0
  %v1138 = vmax.f32 %v1074, 0.0
  %v1139 = vmax.f32 %v1075, 0.0
  %v1140 = vmax.f32 %v1076, 0.0
  %v1141 = vmax.f32 %v1077, 0.0
  %v1142 = vmax.f32 %v1078, 0.0
  %v1143 = vmax.f32 %v1079, 0.0
  %v1144 = vmax.f32 %v1080, 0.0
  %v1145 = vmax.f32 %v1081, 0.0
  %v1146 = vmax.f32 %v1082, 0.0
  %v1147 = vmax.f32 %v1083, 0.0
  %v1148 = vmax.f32 %v1084, 0.0
  %v1149 = vmax.f32 %v1085, 0.0
  %v1150 = vmax.f32 %v1086, 0.0
  %v1151 = vmax.f32 %v1087, 0.0
  %v1152 = vmax.f32 %v1088, 0.0
  %v1153 = vmax.f32 %v1089, 0.0
  %v1154 = vmax.f32 %v1090, 0.0
  %v1155 = vmax.f32 %v1091, 0.0
  %v1156 = vmax.f32 %v1092, 0.0
  %v1157 = vmax.f32 %v1093, 0.0
  %v1158 = vmax.f32 %v1094, 0.0
  %v1159 = vmax.f32 %v1095, 0.0
  %v1160 = vmax.f32 %v1096, 0.0
  %v1161 = vmax.f32 %v1097, 0.0
  %v1162 = vmax.f32 %v1098, 0.0
  %v1163 = vmax.f32 %v1099, 0.0
  %v1164 = vmax.f32 %v1100, 0.0
  %v1165 = vmax.f32 %v1101, 0.0
  %v1166 = vmax.f32 %v1102, 0.0
  %v1167 = vmax.f32 %v1103, 0.0
  %v1168 = vmax.f32 %v1104, 0.0
  %v1169 = vmax.f32 %v1105, 0.0
  %v1170 = vmax.f32 %v1106, 0.0
  %v1171 = vmax.f32 %v1107, 0.0
  %v1172 = vmax.f32 %v1108, 0.0
  %v1173 = vmax.f32 %v1109, 0.0
  %v1174 = vmax.f32 %v1110, 0.0
  %v1175 = vmax.f32 %v1111, 0.0
  %v1176 = vmax.f32 %v1112, 0.0
  %v1177 = vmax.f32 %v1113, 0.0
  %v1178 = vmax.f32 %v1114, 0.0
  %v1179 = vmax.f32 %v1115, 0.0
  %v1180 = vmax.f32 %v1116, 0.0
  %v1181 = vmax.f32 %v1117, 0.0
  %v1182 = vmax.f32 %v1118, 0.0
  %v1183 = vmax.f32 %v1119, 0.0
  %v1184 = vpack.c.bf16 %v1121, %v1120
  %v1185 = vpack.c.bf16 %v1123, %v1122
  %v1186 = vpack.c.bf16 %v1125, %v1124
  %v1187 = vpack.c.bf16 %v1127, %v1126
  %v1188 = vpack.c.bf16 %v1129, %v1128
  %v1189 = vpack.c.bf16 %v1131, %v1130
  %v1190 = vpack.c.bf16 %v1133, %v1132
  %v1191 = vpack.c.bf16 %v1135, %v1134
  %v1192 = vpack.c.bf16 %v1137, %v1136
  %v1193 = vpack.c.bf16 %v1139, %v1138
  %v1194 = vpack.c.bf16 %v1141, %v1140
  %v1195 = vpack.c.bf16 %v1143, %v1142
  %v1196 = vpack.c.bf16 %v1145, %v1144
  %v1197 = vpack.c.bf16 %v1147, %v1146
  %v1198 = vpack.c.bf16 %v1149, %v1148
  %v1199 = vpack.c.bf16 %v1151, %v1150
  %v1200 = vpack.c.bf16 %v1153, %v1152
  %v1201 = vpack.c.bf16 %v1155, %v1154
  %v1202 = vpack.c.bf16 %v1157, %v1156
  %v1203 = vpack.c.bf16 %v1159, %v1158
  %v1204 = vpack.c.bf16 %v1161, %v1160
  %v1205 = vpack.c.bf16 %v1163, %v1162
  %v1206 = vpack.c.bf16 %v1165, %v1164
  %v1207 = vpack.c.bf16 %v1167, %v1166
  %v1208 = vpack.c.bf16 %v1169, %v1168
  %v1209 = vpack.c.bf16 %v1171, %v1170
  %v1210 = vpack.c.bf16 %v1173, %v1172
  %v1211 = vpack.c.bf16 %v1175, %v1174
  %v1212 = vpack.c.bf16 %v1177, %v1176
  %v1213 = vpack.c.bf16 %v1179, %v1178
  %v1214 = vpack.c.bf16 %v1181, %v1180
  %v1215 = vpack.c.bf16 %v1183, %v1182
  %v1216 = vld [vmem:[%s4] sm:$0xf]
  %v1217 = vld [vmem:[%s5] sm:$0x1]
  %v1219 = vlaneseq
  %v1220 = vshrl.u32 %v1219, 7
  %v1221 = vsub.s32 0, %v1220
  %v1222 = vrot.slane %v1217, %v1221
  %v1225 = vsel %vm657, %v1184, 0
  %v1228 = vsel %vm657, %v1185, 0
  %v1231 = vsel %vm657, %v1186, 0
  %v1234 = vsel %vm657, %v1187, 0
  %v1237 = vsel %vm657, %v1188, 0
  %v1240 = vsel %vm657, %v1189, 0
  %v1243 = vsel %vm657, %v1190, 0
  %v1246 = vsel %vm657, %v1191, 0
  %v1249 = vsel %vm657, %v1192, 0
  %v1252 = vsel %vm657, %v1193, 0
  %v1255 = vsel %vm657, %v1194, 0
  %v1258 = vsel %vm657, %v1195, 0
  %v1261 = vsel %vm657, %v1196, 0
  %v1264 = vsel %vm657, %v1197, 0
  %v1267 = vsel %vm657, %v1198, 0
  %v1270 = vsel %vm657, %v1199, 0
  %v1273 = vsel %vm657, %v1200, 0
  %v1276 = vsel %vm657, %v1201, 0
  %v1279 = vsel %vm657, %v1202, 0
  %v1282 = vsel %vm657, %v1203, 0
  %v1285 = vsel %vm657, %v1204, 0
  %v1288 = vsel %vm657, %v1205, 0
  %v1291 = vsel %vm657, %v1206, 0
  %v1294 = vsel %vm657, %v1207, 0
  %v1297 = vsel %vm657, %v1208, 0
  %v1300 = vsel %vm657, %v1209, 0
  %v1303 = vsel %vm657, %v1210, 0
  %v1306 = vsel %vm657, %v1211, 0
  %v1309 = vsel %vm657, %v1212, 0
  %v1312 = vsel %vm657, %v1213, 0
  %v1315 = vsel %vm657, %v1214, 0
  %v1318 = vsel %vm657, %v1215, 0
  %vm1320 = vcmask 1043456
  %v1322 = vsel %vm1320, %v1216, 0
  %1324 = vmatprep.subr.bf16.mxu0 0
  %1325 = vmatpush1.bf16.msra.mxu0 0
  %1326 = vmatprep.subr.bf16.mxu0 0
  %1327 = vmatpush1.bf16.msra.mxu0 0
  %1328 = vmatprep.subr.bf16.mxu0 0
  %1329 = vmatpush1.bf16.msra.mxu0 0
  %1330 = vmatprep.subr.bf16.mxu0 0
  %1331 = vmatpush1.bf16.msra.mxu0 0
  %1332 = vmatprep.subr.bf16.mxu0 0
  %1333 = vmatpush1.bf16.msra.mxu0 0
  %1334 = vmatprep.subr.bf16.mxu0 0
  %1335 = vmatpush1.bf16.msra.mxu0 0
  %1336 = vmatprep.subr.bf16.mxu0 0
  %1337 = vmatpush1.bf16.msra.mxu0 0
  %1338 = vmatprep.subr.bf16.mxu0 0
  %1339 = vmatpush1.bf16.msra.mxu0 %v1322
  %1340 = vmatprep.subr.bf16.mxu0 0
  %1341 = vmatpush2.bf16.msra.mxu0 0
  %1342 = vmatprep.subr.bf16.mxu0 0
  %1343 = vmatpush2.bf16.msra.mxu0 0
  %1344 = vmatprep.subr.bf16.mxu0 0
  %1345 = vmatpush2.bf16.msra.mxu0 0
  %1346 = vmatprep.subr.bf16.mxu0 0
  %1347 = vmatpush2.bf16.msra.mxu0 0
  %1348 = vmatprep.subr.bf16.mxu0 0
  %1349 = vmatpush2.bf16.msra.mxu0 0
  %1350 = vmatprep.subr.bf16.mxu0 0
  %1351 = vmatpush2.bf16.msra.mxu0 0
  %1352 = vmatprep.subr.bf16.mxu0 0
  %1353 = vmatpush2.bf16.msra.mxu0 0
  %1354 = vmatprep.subr.bf16.mxu0 0
  %1355 = vmatpush2.bf16.msra.mxu0 0
  %1356 = vmatprep.mubr.bf16.mxu0 0
  %1357 = vmatmul.mubr.bf16.gmra.mxu0 %v1225
  %v1358 = vpop.f32.mrf.mxu0
  %v1359 = vadd.f32 %v1222, %v1358
  %v1360 = vpop.f32.mrf.mxu0
  %v1361 = vpop.f32.mrf.mxu0
  %v1362 = vadd.f32 %v1222, %v1361
  %v1363 = vpop.f32.mrf.mxu0
  %1364 = vmatprep.mubr.bf16.mxu0 0
  %1365 = vmatmul.mubr.bf16.gmra.mxu0 %v1228
  %v1366 = vpop.f32.mrf.mxu0
  %v1367 = vadd.f32 %v1222, %v1366
  %v1368 = vpop.f32.mrf.mxu0
  %v1369 = vpop.f32.mrf.mxu0
  %v1370 = vadd.f32 %v1222, %v1369
  %v1371 = vpop.f32.mrf.mxu0
  %1372 = vmatprep.mubr.bf16.mxu0 0
  %1373 = vmatmul.mubr.bf16.gmra.mxu0 %v1231
  %v1374 = vpop.f32.mrf.mxu0
  %v1375 = vadd.f32 %v1222, %v1374
  %v1376 = vpop.f32.mrf.mxu0
  %v1377 = vpop.f32.mrf.mxu0
  %v1378 = vadd.f32 %v1222, %v1377
  %v1379 = vpop.f32.mrf.mxu0
  %1380 = vmatprep.mubr.bf16.mxu0 0
  %1381 = vmatmul.mubr.bf16.gmra.mxu0 %v1234
  %v1382 = vpop.f32.mrf.mxu0
  %v1383 = vadd.f32 %v1222, %v1382
  %v1384 = vpop.f32.mrf.mxu0
  %v1385 = vpop.f32.mrf.mxu0
  %v1386 = vadd.f32 %v1222, %v1385
  %v1387 = vpop.f32.mrf.mxu0
  %1388 = vmatprep.mubr.bf16.mxu0 0
  %1389 = vmatmul.mubr.bf16.gmra.mxu0 %v1237
  %v1390 = vpop.f32.mrf.mxu0
  %v1391 = vadd.f32 %v1222, %v1390
  %v1392 = vpop.f32.mrf.mxu0
  %v1393 = vpop.f32.mrf.mxu0
  %v1394 = vadd.f32 %v1222, %v1393
  %v1395 = vpop.f32.mrf.mxu0
  %1396 = vmatprep.mubr.bf16.mxu0 0
  %1397 = vmatmul.mubr.bf16.gmra.mxu0 %v1240
  %v1398 = vpop.f32.mrf.mxu0
  %v1399 = vadd.f32 %v1222, %v1398
  %v1400 = vpop.f32.mrf.mxu0
  %v1401 = vpop.f32.mrf.mxu0
  %v1402 = vadd.f32 %v1222, %v1401
  %v1403 = vpop.f32.mrf.mxu0
  %1404 = vmatprep.mubr.bf16.mxu0 0
  %1405 = vmatmul.mubr.bf16.gmra.mxu0 %v1243
  %v1406 = vpop.f32.mrf.mxu0
  %v1407 = vadd.f32 %v1222, %v1406
  %v1408 = vpop.f32.mrf.mxu0
  %v1409 = vpop.f32.mrf.mxu0
  %v1410 = vadd.f32 %v1222, %v1409
  %v1411 = vpop.f32.mrf.mxu0
  %1412 = vmatprep.mubr.bf16.mxu0 0
  %1413 = vmatmul.mubr.bf16.gmra.mxu0 %v1246
  %v1414 = vpop.f32.mrf.mxu0
  %v1415 = vadd.f32 %v1222, %v1414
  %v1416 = vpop.f32.mrf.mxu0
  %v1417 = vpop.f32.mrf.mxu0
  %v1418 = vadd.f32 %v1222, %v1417
  %v1419 = vpop.f32.mrf.mxu0
  %1420 = vmatprep.mubr.bf16.mxu0 0
  %1421 = vmatmul.mubr.bf16.gmra.mxu0 %v1249
  %v1422 = vpop.f32.mrf.mxu0
  %v1423 = vadd.f32 %v1222, %v1422
  %v1424 = vpop.f32.mrf.mxu0
  %v1425 = vpop.f32.mrf.mxu0
  %v1426 = vadd.f32 %v1222, %v1425
  %v1427 = vpop.f32.mrf.mxu0
  %1428 = vmatprep.mubr.bf16.mxu0 0
  %1429 = vmatmul.mubr.bf16.gmra.mxu0 %v1252
  %v1430 = vpop.f32.mrf.mxu0
  %v1431 = vadd.f32 %v1222, %v1430
  %v1432 = vpop.f32.mrf.mxu0
  %v1433 = vpop.f32.mrf.mxu0
  %v1434 = vadd.f32 %v1222, %v1433
  %v1435 = vpop.f32.mrf.mxu0
  %1436 = vmatprep.mubr.bf16.mxu0 0
  %1437 = vmatmul.mubr.bf16.gmra.mxu0 %v1255
  %v1438 = vpop.f32.mrf.mxu0
  %v1439 = vadd.f32 %v1222, %v1438
  %v1440 = vpop.f32.mrf.mxu0
  %v1441 = vpop.f32.mrf.mxu0
  %v1442 = vadd.f32 %v1222, %v1441
  %v1443 = vpop.f32.mrf.mxu0
  %1444 = vmatprep.mubr.bf16.mxu0 0
  %1445 = vmatmul.mubr.bf16.gmra.mxu0 %v1258
  %v1446 = vpop.f32.mrf.mxu0
  %v1447 = vadd.f32 %v1222, %v1446
  %v1448 = vpop.f32.mrf.mxu0
  %v1449 = vpop.f32.mrf.mxu0
  %v1450 = vadd.f32 %v1222, %v1449
  %v1451 = vpop.f32.mrf.mxu0
  %1452 = vmatprep.mubr.bf16.mxu0 0
  %1453 = vmatmul.mubr.bf16.gmra.mxu0 %v1261
  %v1454 = vpop.f32.mrf.mxu0
  %v1455 = vadd.f32 %v1222, %v1454
  %v1456 = vpop.f32.mrf.mxu0
  %v1457 = vpop.f32.mrf.mxu0
  %v1458 = vadd.f32 %v1222, %v1457
  %v1459 = vpop.f32.mrf.mxu0
  %1460 = vmatprep.mubr.bf16.mxu0 0
  %1461 = vmatmul.mubr.bf16.gmra.mxu0 %v1264
  %v1462 = vpop.f32.mrf.mxu0
  %v1463 = vadd.f32 %v1222, %v1462
  %v1464 = vpop.f32.mrf.mxu0
  %v1465 = vpop.f32.mrf.mxu0
  %v1466 = vadd.f32 %v1222, %v1465
  %v1467 = vpop.f32.mrf.mxu0
  %1468 = vmatprep.mubr.bf16.mxu0 0
  %1469 = vmatmul.mubr.bf16.gmra.mxu0 %v1267
  %v1470 = vpop.f32.mrf.mxu0
  %v1471 = vadd.f32 %v1222, %v1470
  %v1472 = vpop.f32.mrf.mxu0
  %v1473 = vpop.f32.mrf.mxu0
  %v1474 = vadd.f32 %v1222, %v1473
  %v1475 = vpop.f32.mrf.mxu0
  %1476 = vmatprep.mubr.bf16.mxu0 0
  %1477 = vmatmul.mubr.bf16.gmra.mxu0 %v1270
  %v1478 = vpop.f32.mrf.mxu0
  %v1479 = vadd.f32 %v1222, %v1478
  %v1480 = vpop.f32.mrf.mxu0
  %v1481 = vpop.f32.mrf.mxu0
  %v1482 = vadd.f32 %v1222, %v1481
  %v1483 = vpop.f32.mrf.mxu0
  %1484 = vmatprep.mubr.bf16.mxu0 0
  %1485 = vmatmul.mubr.bf16.gmra.mxu0 %v1273
  %v1486 = vpop.f32.mrf.mxu0
  %v1487 = vadd.f32 %v1222, %v1486
  %v1488 = vpop.f32.mrf.mxu0
  %v1489 = vpop.f32.mrf.mxu0
  %v1490 = vadd.f32 %v1222, %v1489
  %v1491 = vpop.f32.mrf.mxu0
  %1492 = vmatprep.mubr.bf16.mxu0 0
  %1493 = vmatmul.mubr.bf16.gmra.mxu0 %v1276
  %v1494 = vpop.f32.mrf.mxu0
  %v1495 = vadd.f32 %v1222, %v1494
  %v1496 = vpop.f32.mrf.mxu0
  %v1497 = vpop.f32.mrf.mxu0
  %v1498 = vadd.f32 %v1222, %v1497
  %v1499 = vpop.f32.mrf.mxu0
  %1500 = vmatprep.mubr.bf16.mxu0 0
  %1501 = vmatmul.mubr.bf16.gmra.mxu0 %v1279
  %v1502 = vpop.f32.mrf.mxu0
  %v1503 = vadd.f32 %v1222, %v1502
  %v1504 = vpop.f32.mrf.mxu0
  %v1505 = vpop.f32.mrf.mxu0
  %v1506 = vadd.f32 %v1222, %v1505
  %v1507 = vpop.f32.mrf.mxu0
  %1508 = vmatprep.mubr.bf16.mxu0 0
  %1509 = vmatmul.mubr.bf16.gmra.mxu0 %v1282
  %v1510 = vpop.f32.mrf.mxu0
  %v1511 = vadd.f32 %v1222, %v1510
  %v1512 = vpop.f32.mrf.mxu0
  %v1513 = vpop.f32.mrf.mxu0
  %v1514 = vadd.f32 %v1222, %v1513
  %v1515 = vpop.f32.mrf.mxu0
  %1516 = vmatprep.mubr.bf16.mxu0 0
  %1517 = vmatmul.mubr.bf16.gmra.mxu0 %v1285
  %v1518 = vpop.f32.mrf.mxu0
  %v1519 = vadd.f32 %v1222, %v1518
  %v1520 = vpop.f32.mrf.mxu0
  %v1521 = vpop.f32.mrf.mxu0
  %v1522 = vadd.f32 %v1222, %v1521
  %v1523 = vpop.f32.mrf.mxu0
  %1524 = vmatprep.mubr.bf16.mxu0 0
  %1525 = vmatmul.mubr.bf16.gmra.mxu0 %v1288
  %v1526 = vpop.f32.mrf.mxu0
  %v1527 = vadd.f32 %v1222, %v1526
  %v1528 = vpop.f32.mrf.mxu0
  %v1529 = vpop.f32.mrf.mxu0
  %v1530 = vadd.f32 %v1222, %v1529
  %v1531 = vpop.f32.mrf.mxu0
  %1532 = vmatprep.mubr.bf16.mxu0 0
  %1533 = vmatmul.mubr.bf16.gmra.mxu0 %v1291
  %v1534 = vpop.f32.mrf.mxu0
  %v1535 = vadd.f32 %v1222, %v1534
  %v1536 = vpop.f32.mrf.mxu0
  %v1537 = vpop.f32.mrf.mxu0
  %v1538 = vadd.f32 %v1222, %v1537
  %v1539 = vpop.f32.mrf.mxu0
  %1540 = vmatprep.mubr.bf16.mxu0 0
  %1541 = vmatmul.mubr.bf16.gmra.mxu0 %v1294
  %v1542 = vpop.f32.mrf.mxu0
  %v1543 = vadd.f32 %v1222, %v1542
  %v1544 = vpop.f32.mrf.mxu0
  %v1545 = vpop.f32.mrf.mxu0
  %v1546 = vadd.f32 %v1222, %v1545
  %v1547 = vpop.f32.mrf.mxu0
  %1548 = vmatprep.mubr.bf16.mxu0 0
  %1549 = vmatmul.mubr.bf16.gmra.mxu0 %v1297
  %v1550 = vpop.f32.mrf.mxu0
  %v1551 = vadd.f32 %v1222, %v1550
  %v1552 = vpop.f32.mrf.mxu0
  %v1553 = vpop.f32.mrf.mxu0
  %v1554 = vadd.f32 %v1222, %v1553
  %v1555 = vpop.f32.mrf.mxu0
  %1556 = vmatprep.mubr.bf16.mxu0 0
  %1557 = vmatmul.mubr.bf16.gmra.mxu0 %v1300
  %v1558 = vpop.f32.mrf.mxu0
  %v1559 = vadd.f32 %v1222, %v1558
  %v1560 = vpop.f32.mrf.mxu0
  %v1561 = vpop.f32.mrf.mxu0
  %v1562 = vadd.f32 %v1222, %v1561
  %v1563 = vpop.f32.mrf.mxu0
  %1564 = vmatprep.mubr.bf16.mxu0 0
  %1565 = vmatmul.mubr.bf16.gmra.mxu0 %v1303
  %v1566 = vpop.f32.mrf.mxu0
  %v1567 = vadd.f32 %v1222, %v1566
  %v1568 = vpop.f32.mrf.mxu0
  %v1569 = vpop.f32.mrf.mxu0
  %v1570 = vadd.f32 %v1222, %v1569
  %v1571 = vpop.f32.mrf.mxu0
  %1572 = vmatprep.mubr.bf16.mxu0 0
  %1573 = vmatmul.mubr.bf16.gmra.mxu0 %v1306
  %v1574 = vpop.f32.mrf.mxu0
  %v1575 = vadd.f32 %v1222, %v1574
  %v1576 = vpop.f32.mrf.mxu0
  %v1577 = vpop.f32.mrf.mxu0
  %v1578 = vadd.f32 %v1222, %v1577
  %v1579 = vpop.f32.mrf.mxu0
  %1580 = vmatprep.mubr.bf16.mxu0 0
  %1581 = vmatmul.mubr.bf16.gmra.mxu0 %v1309
  %v1582 = vpop.f32.mrf.mxu0
  %v1583 = vadd.f32 %v1222, %v1582
  %v1584 = vpop.f32.mrf.mxu0
  %v1585 = vpop.f32.mrf.mxu0
  %v1586 = vadd.f32 %v1222, %v1585
  %v1587 = vpop.f32.mrf.mxu0
  %1588 = vmatprep.mubr.bf16.mxu0 0
  %1589 = vmatmul.mubr.bf16.gmra.mxu0 %v1312
  %v1590 = vpop.f32.mrf.mxu0
  %v1591 = vadd.f32 %v1222, %v1590
  %v1592 = vpop.f32.mrf.mxu0
  %v1593 = vpop.f32.mrf.mxu0
  %v1594 = vadd.f32 %v1222, %v1593
  %v1595 = vpop.f32.mrf.mxu0
  %1596 = vmatprep.mubr.bf16.mxu0 0
  %1597 = vmatmul.mubr.bf16.gmra.mxu0 %v1315
  %v1598 = vpop.f32.mrf.mxu0
  %v1599 = vadd.f32 %v1222, %v1598
  %v1600 = vpop.f32.mrf.mxu0
  %v1601 = vpop.f32.mrf.mxu0
  %v1602 = vadd.f32 %v1222, %v1601
  %v1603 = vpop.f32.mrf.mxu0
  %1604 = vmatprep.mubr.bf16.mxu0 0
  %1605 = vmatmul.mubr.bf16.gmra.mxu0 %v1318
  %v1606 = vpop.f32.mrf.mxu0
  %v1607 = vadd.f32 %v1222, %v1606
  %v1608 = vpop.f32.mrf.mxu0
  %v1609 = vpop.f32.mrf.mxu0
  %v1610 = vadd.f32 %v1222, %v1609
  %v1611 = vpop.f32.mrf.mxu0
  %1612 = vdwg.mxu0
  %vm1613 = vcmask 130048
  %v1614 = vsel %vm1613, %v1359, 0.0
  %v1615 = vsel %vm1613, %v1362, 0.0
  %v1616 = vadd.f32 %v1614, %v1615
  %v1617 = vsel %vm1613, %v1367, 0.0
  %v1618 = vadd.f32 %v1616, %v1617
  %v1619 = vsel %vm1613, %v1370, 0.0
  %v1620 = vadd.f32 %v1618, %v1619
  %v1621 = vsel %vm1613, %v1375, 0.0
  %v1622 = vadd.f32 %v1620, %v1621
  %v1623 = vsel %vm1613, %v1378, 0.0
  %v1624 = vadd.f32 %v1622, %v1623
  %v1625 = vsel %vm1613, %v1383, 0.0
  %v1626 = vadd.f32 %v1624, %v1625
  %v1627 = vsel %vm1613, %v1386, 0.0
  %v1628 = vadd.f32 %v1626, %v1627
  %v1629 = vsel %vm1613, %v1391, 0.0
  %v1630 = vadd.f32 %v1628, %v1629
  %v1631 = vsel %vm1613, %v1394, 0.0
  %v1632 = vadd.f32 %v1630, %v1631
  %v1633 = vsel %vm1613, %v1399, 0.0
  %v1634 = vadd.f32 %v1632, %v1633
  %v1635 = vsel %vm1613, %v1402, 0.0
  %v1636 = vadd.f32 %v1634, %v1635
  %v1637 = vsel %vm1613, %v1407, 0.0
  %v1638 = vadd.f32 %v1636, %v1637
  %v1639 = vsel %vm1613, %v1410, 0.0
  %v1640 = vadd.f32 %v1638, %v1639
  %v1641 = vsel %vm1613, %v1415, 0.0
  %v1642 = vadd.f32 %v1640, %v1641
  %v1643 = vsel %vm1613, %v1418, 0.0
  %v1644 = vadd.f32 %v1642, %v1643
  %v1645 = vsel %vm1613, %v1423, 0.0
  %v1646 = vadd.f32 %v1644, %v1645
  %v1647 = vsel %vm1613, %v1426, 0.0
  %v1648 = vadd.f32 %v1646, %v1647
  %v1649 = vsel %vm1613, %v1431, 0.0
  %v1650 = vadd.f32 %v1648, %v1649
  %v1651 = vsel %vm1613, %v1434, 0.0
  %v1652 = vadd.f32 %v1650, %v1651
  %v1653 = vsel %vm1613, %v1439, 0.0
  %v1654 = vadd.f32 %v1652, %v1653
  %v1655 = vsel %vm1613, %v1442, 0.0
  %v1656 = vadd.f32 %v1654, %v1655
  %v1657 = vsel %vm1613, %v1447, 0.0
  %v1658 = vadd.f32 %v1656, %v1657
  %v1659 = vsel %vm1613, %v1450, 0.0
  %v1660 = vadd.f32 %v1658, %v1659
  %v1661 = vsel %vm1613, %v1455, 0.0
  %v1662 = vadd.f32 %v1660, %v1661
  %v1663 = vsel %vm1613, %v1458, 0.0
  %v1664 = vadd.f32 %v1662, %v1663
  %v1665 = vsel %vm1613, %v1463, 0.0
  %v1666 = vadd.f32 %v1664, %v1665
  %v1667 = vsel %vm1613, %v1466, 0.0
  %v1668 = vadd.f32 %v1666, %v1667
  %v1669 = vsel %vm1613, %v1471, 0.0
  %v1670 = vadd.f32 %v1668, %v1669
  %v1671 = vsel %vm1613, %v1474, 0.0
  %v1672 = vadd.f32 %v1670, %v1671
  %v1673 = vsel %vm1613, %v1479, 0.0
  %v1674 = vadd.f32 %v1672, %v1673
  %v1675 = vsel %vm1613, %v1482, 0.0
  %v1676 = vadd.f32 %v1674, %v1675
  %v1677 = vsel %vm1613, %v1487, 0.0
  %v1678 = vadd.f32 %v1676, %v1677
  %v1679 = vsel %vm1613, %v1490, 0.0
  %v1680 = vadd.f32 %v1678, %v1679
  %v1681 = vsel %vm1613, %v1495, 0.0
  %v1682 = vadd.f32 %v1680, %v1681
  %v1683 = vsel %vm1613, %v1498, 0.0
  %v1684 = vadd.f32 %v1682, %v1683
  %v1685 = vsel %vm1613, %v1503, 0.0
  %v1686 = vadd.f32 %v1684, %v1685
  %v1687 = vsel %vm1613, %v1506, 0.0
  %v1688 = vadd.f32 %v1686, %v1687
  %v1689 = vsel %vm1613, %v1511, 0.0
  %v1690 = vadd.f32 %v1688, %v1689
  %v1691 = vsel %vm1613, %v1514, 0.0
  %v1692 = vadd.f32 %v1690, %v1691
  %v1693 = vsel %vm1613, %v1519, 0.0
  %v1694 = vadd.f32 %v1692, %v1693
  %v1695 = vsel %vm1613, %v1522, 0.0
  %v1696 = vadd.f32 %v1694, %v1695
  %v1697 = vsel %vm1613, %v1527, 0.0
  %v1698 = vadd.f32 %v1696, %v1697
  %v1699 = vsel %vm1613, %v1530, 0.0
  %v1700 = vadd.f32 %v1698, %v1699
  %v1701 = vsel %vm1613, %v1535, 0.0
  %v1702 = vadd.f32 %v1700, %v1701
  %v1703 = vsel %vm1613, %v1538, 0.0
  %v1704 = vadd.f32 %v1702, %v1703
  %v1705 = vsel %vm1613, %v1543, 0.0
  %v1706 = vadd.f32 %v1704, %v1705
  %v1707 = vsel %vm1613, %v1546, 0.0
  %v1708 = vadd.f32 %v1706, %v1707
  %v1709 = vsel %vm1613, %v1551, 0.0
  %v1710 = vadd.f32 %v1708, %v1709
  %v1711 = vsel %vm1613, %v1554, 0.0
  %v1712 = vadd.f32 %v1710, %v1711
  %v1713 = vsel %vm1613, %v1559, 0.0
  %v1714 = vadd.f32 %v1712, %v1713
  %v1715 = vsel %vm1613, %v1562, 0.0
  %v1716 = vadd.f32 %v1714, %v1715
  %v1717 = vsel %vm1613, %v1567, 0.0
  %v1718 = vadd.f32 %v1716, %v1717
  %v1719 = vsel %vm1613, %v1570, 0.0
  %v1720 = vadd.f32 %v1718, %v1719
  %v1721 = vsel %vm1613, %v1575, 0.0
  %v1722 = vadd.f32 %v1720, %v1721
  %v1723 = vsel %vm1613, %v1578, 0.0
  %v1724 = vadd.f32 %v1722, %v1723
  %v1725 = vsel %vm1613, %v1583, 0.0
  %v1726 = vadd.f32 %v1724, %v1725
  %v1727 = vsel %vm1613, %v1586, 0.0
  %v1728 = vadd.f32 %v1726, %v1727
  %v1729 = vsel %vm1613, %v1591, 0.0
  %v1730 = vadd.f32 %v1728, %v1729
  %v1731 = vsel %vm1613, %v1594, 0.0
  %v1732 = vadd.f32 %v1730, %v1731
  %v1733 = vsel %vm1613, %v1599, 0.0
  %v1734 = vadd.f32 %v1732, %v1733
  %v1735 = vsel %vm1613, %v1602, 0.0
  %v1736 = vadd.f32 %v1734, %v1735
  %v1737 = vsel %vm1613, %v1607, 0.0
  %v1738 = vadd.f32 %v1736, %v1737
  %v1739 = vsel %vm1613, %v1610, 0.0
  %v1740 = vadd.f32 %v1738, %v1739
  %v1741 = vrot.slane %v1740, 4
  %v1742 = vadd.f32 %v1740, %v1741
  %v1743 = vrot.slane %v1742, 2
  %v1744 = vadd.f32 %v1742, %v1743
  %v1745 = vrot.slane %v1744, 1
  %v1746 = vadd.f32 %v1744, %v1745
  %v1747 = vmul.f32 %v1746, 0.001953125
  %v1748 = vsub.f32 %v1359, %v1747
  %v1749 = vsub.f32 %v1362, %v1747
  %v1750 = vsub.f32 %v1367, %v1747
  %v1751 = vsub.f32 %v1370, %v1747
  %v1752 = vsub.f32 %v1375, %v1747
  %v1753 = vsub.f32 %v1378, %v1747
  %v1754 = vsub.f32 %v1383, %v1747
  %v1755 = vsub.f32 %v1386, %v1747
  %v1756 = vsub.f32 %v1391, %v1747
  %v1757 = vsub.f32 %v1394, %v1747
  %v1758 = vsub.f32 %v1399, %v1747
  %v1759 = vsub.f32 %v1402, %v1747
  %v1760 = vsub.f32 %v1407, %v1747
  %v1761 = vsub.f32 %v1410, %v1747
  %v1762 = vsub.f32 %v1415, %v1747
  %v1763 = vsub.f32 %v1418, %v1747
  %v1764 = vsub.f32 %v1423, %v1747
  %v1765 = vsub.f32 %v1426, %v1747
  %v1766 = vsub.f32 %v1431, %v1747
  %v1767 = vsub.f32 %v1434, %v1747
  %v1768 = vsub.f32 %v1439, %v1747
  %v1769 = vsub.f32 %v1442, %v1747
  %v1770 = vsub.f32 %v1447, %v1747
  %v1771 = vsub.f32 %v1450, %v1747
  %v1772 = vsub.f32 %v1455, %v1747
  %v1773 = vsub.f32 %v1458, %v1747
  %v1774 = vsub.f32 %v1463, %v1747
  %v1775 = vsub.f32 %v1466, %v1747
  %v1776 = vsub.f32 %v1471, %v1747
  %v1777 = vsub.f32 %v1474, %v1747
  %v1778 = vsub.f32 %v1479, %v1747
  %v1779 = vsub.f32 %v1482, %v1747
  %v1780 = vsub.f32 %v1487, %v1747
  %v1781 = vsub.f32 %v1490, %v1747
  %v1782 = vsub.f32 %v1495, %v1747
  %v1783 = vsub.f32 %v1498, %v1747
  %v1784 = vsub.f32 %v1503, %v1747
  %v1785 = vsub.f32 %v1506, %v1747
  %v1786 = vsub.f32 %v1511, %v1747
  %v1787 = vsub.f32 %v1514, %v1747
  %v1788 = vsub.f32 %v1519, %v1747
  %v1789 = vsub.f32 %v1522, %v1747
  %v1790 = vsub.f32 %v1527, %v1747
  %v1791 = vsub.f32 %v1530, %v1747
  %v1792 = vsub.f32 %v1535, %v1747
  %v1793 = vsub.f32 %v1538, %v1747
  %v1794 = vsub.f32 %v1543, %v1747
  %v1795 = vsub.f32 %v1546, %v1747
  %v1796 = vsub.f32 %v1551, %v1747
  %v1797 = vsub.f32 %v1554, %v1747
  %v1798 = vsub.f32 %v1559, %v1747
  %v1799 = vsub.f32 %v1562, %v1747
  %v1800 = vsub.f32 %v1567, %v1747
  %v1801 = vsub.f32 %v1570, %v1747
  %v1802 = vsub.f32 %v1575, %v1747
  %v1803 = vsub.f32 %v1578, %v1747
  %v1804 = vsub.f32 %v1583, %v1747
  %v1805 = vsub.f32 %v1586, %v1747
  %v1806 = vsub.f32 %v1591, %v1747
  %v1807 = vsub.f32 %v1594, %v1747
  %v1808 = vsub.f32 %v1599, %v1747
  %v1809 = vsub.f32 %v1602, %v1747
  %v1810 = vsub.f32 %v1607, %v1747
  %v1811 = vsub.f32 %v1610, %v1747
  %v1812 = vmul.f32 %v1748, %v1748
  %v1813 = vmul.f32 %v1749, %v1749
  %v1814 = vmul.f32 %v1750, %v1750
  %v1815 = vmul.f32 %v1751, %v1751
  %v1816 = vmul.f32 %v1752, %v1752
  %v1817 = vmul.f32 %v1753, %v1753
  %v1818 = vmul.f32 %v1754, %v1754
  %v1819 = vmul.f32 %v1755, %v1755
  %v1820 = vmul.f32 %v1756, %v1756
  %v1821 = vmul.f32 %v1757, %v1757
  %v1822 = vmul.f32 %v1758, %v1758
  %v1823 = vmul.f32 %v1759, %v1759
  %v1824 = vmul.f32 %v1760, %v1760
  %v1825 = vmul.f32 %v1761, %v1761
  %v1826 = vmul.f32 %v1762, %v1762
  %v1827 = vmul.f32 %v1763, %v1763
  %v1828 = vmul.f32 %v1764, %v1764
  %v1829 = vmul.f32 %v1765, %v1765
  %v1830 = vmul.f32 %v1766, %v1766
  %v1831 = vmul.f32 %v1767, %v1767
  %v1832 = vmul.f32 %v1768, %v1768
  %v1833 = vmul.f32 %v1769, %v1769
  %v1834 = vmul.f32 %v1770, %v1770
  %v1835 = vmul.f32 %v1771, %v1771
  %v1836 = vmul.f32 %v1772, %v1772
  %v1837 = vmul.f32 %v1773, %v1773
  %v1838 = vmul.f32 %v1774, %v1774
  %v1839 = vmul.f32 %v1775, %v1775
  %v1840 = vmul.f32 %v1776, %v1776
  %v1841 = vmul.f32 %v1777, %v1777
  %v1842 = vmul.f32 %v1778, %v1778
  %v1843 = vmul.f32 %v1779, %v1779
  %v1844 = vmul.f32 %v1780, %v1780
  %v1845 = vmul.f32 %v1781, %v1781
  %v1846 = vmul.f32 %v1782, %v1782
  %v1847 = vmul.f32 %v1783, %v1783
  %v1848 = vmul.f32 %v1784, %v1784
  %v1849 = vmul.f32 %v1785, %v1785
  %v1850 = vmul.f32 %v1786, %v1786
  %v1851 = vmul.f32 %v1787, %v1787
  %v1852 = vmul.f32 %v1788, %v1788
  %v1853 = vmul.f32 %v1789, %v1789
  %v1854 = vmul.f32 %v1790, %v1790
  %v1855 = vmul.f32 %v1791, %v1791
  %v1856 = vmul.f32 %v1792, %v1792
  %v1857 = vmul.f32 %v1793, %v1793
  %v1858 = vmul.f32 %v1794, %v1794
  %v1859 = vmul.f32 %v1795, %v1795
  %v1860 = vmul.f32 %v1796, %v1796
  %v1861 = vmul.f32 %v1797, %v1797
  %v1862 = vmul.f32 %v1798, %v1798
  %v1863 = vmul.f32 %v1799, %v1799
  %v1864 = vmul.f32 %v1800, %v1800
  %v1865 = vmul.f32 %v1801, %v1801
  %v1866 = vmul.f32 %v1802, %v1802
  %v1867 = vmul.f32 %v1803, %v1803
  %v1868 = vmul.f32 %v1804, %v1804
  %v1869 = vmul.f32 %v1805, %v1805
  %v1870 = vmul.f32 %v1806, %v1806
  %v1871 = vmul.f32 %v1807, %v1807
  %v1872 = vmul.f32 %v1808, %v1808
  %v1873 = vmul.f32 %v1809, %v1809
  %v1874 = vmul.f32 %v1810, %v1810
  %v1875 = vmul.f32 %v1811, %v1811
  %v1876 = vsel %vm1613, %v1812, 0.0
  %v1877 = vsel %vm1613, %v1813, 0.0
  %v1878 = vadd.f32 %v1876, %v1877
  %v1879 = vsel %vm1613, %v1814, 0.0
  %v1880 = vadd.f32 %v1878, %v1879
  %v1881 = vsel %vm1613, %v1815, 0.0
  %v1882 = vadd.f32 %v1880, %v1881
  %v1883 = vsel %vm1613, %v1816, 0.0
  %v1884 = vadd.f32 %v1882, %v1883
  %v1885 = vsel %vm1613, %v1817, 0.0
  %v1886 = vadd.f32 %v1884, %v1885
  %v1887 = vsel %vm1613, %v1818, 0.0
  %v1888 = vadd.f32 %v1886, %v1887
  %v1889 = vsel %vm1613, %v1819, 0.0
  %v1890 = vadd.f32 %v1888, %v1889
  %v1891 = vsel %vm1613, %v1820, 0.0
  %v1892 = vadd.f32 %v1890, %v1891
  %v1893 = vsel %vm1613, %v1821, 0.0
  %v1894 = vadd.f32 %v1892, %v1893
  %v1895 = vsel %vm1613, %v1822, 0.0
  %v1896 = vadd.f32 %v1894, %v1895
  %v1897 = vsel %vm1613, %v1823, 0.0
  %v1898 = vadd.f32 %v1896, %v1897
  %v1899 = vsel %vm1613, %v1824, 0.0
  %v1900 = vadd.f32 %v1898, %v1899
  %v1901 = vsel %vm1613, %v1825, 0.0
  %v1902 = vadd.f32 %v1900, %v1901
  %v1903 = vsel %vm1613, %v1826, 0.0
  %v1904 = vadd.f32 %v1902, %v1903
  %v1905 = vsel %vm1613, %v1827, 0.0
  %v1906 = vadd.f32 %v1904, %v1905
  %v1907 = vsel %vm1613, %v1828, 0.0
  %v1908 = vadd.f32 %v1906, %v1907
  %v1909 = vsel %vm1613, %v1829, 0.0
  %v1910 = vadd.f32 %v1908, %v1909
  %v1911 = vsel %vm1613, %v1830, 0.0
  %v1912 = vadd.f32 %v1910, %v1911
  %v1913 = vsel %vm1613, %v1831, 0.0
  %v1914 = vadd.f32 %v1912, %v1913
  %v1915 = vsel %vm1613, %v1832, 0.0
  %v1916 = vadd.f32 %v1914, %v1915
  %v1917 = vsel %vm1613, %v1833, 0.0
  %v1918 = vadd.f32 %v1916, %v1917
  %v1919 = vsel %vm1613, %v1834, 0.0
  %v1920 = vadd.f32 %v1918, %v1919
  %v1921 = vsel %vm1613, %v1835, 0.0
  %v1922 = vadd.f32 %v1920, %v1921
  %v1923 = vsel %vm1613, %v1836, 0.0
  %v1924 = vadd.f32 %v1922, %v1923
  %v1925 = vsel %vm1613, %v1837, 0.0
  %v1926 = vadd.f32 %v1924, %v1925
  %v1927 = vsel %vm1613, %v1838, 0.0
  %v1928 = vadd.f32 %v1926, %v1927
  %v1929 = vsel %vm1613, %v1839, 0.0
  %v1930 = vadd.f32 %v1928, %v1929
  %v1931 = vsel %vm1613, %v1840, 0.0
  %v1932 = vadd.f32 %v1930, %v1931
  %v1933 = vsel %vm1613, %v1841, 0.0
  %v1934 = vadd.f32 %v1932, %v1933
  %v1935 = vsel %vm1613, %v1842, 0.0
  %v1936 = vadd.f32 %v1934, %v1935
  %v1937 = vsel %vm1613, %v1843, 0.0
  %v1938 = vadd.f32 %v1936, %v1937
  %v1939 = vsel %vm1613, %v1844, 0.0
  %v1940 = vadd.f32 %v1938, %v1939
  %v1941 = vsel %vm1613, %v1845, 0.0
  %v1942 = vadd.f32 %v1940, %v1941
  %v1943 = vsel %vm1613, %v1846, 0.0
  %v1944 = vadd.f32 %v1942, %v1943
  %v1945 = vsel %vm1613, %v1847, 0.0
  %v1946 = vadd.f32 %v1944, %v1945
  %v1947 = vsel %vm1613, %v1848, 0.0
  %v1948 = vadd.f32 %v1946, %v1947
  %v1949 = vsel %vm1613, %v1849, 0.0
  %v1950 = vadd.f32 %v1948, %v1949
  %v1951 = vsel %vm1613, %v1850, 0.0
  %v1952 = vadd.f32 %v1950, %v1951
  %v1953 = vsel %vm1613, %v1851, 0.0
  %v1954 = vadd.f32 %v1952, %v1953
  %v1955 = vsel %vm1613, %v1852, 0.0
  %v1956 = vadd.f32 %v1954, %v1955
  %v1957 = vsel %vm1613, %v1853, 0.0
  %v1958 = vadd.f32 %v1956, %v1957
  %v1959 = vsel %vm1613, %v1854, 0.0
  %v1960 = vadd.f32 %v1958, %v1959
  %v1961 = vsel %vm1613, %v1855, 0.0
  %v1962 = vadd.f32 %v1960, %v1961
  %v1963 = vsel %vm1613, %v1856, 0.0
  %v1964 = vadd.f32 %v1962, %v1963
  %v1965 = vsel %vm1613, %v1857, 0.0
  %v1966 = vadd.f32 %v1964, %v1965
  %v1967 = vsel %vm1613, %v1858, 0.0
  %v1968 = vadd.f32 %v1966, %v1967
  %v1969 = vsel %vm1613, %v1859, 0.0
  %v1970 = vadd.f32 %v1968, %v1969
  %v1971 = vsel %vm1613, %v1860, 0.0
  %v1972 = vadd.f32 %v1970, %v1971
  %v1973 = vsel %vm1613, %v1861, 0.0
  %v1974 = vadd.f32 %v1972, %v1973
  %v1975 = vsel %vm1613, %v1862, 0.0
  %v1976 = vadd.f32 %v1974, %v1975
  %v1977 = vsel %vm1613, %v1863, 0.0
  %v1978 = vadd.f32 %v1976, %v1977
  %v1979 = vsel %vm1613, %v1864, 0.0
  %v1980 = vadd.f32 %v1978, %v1979
  %v1981 = vsel %vm1613, %v1865, 0.0
  %v1982 = vadd.f32 %v1980, %v1981
  %v1983 = vsel %vm1613, %v1866, 0.0
  %v1984 = vadd.f32 %v1982, %v1983
  %v1985 = vsel %vm1613, %v1867, 0.0
  %v1986 = vadd.f32 %v1984, %v1985
  %v1987 = vsel %vm1613, %v1868, 0.0
  %v1988 = vadd.f32 %v1986, %v1987
  %v1989 = vsel %vm1613, %v1869, 0.0
  %v1990 = vadd.f32 %v1988, %v1989
  %v1991 = vsel %vm1613, %v1870, 0.0
  %v1992 = vadd.f32 %v1990, %v1991
  %v1993 = vsel %vm1613, %v1871, 0.0
  %v1994 = vadd.f32 %v1992, %v1993
  %v1995 = vsel %vm1613, %v1872, 0.0
  %v1996 = vadd.f32 %v1994, %v1995
  %v1997 = vsel %vm1613, %v1873, 0.0
  %v1998 = vadd.f32 %v1996, %v1997
  %v1999 = vsel %vm1613, %v1874, 0.0
  %v2000 = vadd.f32 %v1998, %v1999
  %v2001 = vsel %vm1613, %v1875, 0.0
  %v2002 = vadd.f32 %v2000, %v2001
  %v2003 = vrot.slane %v2002, 4
  %v2004 = vadd.f32 %v2002, %v2003
  %v2005 = vrot.slane %v2004, 2
  %v2006 = vadd.f32 %v2004, %v2005
  %v2007 = vrot.slane %v2006, 1
  %v2008 = vadd.f32 %v2006, %v2007
  %v2009 = vmul.f32 %v2008, 0.001953125
  %v2010 = vadd.f32 %v2009, 1e-05
  %v2011 = vrsqrt.pop %v2010
  %v2012 = vmul.f32 %v1748, %v2011
  %v2013 = vmul.f32 %v1749, %v2011
  %v2014 = vmul.f32 %v1750, %v2011
  %v2015 = vmul.f32 %v1751, %v2011
  %v2016 = vmul.f32 %v1752, %v2011
  %v2017 = vmul.f32 %v1753, %v2011
  %v2018 = vmul.f32 %v1754, %v2011
  %v2019 = vmul.f32 %v1755, %v2011
  %v2020 = vmul.f32 %v1756, %v2011
  %v2021 = vmul.f32 %v1757, %v2011
  %v2022 = vmul.f32 %v1758, %v2011
  %v2023 = vmul.f32 %v1759, %v2011
  %v2024 = vmul.f32 %v1760, %v2011
  %v2025 = vmul.f32 %v1761, %v2011
  %v2026 = vmul.f32 %v1762, %v2011
  %v2027 = vmul.f32 %v1763, %v2011
  %v2028 = vmul.f32 %v1764, %v2011
  %v2029 = vmul.f32 %v1765, %v2011
  %v2030 = vmul.f32 %v1766, %v2011
  %v2031 = vmul.f32 %v1767, %v2011
  %v2032 = vmul.f32 %v1768, %v2011
  %v2033 = vmul.f32 %v1769, %v2011
  %v2034 = vmul.f32 %v1770, %v2011
  %v2035 = vmul.f32 %v1771, %v2011
  %v2036 = vmul.f32 %v1772, %v2011
  %v2037 = vmul.f32 %v1773, %v2011
  %v2038 = vmul.f32 %v1774, %v2011
  %v2039 = vmul.f32 %v1775, %v2011
  %v2040 = vmul.f32 %v1776, %v2011
  %v2041 = vmul.f32 %v1777, %v2011
  %v2042 = vmul.f32 %v1778, %v2011
  %v2043 = vmul.f32 %v1779, %v2011
  %v2044 = vmul.f32 %v1780, %v2011
  %v2045 = vmul.f32 %v1781, %v2011
  %v2046 = vmul.f32 %v1782, %v2011
  %v2047 = vmul.f32 %v1783, %v2011
  %v2048 = vmul.f32 %v1784, %v2011
  %v2049 = vmul.f32 %v1785, %v2011
  %v2050 = vmul.f32 %v1786, %v2011
  %v2051 = vmul.f32 %v1787, %v2011
  %v2052 = vmul.f32 %v1788, %v2011
  %v2053 = vmul.f32 %v1789, %v2011
  %v2054 = vmul.f32 %v1790, %v2011
  %v2055 = vmul.f32 %v1791, %v2011
  %v2056 = vmul.f32 %v1792, %v2011
  %v2057 = vmul.f32 %v1793, %v2011
  %v2058 = vmul.f32 %v1794, %v2011
  %v2059 = vmul.f32 %v1795, %v2011
  %v2060 = vmul.f32 %v1796, %v2011
  %v2061 = vmul.f32 %v1797, %v2011
  %v2062 = vmul.f32 %v1798, %v2011
  %v2063 = vmul.f32 %v1799, %v2011
  %v2064 = vmul.f32 %v1800, %v2011
  %v2065 = vmul.f32 %v1801, %v2011
  %v2066 = vmul.f32 %v1802, %v2011
  %v2067 = vmul.f32 %v1803, %v2011
  %v2068 = vmul.f32 %v1804, %v2011
  %v2069 = vmul.f32 %v1805, %v2011
  %v2070 = vmul.f32 %v1806, %v2011
  %v2071 = vmul.f32 %v1807, %v2011
  %v2072 = vmul.f32 %v1808, %v2011
  %v2073 = vmul.f32 %v1809, %v2011
  %v2074 = vmul.f32 %v1810, %v2011
  %v2075 = vmul.f32 %v1811, %v2011
  %v2076 = vmax.f32 %v2012, 0.0
  %v2077 = vmax.f32 %v2013, 0.0
  %v2078 = vmax.f32 %v2014, 0.0
  %v2079 = vmax.f32 %v2015, 0.0
  %v2080 = vmax.f32 %v2016, 0.0
  %v2081 = vmax.f32 %v2017, 0.0
  %v2082 = vmax.f32 %v2018, 0.0
  %v2083 = vmax.f32 %v2019, 0.0
  %v2084 = vmax.f32 %v2020, 0.0
  %v2085 = vmax.f32 %v2021, 0.0
  %v2086 = vmax.f32 %v2022, 0.0
  %v2087 = vmax.f32 %v2023, 0.0
  %v2088 = vmax.f32 %v2024, 0.0
  %v2089 = vmax.f32 %v2025, 0.0
  %v2090 = vmax.f32 %v2026, 0.0
  %v2091 = vmax.f32 %v2027, 0.0
  %v2092 = vmax.f32 %v2028, 0.0
  %v2093 = vmax.f32 %v2029, 0.0
  %v2094 = vmax.f32 %v2030, 0.0
  %v2095 = vmax.f32 %v2031, 0.0
  %v2096 = vmax.f32 %v2032, 0.0
  %v2097 = vmax.f32 %v2033, 0.0
  %v2098 = vmax.f32 %v2034, 0.0
  %v2099 = vmax.f32 %v2035, 0.0
  %v2100 = vmax.f32 %v2036, 0.0
  %v2101 = vmax.f32 %v2037, 0.0
  %v2102 = vmax.f32 %v2038, 0.0
  %v2103 = vmax.f32 %v2039, 0.0
  %v2104 = vmax.f32 %v2040, 0.0
  %v2105 = vmax.f32 %v2041, 0.0
  %v2106 = vmax.f32 %v2042, 0.0
  %v2107 = vmax.f32 %v2043, 0.0
  %v2108 = vmax.f32 %v2044, 0.0
  %v2109 = vmax.f32 %v2045, 0.0
  %v2110 = vmax.f32 %v2046, 0.0
  %v2111 = vmax.f32 %v2047, 0.0
  %v2112 = vmax.f32 %v2048, 0.0
  %v2113 = vmax.f32 %v2049, 0.0
  %v2114 = vmax.f32 %v2050, 0.0
  %v2115 = vmax.f32 %v2051, 0.0
  %v2116 = vmax.f32 %v2052, 0.0
  %v2117 = vmax.f32 %v2053, 0.0
  %v2118 = vmax.f32 %v2054, 0.0
  %v2119 = vmax.f32 %v2055, 0.0
  %v2120 = vmax.f32 %v2056, 0.0
  %v2121 = vmax.f32 %v2057, 0.0
  %v2122 = vmax.f32 %v2058, 0.0
  %v2123 = vmax.f32 %v2059, 0.0
  %v2124 = vmax.f32 %v2060, 0.0
  %v2125 = vmax.f32 %v2061, 0.0
  %v2126 = vmax.f32 %v2062, 0.0
  %v2127 = vmax.f32 %v2063, 0.0
  %v2128 = vmax.f32 %v2064, 0.0
  %v2129 = vmax.f32 %v2065, 0.0
  %v2130 = vmax.f32 %v2066, 0.0
  %v2131 = vmax.f32 %v2067, 0.0
  %v2132 = vmax.f32 %v2068, 0.0
  %v2133 = vmax.f32 %v2069, 0.0
  %v2134 = vmax.f32 %v2070, 0.0
  %v2135 = vmax.f32 %v2071, 0.0
  %v2136 = vmax.f32 %v2072, 0.0
  %v2137 = vmax.f32 %v2073, 0.0
  %v2138 = vmax.f32 %v2074, 0.0
  %v2139 = vmax.f32 %v2075, 0.0
  %v2140 = vld [vmem:[%s1] sm:$0xf]
  %v2141 = vld [vmem:[%s1 + $0x4] sm:$0xf]
  %v2142 = vld [vmem:[%s1 + $0x8] sm:$0xf]
  %v2143 = vld [vmem:[%s1 + $0xc] sm:$0xf]
  %v2144 = vld [vmem:[%s1 + $0x10] sm:$0xf]
  %v2145 = vld [vmem:[%s1 + $0x14] sm:$0xf]
  %v2146 = vld [vmem:[%s1 + $0x18] sm:$0xf]
  %v2147 = vld [vmem:[%s1 + $0x1c] sm:$0xf]
  %v2148 = vld [vmem:[%s1 + $0x20] sm:$0xf]
  %v2149 = vld [vmem:[%s1 + $0x24] sm:$0xf]
  %v2150 = vld [vmem:[%s1 + $0x28] sm:$0xf]
  %v2151 = vld [vmem:[%s1 + $0x2c] sm:$0xf]
  %v2152 = vld [vmem:[%s1 + $0x30] sm:$0xf]
  %v2153 = vld [vmem:[%s1 + $0x34] sm:$0xf]
  %v2154 = vld [vmem:[%s1 + $0x38] sm:$0xf]
  %v2155 = vld [vmem:[%s1 + $0x3c] sm:$0xf]
  %v2156 = vld [vmem:[%s1 + $0x40] sm:$0xf]
  %v2157 = vld [vmem:[%s1 + $0x44] sm:$0xf]
  %v2158 = vld [vmem:[%s1 + $0x48] sm:$0xf]
  %v2159 = vld [vmem:[%s1 + $0x4c] sm:$0xf]
  %v2160 = vld [vmem:[%s1 + $0x50] sm:$0xf]
  %v2161 = vld [vmem:[%s1 + $0x54] sm:$0xf]
  %v2162 = vld [vmem:[%s1 + $0x58] sm:$0xf]
  %v2163 = vld [vmem:[%s1 + $0x5c] sm:$0xf]
  %v2164 = vld [vmem:[%s1 + $0x60] sm:$0xf]
  %v2165 = vld [vmem:[%s1 + $0x64] sm:$0xf]
  %v2166 = vld [vmem:[%s1 + $0x68] sm:$0xf]
  %v2167 = vld [vmem:[%s1 + $0x6c] sm:$0xf]
  %v2168 = vld [vmem:[%s1 + $0x70] sm:$0xf]
  %v2169 = vld [vmem:[%s1 + $0x74] sm:$0xf]
  %v2170 = vld [vmem:[%s1 + $0x78] sm:$0xf]
  %v2171 = vld [vmem:[%s1 + $0x7c] sm:$0xf]
  %v2172 = vld [vmem:[%s1 + $0x80] sm:$0xf]
  %v2173 = vld [vmem:[%s1 + $0x84] sm:$0xf]
  %v2174 = vld [vmem:[%s1 + $0x88] sm:$0xf]
  %v2175 = vld [vmem:[%s1 + $0x8c] sm:$0xf]
  %v2176 = vld [vmem:[%s1 + $0x90] sm:$0xf]
  %v2177 = vld [vmem:[%s1 + $0x94] sm:$0xf]
  %v2178 = vld [vmem:[%s1 + $0x98] sm:$0xf]
  %v2179 = vld [vmem:[%s1 + $0x9c] sm:$0xf]
  %v2180 = vld [vmem:[%s1 + $0xa0] sm:$0xf]
  %v2181 = vld [vmem:[%s1 + $0xa4] sm:$0xf]
  %v2182 = vld [vmem:[%s1 + $0xa8] sm:$0xf]
  %v2183 = vld [vmem:[%s1 + $0xac] sm:$0xf]
  %v2184 = vld [vmem:[%s1 + $0xb0] sm:$0xf]
  %v2185 = vld [vmem:[%s1 + $0xb4] sm:$0xf]
  %v2186 = vld [vmem:[%s1 + $0xb8] sm:$0xf]
  %v2187 = vld [vmem:[%s1 + $0xbc] sm:$0xf]
  %v2188 = vld [vmem:[%s1 + $0xc0] sm:$0xf]
  %v2189 = vld [vmem:[%s1 + $0xc4] sm:$0xf]
  %v2190 = vld [vmem:[%s1 + $0xc8] sm:$0xf]
  %v2191 = vld [vmem:[%s1 + $0xcc] sm:$0xf]
  %v2192 = vld [vmem:[%s1 + $0xd0] sm:$0xf]
  %v2193 = vld [vmem:[%s1 + $0xd4] sm:$0xf]
  %v2194 = vld [vmem:[%s1 + $0xd8] sm:$0xf]
  %v2195 = vld [vmem:[%s1 + $0xdc] sm:$0xf]
  %v2196 = vld [vmem:[%s1 + $0xe0] sm:$0xf]
  %v2197 = vld [vmem:[%s1 + $0xe4] sm:$0xf]
  %v2198 = vld [vmem:[%s1 + $0xe8] sm:$0xf]
  %v2199 = vld [vmem:[%s1 + $0xec] sm:$0xf]
  %v2200 = vld [vmem:[%s1 + $0xf0] sm:$0xf]
  %v2201 = vld [vmem:[%s1 + $0xf4] sm:$0xf]
  %v2202 = vld [vmem:[%s1 + $0xf8] sm:$0xf]
  %v2203 = vld [vmem:[%s1 + $0xfc] sm:$0xf]
  %v2204 = vld [vmem:[%s6] sm:$0xf]
  %v2205 = vpack.c.bf16 %v2077, %v2076
  %v2206 = vpack.c.bf16 %v2079, %v2078
  %v2207 = vpack.c.bf16 %v2081, %v2080
  %v2208 = vpack.c.bf16 %v2083, %v2082
  %v2209 = vpack.c.bf16 %v2085, %v2084
  %v2210 = vpack.c.bf16 %v2087, %v2086
  %v2211 = vpack.c.bf16 %v2089, %v2088
  %v2212 = vpack.c.bf16 %v2091, %v2090
  %v2213 = vpack.c.bf16 %v2093, %v2092
  %v2214 = vpack.c.bf16 %v2095, %v2094
  %v2215 = vpack.c.bf16 %v2097, %v2096
  %v2216 = vpack.c.bf16 %v2099, %v2098
  %v2217 = vpack.c.bf16 %v2101, %v2100
  %v2218 = vpack.c.bf16 %v2103, %v2102
  %v2219 = vpack.c.bf16 %v2105, %v2104
  %v2220 = vpack.c.bf16 %v2107, %v2106
  %v2221 = vpack.c.bf16 %v2109, %v2108
  %v2222 = vpack.c.bf16 %v2111, %v2110
  %v2223 = vpack.c.bf16 %v2113, %v2112
  %v2224 = vpack.c.bf16 %v2115, %v2114
  %v2225 = vpack.c.bf16 %v2117, %v2116
  %v2226 = vpack.c.bf16 %v2119, %v2118
  %v2227 = vpack.c.bf16 %v2121, %v2120
  %v2228 = vpack.c.bf16 %v2123, %v2122
  %v2229 = vpack.c.bf16 %v2125, %v2124
  %v2230 = vpack.c.bf16 %v2127, %v2126
  %v2231 = vpack.c.bf16 %v2129, %v2128
  %v2232 = vpack.c.bf16 %v2131, %v2130
  %v2233 = vpack.c.bf16 %v2133, %v2132
  %v2234 = vpack.c.bf16 %v2135, %v2134
  %v2235 = vpack.c.bf16 %v2137, %v2136
  %v2236 = vpack.c.bf16 %v2139, %v2138
  %v2237 = vld [vmem:[%s7] sm:$0xf]
  %v2238 = vld [vmem:[%s7 + $0x4] sm:$0xf]
  %v2241 = vunpack.c.l.b16 %v2237
  %v2242 = vunpack.c.l.b16 %v2238
  %v2243 = vpack.c.b16 %v2242, %v2241
  %v2246 = vsel %vm1613, %v2205, 0
  %v2249 = vsel %vm1613, %v2206, 0
  %v2252 = vsel %vm1613, %v2207, 0
  %v2255 = vsel %vm1613, %v2208, 0
  %v2258 = vsel %vm1613, %v2209, 0
  %v2261 = vsel %vm1613, %v2210, 0
  %v2264 = vsel %vm1613, %v2211, 0
  %v2267 = vsel %vm1613, %v2212, 0
  %v2270 = vsel %vm1613, %v2213, 0
  %v2273 = vsel %vm1613, %v2214, 0
  %v2276 = vsel %vm1613, %v2215, 0
  %v2279 = vsel %vm1613, %v2216, 0
  %v2282 = vsel %vm1613, %v2217, 0
  %v2285 = vsel %vm1613, %v2218, 0
  %v2288 = vsel %vm1613, %v2219, 0
  %v2291 = vsel %vm1613, %v2220, 0
  %v2294 = vsel %vm1613, %v2221, 0
  %v2297 = vsel %vm1613, %v2222, 0
  %v2300 = vsel %vm1613, %v2223, 0
  %v2303 = vsel %vm1613, %v2224, 0
  %v2306 = vsel %vm1613, %v2225, 0
  %v2309 = vsel %vm1613, %v2226, 0
  %v2312 = vsel %vm1613, %v2227, 0
  %v2315 = vsel %vm1613, %v2228, 0
  %v2318 = vsel %vm1613, %v2229, 0
  %v2321 = vsel %vm1613, %v2230, 0
  %v2324 = vsel %vm1613, %v2231, 0
  %v2327 = vsel %vm1613, %v2232, 0
  %v2330 = vsel %vm1613, %v2233, 0
  %v2333 = vsel %vm1613, %v2234, 0
  %v2336 = vsel %vm1613, %v2235, 0
  %v2339 = vsel %vm1613, %v2236, 0
  %2341 = vmatprep.subr.bf16.mxu0 0
  %2342 = vmatpush1.bf16.msra.mxu0 0
  %2343 = vmatprep.subr.bf16.mxu0 0
  %2344 = vmatpush1.bf16.msra.mxu0 0
  %2345 = vmatprep.subr.bf16.mxu0 0
  %2346 = vmatpush1.bf16.msra.mxu0 0
  %2347 = vmatprep.subr.bf16.mxu0 0
  %2348 = vmatpush1.bf16.msra.mxu0 0
  %2349 = vmatprep.subr.bf16.mxu0 0
  %2350 = vmatpush1.bf16.msra.mxu0 0
  %2351 = vmatprep.subr.bf16.mxu0 0
  %2352 = vmatpush1.bf16.msra.mxu0 0
  %2353 = vmatprep.subr.bf16.mxu0 0
  %2354 = vmatpush1.bf16.msra.mxu0 0
  %2355 = vmatprep.subr.bf16.mxu0 0
  %2356 = vmatpush1.bf16.msra.mxu0 %v2243
  %2357 = vmatprep.subr.bf16.mxu0 0
  %2358 = vmatpush2.bf16.msra.mxu0 0
  %2359 = vmatprep.subr.bf16.mxu0 0
  %2360 = vmatpush2.bf16.msra.mxu0 0
  %2361 = vmatprep.subr.bf16.mxu0 0
  %2362 = vmatpush2.bf16.msra.mxu0 0
  %2363 = vmatprep.subr.bf16.mxu0 0
  %2364 = vmatpush2.bf16.msra.mxu0 0
  %2365 = vmatprep.subr.bf16.mxu0 0
  %2366 = vmatpush2.bf16.msra.mxu0 0
  %2367 = vmatprep.subr.bf16.mxu0 0
  %2368 = vmatpush2.bf16.msra.mxu0 0
  %2369 = vmatprep.subr.bf16.mxu0 0
  %2370 = vmatpush2.bf16.msra.mxu0 0
  %2371 = vmatprep.subr.bf16.mxu0 0
  %2372 = vmatpush2.bf16.msra.mxu0 0
  %2373 = vmatprep.mubr.bf16.mxu0 0
  %2374 = vmatmul.mubr.bf16.gmra.mxu0 %v2246
  %v2375 = vpop.f32.mrf.mxu0
  %v2376 = vadd.f32 0.0, %v2375
  %v2377 = vpop.f32.mrf.mxu0
  %v2378 = vpop.f32.mrf.mxu0
  %v2379 = vadd.f32 0.0, %v2378
  %v2380 = vpop.f32.mrf.mxu0
  %2381 = vmatprep.mubr.bf16.mxu0 0
  %2382 = vmatmul.mubr.bf16.gmra.mxu0 %v2249
  %v2383 = vpop.f32.mrf.mxu0
  %v2384 = vadd.f32 0.0, %v2383
  %v2385 = vpop.f32.mrf.mxu0
  %v2386 = vpop.f32.mrf.mxu0
  %v2387 = vadd.f32 0.0, %v2386
  %v2388 = vpop.f32.mrf.mxu0
  %2389 = vmatprep.mubr.bf16.mxu0 0
  %2390 = vmatmul.mubr.bf16.gmra.mxu0 %v2252
  %v2391 = vpop.f32.mrf.mxu0
  %v2392 = vadd.f32 0.0, %v2391
  %v2393 = vpop.f32.mrf.mxu0
  %v2394 = vpop.f32.mrf.mxu0
  %v2395 = vadd.f32 0.0, %v2394
  %v2396 = vpop.f32.mrf.mxu0
  %2397 = vmatprep.mubr.bf16.mxu0 0
  %2398 = vmatmul.mubr.bf16.gmra.mxu0 %v2255
  %v2399 = vpop.f32.mrf.mxu0
  %v2400 = vadd.f32 0.0, %v2399
  %v2401 = vpop.f32.mrf.mxu0
  %v2402 = vpop.f32.mrf.mxu0
  %v2403 = vadd.f32 0.0, %v2402
  %v2404 = vpop.f32.mrf.mxu0
  %2405 = vmatprep.mubr.bf16.mxu0 0
  %2406 = vmatmul.mubr.bf16.gmra.mxu0 %v2258
  %v2407 = vpop.f32.mrf.mxu0
  %v2408 = vadd.f32 0.0, %v2407
  %v2409 = vpop.f32.mrf.mxu0
  %v2410 = vpop.f32.mrf.mxu0
  %v2411 = vadd.f32 0.0, %v2410
  %v2412 = vpop.f32.mrf.mxu0
  %2413 = vmatprep.mubr.bf16.mxu0 0
  %2414 = vmatmul.mubr.bf16.gmra.mxu0 %v2261
  %v2415 = vpop.f32.mrf.mxu0
  %v2416 = vadd.f32 0.0, %v2415
  %v2417 = vpop.f32.mrf.mxu0
  %v2418 = vpop.f32.mrf.mxu0
  %v2419 = vadd.f32 0.0, %v2418
  %v2420 = vpop.f32.mrf.mxu0
  %2421 = vmatprep.mubr.bf16.mxu0 0
  %2422 = vmatmul.mubr.bf16.gmra.mxu0 %v2264
  %v2423 = vpop.f32.mrf.mxu0
  %v2424 = vadd.f32 0.0, %v2423
  %v2425 = vpop.f32.mrf.mxu0
  %v2426 = vpop.f32.mrf.mxu0
  %v2427 = vadd.f32 0.0, %v2426
  %v2428 = vpop.f32.mrf.mxu0
  %2429 = vmatprep.mubr.bf16.mxu0 0
  %2430 = vmatmul.mubr.bf16.gmra.mxu0 %v2267
  %v2431 = vpop.f32.mrf.mxu0
  %v2432 = vadd.f32 0.0, %v2431
  %v2433 = vpop.f32.mrf.mxu0
  %v2434 = vpop.f32.mrf.mxu0
  %v2435 = vadd.f32 0.0, %v2434
  %v2436 = vpop.f32.mrf.mxu0
  %2437 = vmatprep.mubr.bf16.mxu0 0
  %2438 = vmatmul.mubr.bf16.gmra.mxu0 %v2270
  %v2439 = vpop.f32.mrf.mxu0
  %v2440 = vadd.f32 0.0, %v2439
  %v2441 = vpop.f32.mrf.mxu0
  %v2442 = vpop.f32.mrf.mxu0
  %v2443 = vadd.f32 0.0, %v2442
  %v2444 = vpop.f32.mrf.mxu0
  %2445 = vmatprep.mubr.bf16.mxu0 0
  %2446 = vmatmul.mubr.bf16.gmra.mxu0 %v2273
  %v2447 = vpop.f32.mrf.mxu0
  %v2448 = vadd.f32 0.0, %v2447
  %v2449 = vpop.f32.mrf.mxu0
  %v2450 = vpop.f32.mrf.mxu0
  %v2451 = vadd.f32 0.0, %v2450
  %v2452 = vpop.f32.mrf.mxu0
  %2453 = vmatprep.mubr.bf16.mxu0 0
  %2454 = vmatmul.mubr.bf16.gmra.mxu0 %v2276
  %v2455 = vpop.f32.mrf.mxu0
  %v2456 = vadd.f32 0.0, %v2455
  %v2457 = vpop.f32.mrf.mxu0
  %v2458 = vpop.f32.mrf.mxu0
  %v2459 = vadd.f32 0.0, %v2458
  %v2460 = vpop.f32.mrf.mxu0
  %2461 = vmatprep.mubr.bf16.mxu0 0
  %2462 = vmatmul.mubr.bf16.gmra.mxu0 %v2279
  %v2463 = vpop.f32.mrf.mxu0
  %v2464 = vadd.f32 0.0, %v2463
  %v2465 = vpop.f32.mrf.mxu0
  %v2466 = vpop.f32.mrf.mxu0
  %v2467 = vadd.f32 0.0, %v2466
  %v2468 = vpop.f32.mrf.mxu0
  %2469 = vmatprep.mubr.bf16.mxu0 0
  %2470 = vmatmul.mubr.bf16.gmra.mxu0 %v2282
  %v2471 = vpop.f32.mrf.mxu0
  %v2472 = vadd.f32 0.0, %v2471
  %v2473 = vpop.f32.mrf.mxu0
  %v2474 = vpop.f32.mrf.mxu0
  %v2475 = vadd.f32 0.0, %v2474
  %v2476 = vpop.f32.mrf.mxu0
  %2477 = vmatprep.mubr.bf16.mxu0 0
  %2478 = vmatmul.mubr.bf16.gmra.mxu0 %v2285
  %v2479 = vpop.f32.mrf.mxu0
  %v2480 = vadd.f32 0.0, %v2479
  %v2481 = vpop.f32.mrf.mxu0
  %v2482 = vpop.f32.mrf.mxu0
  %v2483 = vadd.f32 0.0, %v2482
  %v2484 = vpop.f32.mrf.mxu0
  %2485 = vmatprep.mubr.bf16.mxu0 0
  %2486 = vmatmul.mubr.bf16.gmra.mxu0 %v2288
  %v2487 = vpop.f32.mrf.mxu0
  %v2488 = vadd.f32 0.0, %v2487
  %v2489 = vpop.f32.mrf.mxu0
  %v2490 = vpop.f32.mrf.mxu0
  %v2491 = vadd.f32 0.0, %v2490
  %v2492 = vpop.f32.mrf.mxu0
  %2493 = vmatprep.mubr.bf16.mxu0 0
  %2494 = vmatmul.mubr.bf16.gmra.mxu0 %v2291
  %v2495 = vpop.f32.mrf.mxu0
  %v2496 = vadd.f32 0.0, %v2495
  %v2497 = vpop.f32.mrf.mxu0
  %v2498 = vpop.f32.mrf.mxu0
  %v2499 = vadd.f32 0.0, %v2498
  %v2500 = vpop.f32.mrf.mxu0
  %2501 = vmatprep.mubr.bf16.mxu0 0
  %2502 = vmatmul.mubr.bf16.gmra.mxu0 %v2294
  %v2503 = vpop.f32.mrf.mxu0
  %v2504 = vadd.f32 0.0, %v2503
  %v2505 = vpop.f32.mrf.mxu0
  %v2506 = vpop.f32.mrf.mxu0
  %v2507 = vadd.f32 0.0, %v2506
  %v2508 = vpop.f32.mrf.mxu0
  %2509 = vmatprep.mubr.bf16.mxu0 0
  %2510 = vmatmul.mubr.bf16.gmra.mxu0 %v2297
  %v2511 = vpop.f32.mrf.mxu0
  %v2512 = vadd.f32 0.0, %v2511
  %v2513 = vpop.f32.mrf.mxu0
  %v2514 = vpop.f32.mrf.mxu0
  %v2515 = vadd.f32 0.0, %v2514
  %v2516 = vpop.f32.mrf.mxu0
  %2517 = vmatprep.mubr.bf16.mxu0 0
  %2518 = vmatmul.mubr.bf16.gmra.mxu0 %v2300
  %v2519 = vpop.f32.mrf.mxu0
  %v2520 = vadd.f32 0.0, %v2519
  %v2521 = vpop.f32.mrf.mxu0
  %v2522 = vpop.f32.mrf.mxu0
  %v2523 = vadd.f32 0.0, %v2522
  %v2524 = vpop.f32.mrf.mxu0
  %2525 = vmatprep.mubr.bf16.mxu0 0
  %2526 = vmatmul.mubr.bf16.gmra.mxu0 %v2303
  %v2527 = vpop.f32.mrf.mxu0
  %v2528 = vadd.f32 0.0, %v2527
  %v2529 = vpop.f32.mrf.mxu0
  %v2530 = vpop.f32.mrf.mxu0
  %v2531 = vadd.f32 0.0, %v2530
  %v2532 = vpop.f32.mrf.mxu0
  %2533 = vmatprep.mubr.bf16.mxu0 0
  %2534 = vmatmul.mubr.bf16.gmra.mxu0 %v2306
  %v2535 = vpop.f32.mrf.mxu0
  %v2536 = vadd.f32 0.0, %v2535
  %v2537 = vpop.f32.mrf.mxu0
  %v2538 = vpop.f32.mrf.mxu0
  %v2539 = vadd.f32 0.0, %v2538
  %v2540 = vpop.f32.mrf.mxu0
  %2541 = vmatprep.mubr.bf16.mxu0 0
  %2542 = vmatmul.mubr.bf16.gmra.mxu0 %v2309
  %v2543 = vpop.f32.mrf.mxu0
  %v2544 = vadd.f32 0.0, %v2543
  %v2545 = vpop.f32.mrf.mxu0
  %v2546 = vpop.f32.mrf.mxu0
  %v2547 = vadd.f32 0.0, %v2546
  %v2548 = vpop.f32.mrf.mxu0
  %2549 = vmatprep.mubr.bf16.mxu0 0
  %2550 = vmatmul.mubr.bf16.gmra.mxu0 %v2312
  %v2551 = vpop.f32.mrf.mxu0
  %v2552 = vadd.f32 0.0, %v2551
  %v2553 = vpop.f32.mrf.mxu0
  %v2554 = vpop.f32.mrf.mxu0
  %v2555 = vadd.f32 0.0, %v2554
  %v2556 = vpop.f32.mrf.mxu0
  %2557 = vmatprep.mubr.bf16.mxu0 0
  %2558 = vmatmul.mubr.bf16.gmra.mxu0 %v2315
  %v2559 = vpop.f32.mrf.mxu0
  %v2560 = vadd.f32 0.0, %v2559
  %v2561 = vpop.f32.mrf.mxu0
  %v2562 = vpop.f32.mrf.mxu0
  %v2563 = vadd.f32 0.0, %v2562
  %v2564 = vpop.f32.mrf.mxu0
  %2565 = vmatprep.mubr.bf16.mxu0 0
  %2566 = vmatmul.mubr.bf16.gmra.mxu0 %v2318
  %v2567 = vpop.f32.mrf.mxu0
  %v2568 = vadd.f32 0.0, %v2567
  %v2569 = vpop.f32.mrf.mxu0
  %v2570 = vpop.f32.mrf.mxu0
  %v2571 = vadd.f32 0.0, %v2570
  %v2572 = vpop.f32.mrf.mxu0
  %2573 = vmatprep.mubr.bf16.mxu0 0
  %2574 = vmatmul.mubr.bf16.gmra.mxu0 %v2321
  %v2575 = vpop.f32.mrf.mxu0
  %v2576 = vadd.f32 0.0, %v2575
  %v2577 = vpop.f32.mrf.mxu0
  %v2578 = vpop.f32.mrf.mxu0
  %v2579 = vadd.f32 0.0, %v2578
  %v2580 = vpop.f32.mrf.mxu0
  %2581 = vmatprep.mubr.bf16.mxu0 0
  %2582 = vmatmul.mubr.bf16.gmra.mxu0 %v2324
  %v2583 = vpop.f32.mrf.mxu0
  %v2584 = vadd.f32 0.0, %v2583
  %v2585 = vpop.f32.mrf.mxu0
  %v2586 = vpop.f32.mrf.mxu0
  %v2587 = vadd.f32 0.0, %v2586
  %v2588 = vpop.f32.mrf.mxu0
  %2589 = vmatprep.mubr.bf16.mxu0 0
  %2590 = vmatmul.mubr.bf16.gmra.mxu0 %v2327
  %v2591 = vpop.f32.mrf.mxu0
  %v2592 = vadd.f32 0.0, %v2591
  %v2593 = vpop.f32.mrf.mxu0
  %v2594 = vpop.f32.mrf.mxu0
  %v2595 = vadd.f32 0.0, %v2594
  %v2596 = vpop.f32.mrf.mxu0
  %2597 = vmatprep.mubr.bf16.mxu0 0
  %2598 = vmatmul.mubr.bf16.gmra.mxu0 %v2330
  %v2599 = vpop.f32.mrf.mxu0
  %v2600 = vadd.f32 0.0, %v2599
  %v2601 = vpop.f32.mrf.mxu0
  %v2602 = vpop.f32.mrf.mxu0
  %v2603 = vadd.f32 0.0, %v2602
  %v2604 = vpop.f32.mrf.mxu0
  %2605 = vmatprep.mubr.bf16.mxu0 0
  %2606 = vmatmul.mubr.bf16.gmra.mxu0 %v2333
  %v2607 = vpop.f32.mrf.mxu0
  %v2608 = vadd.f32 0.0, %v2607
  %v2609 = vpop.f32.mrf.mxu0
  %v2610 = vpop.f32.mrf.mxu0
  %v2611 = vadd.f32 0.0, %v2610
  %v2612 = vpop.f32.mrf.mxu0
  %2613 = vmatprep.mubr.bf16.mxu0 0
  %2614 = vmatmul.mubr.bf16.gmra.mxu0 %v2336
  %v2615 = vpop.f32.mrf.mxu0
  %v2616 = vadd.f32 0.0, %v2615
  %v2617 = vpop.f32.mrf.mxu0
  %v2618 = vpop.f32.mrf.mxu0
  %v2619 = vadd.f32 0.0, %v2618
  %v2620 = vpop.f32.mrf.mxu0
  %2621 = vmatprep.mubr.bf16.mxu0 0
  %2622 = vmatmul.mubr.bf16.gmra.mxu0 %v2339
  %v2623 = vpop.f32.mrf.mxu0
  %v2624 = vadd.f32 0.0, %v2623
  %v2625 = vpop.f32.mrf.mxu0
  %v2626 = vpop.f32.mrf.mxu0
  %v2627 = vadd.f32 0.0, %v2626
  %v2628 = vpop.f32.mrf.mxu0
  %2629 = vdwg.mxu0
  %v2694 = vunpack.c.l.b16 %v2140
  %v2695 = vunpack.c.l.b16 %v2141
  %v2696 = vunpack.c.l.b16 %v2142
  %v2697 = vunpack.c.l.b16 %v2143
  %v2698 = vunpack.c.l.b16 %v2144
  %v2699 = vunpack.c.l.b16 %v2145
  %v2700 = vunpack.c.l.b16 %v2146
  %v2701 = vunpack.c.l.b16 %v2147
  %v2702 = vunpack.c.l.b16 %v2148
  %v2703 = vunpack.c.l.b16 %v2149
  %v2704 = vunpack.c.l.b16 %v2150
  %v2705 = vunpack.c.l.b16 %v2151
  %v2706 = vunpack.c.l.b16 %v2152
  %v2707 = vunpack.c.l.b16 %v2153
  %v2708 = vunpack.c.l.b16 %v2154
  %v2709 = vunpack.c.l.b16 %v2155
  %v2710 = vunpack.c.l.b16 %v2156
  %v2711 = vunpack.c.l.b16 %v2157
  %v2712 = vunpack.c.l.b16 %v2158
  %v2713 = vunpack.c.l.b16 %v2159
  %v2714 = vunpack.c.l.b16 %v2160
  %v2715 = vunpack.c.l.b16 %v2161
  %v2716 = vunpack.c.l.b16 %v2162
  %v2717 = vunpack.c.l.b16 %v2163
  %v2718 = vunpack.c.l.b16 %v2164
  %v2719 = vunpack.c.l.b16 %v2165
  %v2720 = vunpack.c.l.b16 %v2166
  %v2721 = vunpack.c.l.b16 %v2167
  %v2722 = vunpack.c.l.b16 %v2168
  %v2723 = vunpack.c.l.b16 %v2169
  %v2724 = vunpack.c.l.b16 %v2170
  %v2725 = vunpack.c.l.b16 %v2171
  %v2726 = vunpack.c.l.b16 %v2172
  %v2727 = vunpack.c.l.b16 %v2173
  %v2728 = vunpack.c.l.b16 %v2174
  %v2729 = vunpack.c.l.b16 %v2175
  %v2730 = vunpack.c.l.b16 %v2176
  %v2731 = vunpack.c.l.b16 %v2177
  %v2732 = vunpack.c.l.b16 %v2178
  %v2733 = vunpack.c.l.b16 %v2179
  %v2734 = vunpack.c.l.b16 %v2180
  %v2735 = vunpack.c.l.b16 %v2181
  %v2736 = vunpack.c.l.b16 %v2182
  %v2737 = vunpack.c.l.b16 %v2183
  %v2738 = vunpack.c.l.b16 %v2184
  %v2739 = vunpack.c.l.b16 %v2185
  %v2740 = vunpack.c.l.b16 %v2186
  %v2741 = vunpack.c.l.b16 %v2187
  %v2742 = vunpack.c.l.b16 %v2188
  %v2743 = vunpack.c.l.b16 %v2189
  %v2744 = vunpack.c.l.b16 %v2190
  %v2745 = vunpack.c.l.b16 %v2191
  %v2746 = vunpack.c.l.b16 %v2192
  %v2747 = vunpack.c.l.b16 %v2193
  %v2748 = vunpack.c.l.b16 %v2194
  %v2749 = vunpack.c.l.b16 %v2195
  %v2750 = vunpack.c.l.b16 %v2196
  %v2751 = vunpack.c.l.b16 %v2197
  %v2752 = vunpack.c.l.b16 %v2198
  %v2753 = vunpack.c.l.b16 %v2199
  %v2754 = vunpack.c.l.b16 %v2200
  %v2755 = vunpack.c.l.b16 %v2201
  %v2756 = vunpack.c.l.b16 %v2202
  %v2757 = vunpack.c.l.b16 %v2203
  %v2758 = vpack.c.b16 %v2695, %v2694
  %v2759 = vpack.c.b16 %v2697, %v2696
  %v2760 = vpack.c.b16 %v2699, %v2698
  %v2761 = vpack.c.b16 %v2701, %v2700
  %v2762 = vpack.c.b16 %v2703, %v2702
  %v2763 = vpack.c.b16 %v2705, %v2704
  %v2764 = vpack.c.b16 %v2707, %v2706
  %v2765 = vpack.c.b16 %v2709, %v2708
  %v2766 = vpack.c.b16 %v2711, %v2710
  %v2767 = vpack.c.b16 %v2713, %v2712
  %v2768 = vpack.c.b16 %v2715, %v2714
  %v2769 = vpack.c.b16 %v2717, %v2716
  %v2770 = vpack.c.b16 %v2719, %v2718
  %v2771 = vpack.c.b16 %v2721, %v2720
  %v2772 = vpack.c.b16 %v2723, %v2722
  %v2773 = vpack.c.b16 %v2725, %v2724
  %v2774 = vpack.c.b16 %v2727, %v2726
  %v2775 = vpack.c.b16 %v2729, %v2728
  %v2776 = vpack.c.b16 %v2731, %v2730
  %v2777 = vpack.c.b16 %v2733, %v2732
  %v2778 = vpack.c.b16 %v2735, %v2734
  %v2779 = vpack.c.b16 %v2737, %v2736
  %v2780 = vpack.c.b16 %v2739, %v2738
  %v2781 = vpack.c.b16 %v2741, %v2740
  %v2782 = vpack.c.b16 %v2743, %v2742
  %v2783 = vpack.c.b16 %v2745, %v2744
  %v2784 = vpack.c.b16 %v2747, %v2746
  %v2785 = vpack.c.b16 %v2749, %v2748
  %v2786 = vpack.c.b16 %v2751, %v2750
  %v2787 = vpack.c.b16 %v2753, %v2752
  %v2788 = vpack.c.b16 %v2755, %v2754
  %v2789 = vpack.c.b16 %v2757, %v2756
  %v2791 = vsel %vm657, %v2758, 0
  %v2794 = vsel %vm657, %v2759, 0
  %v2797 = vsel %vm657, %v2760, 0
  %v2800 = vsel %vm657, %v2761, 0
  %v2803 = vsel %vm657, %v2762, 0
  %v2806 = vsel %vm657, %v2763, 0
  %v2809 = vsel %vm657, %v2764, 0
  %v2812 = vsel %vm657, %v2765, 0
  %v2815 = vsel %vm657, %v2766, 0
  %v2818 = vsel %vm657, %v2767, 0
  %v2821 = vsel %vm657, %v2768, 0
  %v2824 = vsel %vm657, %v2769, 0
  %v2827 = vsel %vm657, %v2770, 0
  %v2830 = vsel %vm657, %v2771, 0
  %v2833 = vsel %vm657, %v2772, 0
  %v2836 = vsel %vm657, %v2773, 0
  %v2839 = vsel %vm657, %v2774, 0
  %v2842 = vsel %vm657, %v2775, 0
  %v2845 = vsel %vm657, %v2776, 0
  %v2848 = vsel %vm657, %v2777, 0
  %v2851 = vsel %vm657, %v2778, 0
  %v2854 = vsel %vm657, %v2779, 0
  %v2857 = vsel %vm657, %v2780, 0
  %v2860 = vsel %vm657, %v2781, 0
  %v2863 = vsel %vm657, %v2782, 0
  %v2866 = vsel %vm657, %v2783, 0
  %v2869 = vsel %vm657, %v2784, 0
  %v2872 = vsel %vm657, %v2785, 0
  %v2875 = vsel %vm657, %v2786, 0
  %v2878 = vsel %vm657, %v2787, 0
  %v2881 = vsel %vm657, %v2788, 0
  %v2884 = vsel %vm657, %v2789, 0
  %v2887 = vsel %vm1320, %v2204, 0
  %2889 = vmatprep.subr.bf16.mxu0 0
  %2890 = vmatpush1.bf16.msra.mxu0 0
  %2891 = vmatprep.subr.bf16.mxu0 0
  %2892 = vmatpush1.bf16.msra.mxu0 0
  %2893 = vmatprep.subr.bf16.mxu0 0
  %2894 = vmatpush1.bf16.msra.mxu0 0
  %2895 = vmatprep.subr.bf16.mxu0 0
  %2896 = vmatpush1.bf16.msra.mxu0 0
  %2897 = vmatprep.subr.bf16.mxu0 0
  %2898 = vmatpush1.bf16.msra.mxu0 0
  %2899 = vmatprep.subr.bf16.mxu0 0
  %2900 = vmatpush1.bf16.msra.mxu0 0
  %2901 = vmatprep.subr.bf16.mxu0 0
  %2902 = vmatpush1.bf16.msra.mxu0 0
  %2903 = vmatprep.subr.bf16.mxu0 0
  %2904 = vmatpush1.bf16.msra.mxu0 %v2887
  %2905 = vmatprep.subr.bf16.mxu0 0
  %2906 = vmatpush2.bf16.msra.mxu0 0
  %2907 = vmatprep.subr.bf16.mxu0 0
  %2908 = vmatpush2.bf16.msra.mxu0 0
  %2909 = vmatprep.subr.bf16.mxu0 0
  %2910 = vmatpush2.bf16.msra.mxu0 0
  %2911 = vmatprep.subr.bf16.mxu0 0
  %2912 = vmatpush2.bf16.msra.mxu0 0
  %2913 = vmatprep.subr.bf16.mxu0 0
  %2914 = vmatpush2.bf16.msra.mxu0 0
  %2915 = vmatprep.subr.bf16.mxu0 0
  %2916 = vmatpush2.bf16.msra.mxu0 0
  %2917 = vmatprep.subr.bf16.mxu0 0
  %2918 = vmatpush2.bf16.msra.mxu0 0
  %2919 = vmatprep.subr.bf16.mxu0 0
  %2920 = vmatpush2.bf16.msra.mxu0 0
  %2921 = vmatprep.mubr.bf16.mxu0 0
  %2922 = vmatmul.mubr.bf16.gmra.mxu0 %v2791
  %v2923 = vpop.f32.mrf.mxu0
  %v2924 = vadd.f32 %v2376, %v2923
  %v2925 = vpop.f32.mrf.mxu0
  %v2926 = vpop.f32.mrf.mxu0
  %v2927 = vadd.f32 %v2379, %v2926
  %v2928 = vpop.f32.mrf.mxu0
  %2929 = vmatprep.mubr.bf16.mxu0 0
  %2930 = vmatmul.mubr.bf16.gmra.mxu0 %v2794
  %v2931 = vpop.f32.mrf.mxu0
  %v2932 = vadd.f32 %v2384, %v2931
  %v2933 = vpop.f32.mrf.mxu0
  %v2934 = vpop.f32.mrf.mxu0
  %v2935 = vadd.f32 %v2387, %v2934
  %v2936 = vpop.f32.mrf.mxu0
  %2937 = vmatprep.mubr.bf16.mxu0 0
  %2938 = vmatmul.mubr.bf16.gmra.mxu0 %v2797
  %v2939 = vpop.f32.mrf.mxu0
  %v2940 = vadd.f32 %v2392, %v2939
  %v2941 = vpop.f32.mrf.mxu0
  %v2942 = vpop.f32.mrf.mxu0
  %v2943 = vadd.f32 %v2395, %v2942
  %v2944 = vpop.f32.mrf.mxu0
  %2945 = vmatprep.mubr.bf16.mxu0 0
  %2946 = vmatmul.mubr.bf16.gmra.mxu0 %v2800
  %v2947 = vpop.f32.mrf.mxu0
  %v2948 = vadd.f32 %v2400, %v2947
  %v2949 = vpop.f32.mrf.mxu0
  %v2950 = vpop.f32.mrf.mxu0
  %v2951 = vadd.f32 %v2403, %v2950
  %v2952 = vpop.f32.mrf.mxu0
  %2953 = vmatprep.mubr.bf16.mxu0 0
  %2954 = vmatmul.mubr.bf16.gmra.mxu0 %v2803
  %v2955 = vpop.f32.mrf.mxu0
  %v2956 = vadd.f32 %v2408, %v2955
  %v2957 = vpop.f32.mrf.mxu0
  %v2958 = vpop.f32.mrf.mxu0
  %v2959 = vadd.f32 %v2411, %v2958
  %v2960 = vpop.f32.mrf.mxu0
  %2961 = vmatprep.mubr.bf16.mxu0 0
  %2962 = vmatmul.mubr.bf16.gmra.mxu0 %v2806
  %v2963 = vpop.f32.mrf.mxu0
  %v2964 = vadd.f32 %v2416, %v2963
  %v2965 = vpop.f32.mrf.mxu0
  %v2966 = vpop.f32.mrf.mxu0
  %v2967 = vadd.f32 %v2419, %v2966
  %v2968 = vpop.f32.mrf.mxu0
  %2969 = vmatprep.mubr.bf16.mxu0 0
  %2970 = vmatmul.mubr.bf16.gmra.mxu0 %v2809
  %v2971 = vpop.f32.mrf.mxu0
  %v2972 = vadd.f32 %v2424, %v2971
  %v2973 = vpop.f32.mrf.mxu0
  %v2974 = vpop.f32.mrf.mxu0
  %v2975 = vadd.f32 %v2427, %v2974
  %v2976 = vpop.f32.mrf.mxu0
  %2977 = vmatprep.mubr.bf16.mxu0 0
  %2978 = vmatmul.mubr.bf16.gmra.mxu0 %v2812
  %v2979 = vpop.f32.mrf.mxu0
  %v2980 = vadd.f32 %v2432, %v2979
  %v2981 = vpop.f32.mrf.mxu0
  %v2982 = vpop.f32.mrf.mxu0
  %v2983 = vadd.f32 %v2435, %v2982
  %v2984 = vpop.f32.mrf.mxu0
  %2985 = vmatprep.mubr.bf16.mxu0 0
  %2986 = vmatmul.mubr.bf16.gmra.mxu0 %v2815
  %v2987 = vpop.f32.mrf.mxu0
  %v2988 = vadd.f32 %v2440, %v2987
  %v2989 = vpop.f32.mrf.mxu0
  %v2990 = vpop.f32.mrf.mxu0
  %v2991 = vadd.f32 %v2443, %v2990
  %v2992 = vpop.f32.mrf.mxu0
  %2993 = vmatprep.mubr.bf16.mxu0 0
  %2994 = vmatmul.mubr.bf16.gmra.mxu0 %v2818
  %v2995 = vpop.f32.mrf.mxu0
  %v2996 = vadd.f32 %v2448, %v2995
  %v2997 = vpop.f32.mrf.mxu0
  %v2998 = vpop.f32.mrf.mxu0
  %v2999 = vadd.f32 %v2451, %v2998
  %v3000 = vpop.f32.mrf.mxu0
  %3001 = vmatprep.mubr.bf16.mxu0 0
  %3002 = vmatmul.mubr.bf16.gmra.mxu0 %v2821
  %v3003 = vpop.f32.mrf.mxu0
  %v3004 = vadd.f32 %v2456, %v3003
  %v3005 = vpop.f32.mrf.mxu0
  %v3006 = vpop.f32.mrf.mxu0
  %v3007 = vadd.f32 %v2459, %v3006
  %v3008 = vpop.f32.mrf.mxu0
  %3009 = vmatprep.mubr.bf16.mxu0 0
  %3010 = vmatmul.mubr.bf16.gmra.mxu0 %v2824
  %v3011 = vpop.f32.mrf.mxu0
  %v3012 = vadd.f32 %v2464, %v3011
  %v3013 = vpop.f32.mrf.mxu0
  %v3014 = vpop.f32.mrf.mxu0
  %v3015 = vadd.f32 %v2467, %v3014
  %v3016 = vpop.f32.mrf.mxu0
  %3017 = vmatprep.mubr.bf16.mxu0 0
  %3018 = vmatmul.mubr.bf16.gmra.mxu0 %v2827
  %v3019 = vpop.f32.mrf.mxu0
  %v3020 = vadd.f32 %v2472, %v3019
  %v3021 = vpop.f32.mrf.mxu0
  %v3022 = vpop.f32.mrf.mxu0
  %v3023 = vadd.f32 %v2475, %v3022
  %v3024 = vpop.f32.mrf.mxu0
  %3025 = vmatprep.mubr.bf16.mxu0 0
  %3026 = vmatmul.mubr.bf16.gmra.mxu0 %v2830
  %v3027 = vpop.f32.mrf.mxu0
  %v3028 = vadd.f32 %v2480, %v3027
  %v3029 = vpop.f32.mrf.mxu0
  %v3030 = vpop.f32.mrf.mxu0
  %v3031 = vadd.f32 %v2483, %v3030
  %v3032 = vpop.f32.mrf.mxu0
  %3033 = vmatprep.mubr.bf16.mxu0 0
  %3034 = vmatmul.mubr.bf16.gmra.mxu0 %v2833
  %v3035 = vpop.f32.mrf.mxu0
  %v3036 = vadd.f32 %v2488, %v3035
  %v3037 = vpop.f32.mrf.mxu0
  %v3038 = vpop.f32.mrf.mxu0
  %v3039 = vadd.f32 %v2491, %v3038
  %v3040 = vpop.f32.mrf.mxu0
  %3041 = vmatprep.mubr.bf16.mxu0 0
  %3042 = vmatmul.mubr.bf16.gmra.mxu0 %v2836
  %v3043 = vpop.f32.mrf.mxu0
  %v3044 = vadd.f32 %v2496, %v3043
  %v3045 = vpop.f32.mrf.mxu0
  %v3046 = vpop.f32.mrf.mxu0
  %v3047 = vadd.f32 %v2499, %v3046
  %v3048 = vpop.f32.mrf.mxu0
  %3049 = vmatprep.mubr.bf16.mxu0 0
  %3050 = vmatmul.mubr.bf16.gmra.mxu0 %v2839
  %v3051 = vpop.f32.mrf.mxu0
  %v3052 = vadd.f32 %v2504, %v3051
  %v3053 = vpop.f32.mrf.mxu0
  %v3054 = vpop.f32.mrf.mxu0
  %v3055 = vadd.f32 %v2507, %v3054
  %v3056 = vpop.f32.mrf.mxu0
  %3057 = vmatprep.mubr.bf16.mxu0 0
  %3058 = vmatmul.mubr.bf16.gmra.mxu0 %v2842
  %v3059 = vpop.f32.mrf.mxu0
  %v3060 = vadd.f32 %v2512, %v3059
  %v3061 = vpop.f32.mrf.mxu0
  %v3062 = vpop.f32.mrf.mxu0
  %v3063 = vadd.f32 %v2515, %v3062
  %v3064 = vpop.f32.mrf.mxu0
  %3065 = vmatprep.mubr.bf16.mxu0 0
  %3066 = vmatmul.mubr.bf16.gmra.mxu0 %v2845
  %v3067 = vpop.f32.mrf.mxu0
  %v3068 = vadd.f32 %v2520, %v3067
  %v3069 = vpop.f32.mrf.mxu0
  %v3070 = vpop.f32.mrf.mxu0
  %v3071 = vadd.f32 %v2523, %v3070
  %v3072 = vpop.f32.mrf.mxu0
  %3073 = vmatprep.mubr.bf16.mxu0 0
  %3074 = vmatmul.mubr.bf16.gmra.mxu0 %v2848
  %v3075 = vpop.f32.mrf.mxu0
  %v3076 = vadd.f32 %v2528, %v3075
  %v3077 = vpop.f32.mrf.mxu0
  %v3078 = vpop.f32.mrf.mxu0
  %v3079 = vadd.f32 %v2531, %v3078
  %v3080 = vpop.f32.mrf.mxu0
  %3081 = vmatprep.mubr.bf16.mxu0 0
  %3082 = vmatmul.mubr.bf16.gmra.mxu0 %v2851
  %v3083 = vpop.f32.mrf.mxu0
  %v3084 = vadd.f32 %v2536, %v3083
  %v3085 = vpop.f32.mrf.mxu0
  %v3086 = vpop.f32.mrf.mxu0
  %v3087 = vadd.f32 %v2539, %v3086
  %v3088 = vpop.f32.mrf.mxu0
  %3089 = vmatprep.mubr.bf16.mxu0 0
  %3090 = vmatmul.mubr.bf16.gmra.mxu0 %v2854
  %v3091 = vpop.f32.mrf.mxu0
  %v3092 = vadd.f32 %v2544, %v3091
  %v3093 = vpop.f32.mrf.mxu0
  %v3094 = vpop.f32.mrf.mxu0
  %v3095 = vadd.f32 %v2547, %v3094
  %v3096 = vpop.f32.mrf.mxu0
  %3097 = vmatprep.mubr.bf16.mxu0 0
  %3098 = vmatmul.mubr.bf16.gmra.mxu0 %v2857
  %v3099 = vpop.f32.mrf.mxu0
  %v3100 = vadd.f32 %v2552, %v3099
  %v3101 = vpop.f32.mrf.mxu0
  %v3102 = vpop.f32.mrf.mxu0
  %v3103 = vadd.f32 %v2555, %v3102
  %v3104 = vpop.f32.mrf.mxu0
  %3105 = vmatprep.mubr.bf16.mxu0 0
  %3106 = vmatmul.mubr.bf16.gmra.mxu0 %v2860
  %v3107 = vpop.f32.mrf.mxu0
  %v3108 = vadd.f32 %v2560, %v3107
  %v3109 = vpop.f32.mrf.mxu0
  %v3110 = vpop.f32.mrf.mxu0
  %v3111 = vadd.f32 %v2563, %v3110
  %v3112 = vpop.f32.mrf.mxu0
  %3113 = vmatprep.mubr.bf16.mxu0 0
  %3114 = vmatmul.mubr.bf16.gmra.mxu0 %v2863
  %v3115 = vpop.f32.mrf.mxu0
  %v3116 = vadd.f32 %v2568, %v3115
  %v3117 = vpop.f32.mrf.mxu0
  %v3118 = vpop.f32.mrf.mxu0
  %v3119 = vadd.f32 %v2571, %v3118
  %v3120 = vpop.f32.mrf.mxu0
  %3121 = vmatprep.mubr.bf16.mxu0 0
  %3122 = vmatmul.mubr.bf16.gmra.mxu0 %v2866
  %v3123 = vpop.f32.mrf.mxu0
  %v3124 = vadd.f32 %v2576, %v3123
  %v3125 = vpop.f32.mrf.mxu0
  %v3126 = vpop.f32.mrf.mxu0
  %v3127 = vadd.f32 %v2579, %v3126
  %v3128 = vpop.f32.mrf.mxu0
  %3129 = vmatprep.mubr.bf16.mxu0 0
  %3130 = vmatmul.mubr.bf16.gmra.mxu0 %v2869
  %v3131 = vpop.f32.mrf.mxu0
  %v3132 = vadd.f32 %v2584, %v3131
  %v3133 = vpop.f32.mrf.mxu0
  %v3134 = vpop.f32.mrf.mxu0
  %v3135 = vadd.f32 %v2587, %v3134
  %v3136 = vpop.f32.mrf.mxu0
  %3137 = vmatprep.mubr.bf16.mxu0 0
  %3138 = vmatmul.mubr.bf16.gmra.mxu0 %v2872
  %v3139 = vpop.f32.mrf.mxu0
  %v3140 = vadd.f32 %v2592, %v3139
  %v3141 = vpop.f32.mrf.mxu0
  %v3142 = vpop.f32.mrf.mxu0
  %v3143 = vadd.f32 %v2595, %v3142
  %v3144 = vpop.f32.mrf.mxu0
  %3145 = vmatprep.mubr.bf16.mxu0 0
  %3146 = vmatmul.mubr.bf16.gmra.mxu0 %v2875
  %v3147 = vpop.f32.mrf.mxu0
  %v3148 = vadd.f32 %v2600, %v3147
  %v3149 = vpop.f32.mrf.mxu0
  %v3150 = vpop.f32.mrf.mxu0
  %v3151 = vadd.f32 %v2603, %v3150
  %v3152 = vpop.f32.mrf.mxu0
  %3153 = vmatprep.mubr.bf16.mxu0 0
  %3154 = vmatmul.mubr.bf16.gmra.mxu0 %v2878
  %v3155 = vpop.f32.mrf.mxu0
  %v3156 = vadd.f32 %v2608, %v3155
  %v3157 = vpop.f32.mrf.mxu0
  %v3158 = vpop.f32.mrf.mxu0
  %v3159 = vadd.f32 %v2611, %v3158
  %v3160 = vpop.f32.mrf.mxu0
  %3161 = vmatprep.mubr.bf16.mxu0 0
  %3162 = vmatmul.mubr.bf16.gmra.mxu0 %v2881
  %v3163 = vpop.f32.mrf.mxu0
  %v3164 = vadd.f32 %v2616, %v3163
  %v3165 = vpop.f32.mrf.mxu0
  %v3166 = vpop.f32.mrf.mxu0
  %v3167 = vadd.f32 %v2619, %v3166
  %v3168 = vpop.f32.mrf.mxu0
  %3169 = vmatprep.mubr.bf16.mxu0 0
  %3170 = vmatmul.mubr.bf16.gmra.mxu0 %v2884
  %v3171 = vpop.f32.mrf.mxu0
  %v3172 = vadd.f32 %v2624, %v3171
  %v3173 = vpop.f32.mrf.mxu0
  %v3174 = vpop.f32.mrf.mxu0
  %v3175 = vadd.f32 %v2627, %v3174
  %v3176 = vpop.f32.mrf.mxu0
  %3177 = vdwg.mxu0
  %v3178 = vld [vmem:[#allocation2] sm:$0x1]
  %v3180 = vlaneseq
  %v3181 = vshrl.u32 %v3180, 7
  %v3182 = vsub.s32 0, %v3181
  %v3183 = vrot.slane %v3178, %v3182
  %v3185 = vadd.f32 %v2924, %v3183
  %v3186 = vadd.f32 %v2927, %v3183
  %v3187 = vadd.f32 %v2932, %v3183
  %v3188 = vadd.f32 %v2935, %v3183
  %v3189 = vadd.f32 %v2940, %v3183
  %v3190 = vadd.f32 %v2943, %v3183
  %v3191 = vadd.f32 %v2948, %v3183
  %v3192 = vadd.f32 %v2951, %v3183
  %v3193 = vadd.f32 %v2956, %v3183
  %v3194 = vadd.f32 %v2959, %v3183
  %v3195 = vadd.f32 %v2964, %v3183
  %v3196 = vadd.f32 %v2967, %v3183
  %v3197 = vadd.f32 %v2972, %v3183
  %v3198 = vadd.f32 %v2975, %v3183
  %v3199 = vadd.f32 %v2980, %v3183
  %v3200 = vadd.f32 %v2983, %v3183
  %v3201 = vadd.f32 %v2988, %v3183
  %v3202 = vadd.f32 %v2991, %v3183
  %v3203 = vadd.f32 %v2996, %v3183
  %v3204 = vadd.f32 %v2999, %v3183
  %v3205 = vadd.f32 %v3004, %v3183
  %v3206 = vadd.f32 %v3007, %v3183
  %v3207 = vadd.f32 %v3012, %v3183
  %v3208 = vadd.f32 %v3015, %v3183
  %v3209 = vadd.f32 %v3020, %v3183
  %v3210 = vadd.f32 %v3023, %v3183
  %v3211 = vadd.f32 %v3028, %v3183
  %v3212 = vadd.f32 %v3031, %v3183
  %v3213 = vadd.f32 %v3036, %v3183
  %v3214 = vadd.f32 %v3039, %v3183
  %v3215 = vadd.f32 %v3044, %v3183
  %v3216 = vadd.f32 %v3047, %v3183
  %v3217 = vadd.f32 %v3052, %v3183
  %v3218 = vadd.f32 %v3055, %v3183
  %v3219 = vadd.f32 %v3060, %v3183
  %v3220 = vadd.f32 %v3063, %v3183
  %v3221 = vadd.f32 %v3068, %v3183
  %v3222 = vadd.f32 %v3071, %v3183
  %v3223 = vadd.f32 %v3076, %v3183
  %v3224 = vadd.f32 %v3079, %v3183
  %v3225 = vadd.f32 %v3084, %v3183
  %v3226 = vadd.f32 %v3087, %v3183
  %v3227 = vadd.f32 %v3092, %v3183
  %v3228 = vadd.f32 %v3095, %v3183
  %v3229 = vadd.f32 %v3100, %v3183
  %v3230 = vadd.f32 %v3103, %v3183
  %v3231 = vadd.f32 %v3108, %v3183
  %v3232 = vadd.f32 %v3111, %v3183
  %v3233 = vadd.f32 %v3116, %v3183
  %v3234 = vadd.f32 %v3119, %v3183
  %v3235 = vadd.f32 %v3124, %v3183
  %v3236 = vadd.f32 %v3127, %v3183
  %v3237 = vadd.f32 %v3132, %v3183
  %v3238 = vadd.f32 %v3135, %v3183
  %v3239 = vadd.f32 %v3140, %v3183
  %v3240 = vadd.f32 %v3143, %v3183
  %v3241 = vadd.f32 %v3148, %v3183
  %v3242 = vadd.f32 %v3151, %v3183
  %v3243 = vadd.f32 %v3156, %v3183
  %v3244 = vadd.f32 %v3159, %v3183
  %v3245 = vadd.f32 %v3164, %v3183
  %v3246 = vadd.f32 %v3167, %v3183
  %v3247 = vadd.f32 %v3172, %v3183
  %v3248 = vadd.f32 %v3175, %v3183
  %vm3249 = vcmask 7168
  %3250 = vst.msk [vmem:[%s9] sm:$0xff] %vm3249, %v3185
  %3251 = vst.msk [vmem:[%s9 + $0x8] sm:$0xff] %vm3249, %v3186
  %3252 = vst.msk [vmem:[%s9 + $0x10] sm:$0xff] %vm3249, %v3187
  %3253 = vst.msk [vmem:[%s9 + $0x18] sm:$0xff] %vm3249, %v3188
  %3254 = vst.msk [vmem:[%s9 + $0x20] sm:$0xff] %vm3249, %v3189
  %3255 = vst.msk [vmem:[%s9 + $0x28] sm:$0xff] %vm3249, %v3190
  %3256 = vst.msk [vmem:[%s9 + $0x30] sm:$0xff] %vm3249, %v3191
  %3257 = vst.msk [vmem:[%s9 + $0x38] sm:$0xff] %vm3249, %v3192
  %3258 = vst.msk [vmem:[%s9 + $0x40] sm:$0xff] %vm3249, %v3193
  %3259 = vst.msk [vmem:[%s9 + $0x48] sm:$0xff] %vm3249, %v3194
  %3260 = vst.msk [vmem:[%s9 + $0x50] sm:$0xff] %vm3249, %v3195
  %3261 = vst.msk [vmem:[%s9 + $0x58] sm:$0xff] %vm3249, %v3196
  %3262 = vst.msk [vmem:[%s9 + $0x60] sm:$0xff] %vm3249, %v3197
  %3263 = vst.msk [vmem:[%s9 + $0x68] sm:$0xff] %vm3249, %v3198
  %3264 = vst.msk [vmem:[%s9 + $0x70] sm:$0xff] %vm3249, %v3199
  %3265 = vst.msk [vmem:[%s9 + $0x78] sm:$0xff] %vm3249, %v3200
  %3266 = vst.msk [vmem:[%s9 + $0x80] sm:$0xff] %vm3249, %v3201
  %3267 = vst.msk [vmem:[%s9 + $0x88] sm:$0xff] %vm3249, %v3202
  %3268 = vst.msk [vmem:[%s9 + $0x90] sm:$0xff] %vm3249, %v3203
  %3269 = vst.msk [vmem:[%s9 + $0x98] sm:$0xff] %vm3249, %v3204
  %3270 = vst.msk [vmem:[%s9 + $0xa0] sm:$0xff] %vm3249, %v3205
  %3271 = vst.msk [vmem:[%s9 + $0xa8] sm:$0xff] %vm3249, %v3206
  %3272 = vst.msk [vmem:[%s9 + $0xb0] sm:$0xff] %vm3249, %v3207
  %3273 = vst.msk [vmem:[%s9 + $0xb8] sm:$0xff] %vm3249, %v3208
  %3274 = vst.msk [vmem:[%s9 + $0xc0] sm:$0xff] %vm3249, %v3209
  %3275 = vst.msk [vmem:[%s9 + $0xc8] sm:$0xff] %vm3249, %v3210
  %3276 = vst.msk [vmem:[%s9 + $0xd0] sm:$0xff] %vm3249, %v3211
  %3277 = vst.msk [vmem:[%s9 + $0xd8] sm:$0xff] %vm3249, %v3212
  %3278 = vst.msk [vmem:[%s9 + $0xe0] sm:$0xff] %vm3249, %v3213
  %3279 = vst.msk [vmem:[%s9 + $0xe8] sm:$0xff] %vm3249, %v3214
  %3280 = vst.msk [vmem:[%s9 + $0xf0] sm:$0xff] %vm3249, %v3215
  %3281 = vst.msk [vmem:[%s9 + $0xf8] sm:$0xff] %vm3249, %v3216
  %3282 = vst.msk [vmem:[%s9 + $0x100] sm:$0xff] %vm3249, %v3217
  %3283 = vst.msk [vmem:[%s9 + $0x108] sm:$0xff] %vm3249, %v3218
  %3284 = vst.msk [vmem:[%s9 + $0x110] sm:$0xff] %vm3249, %v3219
  %3285 = vst.msk [vmem:[%s9 + $0x118] sm:$0xff] %vm3249, %v3220
  %3286 = vst.msk [vmem:[%s9 + $0x120] sm:$0xff] %vm3249, %v3221
  %3287 = vst.msk [vmem:[%s9 + $0x128] sm:$0xff] %vm3249, %v3222
  %3288 = vst.msk [vmem:[%s9 + $0x130] sm:$0xff] %vm3249, %v3223
  %3289 = vst.msk [vmem:[%s9 + $0x138] sm:$0xff] %vm3249, %v3224
  %3290 = vst.msk [vmem:[%s9 + $0x140] sm:$0xff] %vm3249, %v3225
  %3291 = vst.msk [vmem:[%s9 + $0x148] sm:$0xff] %vm3249, %v3226
  %3292 = vst.msk [vmem:[%s9 + $0x150] sm:$0xff] %vm3249, %v3227
  %3293 = vst.msk [vmem:[%s9 + $0x158] sm:$0xff] %vm3249, %v3228
  %3294 = vst.msk [vmem:[%s9 + $0x160] sm:$0xff] %vm3249, %v3229
  %3295 = vst.msk [vmem:[%s9 + $0x168] sm:$0xff] %vm3249, %v3230
  %3296 = vst.msk [vmem:[%s9 + $0x170] sm:$0xff] %vm3249, %v3231
  %3297 = vst.msk [vmem:[%s9 + $0x178] sm:$0xff] %vm3249, %v3232
  %3298 = vst.msk [vmem:[%s9 + $0x180] sm:$0xff] %vm3249, %v3233
  %3299 = vst.msk [vmem:[%s9 + $0x188] sm:$0xff] %vm3249, %v3234
  %3300 = vst.msk [vmem:[%s9 + $0x190] sm:$0xff] %vm3249, %v3235
  %3301 = vst.msk [vmem:[%s9 + $0x198] sm:$0xff] %vm3249, %v3236
  %3302 = vst.msk [vmem:[%s9 + $0x1a0] sm:$0xff] %vm3249, %v3237
  %3303 = vst.msk [vmem:[%s9 + $0x1a8] sm:$0xff] %vm3249, %v3238
  %3304 = vst.msk [vmem:[%s9 + $0x1b0] sm:$0xff] %vm3249, %v3239
  %3305 = vst.msk [vmem:[%s9 + $0x1b8] sm:$0xff] %vm3249, %v3240
  %3306 = vst.msk [vmem:[%s9 + $0x1c0] sm:$0xff] %vm3249, %v3241
  %3307 = vst.msk [vmem:[%s9 + $0x1c8] sm:$0xff] %vm3249, %v3242
  %3308 = vst.msk [vmem:[%s9 + $0x1d0] sm:$0xff] %vm3249, %v3243
  %3309 = vst.msk [vmem:[%s9 + $0x1d8] sm:$0xff] %vm3249, %v3244
  %3310 = vst.msk [vmem:[%s9 + $0x1e0] sm:$0xff] %vm3249, %v3245
  %3311 = vst.msk [vmem:[%s9 + $0x1e8] sm:$0xff] %vm3249, %v3246
  %3312 = vst.msk [vmem:[%s9 + $0x1f0] sm:$0xff] %vm3249, %v3247
  %3313 = vst.msk [vmem:[%s9 + $0x1f8] sm:$0xff] %vm3249, %v3248
  // Predicated region
  $region38: #{cnn_forward.15} parent=0 // pred_check
    _
  $region39: #{cnn_forward.15} parent=0 // pred_check_branch
    %3315 = sbr.rel (0) target = $region41
  $region40: #{cnn_forward.15} parent=0 // pred_region
    _
  $region41: #{cnn_forward.15} parent=0 // pred_fallthru
    _
  // Predicated region
  $region42: #{cnn_forward.15} parent=0 // pred_check
    _
  $region43: #{cnn_forward.15} parent=0 // pred_check_branch
    %3317 = sbr.rel (0) target = $region45
  $region44: #{cnn_forward.15} parent=0 // pred_region
    _
  $region45: #{cnn_forward.15} parent=0 // pred_fallthru
    _

</llo_original>
